<compile_context>
chip_gen: v5e
topology: v5e:2x2
jax: 0.10.0
libtpu: 0.0.40
codegen_flags: <defaults>
</compile_context>

<pallas_src>
import functools

import jax
import jax.numpy as jnp
from jax import lax
from jax.experimental import pallas as pl
from jax.experimental.pallas import tpu as pltpu

BN_EPS = 1e-5

# MXU operand dtype (accumulation stays f32 via preferred_element_type).
MATMUL_DTYPE = jnp.bfloat16


# ---------------------------------------------------------------------------
# Fused Pallas kernel: whole InceptionBlockV3_F7 forward (NHWC in VMEM)
# ---------------------------------------------------------------------------
def _inception_f7_kernel(
    x_ref,
    w_stem_ref, b_stem_ref, g_stem_ref, bt_stem_ref,   # fused 1x1 stem (4 convs)
    w_33_ref, b_33_ref, g_33_ref, bt_33_ref,           # branch1 3x3 conv
    w_tail_ref, b_tail_ref, g_tail_ref, bt_tail_ref,   # fused (1x3|3x1) tails
    o_ref,
    pad_mid_ref, pad_x_ref,                            # VMEM scratch (padded bufs)
    *, H, W, c_red3, c_red1, c_conv3, c_tail,
):
    f32 = jnp.float32
    N = x_ref.shape[0]
    cin = x_ref.shape[-1]
    c_mid = pad_mid_ref.shape[-1]

    def matmul_bias(a, w_ref, b_ref):
        # Single MXU matmul: bf16 operands, f32 accumulation.
        y = lax.dot_general(
            a.astype(MATMUL_DTYPE), w_ref[...],
            dimension_numbers=(((a.ndim - 1,), (0,)), ((), ())),
            preferred_element_type=jnp.float32)
        return y + b_ref[...][0]

    def bn_relu(y, g_ref, bt_ref):
        # Training-mode BatchNorm2d (batch stats, biased var): one-pass stats.
        mean = jnp.mean(y, axis=(0, 1, 2), keepdims=True)
        var = jnp.maximum(
            jnp.mean(y * y, axis=(0, 1, 2), keepdims=True) - mean * mean, 0.0)
        yn = (y - mean) * lax.rsqrt(var + BN_EPS)
        return jnp.maximum(yn * g_ref[...][0] + bt_ref[...][0], 0.0)

    def conv3x3_bn_relu(c, w_ref, b_ref, g_ref, bt_ref):
        # Gather the 9 taps from the zero-padded scratch (im2col) and run ONE
        # K = 9*c MXU matmul instead of 9 separate K=c matmuls.
        patches = jnp.concatenate(
            [pad_mid_ref[:, di:di + H, dj:dj + W, :c]
             for di in range(3) for dj in range(3)], axis=-1)
        return bn_relu(matmul_bias(patches, w_ref, b_ref), g_ref, bt_ref)

    x = x_ref[...]

    # ---- branch3 maxpool: separable (row-max then col-max), -inf borders ----
    pad_x_ref[:, 0:1, :, :] = jnp.full((N, 1, W + 2, cin), -jnp.inf, f32)
    pad_x_ref[:, H + 1:H + 2, :, :] = jnp.full((N, 1, W + 2, cin), -jnp.inf, f32)
    pad_x_ref[:, :, 0:1, :] = jnp.full((N, H + 2, 1, cin), -jnp.inf, f32)
    pad_x_ref[:, :, W + 1:W + 2, :] = jnp.full((N, H + 2, 1, cin), -jnp.inf, f32)
    pad_x_ref[:, 1:H + 1, 1:W + 1, :] = x
    rmax = jnp.maximum(jnp.maximum(pad_x_ref[:, 1:H + 1, 0:W, :], x),
                       pad_x_ref[:, 1:H + 1, 2:W + 2, :])
    pad_x_ref[:, 1:H + 1, 1:W + 1, :] = rmax
    pooled = jnp.maximum(jnp.maximum(pad_x_ref[:, 0:H, 1:W + 1, :], rmax),
                         pad_x_ref[:, 2:H + 2, 1:W + 1, :])

    # ---- all four 1x1 convs fused: [x | pooled] @ blockdiag -> [x1r|x2|x3|x4]
    stem = bn_relu(
        matmul_bias(jnp.concatenate([x, pooled], axis=-1), w_stem_ref, b_stem_ref),
        g_stem_ref, bt_stem_ref)
    x1r = stem[..., :c_red3]
    x2 = stem[..., c_red3:c_red3 + c_red1]
    # branch3 + branch4 outputs: one contiguous channel-slice store.
    o_ref[:, :, :, c_tail:] = stem[..., c_red3 + c_red1:].astype(o_ref.dtype)

    # ---- zero only the 1-wide border frame of pad_mid (interiors overwritten)
    pad_mid_ref[:, 0:1, :, :] = jnp.zeros((N, 1, W + 2, c_mid), f32)
    pad_mid_ref[:, H + 1:H + 2, :, :] = jnp.zeros((N, 1, W + 2, c_mid), f32)
    pad_mid_ref[:, :, 0:1, :] = jnp.zeros((N, H + 2, 1, c_mid), f32)
    pad_mid_ref[:, :, W + 1:W + 2, :] = jnp.zeros((N, H + 2, 1, c_mid), f32)

    # ---- branch1 3x3 conv (single K = 9*c_red3 matmul via im2col) -----------
    pad_mid_ref[:, 1:H + 1, 1:W + 1, :c_red3] = x1r
    x1 = conv3x3_bn_relu(c_red3, w_33_ref, b_33_ref, g_33_ref, bt_33_ref)

    # ---- both (1x3|3x1) tails fused: block-diag on [x1 | x2], one matmul ----
    pad_mid_ref[:, 1:H + 1, 1:W + 1, :c_conv3] = x1
    pad_mid_ref[:, 1:H + 1, 1:W + 1, c_conv3:c_conv3 + c_red1] = x2
    y_tail = conv3x3_bn_relu(c_conv3 + c_red1, w_tail_ref, b_tail_ref,
                             g_tail_ref, bt_tail_ref)
    o_ref[:, :, :, :c_tail] = y_tail.astype(o_ref.dtype)


# ---------------------------------------------------------------------------
# One-time weight fusion (hoisted out of the forward path)
# ---------------------------------------------------------------------------
def _bn_vec(v):
    return jnp.asarray(v, jnp.float32).reshape(1, -1)


def prepare_inception_f7_params(params):
    """Fuse/flatten all ConvolutionBlock weights once. Run per model, not per call."""
    w1r, b1r, g1r, t1r = params['b1_red']
    w2, b2, g2, t2 = params['b2']
    w3, b3, g3, t3 = params['b3']
    w4, b4, g4, t4 = params['b4']
    cin = w1r.shape[2]
    c_red3, c_red1 = w1r.shape[3], w2.shape[3]
    c_pool, c_11 = w3.shape[3], w4.shape[3]

    # Fused 1x1 stem on [x | maxpool(x)] -> [x1r | x2 | x3 | x4] (block-diag).
    c_stem = c_red3 + c_red1 + c_pool + c_11
    w_stem = jnp.zeros((2 * cin, c_stem), jnp.float32)
    w_stem = w_stem.at[:cin, :c_red3].set(w1r.reshape(cin, c_red3))
    w_stem = w_stem.at[:cin, c_red3:c_red3 + c_red1].set(w2.reshape(cin, c_red1))
    w_stem = w_stem.at[cin:, c_red3 + c_red1:c_red3 + c_red1 + c_pool].set(
        w3.reshape(cin, c_pool))
    w_stem = w_stem.at[:cin, c_red3 + c_red1 + c_pool:].set(w4.reshape(cin, c_11))
    b_stem = jnp.concatenate([b1r, b2, b3, b4])
    g_stem = jnp.concatenate([g1r, g2, g3, g4])
    t_stem = jnp.concatenate([t1r, t2, t3, t4])

    # branch1 3x3 conv: (3,3,Cin,Cout) -> (9*Cin, Cout), tap order = in-kernel gather.
    w33, b33, g33, t33 = params['b1_3x3']
    c_conv3 = w33.shape[3]

    # Fused (1x3 | 3x1) tails of branch1 AND branch2 as one block-diagonal 3x3-
    # footprint weight over the stacked input channels [x1 | x2] (exact: the
    # 1x3/3x1 kernels are zero-embedded, the off-diagonal input blocks are 0).
    w11, b11, g11, t11 = params['b1_1']   # (1,3,c_conv3,o11)
    w12, b12, g12, t12 = params['b1_2']   # (3,1,c_conv3,o12)
    w21, b21, g21, t21 = params['b2_1']   # (1,3,c_red1,o21)
    w22, b22, g22, t22 = params['b2_2']   # (3,1,c_red1,o22)
    o11, o12, o21, o22 = w11.shape[3], w12.shape[3], w21.shape[3], w22.shape[3]
    c_tail = o11 + o12 + o21 + o22
    c_in_tail = c_conv3 + c_red1
    wt = jnp.zeros((3, 3, c_in_tail, c_tail), jnp.float32)
    wt = wt.at[1, :, :c_conv3, :o11].set(w11[0])
    wt = wt.at[:, 1, :c_conv3, o11:o11 + o12].set(w12[:, 0])
    wt = wt.at[1, :, c_conv3:, o11 + o12:o11 + o12 + o21].set(w21[0])
    wt = wt.at[:, 1, c_conv3:, o11 + o12 + o21:].set(w22[:, 0])
    b_tail = jnp.concatenate([b11, b12, b21, b22])
    g_tail = jnp.concatenate([g11, g12, g21, g22])
    t_tail = jnp.concatenate([t11, t12, t21, t22])

    return dict(
        w_stem=w_stem.astype(MATMUL_DTYPE),
        b_stem=_bn_vec(b_stem), g_stem=_bn_vec(g_stem), bt_stem=_bn_vec(t_stem),
        w_33=w33.reshape(9 * w33.shape[2], c_conv3).astype(MATMUL_DTYPE),
        b_33=_bn_vec(b33), g_33=_bn_vec(g33), bt_33=_bn_vec(t33),
        w_tail=wt.reshape(9 * c_in_tail, c_tail).astype(MATMUL_DTYPE),
        b_tail=_bn_vec(b_tail), g_tail=_bn_vec(g_tail), bt_tail=_bn_vec(t_tail),
    )


# ---------------------------------------------------------------------------
# Forward wrapper: pallas_call only (all weight fusion already done)
# ---------------------------------------------------------------------------
def inception_f7_forward(prepared, x_nchw):
    # TODO(synk): keep activations NHWC across layers in a real network; the
    # NCHW<->NHWC transposes exist only to match the PyTorch interface.
    x = jnp.transpose(x_nchw, (0, 2, 3, 1)).astype(jnp.float32)   # NCHW -> NHWC
    N, H, W, cin = x.shape

    # All channel splits are static (derived from weight shapes, safe under jit).
    c_red3 = prepared['w_33'].shape[0] // 9
    c_conv3 = prepared['w_33'].shape[1]
    c_red1 = prepared['w_tail'].shape[0] // 9 - c_conv3
    c_tail = prepared['w_tail'].shape[1]
    c_stem = prepared['w_stem'].shape[1]
    c_out = c_tail + (c_stem - c_red3 - c_red1)          # + c_pool + c_11
    c_mid = max(c_red3, c_conv3 + c_red1)

    operands = (
        x,
        prepared['w_stem'], prepared['b_stem'], prepared['g_stem'], prepared['bt_stem'],
        prepared['w_33'], prepared['b_33'], prepared['g_33'], prepared['bt_33'],
        prepared['w_tail'], prepared['b_tail'], prepared['g_tail'], prepared['bt_tail'],
    )

    def full_spec(a):
        if a.ndim == 4:
            return pl.BlockSpec(a.shape, lambda i: (0, 0, 0, 0))
        return pl.BlockSpec(a.shape, lambda i: (0, 0))

    kernel = functools.partial(
        _inception_f7_kernel, H=H, W=W, c_red3=c_red3, c_red1=c_red1,
        c_conv3=c_conv3, c_tail=c_tail)

    out_nhwc = pl.pallas_call(
        kernel,
        out_shape=jax.ShapeDtypeStruct((N, H, W, c_out), jnp.float32),
        grid=(1,),
        in_specs=[full_spec(a) for a in operands],
        out_specs=pl.BlockSpec((N, H, W, c_out), lambda i: (0, 0, 0, 0)),
        scratch_shapes=[
            pltpu.VMEM((N, H + 2, W + 2, c_mid), jnp.float32),  # zero-padded buf
            pltpu.VMEM((N, H + 2, W + 2, cin), jnp.float32),    # -inf-padded buf
        ],
        compiler_params=pltpu.CompilerParams(
            dimension_semantics=("arbitrary",)),
    )(*operands)

    return jnp.transpose(out_nhwc, (0, 3, 1, 2))                 # NHWC -> NCHW


# ---------------------------------------------------------------------------
# Parameter init (deterministic, synthetic)
# ---------------------------------------------------------------------------
def init_conv_block(key, cin, cout, kh, kw):
    k_w, k_b, k_g, k_beta = jax.random.split(key, 4)
    fan_in = cin * kh * kw
    w = jax.random.normal(k_w, (kh, kw, cin, cout), jnp.float32) / jnp.sqrt(float(fan_in))
    b = 0.05 * jax.random.normal(k_b, (cout,), jnp.float32)
    gamma = 1.0 + 0.1 * jax.random.normal(k_g, (cout,), jnp.float32)
    beta = 0.1 * jax.random.normal(k_beta, (cout,), jnp.float32)
    return (w, b, gamma, beta)


def init_inception_f7_params(key, in_channels, red_split_3x3, conv_split_3x3,
                             out_split_3x3_1x3, out_split_3x3_3x1,
                             red_split_1x1, out_split_1x1_1x3, out_split_1x1_3x1,
                             red_pool, red_1x1):
    keys = jax.random.split(key, 9)
    return dict(
        b1_red=init_conv_block(keys[0], in_channels, red_split_3x3, 1, 1),
        b1_3x3=init_conv_block(keys[1], red_split_3x3, conv_split_3x3, 3, 3),
        b1_1=init_conv_block(keys[2], conv_split_3x3, out_split_3x3_1x3, 1, 3),
        b1_2=init_conv_block(keys[3], conv_split_3x3, out_split_3x3_3x1, 3, 1),
        b2=init_conv_block(keys[4], in_channels, red_split_1x1, 1, 1),
        b2_1=init_conv_block(keys[5], red_split_1x1, out_split_1x1_1x3, 1, 3),
        b2_2=init_conv_block(keys[6], red_split_1x1, out_split_1x1_3x1, 3, 1),
        b3=init_conv_block(keys[7], in_channels, red_pool, 1, 1),
        b4=init_conv_block(keys[8], in_channels, red_1x1, 1, 1),
    )


# ---------------------------------------------------------------------------
# Pure-JAX reference (per-block, un-fused; same bf16-operand/f32-acc precision)
# ---------------------------------------------------------------------------
def _ref_conv_bn_relu(x, params, ph, pw):
    w, b, gamma, beta = params
    y = lax.conv_general_dilated(
        x.astype(MATMUL_DTYPE), w.astype(MATMUL_DTYPE),
        window_strides=(1, 1), padding=((ph, ph), (pw, pw)),
        dimension_numbers=('NHWC', 'HWIO', 'NHWC'),
        preferred_element_type=jnp.float32)
    y = y + b
    mean = jnp.mean(y, axis=(0, 1, 2), keepdims=True)
    var = jnp.mean((y - mean) ** 2, axis=(0, 1, 2), keepdims=True)
    y = (y - mean) * lax.rsqrt(var + BN_EPS) * gamma + beta
    return jnp.maximum(y, 0.0)


def _ref_maxpool(x):
    return lax.reduce_window(x, -jnp.inf, lax.max, (1, 3, 3, 1), (1, 1, 1, 1),
                             ((0, 0), (1, 1), (1, 1), (0, 0)))


def _ref_forward(params, x_nchw):
    x = jnp.transpose(x_nchw, (0, 2, 3, 1)).astype(jnp.float32)
    x1 = _ref_conv_bn_relu(x, params['b1_red'], 0, 0)
    x1 = _ref_conv_bn_relu(x1, params['b1_3x3'], 1, 1)
    x1_1 = _ref_conv_bn_relu(x1, params['b1_1'], 0, 1)
    x1_2 = _ref_conv_bn_relu(x1, params['b1_2'], 1, 0)
    x2 = _ref_conv_bn_relu(x, params['b2'], 0, 0)
    x2_1 = _ref_conv_bn_relu(x2, params['b2_1'], 0, 1)
    x2_2 = _ref_conv_bn_relu(x2, params['b2_2'], 1, 0)
    x3 = _ref_conv_bn_relu(_ref_maxpool(x), params['b3'], 0, 0)
    x4 = _ref_conv_bn_relu(x, params['b4'], 0, 0)
    out = jnp.concatenate([x1_1, x1_2, x2_1, x2_2, x3, x4], axis=-1)
    return jnp.transpose(out, (0, 3, 1, 2))


# ---------------------------------------------------------------------------
if __name__ == "__main__":
    key = jax.random.PRNGKey(0)
    k_params, k_x = jax.random.split(key)

    in_channels = 4
    cfg = dict(in_channels=in_channels, red_split_3x3=8, conv_split_3x3=8,
               out_split_3x3_1x3=8, out_split_3x3_3x1=8,
               red_split_1x1=8, out_split_1x1_1x3=8, out_split_1x1_3x1=8,
               red_pool=8, red_1x1=8)

    params = init_inception_f7_params(k_params, **cfg)
    prepared = prepare_inception_f7_params(params)      # one-time weight fusion
    x = jax.random.normal(k_x, (2, in_channels, 16, 16), jnp.float32)  # NCHW

    fwd = jax.jit(inception_f7_forward)
    out = jax.block_until_ready(fwd(prepared, x))
    ref = jax.block_until_ready(_ref_forward(params, x))

    assert out.shape == (2, 48, 16, 16), out.shape
    assert bool(jnp.all(jnp.isfinite(out)))
    max_err = float(jnp.max(jnp.abs(out - ref)))
    # bf16 MXU operands (f32 accumulation) in both kernel and reference;
    # remaining diffs are summation-order / re-rounding noise through the chain.
    assert jnp.allclose(out, ref, atol=2e-2, rtol=2e-2), max_err

    print("KERNEL_OK")
</pallas_src>

<mosaic_0001>
module attributes {stable_mosaic.version = 11 : i64} {
  func.func @_inception_f7_kernel(%arg0: i32, %arg1: memref<2x16x16x4xf32, #tpu.memory_space<vmem>>, %arg2: memref<8x32xbf16, #tpu.memory_space<vmem>>, %arg3: memref<1x32xf32, #tpu.memory_space<vmem>>, %arg4: memref<1x32xf32, #tpu.memory_space<vmem>>, %arg5: memref<1x32xf32, #tpu.memory_space<vmem>>, %arg6: memref<72x8xbf16, #tpu.memory_space<vmem>>, %arg7: memref<1x8xf32, #tpu.memory_space<vmem>>, %arg8: memref<1x8xf32, #tpu.memory_space<vmem>>, %arg9: memref<1x8xf32, #tpu.memory_space<vmem>>, %arg10: memref<144x32xbf16, #tpu.memory_space<vmem>>, %arg11: memref<1x32xf32, #tpu.memory_space<vmem>>, %arg12: memref<1x32xf32, #tpu.memory_space<vmem>>, %arg13: memref<1x32xf32, #tpu.memory_space<vmem>>, %arg14: memref<2x16x16x48xf32, #tpu.memory_space<vmem>>, %arg15: memref<2x18x18x16xf32, #tpu.memory_space<vmem>>, %arg16: memref<2x18x18x4xf32, #tpu.memory_space<vmem>>) attributes {dimension_semantics = [#tpu.dimension_semantics<arbitrary>], iteration_bounds = array<i64: 1>, scalar_prefetch = 0 : i64, scratch_operands = 2 : i64, tpu.core_type = #tpu.core_type<tc>, window_params = [{pipeline_mode = #tpu.pipeline_mode<synchronous>, transform_indices = @transform_0, window_bounds = array<i64: 2, 16, 16, 4>}, {pipeline_mode = #tpu.pipeline_mode<synchronous>, transform_indices = @transform_1, window_bounds = array<i64: 8, 32>}, {pipeline_mode = #tpu.pipeline_mode<synchronous>, transform_indices = @transform_2, window_bounds = array<i64: 1, 32>}, {pipeline_mode = #tpu.pipeline_mode<synchronous>, transform_indices = @transform_3, window_bounds = array<i64: 1, 32>}, {pipeline_mode = #tpu.pipeline_mode<synchronous>, transform_indices = @transform_4, window_bounds = array<i64: 1, 32>}, {pipeline_mode = #tpu.pipeline_mode<synchronous>, transform_indices = @transform_5, window_bounds = array<i64: 72, 8>}, {pipeline_mode = #tpu.pipeline_mode<synchronous>, transform_indices = @transform_6, window_bounds = array<i64: 1, 8>}, {pipeline_mode = #tpu.pipeline_mode<synchronous>, transform_indices = @transform_7, window_bounds = array<i64: 1, 8>}, {pipeline_mode = #tpu.pipeline_mode<synchronous>, transform_indices = @transform_8, window_bounds = array<i64: 1, 8>}, {pipeline_mode = #tpu.pipeline_mode<synchronous>, transform_indices = @transform_9, window_bounds = array<i64: 144, 32>}, {pipeline_mode = #tpu.pipeline_mode<synchronous>, transform_indices = @transform_10, window_bounds = array<i64: 1, 32>}, {pipeline_mode = #tpu.pipeline_mode<synchronous>, transform_indices = @transform_11, window_bounds = array<i64: 1, 32>}, {pipeline_mode = #tpu.pipeline_mode<synchronous>, transform_indices = @transform_12, window_bounds = array<i64: 1, 32>}, {pipeline_mode = #tpu.pipeline_mode<synchronous>, transform_indices = @transform_13, window_bounds = array<i64: 2, 16, 16, 48>}]} {
    %c0 = arith.constant 0 : index
    %c0_0 = arith.constant 0 : index
    %c0_1 = arith.constant 0 : index
    %c0_2 = arith.constant 0 : index
    %0 = vector.load %arg1[%c0, %c0_0, %c0_1, %c0_2] : memref<2x16x16x4xf32, #tpu.memory_space<vmem>>, vector<2x16x16x4xf32>
    %cst = arith.constant 0xFF800000 : f32
    %1 = vector.broadcast %cst : f32 to vector<2x1x18x4xf32>
    %c0_3 = arith.constant 0 : index
    %c0_4 = arith.constant 0 : index
    %c0_5 = arith.constant 0 : index
    %c0_6 = arith.constant 0 : index
    %2 = vector.load %arg16[%c0_3, %c0_4, %c0_5, %c0_6] : memref<2x18x18x4xf32, #tpu.memory_space<vmem>>, vector<2x1x18x4xf32>
    tpu.vector_store %arg16[%c0_3, %c0_4, %c0_5, %c0_6], %1 {strides = array<i32>} : memref<2x18x18x4xf32, #tpu.memory_space<vmem>>, vector<2x1x18x4xf32>,
    %cst_7 = arith.constant 0xFF800000 : f32
    %3 = vector.broadcast %cst_7 : f32 to vector<2x1x18x4xf32>
    %c0_8 = arith.constant 0 : index
    %c17 = arith.constant 17 : index
    %c0_9 = arith.constant 0 : index
    %c0_10 = arith.constant 0 : index
    %4 = vector.load %arg16[%c0_8, %c17, %c0_9, %c0_10] : memref<2x18x18x4xf32, #tpu.memory_space<vmem>>, vector<2x1x18x4xf32>
    tpu.vector_store %arg16[%c0_8, %c17, %c0_9, %c0_10], %3 {strides = array<i32>} : memref<2x18x18x4xf32, #tpu.memory_space<vmem>>, vector<2x1x18x4xf32>,
    %cst_11 = arith.constant 0xFF800000 : f32
    %5 = vector.broadcast %cst_11 : f32 to vector<2x18x1x4xf32>
    %c0_12 = arith.constant 0 : index
    %c0_13 = arith.constant 0 : index
    %c0_14 = arith.constant 0 : index
    %c0_15 = arith.constant 0 : index
    %6 = vector.load %arg16[%c0_12, %c0_13, %c0_14, %c0_15] : memref<2x18x18x4xf32, #tpu.memory_space<vmem>>, vector<2x18x1x4xf32>
    tpu.vector_store %arg16[%c0_12, %c0_13, %c0_14, %c0_15], %5 {strides = array<i32>} : memref<2x18x18x4xf32, #tpu.memory_space<vmem>>, vector<2x18x1x4xf32>,
    %cst_16 = arith.constant 0xFF800000 : f32
    %7 = vector.broadcast %cst_16 : f32 to vector<2x18x1x4xf32>
    %c0_17 = arith.constant 0 : index
    %c0_18 = arith.constant 0 : index
    %c17_19 = arith.constant 17 : index
    %c0_20 = arith.constant 0 : index
    %8 = vector.load %arg16[%c0_17, %c0_18, %c17_19, %c0_20] : memref<2x18x18x4xf32, #tpu.memory_space<vmem>>, vector<2x18x1x4xf32>
    tpu.vector_store %arg16[%c0_17, %c0_18, %c17_19, %c0_20], %7 {strides = array<i32>} : memref<2x18x18x4xf32, #tpu.memory_space<vmem>>, vector<2x18x1x4xf32>,
    %c0_21 = arith.constant 0 : index
    %c1 = arith.constant 1 : index
    %c1_22 = arith.constant 1 : index
    %c0_23 = arith.constant 0 : index
    %9 = vector.load %arg16[%c0_21, %c1, %c1_22, %c0_23] : memref<2x18x18x4xf32, #tpu.memory_space<vmem>>, vector<2x16x16x4xf32>
    tpu.vector_store %arg16[%c0_21, %c1, %c1_22, %c0_23], %0 {strides = array<i32>} : memref<2x18x18x4xf32, #tpu.memory_space<vmem>>, vector<2x16x16x4xf32>,
    %c0_24 = arith.constant 0 : index
    %c1_25 = arith.constant 1 : index
    %c0_26 = arith.constant 0 : index
    %c0_27 = arith.constant 0 : index
    %10 = vector.load %arg16[%c0_24, %c1_25, %c0_26, %c0_27] : memref<2x18x18x4xf32, #tpu.memory_space<vmem>>, vector<2x16x16x4xf32>
    %11 = arith.maximumf %10, %0 : vector<2x16x16x4xf32>
    %c0_28 = arith.constant 0 : index
    %c1_29 = arith.constant 1 : index
    %c2 = arith.constant 2 : index
    %c0_30 = arith.constant 0 : index
    %12 = vector.load %arg16[%c0_28, %c1_29, %c2, %c0_30] : memref<2x18x18x4xf32, #tpu.memory_space<vmem>>, vector<2x16x16x4xf32>
    %13 = arith.maximumf %11, %12 : vector<2x16x16x4xf32>
    %c0_31 = arith.constant 0 : index
    %c1_32 = arith.constant 1 : index
    %c1_33 = arith.constant 1 : index
    %c0_34 = arith.constant 0 : index
    %14 = vector.load %arg16[%c0_31, %c1_32, %c1_33, %c0_34] : memref<2x18x18x4xf32, #tpu.memory_space<vmem>>, vector<2x16x16x4xf32>
    tpu.vector_store %arg16[%c0_31, %c1_32, %c1_33, %c0_34], %13 {strides = array<i32>} : memref<2x18x18x4xf32, #tpu.memory_space<vmem>>, vector<2x16x16x4xf32>,
    %c0_35 = arith.constant 0 : index
    %c0_36 = arith.constant 0 : index
    %c1_37 = arith.constant 1 : index
    %c0_38 = arith.constant 0 : index
    %15 = vector.load %arg16[%c0_35, %c0_36, %c1_37, %c0_38] : memref<2x18x18x4xf32, #tpu.memory_space<vmem>>, vector<2x16x16x4xf32>
    %16 = arith.maximumf %15, %13 : vector<2x16x16x4xf32>
    %c0_39 = arith.constant 0 : index
    %c2_40 = arith.constant 2 : index
    %c1_41 = arith.constant 1 : index
    %c0_42 = arith.constant 0 : index
    %17 = vector.load %arg16[%c0_39, %c2_40, %c1_41, %c0_42] : memref<2x18x18x4xf32, #tpu.memory_space<vmem>>, vector<2x16x16x4xf32>
    %18 = arith.maximumf %16, %17 : vector<2x16x16x4xf32>
    %19 = tpu.concatenate %0, %18 in 3 : vector<2x16x16x4xf32>, vector<2x16x16x4xf32> -> vector<2x16x16x8xf32>
    %20 = arith.truncf %19 : vector<2x16x16x8xf32> to vector<2x16x16x8xbf16>
    %c0_43 = arith.constant 0 : index
    %c0_44 = arith.constant 0 : index
    %21 = vector.load %arg2[%c0_43, %c0_44] : memref<8x32xbf16, #tpu.memory_space<vmem>>, vector<8x32xbf16>
    %cst_45 = arith.constant dense<0.000000e+00> : vector<2x16x16x32xf32>
    %22 = tpu.matmul %20, %21, %cst_45 {dimension_numbers = #tpu.dot_dimension_numbers<[3], [0], [0, 1, 2], [1], [0, 0, 0, 1, 0, 2, 1, 1], [], []>} : vector<2x16x16x8xbf16>, vector<8x32xbf16>, vector<2x16x16x32xf32> -> vector<2x16x16x32xf32>
    %c0_46 = arith.constant 0 : index
    %c0_47 = arith.constant 0 : index
    %23 = vector.load %arg3[%c0_46, %c0_47] : memref<1x32xf32, #tpu.memory_space<vmem>>, vector<1x32xf32>
    %24 = vector.shape_cast %23 : vector<1x32xf32> to vector<32xf32>
    %25 = vector.shape_cast %24 : vector<32xf32> to vector<1x1x1x32xf32>
    %26 = vector.broadcast %25 : vector<1x1x1x32xf32> to vector<2x16x16x32xf32>
    %27 = arith.addf %22, %26 : vector<2x16x16x32xf32>
    %cst_48 = arith.constant dense<0.000000e+00> : vector<32xf32>
    %28 = vector.multi_reduction <add>, %27, %cst_48 [0, 1, 2] : vector<2x16x16x32xf32> to vector<32xf32>
    %29 = vector.shape_cast %28 : vector<32xf32> to vector<1x1x1x32xf32>
    %cst_49 = arith.constant 5.120000e+02 : f32
    %30 = vector.broadcast %cst_49 : f32 to vector<1x1x1x32xf32>
    %31 = arith.divf %29, %30 : vector<1x1x1x32xf32>
    %32 = arith.mulf %27, %27 : vector<2x16x16x32xf32>
    %cst_50 = arith.constant dense<0.000000e+00> : vector<32xf32>
    %33 = vector.multi_reduction <add>, %32, %cst_50 [0, 1, 2] : vector<2x16x16x32xf32> to vector<32xf32>
    %34 = vector.shape_cast %33 : vector<32xf32> to vector<1x1x1x32xf32>
    %cst_51 = arith.constant 5.120000e+02 : f32
    %35 = vector.broadcast %cst_51 : f32 to vector<1x1x1x32xf32>
    %36 = arith.divf %34, %35 : vector<1x1x1x32xf32>
    %37 = arith.mulf %31, %31 : vector<1x1x1x32xf32>
    %38 = arith.subf %36, %37 : vector<1x1x1x32xf32>
    %cst_52 = arith.constant 0.000000e+00 : f32
    %39 = vector.broadcast %cst_52 : f32 to vector<1x1x1x32xf32>
    %40 = arith.maximumf %38, %39 : vector<1x1x1x32xf32>
    %41 = vector.broadcast %31 : vector<1x1x1x32xf32> to vector<2x16x16x32xf32>
    %42 = arith.subf %27, %41 : vector<2x16x16x32xf32>
    %cst_53 = arith.constant 9.99999974E-6 : f32
    %43 = vector.broadcast %cst_53 : f32 to vector<1x1x1x32xf32>
    %44 = arith.addf %40, %43 : vector<1x1x1x32xf32>
    %45 = math.rsqrt %44 : vector<1x1x1x32xf32>
    %46 = vector.broadcast %45 : vector<1x1x1x32xf32> to vector<2x16x16x32xf32>
    %47 = arith.mulf %42, %46 : vector<2x16x16x32xf32>
    %c0_54 = arith.constant 0 : index
    %c0_55 = arith.constant 0 : index
    %48 = vector.load %arg4[%c0_54, %c0_55] : memref<1x32xf32, #tpu.memory_space<vmem>>, vector<1x32xf32>
    %49 = vector.shape_cast %48 : vector<1x32xf32> to vector<32xf32>
    %50 = vector.shape_cast %49 : vector<32xf32> to vector<1x1x1x32xf32>
    %51 = vector.broadcast %50 : vector<1x1x1x32xf32> to vector<2x16x16x32xf32>
    %52 = arith.mulf %47, %51 : vector<2x16x16x32xf32>
    %c0_56 = arith.constant 0 : index
    %c0_57 = arith.constant 0 : index
    %53 = vector.load %arg5[%c0_56, %c0_57] : memref<1x32xf32, #tpu.memory_space<vmem>>, vector<1x32xf32>
    %54 = vector.shape_cast %53 : vector<1x32xf32> to vector<32xf32>
    %55 = vector.shape_cast %54 : vector<32xf32> to vector<1x1x1x32xf32>
    %56 = vector.broadcast %55 : vector<1x1x1x32xf32> to vector<2x16x16x32xf32>
    %57 = arith.addf %52, %56 : vector<2x16x16x32xf32>
    %cst_58 = arith.constant 0.000000e+00 : f32
    %58 = vector.broadcast %cst_58 : f32 to vector<2x16x16x32xf32>
    %59 = arith.maximumf %57, %58 : vector<2x16x16x32xf32>
    %60 = vector.extract_strided_slice %59 {offsets = [0, 0, 0, 0], sizes = [2, 16, 16, 8], strides = [1, 1, 1, 1]} : vector<2x16x16x32xf32> to vector<2x16x16x8xf32>
    %61 = vector.extract_strided_slice %59 {offsets = [0, 0, 0, 8], sizes = [2, 16, 16, 8], strides = [1, 1, 1, 1]} : vector<2x16x16x32xf32> to vector<2x16x16x8xf32>
    %62 = vector.extract_strided_slice %59 {offsets = [0, 0, 0, 16], sizes = [2, 16, 16, 16], strides = [1, 1, 1, 1]} : vector<2x16x16x32xf32> to vector<2x16x16x16xf32>
    %c0_59 = arith.constant 0 : index
    %c0_60 = arith.constant 0 : index
    %c0_61 = arith.constant 0 : index
    %c32 = arith.constant 32 : index
    %63 = vector.load %arg14[%c0_59, %c0_60, %c0_61, %c32] : memref<2x16x16x48xf32, #tpu.memory_space<vmem>>, vector<2x16x16x16xf32>
    tpu.vector_store %arg14[%c0_59, %c0_60, %c0_61, %c32], %62 {strides = array<i32>} : memref<2x16x16x48xf32, #tpu.memory_space<vmem>>, vector<2x16x16x16xf32>,
    %cst_62 = arith.constant 0.000000e+00 : f32
    %64 = vector.broadcast %cst_62 : f32 to vector<2x1x18x16xf32>
    %c0_63 = arith.constant 0 : index
    %c0_64 = arith.constant 0 : index
    %c0_65 = arith.constant 0 : index
    %c0_66 = arith.constant 0 : index
    %65 = vector.load %arg15[%c0_63, %c0_64, %c0_65, %c0_66] : memref<2x18x18x16xf32, #tpu.memory_space<vmem>>, vector<2x1x18x16xf32>
    tpu.vector_store %arg15[%c0_63, %c0_64, %c0_65, %c0_66], %64 {strides = array<i32>} : memref<2x18x18x16xf32, #tpu.memory_space<vmem>>, vector<2x1x18x16xf32>,
    %cst_67 = arith.constant 0.000000e+00 : f32
    %66 = vector.broadcast %cst_67 : f32 to vector<2x1x18x16xf32>
    %c0_68 = arith.constant 0 : index
    %c17_69 = arith.constant 17 : index
    %c0_70 = arith.constant 0 : index
    %c0_71 = arith.constant 0 : index
    %67 = vector.load %arg15[%c0_68, %c17_69, %c0_70, %c0_71] : memref<2x18x18x16xf32, #tpu.memory_space<vmem>>, vector<2x1x18x16xf32>
    tpu.vector_store %arg15[%c0_68, %c17_69, %c0_70, %c0_71], %66 {strides = array<i32>} : memref<2x18x18x16xf32, #tpu.memory_space<vmem>>, vector<2x1x18x16xf32>,
    %cst_72 = arith.constant 0.000000e+00 : f32
    %68 = vector.broadcast %cst_72 : f32 to vector<2x18x1x16xf32>
    %c0_73 = arith.constant 0 : index
    %c0_74 = arith.constant 0 : index
    %c0_75 = arith.constant 0 : index
    %c0_76 = arith.constant 0 : index
    %69 = vector.load %arg15[%c0_73, %c0_74, %c0_75, %c0_76] : memref<2x18x18x16xf32, #tpu.memory_space<vmem>>, vector<2x18x1x16xf32>
    tpu.vector_store %arg15[%c0_73, %c0_74, %c0_75, %c0_76], %68 {strides = array<i32>} : memref<2x18x18x16xf32, #tpu.memory_space<vmem>>, vector<2x18x1x16xf32>,
    %cst_77 = arith.constant 0.000000e+00 : f32
    %70 = vector.broadcast %cst_77 : f32 to vector<2x18x1x16xf32>
    %c0_78 = arith.constant 0 : index
    %c0_79 = arith.constant 0 : index
    %c17_80 = arith.constant 17 : index
    %c0_81 = arith.constant 0 : index
    %71 = vector.load %arg15[%c0_78, %c0_79, %c17_80, %c0_81] : memref<2x18x18x16xf32, #tpu.memory_space<vmem>>, vector<2x18x1x16xf32>
    tpu.vector_store %arg15[%c0_78, %c0_79, %c17_80, %c0_81], %70 {strides = array<i32>} : memref<2x18x18x16xf32, #tpu.memory_space<vmem>>, vector<2x18x1x16xf32>,
    %c0_82 = arith.constant 0 : index
    %c1_83 = arith.constant 1 : index
    %c1_84 = arith.constant 1 : index
    %c0_85 = arith.constant 0 : index
    %72 = vector.load %arg15[%c0_82, %c1_83, %c1_84, %c0_85] : memref<2x18x18x16xf32, #tpu.memory_space<vmem>>, vector<2x16x16x8xf32>
    tpu.vector_store %arg15[%c0_82, %c1_83, %c1_84, %c0_85], %60 {strides = array<i32>} : memref<2x18x18x16xf32, #tpu.memory_space<vmem>>, vector<2x16x16x8xf32>,
    %c0_86 = arith.constant 0 : index
    %c0_87 = arith.constant 0 : index
    %c0_88 = arith.constant 0 : index
    %c0_89 = arith.constant 0 : index
    %73 = vector.load %arg15[%c0_86, %c0_87, %c0_88, %c0_89] : memref<2x18x18x16xf32, #tpu.memory_space<vmem>>, vector<2x16x16x8xf32>
    %c0_90 = arith.constant 0 : index
    %c0_91 = arith.constant 0 : index
    %c1_92 = arith.constant 1 : index
    %c0_93 = arith.constant 0 : index
    %74 = vector.load %arg15[%c0_90, %c0_91, %c1_92, %c0_93] : memref<2x18x18x16xf32, #tpu.memory_space<vmem>>, vector<2x16x16x8xf32>
    %c0_94 = arith.constant 0 : index
    %c0_95 = arith.constant 0 : index
    %c2_96 = arith.constant 2 : index
    %c0_97 = arith.constant 0 : index
    %75 = vector.load %arg15[%c0_94, %c0_95, %c2_96, %c0_97] : memref<2x18x18x16xf32, #tpu.memory_space<vmem>>, vector<2x16x16x8xf32>
    %c0_98 = arith.constant 0 : index
    %c1_99 = arith.constant 1 : index
    %c0_100 = arith.constant 0 : index
    %c0_101 = arith.constant 0 : index
    %76 = vector.load %arg15[%c0_98, %c1_99, %c0_100, %c0_101] : memref<2x18x18x16xf32, #tpu.memory_space<vmem>>, vector<2x16x16x8xf32>
    %c0_102 = arith.constant 0 : index
    %c1_103 = arith.constant 1 : index
    %c1_104 = arith.constant 1 : index
    %c0_105 = arith.constant 0 : index
    %77 = vector.load %arg15[%c0_102, %c1_103, %c1_104, %c0_105] : memref<2x18x18x16xf32, #tpu.memory_space<vmem>>, vector<2x16x16x8xf32>
    %c0_106 = arith.constant 0 : index
    %c1_107 = arith.constant 1 : index
    %c2_108 = arith.constant 2 : index
    %c0_109 = arith.constant 0 : index
    %78 = vector.load %arg15[%c0_106, %c1_107, %c2_108, %c0_109] : memref<2x18x18x16xf32, #tpu.memory_space<vmem>>, vector<2x16x16x8xf32>
    %c0_110 = arith.constant 0 : index
    %c2_111 = arith.constant 2 : index
    %c0_112 = arith.constant 0 : index
    %c0_113 = arith.constant 0 : index
    %79 = vector.load %arg15[%c0_110, %c2_111, %c0_112, %c0_113] : memref<2x18x18x16xf32, #tpu.memory_space<vmem>>, vector<2x16x16x8xf32>
    %c0_114 = arith.constant 0 : index
    %c2_115 = arith.constant 2 : index
    %c1_116 = arith.constant 1 : index
    %c0_117 = arith.constant 0 : index
    %80 = vector.load %arg15[%c0_114, %c2_115, %c1_116, %c0_117] : memref<2x18x18x16xf32, #tpu.memory_space<vmem>>, vector<2x16x16x8xf32>
    %c0_118 = arith.constant 0 : index
    %c2_119 = arith.constant 2 : index
    %c2_120 = arith.constant 2 : index
    %c0_121 = arith.constant 0 : index
    %81 = vector.load %arg15[%c0_118, %c2_119, %c2_120, %c0_121] : memref<2x18x18x16xf32, #tpu.memory_space<vmem>>, vector<2x16x16x8xf32>
    %82 = tpu.concatenate %73, %74, %75, %76, %77, %78, %79, %80, %81 in 3 : vector<2x16x16x8xf32>, vector<2x16x16x8xf32>, vector<2x16x16x8xf32>, vector<2x16x16x8xf32>, vector<2x16x16x8xf32>, vector<2x16x16x8xf32>, vector<2x16x16x8xf32>, vector<2x16x16x8xf32>, vector<2x16x16x8xf32> -> vector<2x16x16x72xf32>
    %83 = arith.truncf %82 : vector<2x16x16x72xf32> to vector<2x16x16x72xbf16>
    %c0_122 = arith.constant 0 : index
    %c0_123 = arith.constant 0 : index
    %84 = vector.load %arg6[%c0_122, %c0_123] : memref<72x8xbf16, #tpu.memory_space<vmem>>, vector<72x8xbf16>
    %cst_124 = arith.constant dense<0.000000e+00> : vector<2x16x16x8xf32>
    %85 = tpu.matmul %83, %84, %cst_124 {dimension_numbers = #tpu.dot_dimension_numbers<[3], [0], [0, 1, 2], [1], [0, 0, 0, 1, 0, 2, 1, 1], [], []>} : vector<2x16x16x72xbf16>, vector<72x8xbf16>, vector<2x16x16x8xf32> -> vector<2x16x16x8xf32>
    %c0_125 = arith.constant 0 : index
    %c0_126 = arith.constant 0 : index
    %86 = vector.load %arg7[%c0_125, %c0_126] : memref<1x8xf32, #tpu.memory_space<vmem>>, vector<1x8xf32>
    %87 = vector.shape_cast %86 : vector<1x8xf32> to vector<8xf32>
    %88 = vector.shape_cast %87 : vector<8xf32> to vector<1x1x1x8xf32>
    %89 = vector.broadcast %88 : vector<1x1x1x8xf32> to vector<2x16x16x8xf32>
    %90 = arith.addf %85, %89 : vector<2x16x16x8xf32>
    %cst_127 = arith.constant dense<0.000000e+00> : vector<8xf32>
    %91 = vector.multi_reduction <add>, %90, %cst_127 [0, 1, 2] : vector<2x16x16x8xf32> to vector<8xf32>
    %92 = vector.shape_cast %91 : vector<8xf32> to vector<1x1x1x8xf32>
    %cst_128 = arith.constant 5.120000e+02 : f32
    %93 = vector.broadcast %cst_128 : f32 to vector<1x1x1x8xf32>
    %94 = arith.divf %92, %93 : vector<1x1x1x8xf32>
    %95 = arith.mulf %90, %90 : vector<2x16x16x8xf32>
    %cst_129 = arith.constant dense<0.000000e+00> : vector<8xf32>
    %96 = vector.multi_reduction <add>, %95, %cst_129 [0, 1, 2] : vector<2x16x16x8xf32> to vector<8xf32>
    %97 = vector.shape_cast %96 : vector<8xf32> to vector<1x1x1x8xf32>
    %cst_130 = arith.constant 5.120000e+02 : f32
    %98 = vector.broadcast %cst_130 : f32 to vector<1x1x1x8xf32>
    %99 = arith.divf %97, %98 : vector<1x1x1x8xf32>
    %100 = arith.mulf %94, %94 : vector<1x1x1x8xf32>
    %101 = arith.subf %99, %100 : vector<1x1x1x8xf32>
    %cst_131 = arith.constant 0.000000e+00 : f32
    %102 = vector.broadcast %cst_131 : f32 to vector<1x1x1x8xf32>
    %103 = arith.maximumf %101, %102 : vector<1x1x1x8xf32>
    %104 = vector.broadcast %94 : vector<1x1x1x8xf32> to vector<2x16x16x8xf32>
    %105 = arith.subf %90, %104 : vector<2x16x16x8xf32>
    %cst_132 = arith.constant 9.99999974E-6 : f32
    %106 = vector.broadcast %cst_132 : f32 to vector<1x1x1x8xf32>
    %107 = arith.addf %103, %106 : vector<1x1x1x8xf32>
    %108 = math.rsqrt %107 : vector<1x1x1x8xf32>
    %109 = vector.broadcast %108 : vector<1x1x1x8xf32> to vector<2x16x16x8xf32>
    %110 = arith.mulf %105, %109 : vector<2x16x16x8xf32>
    %c0_133 = arith.constant 0 : index
    %c0_134 = arith.constant 0 : index
    %111 = vector.load %arg8[%c0_133, %c0_134] : memref<1x8xf32, #tpu.memory_space<vmem>>, vector<1x8xf32>
    %112 = vector.shape_cast %111 : vector<1x8xf32> to vector<8xf32>
    %113 = vector.shape_cast %112 : vector<8xf32> to vector<1x1x1x8xf32>
    %114 = vector.broadcast %113 : vector<1x1x1x8xf32> to vector<2x16x16x8xf32>
    %115 = arith.mulf %110, %114 : vector<2x16x16x8xf32>
    %c0_135 = arith.constant 0 : index
    %c0_136 = arith.constant 0 : index
    %116 = vector.load %arg9[%c0_135, %c0_136] : memref<1x8xf32, #tpu.memory_space<vmem>>, vector<1x8xf32>
    %117 = vector.shape_cast %116 : vector<1x8xf32> to vector<8xf32>
    %118 = vector.shape_cast %117 : vector<8xf32> to vector<1x1x1x8xf32>
    %119 = vector.broadcast %118 : vector<1x1x1x8xf32> to vector<2x16x16x8xf32>
    %120 = arith.addf %115, %119 : vector<2x16x16x8xf32>
    %cst_137 = arith.constant 0.000000e+00 : f32
    %121 = vector.broadcast %cst_137 : f32 to vector<2x16x16x8xf32>
    %122 = arith.maximumf %120, %121 : vector<2x16x16x8xf32>
    %c0_138 = arith.constant 0 : index
    %c1_139 = arith.constant 1 : index
    %c1_140 = arith.constant 1 : index
    %c0_141 = arith.constant 0 : index
    %123 = vector.load %arg15[%c0_138, %c1_139, %c1_140, %c0_141] : memref<2x18x18x16xf32, #tpu.memory_space<vmem>>, vector<2x16x16x8xf32>
    tpu.vector_store %arg15[%c0_138, %c1_139, %c1_140, %c0_141], %122 {strides = array<i32>} : memref<2x18x18x16xf32, #tpu.memory_space<vmem>>, vector<2x16x16x8xf32>,
    %c0_142 = arith.constant 0 : index
    %c1_143 = arith.constant 1 : index
    %c1_144 = arith.constant 1 : index
    %c8 = arith.constant 8 : index
    %124 = vector.load %arg15[%c0_142, %c1_143, %c1_144, %c8] : memref<2x18x18x16xf32, #tpu.memory_space<vmem>>, vector<2x16x16x8xf32>
    tpu.vector_store %arg15[%c0_142, %c1_143, %c1_144, %c8], %61 {strides = array<i32>} : memref<2x18x18x16xf32, #tpu.memory_space<vmem>>, vector<2x16x16x8xf32>,
    %c0_145 = arith.constant 0 : index
    %c0_146 = arith.constant 0 : index
    %c0_147 = arith.constant 0 : index
    %c0_148 = arith.constant 0 : index
    %125 = vector.load %arg15[%c0_145, %c0_146, %c0_147, %c0_148] : memref<2x18x18x16xf32, #tpu.memory_space<vmem>>, vector<2x16x16x16xf32>
    %c0_149 = arith.constant 0 : index
    %c0_150 = arith.constant 0 : index
    %c1_151 = arith.constant 1 : index
    %c0_152 = arith.constant 0 : index
    %126 = vector.load %arg15[%c0_149, %c0_150, %c1_151, %c0_152] : memref<2x18x18x16xf32, #tpu.memory_space<vmem>>, vector<2x16x16x16xf32>
    %c0_153 = arith.constant 0 : index
    %c0_154 = arith.constant 0 : index
    %c2_155 = arith.constant 2 : index
    %c0_156 = arith.constant 0 : index
    %127 = vector.load %arg15[%c0_153, %c0_154, %c2_155, %c0_156] : memref<2x18x18x16xf32, #tpu.memory_space<vmem>>, vector<2x16x16x16xf32>
    %c0_157 = arith.constant 0 : index
    %c1_158 = arith.constant 1 : index
    %c0_159 = arith.constant 0 : index
    %c0_160 = arith.constant 0 : index
    %128 = vector.load %arg15[%c0_157, %c1_158, %c0_159, %c0_160] : memref<2x18x18x16xf32, #tpu.memory_space<vmem>>, vector<2x16x16x16xf32>
    %c0_161 = arith.constant 0 : index
    %c1_162 = arith.constant 1 : index
    %c1_163 = arith.constant 1 : index
    %c0_164 = arith.constant 0 : index
    %129 = vector.load %arg15[%c0_161, %c1_162, %c1_163, %c0_164] : memref<2x18x18x16xf32, #tpu.memory_space<vmem>>, vector<2x16x16x16xf32>
    %c0_165 = arith.constant 0 : index
    %c1_166 = arith.constant 1 : index
    %c2_167 = arith.constant 2 : index
    %c0_168 = arith.constant 0 : index
    %130 = vector.load %arg15[%c0_165, %c1_166, %c2_167, %c0_168] : memref<2x18x18x16xf32, #tpu.memory_space<vmem>>, vector<2x16x16x16xf32>
    %c0_169 = arith.constant 0 : index
    %c2_170 = arith.constant 2 : index
    %c0_171 = arith.constant 0 : index
    %c0_172 = arith.constant 0 : index
    %131 = vector.load %arg15[%c0_169, %c2_170, %c0_171, %c0_172] : memref<2x18x18x16xf32, #tpu.memory_space<vmem>>, vector<2x16x16x16xf32>
    %c0_173 = arith.constant 0 : index
    %c2_174 = arith.constant 2 : index
    %c1_175 = arith.constant 1 : index
    %c0_176 = arith.constant 0 : index
    %132 = vector.load %arg15[%c0_173, %c2_174, %c1_175, %c0_176] : memref<2x18x18x16xf32, #tpu.memory_space<vmem>>, vector<2x16x16x16xf32>
    %c0_177 = arith.constant 0 : index
    %c2_178 = arith.constant 2 : index
    %c2_179 = arith.constant 2 : index
    %c0_180 = arith.constant 0 : index
    %133 = vector.load %arg15[%c0_177, %c2_178, %c2_179, %c0_180] : memref<2x18x18x16xf32, #tpu.memory_space<vmem>>, vector<2x16x16x16xf32>
    %134 = tpu.concatenate %125, %126, %127, %128, %129, %130, %131, %132, %133 in 3 : vector<2x16x16x16xf32>, vector<2x16x16x16xf32>, vector<2x16x16x16xf32>, vector<2x16x16x16xf32>, vector<2x16x16x16xf32>, vector<2x16x16x16xf32>, vector<2x16x16x16xf32>, vector<2x16x16x16xf32>, vector<2x16x16x16xf32> -> vector<2x16x16x144xf32>
    %135 = arith.truncf %134 : vector<2x16x16x144xf32> to vector<2x16x16x144xbf16>
    %c0_181 = arith.constant 0 : index
    %c0_182 = arith.constant 0 : index
    %136 = vector.load %arg10[%c0_181, %c0_182] : memref<144x32xbf16, #tpu.memory_space<vmem>>, vector<144x32xbf16>
    %cst_183 = arith.constant dense<0.000000e+00> : vector<2x16x16x32xf32>
    %137 = tpu.matmul %135, %136, %cst_183 {dimension_numbers = #tpu.dot_dimension_numbers<[3], [0], [0, 1, 2], [1], [0, 0, 0, 1, 0, 2, 1, 1], [], []>} : vector<2x16x16x144xbf16>, vector<144x32xbf16>, vector<2x16x16x32xf32> -> vector<2x16x16x32xf32>
    %c0_184 = arith.constant 0 : index
    %c0_185 = arith.constant 0 : index
    %138 = vector.load %arg11[%c0_184, %c0_185] : memref<1x32xf32, #tpu.memory_space<vmem>>, vector<1x32xf32>
    %139 = vector.shape_cast %138 : vector<1x32xf32> to vector<32xf32>
    %140 = vector.shape_cast %139 : vector<32xf32> to vector<1x1x1x32xf32>
    %141 = vector.broadcast %140 : vector<1x1x1x32xf32> to vector<2x16x16x32xf32>
    %142 = arith.addf %137, %141 : vector<2x16x16x32xf32>
    %cst_186 = arith.constant dense<0.000000e+00> : vector<32xf32>
    %143 = vector.multi_reduction <add>, %142, %cst_186 [0, 1, 2] : vector<2x16x16x32xf32> to vector<32xf32>
    %144 = vector.shape_cast %143 : vector<32xf32> to vector<1x1x1x32xf32>
    %cst_187 = arith.constant 5.120000e+02 : f32
    %145 = vector.broadcast %cst_187 : f32 to vector<1x1x1x32xf32>
    %146 = arith.divf %144, %145 : vector<1x1x1x32xf32>
    %147 = arith.mulf %142, %142 : vector<2x16x16x32xf32>
    %cst_188 = arith.constant dense<0.000000e+00> : vector<32xf32>
    %148 = vector.multi_reduction <add>, %147, %cst_188 [0, 1, 2] : vector<2x16x16x32xf32> to vector<32xf32>
    %149 = vector.shape_cast %148 : vector<32xf32> to vector<1x1x1x32xf32>
    %cst_189 = arith.constant 5.120000e+02 : f32
    %150 = vector.broadcast %cst_189 : f32 to vector<1x1x1x32xf32>
    %151 = arith.divf %149, %150 : vector<1x1x1x32xf32>
    %152 = arith.mulf %146, %146 : vector<1x1x1x32xf32>
    %153 = arith.subf %151, %152 : vector<1x1x1x32xf32>
    %cst_190 = arith.constant 0.000000e+00 : f32
    %154 = vector.broadcast %cst_190 : f32 to vector<1x1x1x32xf32>
    %155 = arith.maximumf %153, %154 : vector<1x1x1x32xf32>
    %156 = vector.broadcast %146 : vector<1x1x1x32xf32> to vector<2x16x16x32xf32>
    %157 = arith.subf %142, %156 : vector<2x16x16x32xf32>
    %cst_191 = arith.constant 9.99999974E-6 : f32
    %158 = vector.broadcast %cst_191 : f32 to vector<1x1x1x32xf32>
    %159 = arith.addf %155, %158 : vector<1x1x1x32xf32>
    %160 = math.rsqrt %159 : vector<1x1x1x32xf32>
    %161 = vector.broadcast %160 : vector<1x1x1x32xf32> to vector<2x16x16x32xf32>
    %162 = arith.mulf %157, %161 : vector<2x16x16x32xf32>
    %c0_192 = arith.constant 0 : index
    %c0_193 = arith.constant 0 : index
    %163 = vector.load %arg12[%c0_192, %c0_193] : memref<1x32xf32, #tpu.memory_space<vmem>>, vector<1x32xf32>
    %164 = vector.shape_cast %163 : vector<1x32xf32> to vector<32xf32>
    %165 = vector.shape_cast %164 : vector<32xf32> to vector<1x1x1x32xf32>
    %166 = vector.broadcast %165 : vector<1x1x1x32xf32> to vector<2x16x16x32xf32>
    %167 = arith.mulf %162, %166 : vector<2x16x16x32xf32>
    %c0_194 = arith.constant 0 : index
    %c0_195 = arith.constant 0 : index
    %168 = vector.load %arg13[%c0_194, %c0_195] : memref<1x32xf32, #tpu.memory_space<vmem>>, vector<1x32xf32>
    %169 = vector.shape_cast %168 : vector<1x32xf32> to vector<32xf32>
    %170 = vector.shape_cast %169 : vector<32xf32> to vector<1x1x1x32xf32>
    %171 = vector.broadcast %170 : vector<1x1x1x32xf32> to vector<2x16x16x32xf32>
    %172 = arith.addf %167, %171 : vector<2x16x16x32xf32>
    %cst_196 = arith.constant 0.000000e+00 : f32
    %173 = vector.broadcast %cst_196 : f32 to vector<2x16x16x32xf32>
    %174 = arith.maximumf %172, %173 : vector<2x16x16x32xf32>
    %c0_197 = arith.constant 0 : index
    %c0_198 = arith.constant 0 : index
    %c0_199 = arith.constant 0 : index
    %c0_200 = arith.constant 0 : index
    %175 = vector.load %arg14[%c0_197, %c0_198, %c0_199, %c0_200] : memref<2x16x16x48xf32, #tpu.memory_space<vmem>>, vector<2x16x16x32xf32>
    tpu.vector_store %arg14[%c0_197, %c0_198, %c0_199, %c0_200], %174 {strides = array<i32>} : memref<2x16x16x48xf32, #tpu.memory_space<vmem>>, vector<2x16x16x32xf32>,
    return
  }
  func.func @transform_0(%arg0: i32) -> (i32, i32, i32, i32) {
    %c0_i32 = arith.constant 0 : i32
    %c0_i32_0 = arith.constant 0 : i32
    %c0_i32_1 = arith.constant 0 : i32
    %c0_i32_2 = arith.constant 0 : i32
    %c0_i32_3 = arith.constant 0 : i32
    return %c0_i32, %c0_i32_0, %c0_i32_1, %c0_i32_2 : i32, i32, i32, i32
  }
  func.func @transform_1(%arg0: i32) -> (i32, i32) {
    %c0_i32 = arith.constant 0 : i32
    %c0_i32_0 = arith.constant 0 : i32
    %c0_i32_1 = arith.constant 0 : i32
    return %c0_i32, %c0_i32_0 : i32, i32
  }
  func.func @transform_2(%arg0: i32) -> (i32, i32) {
    %c0_i32 = arith.constant 0 : i32
    %c0_i32_0 = arith.constant 0 : i32
    %c0_i32_1 = arith.constant 0 : i32
    return %c0_i32, %c0_i32_0 : i32, i32
  }
  func.func @transform_3(%arg0: i32) -> (i32, i32) {
    %c0_i32 = arith.constant 0 : i32
    %c0_i32_0 = arith.constant 0 : i32
    %c0_i32_1 = arith.constant 0 : i32
    return %c0_i32, %c0_i32_0 : i32, i32
  }
  func.func @transform_4(%arg0: i32) -> (i32, i32) {
    %c0_i32 = arith.constant 0 : i32
    %c0_i32_0 = arith.constant 0 : i32
    %c0_i32_1 = arith.constant 0 : i32
    return %c0_i32, %c0_i32_0 : i32, i32
  }
  func.func @transform_5(%arg0: i32) -> (i32, i32) {
    %c0_i32 = arith.constant 0 : i32
    %c0_i32_0 = arith.constant 0 : i32
    %c0_i32_1 = arith.constant 0 : i32
    return %c0_i32, %c0_i32_0 : i32, i32
  }
  func.func @transform_6(%arg0: i32) -> (i32, i32) {
    %c0_i32 = arith.constant 0 : i32
    %c0_i32_0 = arith.constant 0 : i32
    %c0_i32_1 = arith.constant 0 : i32
    return %c0_i32, %c0_i32_0 : i32, i32
  }
  func.func @transform_7(%arg0: i32) -> (i32, i32) {
    %c0_i32 = arith.constant 0 : i32
    %c0_i32_0 = arith.constant 0 : i32
    %c0_i32_1 = arith.constant 0 : i32
    return %c0_i32, %c0_i32_0 : i32, i32
  }
  func.func @transform_8(%arg0: i32) -> (i32, i32) {
    %c0_i32 = arith.constant 0 : i32
    %c0_i32_0 = arith.constant 0 : i32
    %c0_i32_1 = arith.constant 0 : i32
    return %c0_i32, %c0_i32_0 : i32, i32
  }
  func.func @transform_9(%arg0: i32) -> (i32, i32) {
    %c0_i32 = arith.constant 0 : i32
    %c0_i32_0 = arith.constant 0 : i32
    %c0_i32_1 = arith.constant 0 : i32
    return %c0_i32, %c0_i32_0 : i32, i32
  }
  func.func @transform_10(%arg0: i32) -> (i32, i32) {
    %c0_i32 = arith.constant 0 : i32
    %c0_i32_0 = arith.constant 0 : i32
    %c0_i32_1 = arith.constant 0 : i32
    return %c0_i32, %c0_i32_0 : i32, i32
  }
  func.func @transform_11(%arg0: i32) -> (i32, i32) {
    %c0_i32 = arith.constant 0 : i32
    %c0_i32_0 = arith.constant 0 : i32
    %c0_i32_1 = arith.constant 0 : i32
    return %c0_i32, %c0_i32_0 : i32, i32
  }
  func.func @transform_12(%arg0: i32) -> (i32, i32) {
    %c0_i32 = arith.constant 0 : i32
    %c0_i32_0 = arith.constant 0 : i32
    %c0_i32_1 = arith.constant 0 : i32
    return %c0_i32, %c0_i32_0 : i32, i32
  }
  func.func @transform_13(%arg0: i32) -> (i32, i32, i32, i32) {
    %c0_i32 = arith.constant 0 : i32
    %c0_i32_0 = arith.constant 0 : i32
    %c0_i32_1 = arith.constant 0 : i32
    %c0_i32_2 = arith.constant 0 : i32
    %c0_i32_3 = arith.constant 0 : i32
    return %c0_i32, %c0_i32_0, %c0_i32_1, %c0_i32_2 : i32, i32, i32, i32
  }
}

</mosaic_0001>

<llo_original>
// kernel: inception_f7_forward.1
$region0: #{inception_f7_forward.1}
  #allocation0 [shape = 'u32[]', space=smem, size = 0x4, offset = 0x4, fixed_abs, tag = 'smem constant byte address 0x4 - core index']
  #allocation1 [shape = 'u32[72,128]{1,0:T(1,128)}', space=vmem, size = 0x9000, scoped, tag = 'internal scratch']
  #allocation2 [shape = 'f32[2,18,18,16]{3,2,1,0:T(8,128)}', space=vmem, size = 0x6c000, scoped, tag = 'scratch operand']
  #allocation3 [shape = 'f32[2,18,18,4]{3,2,1,0:T(8,128)}', space=vmem, size = 0x6c000, scoped, tag = 'scratch operand']
  %s0 = inlined_call_operand.vmem [shape: f32[2,16,16,4], index: 0, kind: input, shape index: {}]
  %s1 = inlined_call_operand.vmem [shape: bf16[8,32], index: 1, kind: input, shape index: {}]
  %s2 = inlined_call_operand.vmem [shape: f32[1,32], index: 2, kind: input, shape index: {}]
  %s3 = inlined_call_operand.vmem [shape: f32[1,32], index: 3, kind: input, shape index: {}]
  %s4 = inlined_call_operand.vmem [shape: f32[1,32], index: 4, kind: input, shape index: {}]
  %s5 = inlined_call_operand.vmem [shape: bf16[72,8], index: 5, kind: input, shape index: {}]
  %s6 = inlined_call_operand.vmem [shape: f32[1,8], index: 6, kind: input, shape index: {}]
  %s7 = inlined_call_operand.vmem [shape: f32[1,8], index: 7, kind: input, shape index: {}]
  %s8 = inlined_call_operand.vmem [shape: f32[1,8], index: 8, kind: input, shape index: {}]
  %s9 = inlined_call_operand.vmem [shape: bf16[144,32], index: 9, kind: input, shape index: {}]
  %s10 = inlined_call_operand.vmem [shape: f32[1,32], index: 10, kind: input, shape index: {}]
  %s11 = inlined_call_operand.vmem [shape: f32[1,32], index: 11, kind: input, shape index: {}]
  %s12 = inlined_call_operand.vmem [shape: f32[1,32], index: 12, kind: input, shape index: {}]
  %s13 = inlined_call_operand.hbm [shape: f32[2,16,16,48], index: 13, kind: output, shape index: {}]
  %s14 = sld [smem:[#allocation0]]
  $region62: #{inception_f7_forward.1} parent=0
    _
  %s16 = ssub.s32 1, %s14
  %s17 = scalar_select 0, %s16, %s14
  $region1: #{inception_f7_forward.1} parent=0
    #allocation4 [shape = 'u8[262144]{0}', space=vmem, size = 0x40000, scoped, tag = 'output window, operand 0, single buffered']
    #allocation5 [shape = 's32[1]{0}', space=sflag, size = 0x4, scoped, tag = 'scoped memory for inception_f7_forward.1']
    %18 = vsyncpa [#allocation5], 0
    // Predicated region
    $region2: #{inception_f7_forward.1} parent=1 // pred_check
      _
    $region3: #{inception_f7_forward.1} parent=1 // pred_check_branch
      %20 = sbr.rel (0) target = $region5
    $region4: #{inception_f7_forward.1} parent=1 // pred_region
      _
    $region5: #{inception_f7_forward.1} parent=1 // pred_fallthru
      _
    // Predicated region
    $region6: #{inception_f7_forward.1} parent=1 // pred_check
      _
    $region7: #{inception_f7_forward.1} parent=1 // pred_check_branch
      %22 = sbr.rel (0) target = $region9
    $region8: #{inception_f7_forward.1} parent=1 // pred_region
      _
    $region9: #{inception_f7_forward.1} parent=1 // pred_fallthru
      _
    // Predicated region
    $region10: #{inception_f7_forward.1} parent=1 // pred_check
      _
    $region11: #{inception_f7_forward.1} parent=1 // pred_check_branch
      %24 = sbr.rel (0) target = $region13
    $region12: #{inception_f7_forward.1} parent=1 // pred_region
      _
    $region13: #{inception_f7_forward.1} parent=1 // pred_fallthru
      _
    // Predicated region
    $region14: #{inception_f7_forward.1} parent=1 // pred_check
      _
    $region15: #{inception_f7_forward.1} parent=1 // pred_check_branch
      %26 = sbr.rel (0) target = $region17
    $region16: #{inception_f7_forward.1} parent=1 // pred_region
      _
    $region17: #{inception_f7_forward.1} parent=1 // pred_fallthru
      _
    // Predicated region
    $region18: #{inception_f7_forward.1} parent=1 // pred_check
      _
    $region19: #{inception_f7_forward.1} parent=1 // pred_check_branch
      %28 = sbr.rel (0) target = $region21
    $region20: #{inception_f7_forward.1} parent=1 // pred_region
      _
    $region21: #{inception_f7_forward.1} parent=1 // pred_fallthru
      _
    // Predicated region
    $region22: #{inception_f7_forward.1} parent=1 // pred_check
      _
    $region23: #{inception_f7_forward.1} parent=1 // pred_check_branch
      %30 = sbr.rel (0) target = $region25
    $region24: #{inception_f7_forward.1} parent=1 // pred_region
      _
    $region25: #{inception_f7_forward.1} parent=1 // pred_fallthru
      _
    // Predicated region
    $region26: #{inception_f7_forward.1} parent=1 // pred_check
      _
    $region27: #{inception_f7_forward.1} parent=1 // pred_check_branch
      %32 = sbr.rel (0) target = $region29
    $region28: #{inception_f7_forward.1} parent=1 // pred_region
      _
    $region29: #{inception_f7_forward.1} parent=1 // pred_fallthru
      _
    // Predicated region
    $region30: #{inception_f7_forward.1} parent=1 // pred_check
      _
    $region31: #{inception_f7_forward.1} parent=1 // pred_check_branch
      %34 = sbr.rel (0) target = $region33
    $region32: #{inception_f7_forward.1} parent=1 // pred_region
      _
    $region33: #{inception_f7_forward.1} parent=1 // pred_fallthru
      _
    // Predicated region
    $region34: #{inception_f7_forward.1} parent=1 // pred_check
      _
    $region35: #{inception_f7_forward.1} parent=1 // pred_check_branch
      %36 = sbr.rel (0) target = $region37
    $region36: #{inception_f7_forward.1} parent=1 // pred_region
      _
    $region37: #{inception_f7_forward.1} parent=1 // pred_fallthru
      _
    // Predicated region
    $region38: #{inception_f7_forward.1} parent=1 // pred_check
      _
    $region39: #{inception_f7_forward.1} parent=1 // pred_check_branch
      %38 = sbr.rel (0) target = $region41
    $region40: #{inception_f7_forward.1} parent=1 // pred_region
      _
    $region41: #{inception_f7_forward.1} parent=1 // pred_fallthru
      _
    // Predicated region
    $region42: #{inception_f7_forward.1} parent=1 // pred_check
      _
    $region43: #{inception_f7_forward.1} parent=1 // pred_check_branch
      %40 = sbr.rel (0) target = $region45
    $region44: #{inception_f7_forward.1} parent=1 // pred_region
      _
    $region45: #{inception_f7_forward.1} parent=1 // pred_fallthru
      _
    // Predicated region
    $region46: #{inception_f7_forward.1} parent=1 // pred_check
      _
    $region47: #{inception_f7_forward.1} parent=1 // pred_check_branch
      %42 = sbr.rel (0) target = $region49
    $region48: #{inception_f7_forward.1} parent=1 // pred_region
      _
    $region49: #{inception_f7_forward.1} parent=1 // pred_fallthru
      _
    // Predicated region
    $region50: #{inception_f7_forward.1} parent=1 // pred_check
      _
    $region51: #{inception_f7_forward.1} parent=1 // pred_check_branch
      %44 = sbr.rel (0) target = $region53
    $region52: #{inception_f7_forward.1} parent=1 // pred_region
      _
    $region53: #{inception_f7_forward.1} parent=1 // pred_fallthru
      _
    %v46 = vld [vmem:[%s0] sm:$0xff]
    %v47 = vld [vmem:[%s0 + $0x8] sm:$0xff]
    %v48 = vld [vmem:[%s0 + $0x10] sm:$0xff]
    %v49 = vld [vmem:[%s0 + $0x18] sm:$0xff]
    %v50 = vld [vmem:[%s0 + $0x20] sm:$0xff]
    %v51 = vld [vmem:[%s0 + $0x28] sm:$0xff]
    %v52 = vld [vmem:[%s0 + $0x30] sm:$0xff]
    %v53 = vld [vmem:[%s0 + $0x38] sm:$0xff]
    %v54 = vld [vmem:[%s0 + $0x40] sm:$0xff]
    %v55 = vld [vmem:[%s0 + $0x48] sm:$0xff]
    %v56 = vld [vmem:[%s0 + $0x50] sm:$0xff]
    %v57 = vld [vmem:[%s0 + $0x58] sm:$0xff]
    %v58 = vld [vmem:[%s0 + $0x60] sm:$0xff]
    %v59 = vld [vmem:[%s0 + $0x68] sm:$0xff]
    %v60 = vld [vmem:[%s0 + $0x70] sm:$0xff]
    %v61 = vld [vmem:[%s0 + $0x78] sm:$0xff]
    %v62 = vld [vmem:[%s0 + $0x80] sm:$0xff]
    %v63 = vld [vmem:[%s0 + $0x88] sm:$0xff]
    %v64 = vld [vmem:[%s0 + $0x90] sm:$0xff]
    %v65 = vld [vmem:[%s0 + $0x98] sm:$0xff]
    %v66 = vld [vmem:[%s0 + $0xa0] sm:$0xff]
    %v67 = vld [vmem:[%s0 + $0xa8] sm:$0xff]
    %v68 = vld [vmem:[%s0 + $0xb0] sm:$0xff]
    %v69 = vld [vmem:[%s0 + $0xb8] sm:$0xff]
    %v70 = vld [vmem:[%s0 + $0xc0] sm:$0xff]
    %v71 = vld [vmem:[%s0 + $0xc8] sm:$0xff]
    %v72 = vld [vmem:[%s0 + $0xd0] sm:$0xff]
    %v73 = vld [vmem:[%s0 + $0xd8] sm:$0xff]
    %v74 = vld [vmem:[%s0 + $0xe0] sm:$0xff]
    %v75 = vld [vmem:[%s0 + $0xe8] sm:$0xff]
    %v76 = vld [vmem:[%s0 + $0xf0] sm:$0xff]
    %v77 = vld [vmem:[%s0 + $0xf8] sm:$0xff]
    %v78 = vld [vmem:[%s0 + $0x100] sm:$0xff]
    %v79 = vld [vmem:[%s0 + $0x108] sm:$0xff]
    %v80 = vld [vmem:[%s0 + $0x110] sm:$0xff]
    %v81 = vld [vmem:[%s0 + $0x118] sm:$0xff]
    %v82 = vld [vmem:[%s0 + $0x120] sm:$0xff]
    %v83 = vld [vmem:[%s0 + $0x128] sm:$0xff]
    %v84 = vld [vmem:[%s0 + $0x130] sm:$0xff]
    %v85 = vld [vmem:[%s0 + $0x138] sm:$0xff]
    %v86 = vld [vmem:[%s0 + $0x140] sm:$0xff]
    %v87 = vld [vmem:[%s0 + $0x148] sm:$0xff]
    %v88 = vld [vmem:[%s0 + $0x150] sm:$0xff]
    %v89 = vld [vmem:[%s0 + $0x158] sm:$0xff]
    %v90 = vld [vmem:[%s0 + $0x160] sm:$0xff]
    %v91 = vld [vmem:[%s0 + $0x168] sm:$0xff]
    %v92 = vld [vmem:[%s0 + $0x170] sm:$0xff]
    %v93 = vld [vmem:[%s0 + $0x178] sm:$0xff]
    %v94 = vld [vmem:[%s0 + $0x180] sm:$0xff]
    %v95 = vld [vmem:[%s0 + $0x188] sm:$0xff]
    %v96 = vld [vmem:[%s0 + $0x190] sm:$0xff]
    %v97 = vld [vmem:[%s0 + $0x198] sm:$0xff]
    %v98 = vld [vmem:[%s0 + $0x1a0] sm:$0xff]
    %v99 = vld [vmem:[%s0 + $0x1a8] sm:$0xff]
    %v100 = vld [vmem:[%s0 + $0x1b0] sm:$0xff]
    %v101 = vld [vmem:[%s0 + $0x1b8] sm:$0xff]
    %v102 = vld [vmem:[%s0 + $0x1c0] sm:$0xff]
    %v103 = vld [vmem:[%s0 + $0x1c8] sm:$0xff]
    %v104 = vld [vmem:[%s0 + $0x1d0] sm:$0xff]
    %v105 = vld [vmem:[%s0 + $0x1d8] sm:$0xff]
    %v106 = vld [vmem:[%s0 + $0x1e0] sm:$0xff]
    %v107 = vld [vmem:[%s0 + $0x1e8] sm:$0xff]
    %v108 = vld [vmem:[%s0 + $0x1f0] sm:$0xff]
    %v109 = vld [vmem:[%s0 + $0x1f8] sm:$0xff]
    %vm110 = vcmask 31744
    %111 = vst.msk [vmem:[#allocation3] sm:$0xff] %vm110, -inf
    %112 = vst.msk [vmem:[#allocation3 + $0x8] sm:$0xff] %vm110, -inf
    %vm113 = vcmask 25600
    %114 = vst.msk [vmem:[#allocation3 + $0x10] sm:$0x3] %vm113, -inf
    %115 = vst.msk [vmem:[#allocation3 + $0x1b0] sm:$0xff] %vm110, -inf
    %116 = vst.msk [vmem:[#allocation3 + $0x1b8] sm:$0xff] %vm110, -inf
    %117 = vst.msk [vmem:[#allocation3 + $0x1c0] sm:$0x3] %vm113, -inf
    %s118 = scalar_lea.vmem [#allocation3], 408
    %119 = vst.msk [vmem:[%s118] sm:$0xff] %vm110, -inf
    %120 = vst.msk [vmem:[%s118 + $0x8] sm:$0xff] %vm110, -inf
    %121 = vst.msk [vmem:[%s118 + $0x10] sm:$0x3] %vm113, -inf
    %122 = vst.msk [vmem:[%s118 + $0x1b0] sm:$0xff] %vm110, -inf
    %123 = vst.msk [vmem:[%s118 + $0x1b8] sm:$0xff] %vm110, -inf
    %124 = vst.msk [vmem:[%s118 + $0x1c0] sm:$0x3] %vm113, -inf
    %vm125 = vcmask 24576
    %126 = vst.msk [vmem:[#allocation3] sm:$0x1] %vm125, -inf
    %127 = vst.msk [vmem:[#allocation3 + $0x18] sm:$0x1] %vm125, -inf
    %128 = vst.msk [vmem:[#allocation3 + $0x30] sm:$0x1] %vm125, -inf
    %129 = vst.msk [vmem:[#allocation3 + $0x48] sm:$0x1] %vm125, -inf
    %130 = vst.msk [vmem:[#allocation3 + $0x60] sm:$0x1] %vm125, -inf
    %131 = vst.msk [vmem:[#allocation3 + $0x78] sm:$0x1] %vm125, -inf
    %132 = vst.msk [vmem:[#allocation3 + $0x90] sm:$0x1] %vm125, -inf
    %133 = vst.msk [vmem:[#allocation3 + $0xa8] sm:$0x1] %vm125, -inf
    %134 = vst.msk [vmem:[#allocation3 + $0xc0] sm:$0x1] %vm125, -inf
    %135 = vst.msk [vmem:[#allocation3 + $0xd8] sm:$0x1] %vm125, -inf
    %136 = vst.msk [vmem:[#allocation3 + $0xf0] sm:$0x1] %vm125, -inf
    %137 = vst.msk [vmem:[#allocation3 + $0x108] sm:$0x1] %vm125, -inf
    %138 = vst.msk [vmem:[#allocation3 + $0x120] sm:$0x1] %vm125, -inf
    %139 = vst.msk [vmem:[#allocation3 + $0x138] sm:$0x1] %vm125, -inf
    %140 = vst.msk [vmem:[#allocation3 + $0x150] sm:$0x1] %vm125, -inf
    %141 = vst.msk [vmem:[#allocation3 + $0x168] sm:$0x1] %vm125, -inf
    %142 = vst.msk [vmem:[#allocation3 + $0x180] sm:$0x1] %vm125, -inf
    %143 = vst.msk [vmem:[#allocation3 + $0x198] sm:$0x1] %vm125, -inf
    %144 = vst.msk [vmem:[#allocation3 + $0x1b0] sm:$0x1] %vm125, -inf
    %145 = vst.msk [vmem:[#allocation3 + $0x1c8] sm:$0x1] %vm125, -inf
    %146 = vst.msk [vmem:[#allocation3 + $0x1e0] sm:$0x1] %vm125, -inf
    %147 = vst.msk [vmem:[#allocation3 + $0x1f8] sm:$0x1] %vm125, -inf
    %148 = vst.msk [vmem:[#allocation3 + $0x210] sm:$0x1] %vm125, -inf
    %149 = vst.msk [vmem:[#allocation3 + $0x228] sm:$0x1] %vm125, -inf
    %150 = vst.msk [vmem:[#allocation3 + $0x240] sm:$0x1] %vm125, -inf
    %151 = vst.msk [vmem:[#allocation3 + $0x258] sm:$0x1] %vm125, -inf
    %152 = vst.msk [vmem:[#allocation3 + $0x270] sm:$0x1] %vm125, -inf
    %153 = vst.msk [vmem:[#allocation3 + $0x288] sm:$0x1] %vm125, -inf
    %154 = vst.msk [vmem:[#allocation3 + $0x2a0] sm:$0x1] %vm125, -inf
    %155 = vst.msk [vmem:[#allocation3 + $0x2b8] sm:$0x1] %vm125, -inf
    %156 = vst.msk [vmem:[#allocation3 + $0x2d0] sm:$0x1] %vm125, -inf
    %157 = vst.msk [vmem:[#allocation3 + $0x2e8] sm:$0x1] %vm125, -inf
    %158 = vst.msk [vmem:[#allocation3 + $0x300] sm:$0x1] %vm125, -inf
    %159 = vst.msk [vmem:[#allocation3 + $0x318] sm:$0x1] %vm125, -inf
    %160 = vst.msk [vmem:[#allocation3 + $0x330] sm:$0x1] %vm125, -inf
    %161 = vst.msk [vmem:[#allocation3 + $0x348] sm:$0x1] %vm125, -inf
    %162 = vst.msk [vmem:[#allocation3 + $0x11] sm:$0x1] %vm125, -inf
    %163 = vst.msk [vmem:[#allocation3 + $0x29] sm:$0x1] %vm125, -inf
    %164 = vst.msk [vmem:[#allocation3 + $0x41] sm:$0x1] %vm125, -inf
    %165 = vst.msk [vmem:[#allocation3 + $0x59] sm:$0x1] %vm125, -inf
    %166 = vst.msk [vmem:[#allocation3 + $0x71] sm:$0x1] %vm125, -inf
    %167 = vst.msk [vmem:[#allocation3 + $0x89] sm:$0x1] %vm125, -inf
    %168 = vst.msk [vmem:[#allocation3 + $0xa1] sm:$0x1] %vm125, -inf
    %169 = vst.msk [vmem:[#allocation3 + $0xb9] sm:$0x1] %vm125, -inf
    %170 = vst.msk [vmem:[#allocation3 + $0xd1] sm:$0x1] %vm125, -inf
    %171 = vst.msk [vmem:[#allocation3 + $0xe9] sm:$0x1] %vm125, -inf
    %172 = vst.msk [vmem:[#allocation3 + $0x101] sm:$0x1] %vm125, -inf
    %173 = vst.msk [vmem:[#allocation3 + $0x119] sm:$0x1] %vm125, -inf
    %174 = vst.msk [vmem:[#allocation3 + $0x131] sm:$0x1] %vm125, -inf
    %175 = vst.msk [vmem:[#allocation3 + $0x149] sm:$0x1] %vm125, -inf
    %176 = vst.msk [vmem:[#allocation3 + $0x161] sm:$0x1] %vm125, -inf
    %177 = vst.msk [vmem:[#allocation3 + $0x179] sm:$0x1] %vm125, -inf
    %178 = vst.msk [vmem:[#allocation3 + $0x191] sm:$0x1] %vm125, -inf
    %179 = vst.msk [vmem:[#allocation3 + $0x1a9] sm:$0x1] %vm125, -inf
    %180 = vst.msk [vmem:[#allocation3 + $0x1c1] sm:$0x1] %vm125, -inf
    %181 = vst.msk [vmem:[#allocation3 + $0x1d9] sm:$0x1] %vm125, -inf
    %182 = vst.msk [vmem:[#allocation3 + $0x1f1] sm:$0x1] %vm125, -inf
    %183 = vst.msk [vmem:[#allocation3 + $0x209] sm:$0x1] %vm125, -inf
    %184 = vst.msk [vmem:[#allocation3 + $0x221] sm:$0x1] %vm125, -inf
    %185 = vst.msk [vmem:[#allocation3 + $0x239] sm:$0x1] %vm125, -inf
    %186 = vst.msk [vmem:[#allocation3 + $0x251] sm:$0x1] %vm125, -inf
    %187 = vst.msk [vmem:[#allocation3 + $0x269] sm:$0x1] %vm125, -inf
    %188 = vst.msk [vmem:[#allocation3 + $0x281] sm:$0x1] %vm125, -inf
    %189 = vst.msk [vmem:[#allocation3 + $0x299] sm:$0x1] %vm125, -inf
    %190 = vst.msk [vmem:[#allocation3 + $0x2b1] sm:$0x1] %vm125, -inf
    %191 = vst.msk [vmem:[#allocation3 + $0x2c9] sm:$0x1] %vm125, -inf
    %192 = vst.msk [vmem:[#allocation3 + $0x2e1] sm:$0x1] %vm125, -inf
    %193 = vst.msk [vmem:[#allocation3 + $0x2f9] sm:$0x1] %vm125, -inf
    %194 = vst.msk [vmem:[#allocation3 + $0x311] sm:$0x1] %vm125, -inf
    %195 = vst.msk [vmem:[#allocation3 + $0x329] sm:$0x1] %vm125, -inf
    %196 = vst.msk [vmem:[#allocation3 + $0x341] sm:$0x1] %vm125, -inf
    %197 = vst.msk [vmem:[#allocation3 + $0x359] sm:$0x1] %vm125, -inf
    %s198 = scalar_lea.vmem [#allocation3], 24
    %199 = vst.msk [vmem:[%s198 + $0x1] sm:$0xff] %vm110, %v46
    %200 = vst.msk [vmem:[%s198 + $0x9] sm:$0xff] %vm110, %v47
    %201 = vst.msk [vmem:[%s198 + $0x19] sm:$0xff] %vm110, %v48
    %202 = vst.msk [vmem:[%s198 + $0x21] sm:$0xff] %vm110, %v49
    %203 = vst.msk [vmem:[%s198 + $0x31] sm:$0xff] %vm110, %v50
    %204 = vst.msk [vmem:[%s198 + $0x39] sm:$0xff] %vm110, %v51
    %205 = vst.msk [vmem:[%s198 + $0x49] sm:$0xff] %vm110, %v52
    %206 = vst.msk [vmem:[%s198 + $0x51] sm:$0xff] %vm110, %v53
    %207 = vst.msk [vmem:[%s198 + $0x61] sm:$0xff] %vm110, %v54
    %208 = vst.msk [vmem:[%s198 + $0x69] sm:$0xff] %vm110, %v55
    %209 = vst.msk [vmem:[%s198 + $0x79] sm:$0xff] %vm110, %v56
    %210 = vst.msk [vmem:[%s198 + $0x81] sm:$0xff] %vm110, %v57
    %211 = vst.msk [vmem:[%s198 + $0x91] sm:$0xff] %vm110, %v58
    %212 = vst.msk [vmem:[%s198 + $0x99] sm:$0xff] %vm110, %v59
    %213 = vst.msk [vmem:[%s198 + $0xa9] sm:$0xff] %vm110, %v60
    %214 = vst.msk [vmem:[%s198 + $0xb1] sm:$0xff] %vm110, %v61
    %215 = vst.msk [vmem:[%s198 + $0xc1] sm:$0xff] %vm110, %v62
    %216 = vst.msk [vmem:[%s198 + $0xc9] sm:$0xff] %vm110, %v63
    %217 = vst.msk [vmem:[%s198 + $0xd9] sm:$0xff] %vm110, %v64
    %218 = vst.msk [vmem:[%s198 + $0xe1] sm:$0xff] %vm110, %v65
    %219 = vst.msk [vmem:[%s198 + $0xf1] sm:$0xff] %vm110, %v66
    %220 = vst.msk [vmem:[%s198 + $0xf9] sm:$0xff] %vm110, %v67
    %221 = vst.msk [vmem:[%s198 + $0x109] sm:$0xff] %vm110, %v68
    %222 = vst.msk [vmem:[%s198 + $0x111] sm:$0xff] %vm110, %v69
    %223 = vst.msk [vmem:[%s198 + $0x121] sm:$0xff] %vm110, %v70
    %224 = vst.msk [vmem:[%s198 + $0x129] sm:$0xff] %vm110, %v71
    %225 = vst.msk [vmem:[%s198 + $0x139] sm:$0xff] %vm110, %v72
    %226 = vst.msk [vmem:[%s198 + $0x141] sm:$0xff] %vm110, %v73
    %227 = vst.msk [vmem:[%s198 + $0x151] sm:$0xff] %vm110, %v74
    %228 = vst.msk [vmem:[%s198 + $0x159] sm:$0xff] %vm110, %v75
    %229 = vst.msk [vmem:[%s198 + $0x169] sm:$0xff] %vm110, %v76
    %230 = vst.msk [vmem:[%s198 + $0x171] sm:$0xff] %vm110, %v77
    %231 = vst.msk [vmem:[%s198 + $0x1b1] sm:$0xff] %vm110, %v78
    %232 = vst.msk [vmem:[%s198 + $0x1b9] sm:$0xff] %vm110, %v79
    %233 = vst.msk [vmem:[%s198 + $0x1c9] sm:$0xff] %vm110, %v80
    %234 = vst.msk [vmem:[%s198 + $0x1d1] sm:$0xff] %vm110, %v81
    %235 = vst.msk [vmem:[%s198 + $0x1e1] sm:$0xff] %vm110, %v82
    %236 = vst.msk [vmem:[%s198 + $0x1e9] sm:$0xff] %vm110, %v83
    %237 = vst.msk [vmem:[%s198 + $0x1f9] sm:$0xff] %vm110, %v84
    %238 = vst.msk [vmem:[%s198 + $0x201] sm:$0xff] %vm110, %v85
    %239 = vst.msk [vmem:[%s198 + $0x211] sm:$0xff] %vm110, %v86
    %240 = vst.msk [vmem:[%s198 + $0x219] sm:$0xff] %vm110, %v87
    %241 = vst.msk [vmem:[%s198 + $0x229] sm:$0xff] %vm110, %v88
    %242 = vst.msk [vmem:[%s198 + $0x231] sm:$0xff] %vm110, %v89
    %243 = vst.msk [vmem:[%s198 + $0x241] sm:$0xff] %vm110, %v90
    %244 = vst.msk [vmem:[%s198 + $0x249] sm:$0xff] %vm110, %v91
    %245 = vst.msk [vmem:[%s198 + $0x259] sm:$0xff] %vm110, %v92
    %246 = vst.msk [vmem:[%s198 + $0x261] sm:$0xff] %vm110, %v93
    %247 = vst.msk [vmem:[%s198 + $0x271] sm:$0xff] %vm110, %v94
    %248 = vst.msk [vmem:[%s198 + $0x279] sm:$0xff] %vm110, %v95
    %249 = vst.msk [vmem:[%s198 + $0x289] sm:$0xff] %vm110, %v96
    %250 = vst.msk [vmem:[%s198 + $0x291] sm:$0xff] %vm110, %v97
    %251 = vst.msk [vmem:[%s198 + $0x2a1] sm:$0xff] %vm110, %v98
    %252 = vst.msk [vmem:[%s198 + $0x2a9] sm:$0xff] %vm110, %v99
    %253 = vst.msk [vmem:[%s198 + $0x2b9] sm:$0xff] %vm110, %v100
    %254 = vst.msk [vmem:[%s198 + $0x2c1] sm:$0xff] %vm110, %v101
    %255 = vst.msk [vmem:[%s198 + $0x2d1] sm:$0xff] %vm110, %v102
    %256 = vst.msk [vmem:[%s198 + $0x2d9] sm:$0xff] %vm110, %v103
    %257 = vst.msk [vmem:[%s198 + $0x2e9] sm:$0xff] %vm110, %v104
    %258 = vst.msk [vmem:[%s198 + $0x2f1] sm:$0xff] %vm110, %v105
    %259 = vst.msk [vmem:[%s198 + $0x301] sm:$0xff] %vm110, %v106
    %260 = vst.msk [vmem:[%s198 + $0x309] sm:$0xff] %vm110, %v107
    %261 = vst.msk [vmem:[%s198 + $0x319] sm:$0xff] %vm110, %v108
    %262 = vst.msk [vmem:[%s198 + $0x321] sm:$0xff] %vm110, %v109
    %v263 = vld [vmem:[%s198] sm:$0xff]
    %v264 = vld [vmem:[%s198 + $0x8] sm:$0xff]
    %v265 = vld [vmem:[%s198 + $0x18] sm:$0xff]
    %v266 = vld [vmem:[%s198 + $0x20] sm:$0xff]
    %v267 = vld [vmem:[%s198 + $0x30] sm:$0xff]
    %v268 = vld [vmem:[%s198 + $0x38] sm:$0xff]
    %v269 = vld [vmem:[%s198 + $0x48] sm:$0xff]
    %v270 = vld [vmem:[%s198 + $0x50] sm:$0xff]
    %v271 = vld [vmem:[%s198 + $0x60] sm:$0xff]
    %v272 = vld [vmem:[%s198 + $0x68] sm:$0xff]
    %v273 = vld [vmem:[%s198 + $0x78] sm:$0xff]
    %v274 = vld [vmem:[%s198 + $0x80] sm:$0xff]
    %v275 = vld [vmem:[%s198 + $0x90] sm:$0xff]
    %v276 = vld [vmem:[%s198 + $0x98] sm:$0xff]
    %v277 = vld [vmem:[%s198 + $0xa8] sm:$0xff]
    %v278 = vld [vmem:[%s198 + $0xb0] sm:$0xff]
    %v279 = vld [vmem:[%s198 + $0xc0] sm:$0xff]
    %v280 = vld [vmem:[%s198 + $0xc8] sm:$0xff]
    %v281 = vld [vmem:[%s198 + $0xd8] sm:$0xff]
    %v282 = vld [vmem:[%s198 + $0xe0] sm:$0xff]
    %v283 = vld [vmem:[%s198 + $0xf0] sm:$0xff]
    %v284 = vld [vmem:[%s198 + $0xf8] sm:$0xff]
    %v285 = vld [vmem:[%s198 + $0x108] sm:$0xff]
    %v286 = vld [vmem:[%s198 + $0x110] sm:$0xff]
    %v287 = vld [vmem:[%s198 + $0x120] sm:$0xff]
    %v288 = vld [vmem:[%s198 + $0x128] sm:$0xff]
    %v289 = vld [vmem:[%s198 + $0x138] sm:$0xff]
    %v290 = vld [vmem:[%s198 + $0x140] sm:$0xff]
    %v291 = vld [vmem:[%s198 + $0x150] sm:$0xff]
    %v292 = vld [vmem:[%s198 + $0x158] sm:$0xff]
    %v293 = vld [vmem:[%s198 + $0x168] sm:$0xff]
    %v294 = vld [vmem:[%s198 + $0x170] sm:$0xff]
    %v295 = vld [vmem:[%s198 + $0x1b0] sm:$0xff]
    %v296 = vld [vmem:[%s198 + $0x1b8] sm:$0xff]
    %v297 = vld [vmem:[%s198 + $0x1c8] sm:$0xff]
    %v298 = vld [vmem:[%s198 + $0x1d0] sm:$0xff]
    %v299 = vld [vmem:[%s198 + $0x1e0] sm:$0xff]
    %v300 = vld [vmem:[%s198 + $0x1e8] sm:$0xff]
    %v301 = vld [vmem:[%s198 + $0x1f8] sm:$0xff]
    %v302 = vld [vmem:[%s198 + $0x200] sm:$0xff]
    %v303 = vld [vmem:[%s198 + $0x210] sm:$0xff]
    %v304 = vld [vmem:[%s198 + $0x218] sm:$0xff]
    %v305 = vld [vmem:[%s198 + $0x228] sm:$0xff]
    %v306 = vld [vmem:[%s198 + $0x230] sm:$0xff]
    %v307 = vld [vmem:[%s198 + $0x240] sm:$0xff]
    %v308 = vld [vmem:[%s198 + $0x248] sm:$0xff]
    %v309 = vld [vmem:[%s198 + $0x258] sm:$0xff]
    %v310 = vld [vmem:[%s198 + $0x260] sm:$0xff]
    %v311 = vld [vmem:[%s198 + $0x270] sm:$0xff]
    %v312 = vld [vmem:[%s198 + $0x278] sm:$0xff]
    %v313 = vld [vmem:[%s198 + $0x288] sm:$0xff]
    %v314 = vld [vmem:[%s198 + $0x290] sm:$0xff]
    %v315 = vld [vmem:[%s198 + $0x2a0] sm:$0xff]
    %v316 = vld [vmem:[%s198 + $0x2a8] sm:$0xff]
    %v317 = vld [vmem:[%s198 + $0x2b8] sm:$0xff]
    %v318 = vld [vmem:[%s198 + $0x2c0] sm:$0xff]
    %v319 = vld [vmem:[%s198 + $0x2d0] sm:$0xff]
    %v320 = vld [vmem:[%s198 + $0x2d8] sm:$0xff]
    %v321 = vld [vmem:[%s198 + $0x2e8] sm:$0xff]
    %v322 = vld [vmem:[%s198 + $0x2f0] sm:$0xff]
    %v323 = vld [vmem:[%s198 + $0x300] sm:$0xff]
    %v324 = vld [vmem:[%s198 + $0x308] sm:$0xff]
    %v325 = vld [vmem:[%s198 + $0x318] sm:$0xff]
    %v326 = vld [vmem:[%s198 + $0x320] sm:$0xff]
    %v327 = vmax.f32 %v263, %v46
    %v328 = vmax.f32 %v264, %v47
    %v329 = vmax.f32 %v265, %v48
    %v330 = vmax.f32 %v266, %v49
    %v331 = vmax.f32 %v267, %v50
    %v332 = vmax.f32 %v268, %v51
    %v333 = vmax.f32 %v269, %v52
    %v334 = vmax.f32 %v270, %v53
    %v335 = vmax.f32 %v271, %v54
    %v336 = vmax.f32 %v272, %v55
    %v337 = vmax.f32 %v273, %v56
    %v338 = vmax.f32 %v274, %v57
    %v339 = vmax.f32 %v275, %v58
    %v340 = vmax.f32 %v276, %v59
    %v341 = vmax.f32 %v277, %v60
    %v342 = vmax.f32 %v278, %v61
    %v343 = vmax.f32 %v279, %v62
    %v344 = vmax.f32 %v280, %v63
    %v345 = vmax.f32 %v281, %v64
    %v346 = vmax.f32 %v282, %v65
    %v347 = vmax.f32 %v283, %v66
    %v348 = vmax.f32 %v284, %v67
    %v349 = vmax.f32 %v285, %v68
    %v350 = vmax.f32 %v286, %v69
    %v351 = vmax.f32 %v287, %v70
    %v352 = vmax.f32 %v288, %v71
    %v353 = vmax.f32 %v289, %v72
    %v354 = vmax.f32 %v290, %v73
    %v355 = vmax.f32 %v291, %v74
    %v356 = vmax.f32 %v292, %v75
    %v357 = vmax.f32 %v293, %v76
    %v358 = vmax.f32 %v294, %v77
    %v359 = vmax.f32 %v295, %v78
    %v360 = vmax.f32 %v296, %v79
    %v361 = vmax.f32 %v297, %v80
    %v362 = vmax.f32 %v298, %v81
    %v363 = vmax.f32 %v299, %v82
    %v364 = vmax.f32 %v300, %v83
    %v365 = vmax.f32 %v301, %v84
    %v366 = vmax.f32 %v302, %v85
    %v367 = vmax.f32 %v303, %v86
    %v368 = vmax.f32 %v304, %v87
    %v369 = vmax.f32 %v305, %v88
    %v370 = vmax.f32 %v306, %v89
    %v371 = vmax.f32 %v307, %v90
    %v372 = vmax.f32 %v308, %v91
    %v373 = vmax.f32 %v309, %v92
    %v374 = vmax.f32 %v310, %v93
    %v375 = vmax.f32 %v311, %v94
    %v376 = vmax.f32 %v312, %v95
    %v377 = vmax.f32 %v313, %v96
    %v378 = vmax.f32 %v314, %v97
    %v379 = vmax.f32 %v315, %v98
    %v380 = vmax.f32 %v316, %v99
    %v381 = vmax.f32 %v317, %v100
    %v382 = vmax.f32 %v318, %v101
    %v383 = vmax.f32 %v319, %v102
    %v384 = vmax.f32 %v320, %v103
    %v385 = vmax.f32 %v321, %v104
    %v386 = vmax.f32 %v322, %v105
    %v387 = vmax.f32 %v323, %v106
    %v388 = vmax.f32 %v324, %v107
    %v389 = vmax.f32 %v325, %v108
    %v390 = vmax.f32 %v326, %v109
    %v391 = vld [vmem:[%s198 + $0x2] sm:$0xff]
    %v392 = vld [vmem:[%s198 + $0xa] sm:$0xff]
    %v393 = vld [vmem:[%s198 + $0x1a] sm:$0xff]
    %v394 = vld [vmem:[%s198 + $0x22] sm:$0xff]
    %v395 = vld [vmem:[%s198 + $0x32] sm:$0xff]
    %v396 = vld [vmem:[%s198 + $0x3a] sm:$0xff]
    %v397 = vld [vmem:[%s198 + $0x4a] sm:$0xff]
    %v398 = vld [vmem:[%s198 + $0x52] sm:$0xff]
    %v399 = vld [vmem:[%s198 + $0x62] sm:$0xff]
    %v400 = vld [vmem:[%s198 + $0x6a] sm:$0xff]
    %v401 = vld [vmem:[%s198 + $0x7a] sm:$0xff]
    %v402 = vld [vmem:[%s198 + $0x82] sm:$0xff]
    %v403 = vld [vmem:[%s198 + $0x92] sm:$0xff]
    %v404 = vld [vmem:[%s198 + $0x9a] sm:$0xff]
    %v405 = vld [vmem:[%s198 + $0xaa] sm:$0xff]
    %v406 = vld [vmem:[%s198 + $0xb2] sm:$0xff]
    %v407 = vld [vmem:[%s198 + $0xc2] sm:$0xff]
    %v408 = vld [vmem:[%s198 + $0xca] sm:$0xff]
    %v409 = vld [vmem:[%s198 + $0xda] sm:$0xff]
    %v410 = vld [vmem:[%s198 + $0xe2] sm:$0xff]
    %v411 = vld [vmem:[%s198 + $0xf2] sm:$0xff]
    %v412 = vld [vmem:[%s198 + $0xfa] sm:$0xff]
    %v413 = vld [vmem:[%s198 + $0x10a] sm:$0xff]
    %v414 = vld [vmem:[%s198 + $0x112] sm:$0xff]
    %v415 = vld [vmem:[%s198 + $0x122] sm:$0xff]
    %v416 = vld [vmem:[%s198 + $0x12a] sm:$0xff]
    %v417 = vld [vmem:[%s198 + $0x13a] sm:$0xff]
    %v418 = vld [vmem:[%s198 + $0x142] sm:$0xff]
    %v419 = vld [vmem:[%s198 + $0x152] sm:$0xff]
    %v420 = vld [vmem:[%s198 + $0x15a] sm:$0xff]
    %v421 = vld [vmem:[%s198 + $0x16a] sm:$0xff]
    %v422 = vld [vmem:[%s198 + $0x172] sm:$0xff]
    %v423 = vld [vmem:[%s198 + $0x1b2] sm:$0xff]
    %v424 = vld [vmem:[%s198 + $0x1ba] sm:$0xff]
    %v425 = vld [vmem:[%s198 + $0x1ca] sm:$0xff]
    %v426 = vld [vmem:[%s198 + $0x1d2] sm:$0xff]
    %v427 = vld [vmem:[%s198 + $0x1e2] sm:$0xff]
    %v428 = vld [vmem:[%s198 + $0x1ea] sm:$0xff]
    %v429 = vld [vmem:[%s198 + $0x1fa] sm:$0xff]
    %v430 = vld [vmem:[%s198 + $0x202] sm:$0xff]
    %v431 = vld [vmem:[%s198 + $0x212] sm:$0xff]
    %v432 = vld [vmem:[%s198 + $0x21a] sm:$0xff]
    %v433 = vld [vmem:[%s198 + $0x22a] sm:$0xff]
    %v434 = vld [vmem:[%s198 + $0x232] sm:$0xff]
    %v435 = vld [vmem:[%s198 + $0x242] sm:$0xff]
    %v436 = vld [vmem:[%s198 + $0x24a] sm:$0xff]
    %v437 = vld [vmem:[%s198 + $0x25a] sm:$0xff]
    %v438 = vld [vmem:[%s198 + $0x262] sm:$0xff]
    %v439 = vld [vmem:[%s198 + $0x272] sm:$0xff]
    %v440 = vld [vmem:[%s198 + $0x27a] sm:$0xff]
    %v441 = vld [vmem:[%s198 + $0x28a] sm:$0xff]
    %v442 = vld [vmem:[%s198 + $0x292] sm:$0xff]
    %v443 = vld [vmem:[%s198 + $0x2a2] sm:$0xff]
    %v444 = vld [vmem:[%s198 + $0x2aa] sm:$0xff]
    %v445 = vld [vmem:[%s198 + $0x2ba] sm:$0xff]
    %v446 = vld [vmem:[%s198 + $0x2c2] sm:$0xff]
    %v447 = vld [vmem:[%s198 + $0x2d2] sm:$0xff]
    %v448 = vld [vmem:[%s198 + $0x2da] sm:$0xff]
    %v449 = vld [vmem:[%s198 + $0x2ea] sm:$0xff]
    %v450 = vld [vmem:[%s198 + $0x2f2] sm:$0xff]
    %v451 = vld [vmem:[%s198 + $0x302] sm:$0xff]
    %v452 = vld [vmem:[%s198 + $0x30a] sm:$0xff]
    %v453 = vld [vmem:[%s198 + $0x31a] sm:$0xff]
    %v454 = vld [vmem:[%s198 + $0x322] sm:$0xff]
    %v455 = vmax.f32 %v327, %v391
    %v456 = vmax.f32 %v328, %v392
    %v457 = vmax.f32 %v329, %v393
    %v458 = vmax.f32 %v330, %v394
    %v459 = vmax.f32 %v331, %v395
    %v460 = vmax.f32 %v332, %v396
    %v461 = vmax.f32 %v333, %v397
    %v462 = vmax.f32 %v334, %v398
    %v463 = vmax.f32 %v335, %v399
    %v464 = vmax.f32 %v336, %v400
    %v465 = vmax.f32 %v337, %v401
    %v466 = vmax.f32 %v338, %v402
    %v467 = vmax.f32 %v339, %v403
    %v468 = vmax.f32 %v340, %v404
    %v469 = vmax.f32 %v341, %v405
    %v470 = vmax.f32 %v342, %v406
    %v471 = vmax.f32 %v343, %v407
    %v472 = vmax.f32 %v344, %v408
    %v473 = vmax.f32 %v345, %v409
    %v474 = vmax.f32 %v346, %v410
    %v475 = vmax.f32 %v347, %v411
    %v476 = vmax.f32 %v348, %v412
    %v477 = vmax.f32 %v349, %v413
    %v478 = vmax.f32 %v350, %v414
    %v479 = vmax.f32 %v351, %v415
    %v480 = vmax.f32 %v352, %v416
    %v481 = vmax.f32 %v353, %v417
    %v482 = vmax.f32 %v354, %v418
    %v483 = vmax.f32 %v355, %v419
    %v484 = vmax.f32 %v356, %v420
    %v485 = vmax.f32 %v357, %v421
    %v486 = vmax.f32 %v358, %v422
    %v487 = vmax.f32 %v359, %v423
    %v488 = vmax.f32 %v360, %v424
    %v489 = vmax.f32 %v361, %v425
    %v490 = vmax.f32 %v362, %v426
    %v491 = vmax.f32 %v363, %v427
    %v492 = vmax.f32 %v364, %v428
    %v493 = vmax.f32 %v365, %v429
    %v494 = vmax.f32 %v366, %v430
    %v495 = vmax.f32 %v367, %v431
    %v496 = vmax.f32 %v368, %v432
    %v497 = vmax.f32 %v369, %v433
    %v498 = vmax.f32 %v370, %v434
    %v499 = vmax.f32 %v371, %v435
    %v500 = vmax.f32 %v372, %v436
    %v501 = vmax.f32 %v373, %v437
    %v502 = vmax.f32 %v374, %v438
    %v503 = vmax.f32 %v375, %v439
    %v504 = vmax.f32 %v376, %v440
    %v505 = vmax.f32 %v377, %v441
    %v506 = vmax.f32 %v378, %v442
    %v507 = vmax.f32 %v379, %v443
    %v508 = vmax.f32 %v380, %v444
    %v509 = vmax.f32 %v381, %v445
    %v510 = vmax.f32 %v382, %v446
    %v511 = vmax.f32 %v383, %v447
    %v512 = vmax.f32 %v384, %v448
    %v513 = vmax.f32 %v385, %v449
    %v514 = vmax.f32 %v386, %v450
    %v515 = vmax.f32 %v387, %v451
    %v516 = vmax.f32 %v388, %v452
    %v517 = vmax.f32 %v389, %v453
    %v518 = vmax.f32 %v390, %v454
    %519 = vst.msk [vmem:[%s198 + $0x1] sm:$0xff] %vm110, %v455
    %520 = vst.msk [vmem:[%s198 + $0x9] sm:$0xff] %vm110, %v456
    %521 = vst.msk [vmem:[%s198 + $0x19] sm:$0xff] %vm110, %v457
    %522 = vst.msk [vmem:[%s198 + $0x21] sm:$0xff] %vm110, %v458
    %523 = vst.msk [vmem:[%s198 + $0x31] sm:$0xff] %vm110, %v459
    %524 = vst.msk [vmem:[%s198 + $0x39] sm:$0xff] %vm110, %v460
    %525 = vst.msk [vmem:[%s198 + $0x49] sm:$0xff] %vm110, %v461
    %526 = vst.msk [vmem:[%s198 + $0x51] sm:$0xff] %vm110, %v462
    %527 = vst.msk [vmem:[%s198 + $0x61] sm:$0xff] %vm110, %v463
    %528 = vst.msk [vmem:[%s198 + $0x69] sm:$0xff] %vm110, %v464
    %529 = vst.msk [vmem:[%s198 + $0x79] sm:$0xff] %vm110, %v465
    %530 = vst.msk [vmem:[%s198 + $0x81] sm:$0xff] %vm110, %v466
    %531 = vst.msk [vmem:[%s198 + $0x91] sm:$0xff] %vm110, %v467
    %532 = vst.msk [vmem:[%s198 + $0x99] sm:$0xff] %vm110, %v468
    %533 = vst.msk [vmem:[%s198 + $0xa9] sm:$0xff] %vm110, %v469
    %534 = vst.msk [vmem:[%s198 + $0xb1] sm:$0xff] %vm110, %v470
    %535 = vst.msk [vmem:[%s198 + $0xc1] sm:$0xff] %vm110, %v471
    %536 = vst.msk [vmem:[%s198 + $0xc9] sm:$0xff] %vm110, %v472
    %537 = vst.msk [vmem:[%s198 + $0xd9] sm:$0xff] %vm110, %v473
    %538 = vst.msk [vmem:[%s198 + $0xe1] sm:$0xff] %vm110, %v474
    %539 = vst.msk [vmem:[%s198 + $0xf1] sm:$0xff] %vm110, %v475
    %540 = vst.msk [vmem:[%s198 + $0xf9] sm:$0xff] %vm110, %v476
    %541 = vst.msk [vmem:[%s198 + $0x109] sm:$0xff] %vm110, %v477
    %542 = vst.msk [vmem:[%s198 + $0x111] sm:$0xff] %vm110, %v478
    %543 = vst.msk [vmem:[%s198 + $0x121] sm:$0xff] %vm110, %v479
    %544 = vst.msk [vmem:[%s198 + $0x129] sm:$0xff] %vm110, %v480
    %545 = vst.msk [vmem:[%s198 + $0x139] sm:$0xff] %vm110, %v481
    %546 = vst.msk [vmem:[%s198 + $0x141] sm:$0xff] %vm110, %v482
    %547 = vst.msk [vmem:[%s198 + $0x151] sm:$0xff] %vm110, %v483
    %548 = vst.msk [vmem:[%s198 + $0x159] sm:$0xff] %vm110, %v484
    %549 = vst.msk [vmem:[%s198 + $0x169] sm:$0xff] %vm110, %v485
    %550 = vst.msk [vmem:[%s198 + $0x171] sm:$0xff] %vm110, %v486
    %551 = vst.msk [vmem:[%s198 + $0x1b1] sm:$0xff] %vm110, %v487
    %552 = vst.msk [vmem:[%s198 + $0x1b9] sm:$0xff] %vm110, %v488
    %553 = vst.msk [vmem:[%s198 + $0x1c9] sm:$0xff] %vm110, %v489
    %554 = vst.msk [vmem:[%s198 + $0x1d1] sm:$0xff] %vm110, %v490
    %555 = vst.msk [vmem:[%s198 + $0x1e1] sm:$0xff] %vm110, %v491
    %556 = vst.msk [vmem:[%s198 + $0x1e9] sm:$0xff] %vm110, %v492
    %557 = vst.msk [vmem:[%s198 + $0x1f9] sm:$0xff] %vm110, %v493
    %558 = vst.msk [vmem:[%s198 + $0x201] sm:$0xff] %vm110, %v494
    %559 = vst.msk [vmem:[%s198 + $0x211] sm:$0xff] %vm110, %v495
    %560 = vst.msk [vmem:[%s198 + $0x219] sm:$0xff] %vm110, %v496
    %561 = vst.msk [vmem:[%s198 + $0x229] sm:$0xff] %vm110, %v497
    %562 = vst.msk [vmem:[%s198 + $0x231] sm:$0xff] %vm110, %v498
    %563 = vst.msk [vmem:[%s198 + $0x241] sm:$0xff] %vm110, %v499
    %564 = vst.msk [vmem:[%s198 + $0x249] sm:$0xff] %vm110, %v500
    %565 = vst.msk [vmem:[%s198 + $0x259] sm:$0xff] %vm110, %v501
    %566 = vst.msk [vmem:[%s198 + $0x261] sm:$0xff] %vm110, %v502
    %567 = vst.msk [vmem:[%s198 + $0x271] sm:$0xff] %vm110, %v503
    %568 = vst.msk [vmem:[%s198 + $0x279] sm:$0xff] %vm110, %v504
    %569 = vst.msk [vmem:[%s198 + $0x289] sm:$0xff] %vm110, %v505
    %570 = vst.msk [vmem:[%s198 + $0x291] sm:$0xff] %vm110, %v506
    %571 = vst.msk [vmem:[%s198 + $0x2a1] sm:$0xff] %vm110, %v507
    %572 = vst.msk [vmem:[%s198 + $0x2a9] sm:$0xff] %vm110, %v508
    %573 = vst.msk [vmem:[%s198 + $0x2b9] sm:$0xff] %vm110, %v509
    %574 = vst.msk [vmem:[%s198 + $0x2c1] sm:$0xff] %vm110, %v510
    %575 = vst.msk [vmem:[%s198 + $0x2d1] sm:$0xff] %vm110, %v511
    %576 = vst.msk [vmem:[%s198 + $0x2d9] sm:$0xff] %vm110, %v512
    %577 = vst.msk [vmem:[%s198 + $0x2e9] sm:$0xff] %vm110, %v513
    %578 = vst.msk [vmem:[%s198 + $0x2f1] sm:$0xff] %vm110, %v514
    %579 = vst.msk [vmem:[%s198 + $0x301] sm:$0xff] %vm110, %v515
    %580 = vst.msk [vmem:[%s198 + $0x309] sm:$0xff] %vm110, %v516
    %581 = vst.msk [vmem:[%s198 + $0x319] sm:$0xff] %vm110, %v517
    %582 = vst.msk [vmem:[%s198 + $0x321] sm:$0xff] %vm110, %v518
    %v583 = vld [vmem:[#allocation3 + $0x1] sm:$0xff]
    %v584 = vld [vmem:[#allocation3 + $0x9] sm:$0xff]
    %v585 = vld [vmem:[#allocation3 + $0x19] sm:$0xff]
    %v586 = vld [vmem:[#allocation3 + $0x21] sm:$0xff]
    %v587 = vld [vmem:[#allocation3 + $0x31] sm:$0xff]
    %v588 = vld [vmem:[#allocation3 + $0x39] sm:$0xff]
    %v589 = vld [vmem:[#allocation3 + $0x49] sm:$0xff]
    %v590 = vld [vmem:[#allocation3 + $0x51] sm:$0xff]
    %v591 = vld [vmem:[#allocation3 + $0x61] sm:$0xff]
    %v592 = vld [vmem:[#allocation3 + $0x69] sm:$0xff]
    %v593 = vld [vmem:[#allocation3 + $0x79] sm:$0xff]
    %v594 = vld [vmem:[#allocation3 + $0x81] sm:$0xff]
    %v595 = vld [vmem:[#allocation3 + $0x91] sm:$0xff]
    %v596 = vld [vmem:[#allocation3 + $0x99] sm:$0xff]
    %v597 = vld [vmem:[#allocation3 + $0xa9] sm:$0xff]
    %v598 = vld [vmem:[#allocation3 + $0xb1] sm:$0xff]
    %v599 = vld [vmem:[#allocation3 + $0xc1] sm:$0xff]
    %v600 = vld [vmem:[#allocation3 + $0xc9] sm:$0xff]
    %v601 = vld [vmem:[#allocation3 + $0xd9] sm:$0xff]
    %v602 = vld [vmem:[#allocation3 + $0xe1] sm:$0xff]
    %v603 = vld [vmem:[#allocation3 + $0xf1] sm:$0xff]
    %v604 = vld [vmem:[#allocation3 + $0xf9] sm:$0xff]
    %v605 = vld [vmem:[#allocation3 + $0x109] sm:$0xff]
    %v606 = vld [vmem:[#allocation3 + $0x111] sm:$0xff]
    %v607 = vld [vmem:[#allocation3 + $0x121] sm:$0xff]
    %v608 = vld [vmem:[#allocation3 + $0x129] sm:$0xff]
    %v609 = vld [vmem:[#allocation3 + $0x139] sm:$0xff]
    %v610 = vld [vmem:[#allocation3 + $0x141] sm:$0xff]
    %v611 = vld [vmem:[#allocation3 + $0x151] sm:$0xff]
    %v612 = vld [vmem:[#allocation3 + $0x159] sm:$0xff]
    %v613 = vld [vmem:[#allocation3 + $0x169] sm:$0xff]
    %v614 = vld [vmem:[#allocation3 + $0x171] sm:$0xff]
    %v615 = vld [vmem:[#allocation3 + $0x1b1] sm:$0xff]
    %v616 = vld [vmem:[#allocation3 + $0x1b9] sm:$0xff]
    %v617 = vld [vmem:[#allocation3 + $0x1c9] sm:$0xff]
    %v618 = vld [vmem:[#allocation3 + $0x1d1] sm:$0xff]
    %v619 = vld [vmem:[#allocation3 + $0x1e1] sm:$0xff]
    %v620 = vld [vmem:[#allocation3 + $0x1e9] sm:$0xff]
    %v621 = vld [vmem:[#allocation3 + $0x1f9] sm:$0xff]
    %v622 = vld [vmem:[#allocation3 + $0x201] sm:$0xff]
    %v623 = vld [vmem:[#allocation3 + $0x211] sm:$0xff]
    %v624 = vld [vmem:[#allocation3 + $0x219] sm:$0xff]
    %v625 = vld [vmem:[#allocation3 + $0x229] sm:$0xff]
    %v626 = vld [vmem:[#allocation3 + $0x231] sm:$0xff]
    %v627 = vld [vmem:[#allocation3 + $0x241] sm:$0xff]
    %v628 = vld [vmem:[#allocation3 + $0x249] sm:$0xff]
    %v629 = vld [vmem:[#allocation3 + $0x259] sm:$0xff]
    %v630 = vld [vmem:[#allocation3 + $0x261] sm:$0xff]
    %v631 = vld [vmem:[#allocation3 + $0x271] sm:$0xff]
    %v632 = vld [vmem:[#allocation3 + $0x279] sm:$0xff]
    %v633 = vld [vmem:[#allocation3 + $0x289] sm:$0xff]
    %v634 = vld [vmem:[#allocation3 + $0x291] sm:$0xff]
    %v635 = vld [vmem:[#allocation3 + $0x2a1] sm:$0xff]
    %v636 = vld [vmem:[#allocation3 + $0x2a9] sm:$0xff]
    %v637 = vld [vmem:[#allocation3 + $0x2b9] sm:$0xff]
    %v638 = vld [vmem:[#allocation3 + $0x2c1] sm:$0xff]
    %v639 = vld [vmem:[#allocation3 + $0x2d1] sm:$0xff]
    %v640 = vld [vmem:[#allocation3 + $0x2d9] sm:$0xff]
    %v641 = vld [vmem:[#allocation3 + $0x2e9] sm:$0xff]
    %v642 = vld [vmem:[#allocation3 + $0x2f1] sm:$0xff]
    %v643 = vld [vmem:[#allocation3 + $0x301] sm:$0xff]
    %v644 = vld [vmem:[#allocation3 + $0x309] sm:$0xff]
    %v645 = vld [vmem:[#allocation3 + $0x319] sm:$0xff]
    %v646 = vld [vmem:[#allocation3 + $0x321] sm:$0xff]
    %v647 = vmax.f32 %v583, %v455
    %v648 = vmax.f32 %v584, %v456
    %v649 = vmax.f32 %v585, %v457
    %v650 = vmax.f32 %v586, %v458
    %v651 = vmax.f32 %v587, %v459
    %v652 = vmax.f32 %v588, %v460
    %v653 = vmax.f32 %v589, %v461
    %v654 = vmax.f32 %v590, %v462
    %v655 = vmax.f32 %v591, %v463
    %v656 = vmax.f32 %v592, %v464
    %v657 = vmax.f32 %v593, %v465
    %v658 = vmax.f32 %v594, %v466
    %v659 = vmax.f32 %v595, %v467
    %v660 = vmax.f32 %v596, %v468
    %v661 = vmax.f32 %v597, %v469
    %v662 = vmax.f32 %v598, %v470
    %v663 = vmax.f32 %v599, %v471
    %v664 = vmax.f32 %v600, %v472
    %v665 = vmax.f32 %v601, %v473
    %v666 = vmax.f32 %v602, %v474
    %v667 = vmax.f32 %v603, %v475
    %v668 = vmax.f32 %v604, %v476
    %v669 = vmax.f32 %v605, %v477
    %v670 = vmax.f32 %v606, %v478
    %v671 = vmax.f32 %v607, %v479
    %v672 = vmax.f32 %v608, %v480
    %v673 = vmax.f32 %v609, %v481
    %v674 = vmax.f32 %v610, %v482
    %v675 = vmax.f32 %v611, %v483
    %v676 = vmax.f32 %v612, %v484
    %v677 = vmax.f32 %v613, %v485
    %v678 = vmax.f32 %v614, %v486
    %v679 = vmax.f32 %v615, %v487
    %v680 = vmax.f32 %v616, %v488
    %v681 = vmax.f32 %v617, %v489
    %v682 = vmax.f32 %v618, %v490
    %v683 = vmax.f32 %v619, %v491
    %v684 = vmax.f32 %v620, %v492
    %v685 = vmax.f32 %v621, %v493
    %v686 = vmax.f32 %v622, %v494
    %v687 = vmax.f32 %v623, %v495
    %v688 = vmax.f32 %v624, %v496
    %v689 = vmax.f32 %v625, %v497
    %v690 = vmax.f32 %v626, %v498
    %v691 = vmax.f32 %v627, %v499
    %v692 = vmax.f32 %v628, %v500
    %v693 = vmax.f32 %v629, %v501
    %v694 = vmax.f32 %v630, %v502
    %v695 = vmax.f32 %v631, %v503
    %v696 = vmax.f32 %v632, %v504
    %v697 = vmax.f32 %v633, %v505
    %v698 = vmax.f32 %v634, %v506
    %v699 = vmax.f32 %v635, %v507
    %v700 = vmax.f32 %v636, %v508
    %v701 = vmax.f32 %v637, %v509
    %v702 = vmax.f32 %v638, %v510
    %v703 = vmax.f32 %v639, %v511
    %v704 = vmax.f32 %v640, %v512
    %v705 = vmax.f32 %v641, %v513
    %v706 = vmax.f32 %v642, %v514
    %v707 = vmax.f32 %v643, %v515
    %v708 = vmax.f32 %v644, %v516
    %v709 = vmax.f32 %v645, %v517
    %v710 = vmax.f32 %v646, %v518
    %s711 = scalar_lea.vmem [#allocation3], 48
    %v712 = vld [vmem:[%s711 + $0x1] sm:$0xff]
    %v713 = vld [vmem:[%s711 + $0x9] sm:$0xff]
    %v714 = vld [vmem:[%s711 + $0x19] sm:$0xff]
    %v715 = vld [vmem:[%s711 + $0x21] sm:$0xff]
    %v716 = vld [vmem:[%s711 + $0x31] sm:$0xff]
    %v717 = vld [vmem:[%s711 + $0x39] sm:$0xff]
    %v718 = vld [vmem:[%s711 + $0x49] sm:$0xff]
    %v719 = vld [vmem:[%s711 + $0x51] sm:$0xff]
    %v720 = vld [vmem:[%s711 + $0x61] sm:$0xff]
    %v721 = vld [vmem:[%s711 + $0x69] sm:$0xff]
    %v722 = vld [vmem:[%s711 + $0x79] sm:$0xff]
    %v723 = vld [vmem:[%s711 + $0x81] sm:$0xff]
    %v724 = vld [vmem:[%s711 + $0x91] sm:$0xff]
    %v725 = vld [vmem:[%s711 + $0x99] sm:$0xff]
    %v726 = vld [vmem:[%s711 + $0xa9] sm:$0xff]
    %v727 = vld [vmem:[%s711 + $0xb1] sm:$0xff]
    %v728 = vld [vmem:[%s711 + $0xc1] sm:$0xff]
    %v729 = vld [vmem:[%s711 + $0xc9] sm:$0xff]
    %v730 = vld [vmem:[%s711 + $0xd9] sm:$0xff]
    %v731 = vld [vmem:[%s711 + $0xe1] sm:$0xff]
    %v732 = vld [vmem:[%s711 + $0xf1] sm:$0xff]
    %v733 = vld [vmem:[%s711 + $0xf9] sm:$0xff]
    %v734 = vld [vmem:[%s711 + $0x109] sm:$0xff]
    %v735 = vld [vmem:[%s711 + $0x111] sm:$0xff]
    %v736 = vld [vmem:[%s711 + $0x121] sm:$0xff]
    %v737 = vld [vmem:[%s711 + $0x129] sm:$0xff]
    %v738 = vld [vmem:[%s711 + $0x139] sm:$0xff]
    %v739 = vld [vmem:[%s711 + $0x141] sm:$0xff]
    %v740 = vld [vmem:[%s711 + $0x151] sm:$0xff]
    %v741 = vld [vmem:[%s711 + $0x159] sm:$0xff]
    %v742 = vld [vmem:[%s711 + $0x169] sm:$0xff]
    %v743 = vld [vmem:[%s711 + $0x171] sm:$0xff]
    %v744 = vld [vmem:[%s711 + $0x1b1] sm:$0xff]
    %v745 = vld [vmem:[%s711 + $0x1b9] sm:$0xff]
    %v746 = vld [vmem:[%s711 + $0x1c9] sm:$0xff]
    %v747 = vld [vmem:[%s711 + $0x1d1] sm:$0xff]
    %v748 = vld [vmem:[%s711 + $0x1e1] sm:$0xff]
    %v749 = vld [vmem:[%s711 + $0x1e9] sm:$0xff]
    %v750 = vld [vmem:[%s711 + $0x1f9] sm:$0xff]
    %v751 = vld [vmem:[%s711 + $0x201] sm:$0xff]
    %v752 = vld [vmem:[%s711 + $0x211] sm:$0xff]
    %v753 = vld [vmem:[%s711 + $0x219] sm:$0xff]
    %v754 = vld [vmem:[%s711 + $0x229] sm:$0xff]
    %v755 = vld [vmem:[%s711 + $0x231] sm:$0xff]
    %v756 = vld [vmem:[%s711 + $0x241] sm:$0xff]
    %v757 = vld [vmem:[%s711 + $0x249] sm:$0xff]
    %v758 = vld [vmem:[%s711 + $0x259] sm:$0xff]
    %v759 = vld [vmem:[%s711 + $0x261] sm:$0xff]
    %v760 = vld [vmem:[%s711 + $0x271] sm:$0xff]
    %v761 = vld [vmem:[%s711 + $0x279] sm:$0xff]
    %v762 = vld [vmem:[%s711 + $0x289] sm:$0xff]
    %v763 = vld [vmem:[%s711 + $0x291] sm:$0xff]
    %v764 = vld [vmem:[%s711 + $0x2a1] sm:$0xff]
    %v765 = vld [vmem:[%s711 + $0x2a9] sm:$0xff]
    %v766 = vld [vmem:[%s711 + $0x2b9] sm:$0xff]
    %v767 = vld [vmem:[%s711 + $0x2c1] sm:$0xff]
    %v768 = vld [vmem:[%s711 + $0x2d1] sm:$0xff]
    %v769 = vld [vmem:[%s711 + $0x2d9] sm:$0xff]
    %v770 = vld [vmem:[%s711 + $0x2e9] sm:$0xff]
    %v771 = vld [vmem:[%s711 + $0x2f1] sm:$0xff]
    %v772 = vld [vmem:[%s711 + $0x301] sm:$0xff]
    %v773 = vld [vmem:[%s711 + $0x309] sm:$0xff]
    %v774 = vld [vmem:[%s711 + $0x319] sm:$0xff]
    %v775 = vld [vmem:[%s711 + $0x321] sm:$0xff]
    %v776 = vmax.f32 %v647, %v712
    %v777 = vmax.f32 %v648, %v713
    %v778 = vmax.f32 %v649, %v714
    %v779 = vmax.f32 %v650, %v715
    %v780 = vmax.f32 %v651, %v716
    %v781 = vmax.f32 %v652, %v717
    %v782 = vmax.f32 %v653, %v718
    %v783 = vmax.f32 %v654, %v719
    %v784 = vmax.f32 %v655, %v720
    %v785 = vmax.f32 %v656, %v721
    %v786 = vmax.f32 %v657, %v722
    %v787 = vmax.f32 %v658, %v723
    %v788 = vmax.f32 %v659, %v724
    %v789 = vmax.f32 %v660, %v725
    %v790 = vmax.f32 %v661, %v726
    %v791 = vmax.f32 %v662, %v727
    %v792 = vmax.f32 %v663, %v728
    %v793 = vmax.f32 %v664, %v729
    %v794 = vmax.f32 %v665, %v730
    %v795 = vmax.f32 %v666, %v731
    %v796 = vmax.f32 %v667, %v732
    %v797 = vmax.f32 %v668, %v733
    %v798 = vmax.f32 %v669, %v734
    %v799 = vmax.f32 %v670, %v735
    %v800 = vmax.f32 %v671, %v736
    %v801 = vmax.f32 %v672, %v737
    %v802 = vmax.f32 %v673, %v738
    %v803 = vmax.f32 %v674, %v739
    %v804 = vmax.f32 %v675, %v740
    %v805 = vmax.f32 %v676, %v741
    %v806 = vmax.f32 %v677, %v742
    %v807 = vmax.f32 %v678, %v743
    %v808 = vmax.f32 %v679, %v744
    %v809 = vmax.f32 %v680, %v745
    %v810 = vmax.f32 %v681, %v746
    %v811 = vmax.f32 %v682, %v747
    %v812 = vmax.f32 %v683, %v748
    %v813 = vmax.f32 %v684, %v749
    %v814 = vmax.f32 %v685, %v750
    %v815 = vmax.f32 %v686, %v751
    %v816 = vmax.f32 %v687, %v752
    %v817 = vmax.f32 %v688, %v753
    %v818 = vmax.f32 %v689, %v754
    %v819 = vmax.f32 %v690, %v755
    %v820 = vmax.f32 %v691, %v756
    %v821 = vmax.f32 %v692, %v757
    %v822 = vmax.f32 %v693, %v758
    %v823 = vmax.f32 %v694, %v759
    %v824 = vmax.f32 %v695, %v760
    %v825 = vmax.f32 %v696, %v761
    %v826 = vmax.f32 %v697, %v762
    %v827 = vmax.f32 %v698, %v763
    %v828 = vmax.f32 %v699, %v764
    %v829 = vmax.f32 %v700, %v765
    %v830 = vmax.f32 %v701, %v766
    %v831 = vmax.f32 %v702, %v767
    %v832 = vmax.f32 %v703, %v768
    %v833 = vmax.f32 %v704, %v769
    %v834 = vmax.f32 %v705, %v770
    %v835 = vmax.f32 %v706, %v771
    %v836 = vmax.f32 %v707, %v772
    %v837 = vmax.f32 %v708, %v773
    %v838 = vmax.f32 %v709, %v774
    %v839 = vmax.f32 %v710, %v775
    %904 = vrot.lane.b32.xlu0 %v776, 4
    %v905 = vpop.permute.xlu0 %904
    %906 = vrot.lane.b32.xlu0 %v777, 4
    %v907 = vpop.permute.xlu0 %906
    %908 = vrot.lane.b32.xlu0 %v778, 4
    %v909 = vpop.permute.xlu0 %908
    %910 = vrot.lane.b32.xlu0 %v779, 4
    %v911 = vpop.permute.xlu0 %910
    %912 = vrot.lane.b32.xlu0 %v780, 4
    %v913 = vpop.permute.xlu0 %912
    %914 = vrot.lane.b32.xlu0 %v781, 4
    %v915 = vpop.permute.xlu0 %914
    %916 = vrot.lane.b32.xlu0 %v782, 4
    %v917 = vpop.permute.xlu0 %916
    %918 = vrot.lane.b32.xlu0 %v783, 4
    %v919 = vpop.permute.xlu0 %918
    %920 = vrot.lane.b32.xlu0 %v784, 4
    %v921 = vpop.permute.xlu0 %920
    %922 = vrot.lane.b32.xlu0 %v785, 4
    %v923 = vpop.permute.xlu0 %922
    %924 = vrot.lane.b32.xlu0 %v786, 4
    %v925 = vpop.permute.xlu0 %924
    %926 = vrot.lane.b32.xlu0 %v787, 4
    %v927 = vpop.permute.xlu0 %926
    %928 = vrot.lane.b32.xlu0 %v788, 4
    %v929 = vpop.permute.xlu0 %928
    %930 = vrot.lane.b32.xlu0 %v789, 4
    %v931 = vpop.permute.xlu0 %930
    %932 = vrot.lane.b32.xlu0 %v790, 4
    %v933 = vpop.permute.xlu0 %932
    %934 = vrot.lane.b32.xlu0 %v791, 4
    %v935 = vpop.permute.xlu0 %934
    %936 = vrot.lane.b32.xlu0 %v792, 4
    %v937 = vpop.permute.xlu0 %936
    %938 = vrot.lane.b32.xlu0 %v793, 4
    %v939 = vpop.permute.xlu0 %938
    %940 = vrot.lane.b32.xlu0 %v794, 4
    %v941 = vpop.permute.xlu0 %940
    %942 = vrot.lane.b32.xlu0 %v795, 4
    %v943 = vpop.permute.xlu0 %942
    %944 = vrot.lane.b32.xlu0 %v796, 4
    %v945 = vpop.permute.xlu0 %944
    %946 = vrot.lane.b32.xlu0 %v797, 4
    %v947 = vpop.permute.xlu0 %946
    %948 = vrot.lane.b32.xlu0 %v798, 4
    %v949 = vpop.permute.xlu0 %948
    %950 = vrot.lane.b32.xlu0 %v799, 4
    %v951 = vpop.permute.xlu0 %950
    %952 = vrot.lane.b32.xlu0 %v800, 4
    %v953 = vpop.permute.xlu0 %952
    %954 = vrot.lane.b32.xlu0 %v801, 4
    %v955 = vpop.permute.xlu0 %954
    %956 = vrot.lane.b32.xlu0 %v802, 4
    %v957 = vpop.permute.xlu0 %956
    %958 = vrot.lane.b32.xlu0 %v803, 4
    %v959 = vpop.permute.xlu0 %958
    %960 = vrot.lane.b32.xlu0 %v804, 4
    %v961 = vpop.permute.xlu0 %960
    %962 = vrot.lane.b32.xlu0 %v805, 4
    %v963 = vpop.permute.xlu0 %962
    %964 = vrot.lane.b32.xlu0 %v806, 4
    %v965 = vpop.permute.xlu0 %964
    %966 = vrot.lane.b32.xlu0 %v807, 4
    %v967 = vpop.permute.xlu0 %966
    %968 = vrot.lane.b32.xlu0 %v808, 4
    %v969 = vpop.permute.xlu0 %968
    %970 = vrot.lane.b32.xlu0 %v809, 4
    %v971 = vpop.permute.xlu0 %970
    %972 = vrot.lane.b32.xlu0 %v810, 4
    %v973 = vpop.permute.xlu0 %972
    %974 = vrot.lane.b32.xlu0 %v811, 4
    %v975 = vpop.permute.xlu0 %974
    %976 = vrot.lane.b32.xlu0 %v812, 4
    %v977 = vpop.permute.xlu0 %976
    %978 = vrot.lane.b32.xlu0 %v813, 4
    %v979 = vpop.permute.xlu0 %978
    %980 = vrot.lane.b32.xlu0 %v814, 4
    %v981 = vpop.permute.xlu0 %980
    %982 = vrot.lane.b32.xlu0 %v815, 4
    %v983 = vpop.permute.xlu0 %982
    %984 = vrot.lane.b32.xlu0 %v816, 4
    %v985 = vpop.permute.xlu0 %984
    %986 = vrot.lane.b32.xlu0 %v817, 4
    %v987 = vpop.permute.xlu0 %986
    %988 = vrot.lane.b32.xlu0 %v818, 4
    %v989 = vpop.permute.xlu0 %988
    %990 = vrot.lane.b32.xlu0 %v819, 4
    %v991 = vpop.permute.xlu0 %990
    %992 = vrot.lane.b32.xlu0 %v820, 4
    %v993 = vpop.permute.xlu0 %992
    %994 = vrot.lane.b32.xlu0 %v821, 4
    %v995 = vpop.permute.xlu0 %994
    %996 = vrot.lane.b32.xlu0 %v822, 4
    %v997 = vpop.permute.xlu0 %996
    %998 = vrot.lane.b32.xlu0 %v823, 4
    %v999 = vpop.permute.xlu0 %998
    %1000 = vrot.lane.b32.xlu0 %v824, 4
    %v1001 = vpop.permute.xlu0 %1000
    %1002 = vrot.lane.b32.xlu0 %v825, 4
    %v1003 = vpop.permute.xlu0 %1002
    %1004 = vrot.lane.b32.xlu0 %v826, 4
    %v1005 = vpop.permute.xlu0 %1004
    %1006 = vrot.lane.b32.xlu0 %v827, 4
    %v1007 = vpop.permute.xlu0 %1006
    %1008 = vrot.lane.b32.xlu0 %v828, 4
    %v1009 = vpop.permute.xlu0 %1008
    %1010 = vrot.lane.b32.xlu0 %v829, 4
    %v1011 = vpop.permute.xlu0 %1010
    %1012 = vrot.lane.b32.xlu0 %v830, 4
    %v1013 = vpop.permute.xlu0 %1012
    %1014 = vrot.lane.b32.xlu0 %v831, 4
    %v1015 = vpop.permute.xlu0 %1014
    %1016 = vrot.lane.b32.xlu0 %v832, 4
    %v1017 = vpop.permute.xlu0 %1016
    %1018 = vrot.lane.b32.xlu0 %v833, 4
    %v1019 = vpop.permute.xlu0 %1018
    %1020 = vrot.lane.b32.xlu0 %v834, 4
    %v1021 = vpop.permute.xlu0 %1020
    %1022 = vrot.lane.b32.xlu0 %v835, 4
    %v1023 = vpop.permute.xlu0 %1022
    %1024 = vrot.lane.b32.xlu0 %v836, 4
    %v1025 = vpop.permute.xlu0 %1024
    %1026 = vrot.lane.b32.xlu0 %v837, 4
    %v1027 = vpop.permute.xlu0 %1026
    %1028 = vrot.lane.b32.xlu0 %v838, 4
    %v1029 = vpop.permute.xlu0 %1028
    %1030 = vrot.lane.b32.xlu0 %v839, 4
    %v1031 = vpop.permute.xlu0 %1030
    %v1096 = vsel %vm110, %v46, %v905
    %v1097 = vsel %vm110, %v47, %v907
    %v1098 = vsel %vm110, %v48, %v909
    %v1099 = vsel %vm110, %v49, %v911
    %v1100 = vsel %vm110, %v50, %v913
    %v1101 = vsel %vm110, %v51, %v915
    %v1102 = vsel %vm110, %v52, %v917
    %v1103 = vsel %vm110, %v53, %v919
    %v1104 = vsel %vm110, %v54, %v921
    %v1105 = vsel %vm110, %v55, %v923
    %v1106 = vsel %vm110, %v56, %v925
    %v1107 = vsel %vm110, %v57, %v927
    %v1108 = vsel %vm110, %v58, %v929
    %v1109 = vsel %vm110, %v59, %v931
    %v1110 = vsel %vm110, %v60, %v933
    %v1111 = vsel %vm110, %v61, %v935
    %v1112 = vsel %vm110, %v62, %v937
    %v1113 = vsel %vm110, %v63, %v939
    %v1114 = vsel %vm110, %v64, %v941
    %v1115 = vsel %vm110, %v65, %v943
    %v1116 = vsel %vm110, %v66, %v945
    %v1117 = vsel %vm110, %v67, %v947
    %v1118 = vsel %vm110, %v68, %v949
    %v1119 = vsel %vm110, %v69, %v951
    %v1120 = vsel %vm110, %v70, %v953
    %v1121 = vsel %vm110, %v71, %v955
    %v1122 = vsel %vm110, %v72, %v957
    %v1123 = vsel %vm110, %v73, %v959
    %v1124 = vsel %vm110, %v74, %v961
    %v1125 = vsel %vm110, %v75, %v963
    %v1126 = vsel %vm110, %v76, %v965
    %v1127 = vsel %vm110, %v77, %v967
    %v1128 = vsel %vm110, %v78, %v969
    %v1129 = vsel %vm110, %v79, %v971
    %v1130 = vsel %vm110, %v80, %v973
    %v1131 = vsel %vm110, %v81, %v975
    %v1132 = vsel %vm110, %v82, %v977
    %v1133 = vsel %vm110, %v83, %v979
    %v1134 = vsel %vm110, %v84, %v981
    %v1135 = vsel %vm110, %v85, %v983
    %v1136 = vsel %vm110, %v86, %v985
    %v1137 = vsel %vm110, %v87, %v987
    %v1138 = vsel %vm110, %v88, %v989
    %v1139 = vsel %vm110, %v89, %v991
    %v1140 = vsel %vm110, %v90, %v993
    %v1141 = vsel %vm110, %v91, %v995
    %v1142 = vsel %vm110, %v92, %v997
    %v1143 = vsel %vm110, %v93, %v999
    %v1144 = vsel %vm110, %v94, %v1001
    %v1145 = vsel %vm110, %v95, %v1003
    %v1146 = vsel %vm110, %v96, %v1005
    %v1147 = vsel %vm110, %v97, %v1007
    %v1148 = vsel %vm110, %v98, %v1009
    %v1149 = vsel %vm110, %v99, %v1011
    %v1150 = vsel %vm110, %v100, %v1013
    %v1151 = vsel %vm110, %v101, %v1015
    %v1152 = vsel %vm110, %v102, %v1017
    %v1153 = vsel %vm110, %v103, %v1019
    %v1154 = vsel %vm110, %v104, %v1021
    %v1155 = vsel %vm110, %v105, %v1023
    %v1156 = vsel %vm110, %v106, %v1025
    %v1157 = vsel %vm110, %v107, %v1027
    %v1158 = vsel %vm110, %v108, %v1029
    %v1159 = vsel %vm110, %v109, %v1031
    %v1160 = vpack.c.bf16 %v1096, %v1096
    %v1161 = vpack.c.bf16 %v1097, %v1097
    %v1162 = vpack.c.bf16 %v1098, %v1098
    %v1163 = vpack.c.bf16 %v1099, %v1099
    %v1164 = vpack.c.bf16 %v1100, %v1100
    %v1165 = vpack.c.bf16 %v1101, %v1101
    %v1166 = vpack.c.bf16 %v1102, %v1102
    %v1167 = vpack.c.bf16 %v1103, %v1103
    %v1168 = vpack.c.bf16 %v1104, %v1104
    %v1169 = vpack.c.bf16 %v1105, %v1105
    %v1170 = vpack.c.bf16 %v1106, %v1106
    %v1171 = vpack.c.bf16 %v1107, %v1107
    %v1172 = vpack.c.bf16 %v1108, %v1108
    %v1173 = vpack.c.bf16 %v1109, %v1109
    %v1174 = vpack.c.bf16 %v1110, %v1110
    %v1175 = vpack.c.bf16 %v1111, %v1111
    %v1176 = vpack.c.bf16 %v1112, %v1112
    %v1177 = vpack.c.bf16 %v1113, %v1113
    %v1178 = vpack.c.bf16 %v1114, %v1114
    %v1179 = vpack.c.bf16 %v1115, %v1115
    %v1180 = vpack.c.bf16 %v1116, %v1116
    %v1181 = vpack.c.bf16 %v1117, %v1117
    %v1182 = vpack.c.bf16 %v1118, %v1118
    %v1183 = vpack.c.bf16 %v1119, %v1119
    %v1184 = vpack.c.bf16 %v1120, %v1120
    %v1185 = vpack.c.bf16 %v1121, %v1121
    %v1186 = vpack.c.bf16 %v1122, %v1122
    %v1187 = vpack.c.bf16 %v1123, %v1123
    %v1188 = vpack.c.bf16 %v1124, %v1124
    %v1189 = vpack.c.bf16 %v1125, %v1125
    %v1190 = vpack.c.bf16 %v1126, %v1126
    %v1191 = vpack.c.bf16 %v1127, %v1127
    %v1192 = vpack.c.bf16 %v1128, %v1128
    %v1193 = vpack.c.bf16 %v1129, %v1129
    %v1194 = vpack.c.bf16 %v1130, %v1130
    %v1195 = vpack.c.bf16 %v1131, %v1131
    %v1196 = vpack.c.bf16 %v1132, %v1132
    %v1197 = vpack.c.bf16 %v1133, %v1133
    %v1198 = vpack.c.bf16 %v1134, %v1134
    %v1199 = vpack.c.bf16 %v1135, %v1135
    %v1200 = vpack.c.bf16 %v1136, %v1136
    %v1201 = vpack.c.bf16 %v1137, %v1137
    %v1202 = vpack.c.bf16 %v1138, %v1138
    %v1203 = vpack.c.bf16 %v1139, %v1139
    %v1204 = vpack.c.bf16 %v1140, %v1140
    %v1205 = vpack.c.bf16 %v1141, %v1141
    %v1206 = vpack.c.bf16 %v1142, %v1142
    %v1207 = vpack.c.bf16 %v1143, %v1143
    %v1208 = vpack.c.bf16 %v1144, %v1144
    %v1209 = vpack.c.bf16 %v1145, %v1145
    %v1210 = vpack.c.bf16 %v1146, %v1146
    %v1211 = vpack.c.bf16 %v1147, %v1147
    %v1212 = vpack.c.bf16 %v1148, %v1148
    %v1213 = vpack.c.bf16 %v1149, %v1149
    %v1214 = vpack.c.bf16 %v1150, %v1150
    %v1215 = vpack.c.bf16 %v1151, %v1151
    %v1216 = vpack.c.bf16 %v1152, %v1152
    %v1217 = vpack.c.bf16 %v1153, %v1153
    %v1218 = vpack.c.bf16 %v1154, %v1154
    %v1219 = vpack.c.bf16 %v1155, %v1155
    %v1220 = vpack.c.bf16 %v1156, %v1156
    %v1221 = vpack.c.bf16 %v1157, %v1157
    %v1222 = vpack.c.bf16 %v1158, %v1158
    %v1223 = vpack.c.bf16 %v1159, %v1159
    %v1224 = vld [vmem:[%s1] sm:$0xf]
    %v1225 = vld [vmem:[%s2] sm:$0x1]
    %v1227 = vperm.slane %v1225, 0
    %v1293 = vunpack.c.l.b16 %v1160
    %v1294 = vunpack.c.l.b16 %v1161
    %v1295 = vunpack.c.l.b16 %v1162
    %v1296 = vunpack.c.l.b16 %v1163
    %v1297 = vunpack.c.l.b16 %v1164
    %v1298 = vunpack.c.l.b16 %v1165
    %v1299 = vunpack.c.l.b16 %v1166
    %v1300 = vunpack.c.l.b16 %v1167
    %v1301 = vunpack.c.l.b16 %v1168
    %v1302 = vunpack.c.l.b16 %v1169
    %v1303 = vunpack.c.l.b16 %v1170
    %v1304 = vunpack.c.l.b16 %v1171
    %v1305 = vunpack.c.l.b16 %v1172
    %v1306 = vunpack.c.l.b16 %v1173
    %v1307 = vunpack.c.l.b16 %v1174
    %v1308 = vunpack.c.l.b16 %v1175
    %v1309 = vunpack.c.l.b16 %v1176
    %v1310 = vunpack.c.l.b16 %v1177
    %v1311 = vunpack.c.l.b16 %v1178
    %v1312 = vunpack.c.l.b16 %v1179
    %v1313 = vunpack.c.l.b16 %v1180
    %v1314 = vunpack.c.l.b16 %v1181
    %v1315 = vunpack.c.l.b16 %v1182
    %v1316 = vunpack.c.l.b16 %v1183
    %v1317 = vunpack.c.l.b16 %v1184
    %v1318 = vunpack.c.l.b16 %v1185
    %v1319 = vunpack.c.l.b16 %v1186
    %v1320 = vunpack.c.l.b16 %v1187
    %v1321 = vunpack.c.l.b16 %v1188
    %v1322 = vunpack.c.l.b16 %v1189
    %v1323 = vunpack.c.l.b16 %v1190
    %v1324 = vunpack.c.l.b16 %v1191
    %v1325 = vunpack.c.l.b16 %v1192
    %v1326 = vunpack.c.l.b16 %v1193
    %v1327 = vunpack.c.l.b16 %v1194
    %v1328 = vunpack.c.l.b16 %v1195
    %v1329 = vunpack.c.l.b16 %v1196
    %v1330 = vunpack.c.l.b16 %v1197
    %v1331 = vunpack.c.l.b16 %v1198
    %v1332 = vunpack.c.l.b16 %v1199
    %v1333 = vunpack.c.l.b16 %v1200
    %v1334 = vunpack.c.l.b16 %v1201
    %v1335 = vunpack.c.l.b16 %v1202
    %v1336 = vunpack.c.l.b16 %v1203
    %v1337 = vunpack.c.l.b16 %v1204
    %v1338 = vunpack.c.l.b16 %v1205
    %v1339 = vunpack.c.l.b16 %v1206
    %v1340 = vunpack.c.l.b16 %v1207
    %v1341 = vunpack.c.l.b16 %v1208
    %v1342 = vunpack.c.l.b16 %v1209
    %v1343 = vunpack.c.l.b16 %v1210
    %v1344 = vunpack.c.l.b16 %v1211
    %v1345 = vunpack.c.l.b16 %v1212
    %v1346 = vunpack.c.l.b16 %v1213
    %v1347 = vunpack.c.l.b16 %v1214
    %v1348 = vunpack.c.l.b16 %v1215
    %v1349 = vunpack.c.l.b16 %v1216
    %v1350 = vunpack.c.l.b16 %v1217
    %v1351 = vunpack.c.l.b16 %v1218
    %v1352 = vunpack.c.l.b16 %v1219
    %v1353 = vunpack.c.l.b16 %v1220
    %v1354 = vunpack.c.l.b16 %v1221
    %v1355 = vunpack.c.l.b16 %v1222
    %v1356 = vunpack.c.l.b16 %v1223
    %v1357 = vpack.c.b16 %v1294, %v1293
    %v1358 = vpack.c.b16 %v1296, %v1295
    %v1359 = vpack.c.b16 %v1298, %v1297
    %v1360 = vpack.c.b16 %v1300, %v1299
    %v1361 = vpack.c.b16 %v1302, %v1301
    %v1362 = vpack.c.b16 %v1304, %v1303
    %v1363 = vpack.c.b16 %v1306, %v1305
    %v1364 = vpack.c.b16 %v1308, %v1307
    %v1365 = vpack.c.b16 %v1310, %v1309
    %v1366 = vpack.c.b16 %v1312, %v1311
    %v1367 = vpack.c.b16 %v1314, %v1313
    %v1368 = vpack.c.b16 %v1316, %v1315
    %v1369 = vpack.c.b16 %v1318, %v1317
    %v1370 = vpack.c.b16 %v1320, %v1319
    %v1371 = vpack.c.b16 %v1322, %v1321
    %v1372 = vpack.c.b16 %v1324, %v1323
    %v1373 = vpack.c.b16 %v1326, %v1325
    %v1374 = vpack.c.b16 %v1328, %v1327
    %v1375 = vpack.c.b16 %v1330, %v1329
    %v1376 = vpack.c.b16 %v1332, %v1331
    %v1377 = vpack.c.b16 %v1334, %v1333
    %v1378 = vpack.c.b16 %v1336, %v1335
    %v1379 = vpack.c.b16 %v1338, %v1337
    %v1380 = vpack.c.b16 %v1340, %v1339
    %v1381 = vpack.c.b16 %v1342, %v1341
    %v1382 = vpack.c.b16 %v1344, %v1343
    %v1383 = vpack.c.b16 %v1346, %v1345
    %v1384 = vpack.c.b16 %v1348, %v1347
    %v1385 = vpack.c.b16 %v1350, %v1349
    %v1386 = vpack.c.b16 %v1352, %v1351
    %v1387 = vpack.c.b16 %v1354, %v1353
    %v1388 = vpack.c.b16 %v1356, %v1355
    %vm1389 = vcmask 64512
    %v1391 = vsel %vm1389, %v1357, 0
    %v1394 = vsel %vm1389, %v1358, 0
    %v1397 = vsel %vm1389, %v1359, 0
    %v1400 = vsel %vm1389, %v1360, 0
    %v1403 = vsel %vm1389, %v1361, 0
    %v1406 = vsel %vm1389, %v1362, 0
    %v1409 = vsel %vm1389, %v1363, 0
    %v1412 = vsel %vm1389, %v1364, 0
    %v1415 = vsel %vm1389, %v1365, 0
    %v1418 = vsel %vm1389, %v1366, 0
    %v1421 = vsel %vm1389, %v1367, 0
    %v1424 = vsel %vm1389, %v1368, 0
    %v1427 = vsel %vm1389, %v1369, 0
    %v1430 = vsel %vm1389, %v1370, 0
    %v1433 = vsel %vm1389, %v1371, 0
    %v1436 = vsel %vm1389, %v1372, 0
    %v1439 = vsel %vm1389, %v1373, 0
    %v1442 = vsel %vm1389, %v1374, 0
    %v1445 = vsel %vm1389, %v1375, 0
    %v1448 = vsel %vm1389, %v1376, 0
    %v1451 = vsel %vm1389, %v1377, 0
    %v1454 = vsel %vm1389, %v1378, 0
    %v1457 = vsel %vm1389, %v1379, 0
    %v1460 = vsel %vm1389, %v1380, 0
    %v1463 = vsel %vm1389, %v1381, 0
    %v1466 = vsel %vm1389, %v1382, 0
    %v1469 = vsel %vm1389, %v1383, 0
    %v1472 = vsel %vm1389, %v1384, 0
    %v1475 = vsel %vm1389, %v1385, 0
    %v1478 = vsel %vm1389, %v1386, 0
    %v1481 = vsel %vm1389, %v1387, 0
    %v1484 = vsel %vm1389, %v1388, 0
    %vm1486 = vcmask 1043456
    %v1488 = vsel %vm1486, %v1224, 0
    %1490 = vmatpush.bf16.msra.mxu0 0
    %1491 = vmatpush.bf16.msra.mxu0 0
    %1492 = vmatpush.bf16.msra.mxu0 0
    %1493 = vmatpush.bf16.msra.mxu0 0
    %1494 = vmatpush.bf16.msra.mxu0 0
    %1495 = vmatpush.bf16.msra.mxu0 0
    %1496 = vmatpush.bf16.msra.mxu0 0
    %1497 = vmatpush.bf16.msra.mxu0 %v1488
    %1498 = vmatmul.bf16.gmra.mxu0 %v1391
    %v1499 = vpop.f32.mrf.mxu0
    %v1500 = vadd.f32 %v1227, %v1499
    %v1501 = vpop.f32.mrf.mxu0
    %v1502 = vadd.f32 %v1227, %v1501
    %1503 = vmatmul.bf16.gmra.mxu0 %v1394
    %v1504 = vpop.f32.mrf.mxu0
    %v1505 = vadd.f32 %v1227, %v1504
    %v1506 = vpop.f32.mrf.mxu0
    %v1507 = vadd.f32 %v1227, %v1506
    %1508 = vmatmul.bf16.gmra.mxu0 %v1397
    %v1509 = vpop.f32.mrf.mxu0
    %v1510 = vadd.f32 %v1227, %v1509
    %v1511 = vpop.f32.mrf.mxu0
    %v1512 = vadd.f32 %v1227, %v1511
    %1513 = vmatmul.bf16.gmra.mxu0 %v1400
    %v1514 = vpop.f32.mrf.mxu0
    %v1515 = vadd.f32 %v1227, %v1514
    %v1516 = vpop.f32.mrf.mxu0
    %v1517 = vadd.f32 %v1227, %v1516
    %1518 = vmatmul.bf16.gmra.mxu0 %v1403
    %v1519 = vpop.f32.mrf.mxu0
    %v1520 = vadd.f32 %v1227, %v1519
    %v1521 = vpop.f32.mrf.mxu0
    %v1522 = vadd.f32 %v1227, %v1521
    %1523 = vmatmul.bf16.gmra.mxu0 %v1406
    %v1524 = vpop.f32.mrf.mxu0
    %v1525 = vadd.f32 %v1227, %v1524
    %v1526 = vpop.f32.mrf.mxu0
    %v1527 = vadd.f32 %v1227, %v1526
    %1528 = vmatmul.bf16.gmra.mxu0 %v1409
    %v1529 = vpop.f32.mrf.mxu0
    %v1530 = vadd.f32 %v1227, %v1529
    %v1531 = vpop.f32.mrf.mxu0
    %v1532 = vadd.f32 %v1227, %v1531
    %1533 = vmatmul.bf16.gmra.mxu0 %v1412
    %v1534 = vpop.f32.mrf.mxu0
    %v1535 = vadd.f32 %v1227, %v1534
    %v1536 = vpop.f32.mrf.mxu0
    %v1537 = vadd.f32 %v1227, %v1536
    %1538 = vmatmul.bf16.gmra.mxu0 %v1415
    %v1539 = vpop.f32.mrf.mxu0
    %v1540 = vadd.f32 %v1227, %v1539
    %v1541 = vpop.f32.mrf.mxu0
    %v1542 = vadd.f32 %v1227, %v1541
    %1543 = vmatmul.bf16.gmra.mxu0 %v1418
    %v1544 = vpop.f32.mrf.mxu0
    %v1545 = vadd.f32 %v1227, %v1544
    %v1546 = vpop.f32.mrf.mxu0
    %v1547 = vadd.f32 %v1227, %v1546
    %1548 = vmatmul.bf16.gmra.mxu0 %v1421
    %v1549 = vpop.f32.mrf.mxu0
    %v1550 = vadd.f32 %v1227, %v1549
    %v1551 = vpop.f32.mrf.mxu0
    %v1552 = vadd.f32 %v1227, %v1551
    %1553 = vmatmul.bf16.gmra.mxu0 %v1424
    %v1554 = vpop.f32.mrf.mxu0
    %v1555 = vadd.f32 %v1227, %v1554
    %v1556 = vpop.f32.mrf.mxu0
    %v1557 = vadd.f32 %v1227, %v1556
    %1558 = vmatmul.bf16.gmra.mxu0 %v1427
    %v1559 = vpop.f32.mrf.mxu0
    %v1560 = vadd.f32 %v1227, %v1559
    %v1561 = vpop.f32.mrf.mxu0
    %v1562 = vadd.f32 %v1227, %v1561
    %1563 = vmatmul.bf16.gmra.mxu0 %v1430
    %v1564 = vpop.f32.mrf.mxu0
    %v1565 = vadd.f32 %v1227, %v1564
    %v1566 = vpop.f32.mrf.mxu0
    %v1567 = vadd.f32 %v1227, %v1566
    %1568 = vmatmul.bf16.gmra.mxu0 %v1433
    %v1569 = vpop.f32.mrf.mxu0
    %v1570 = vadd.f32 %v1227, %v1569
    %v1571 = vpop.f32.mrf.mxu0
    %v1572 = vadd.f32 %v1227, %v1571
    %1573 = vmatmul.bf16.gmra.mxu0 %v1436
    %v1574 = vpop.f32.mrf.mxu0
    %v1575 = vadd.f32 %v1227, %v1574
    %v1576 = vpop.f32.mrf.mxu0
    %v1577 = vadd.f32 %v1227, %v1576
    %1578 = vmatmul.bf16.gmra.mxu0 %v1439
    %v1579 = vpop.f32.mrf.mxu0
    %v1580 = vadd.f32 %v1227, %v1579
    %v1581 = vpop.f32.mrf.mxu0
    %v1582 = vadd.f32 %v1227, %v1581
    %1583 = vmatmul.bf16.gmra.mxu0 %v1442
    %v1584 = vpop.f32.mrf.mxu0
    %v1585 = vadd.f32 %v1227, %v1584
    %v1586 = vpop.f32.mrf.mxu0
    %v1587 = vadd.f32 %v1227, %v1586
    %1588 = vmatmul.bf16.gmra.mxu0 %v1445
    %v1589 = vpop.f32.mrf.mxu0
    %v1590 = vadd.f32 %v1227, %v1589
    %v1591 = vpop.f32.mrf.mxu0
    %v1592 = vadd.f32 %v1227, %v1591
    %1593 = vmatmul.bf16.gmra.mxu0 %v1448
    %v1594 = vpop.f32.mrf.mxu0
    %v1595 = vadd.f32 %v1227, %v1594
    %v1596 = vpop.f32.mrf.mxu0
    %v1597 = vadd.f32 %v1227, %v1596
    %1598 = vmatmul.bf16.gmra.mxu0 %v1451
    %v1599 = vpop.f32.mrf.mxu0
    %v1600 = vadd.f32 %v1227, %v1599
    %v1601 = vpop.f32.mrf.mxu0
    %v1602 = vadd.f32 %v1227, %v1601
    %1603 = vmatmul.bf16.gmra.mxu0 %v1454
    %v1604 = vpop.f32.mrf.mxu0
    %v1605 = vadd.f32 %v1227, %v1604
    %v1606 = vpop.f32.mrf.mxu0
    %v1607 = vadd.f32 %v1227, %v1606
    %1608 = vmatmul.bf16.gmra.mxu0 %v1457
    %v1609 = vpop.f32.mrf.mxu0
    %v1610 = vadd.f32 %v1227, %v1609
    %v1611 = vpop.f32.mrf.mxu0
    %v1612 = vadd.f32 %v1227, %v1611
    %1613 = vmatmul.bf16.gmra.mxu0 %v1460
    %v1614 = vpop.f32.mrf.mxu0
    %v1615 = vadd.f32 %v1227, %v1614
    %v1616 = vpop.f32.mrf.mxu0
    %v1617 = vadd.f32 %v1227, %v1616
    %1618 = vmatmul.bf16.gmra.mxu0 %v1463
    %v1619 = vpop.f32.mrf.mxu0
    %v1620 = vadd.f32 %v1227, %v1619
    %v1621 = vpop.f32.mrf.mxu0
    %v1622 = vadd.f32 %v1227, %v1621
    %1623 = vmatmul.bf16.gmra.mxu0 %v1466
    %v1624 = vpop.f32.mrf.mxu0
    %v1625 = vadd.f32 %v1227, %v1624
    %v1626 = vpop.f32.mrf.mxu0
    %v1627 = vadd.f32 %v1227, %v1626
    %1628 = vmatmul.bf16.gmra.mxu0 %v1469
    %v1629 = vpop.f32.mrf.mxu0
    %v1630 = vadd.f32 %v1227, %v1629
    %v1631 = vpop.f32.mrf.mxu0
    %v1632 = vadd.f32 %v1227, %v1631
    %1633 = vmatmul.bf16.gmra.mxu0 %v1472
    %v1634 = vpop.f32.mrf.mxu0
    %v1635 = vadd.f32 %v1227, %v1634
    %v1636 = vpop.f32.mrf.mxu0
    %v1637 = vadd.f32 %v1227, %v1636
    %1638 = vmatmul.bf16.gmra.mxu0 %v1475
    %v1639 = vpop.f32.mrf.mxu0
    %v1640 = vadd.f32 %v1227, %v1639
    %v1641 = vpop.f32.mrf.mxu0
    %v1642 = vadd.f32 %v1227, %v1641
    %1643 = vmatmul.bf16.gmra.mxu0 %v1478
    %v1644 = vpop.f32.mrf.mxu0
    %v1645 = vadd.f32 %v1227, %v1644
    %v1646 = vpop.f32.mrf.mxu0
    %v1647 = vadd.f32 %v1227, %v1646
    %1648 = vmatmul.bf16.gmra.mxu0 %v1481
    %v1649 = vpop.f32.mrf.mxu0
    %v1650 = vadd.f32 %v1227, %v1649
    %v1651 = vpop.f32.mrf.mxu0
    %v1652 = vadd.f32 %v1227, %v1651
    %1653 = vmatmul.bf16.gmra.mxu0 %v1484
    %v1654 = vpop.f32.mrf.mxu0
    %v1655 = vadd.f32 %v1227, %v1654
    %v1656 = vpop.f32.mrf.mxu0
    %v1657 = vadd.f32 %v1227, %v1656
    %1658 = vdwg.mxu0
    %vm1659 = vcmask 261120
    %v1660 = vsel %vm1659, %v1500, 0.0
    %v1661 = vsel %vm1659, %v1502, 0.0
    %v1662 = vadd.f32 %v1660, %v1661
    %v1663 = vsel %vm1659, %v1505, 0.0
    %v1664 = vadd.f32 %v1662, %v1663
    %v1665 = vsel %vm1659, %v1507, 0.0
    %v1666 = vadd.f32 %v1664, %v1665
    %v1667 = vsel %vm1659, %v1510, 0.0
    %v1668 = vadd.f32 %v1666, %v1667
    %v1669 = vsel %vm1659, %v1512, 0.0
    %v1670 = vadd.f32 %v1668, %v1669
    %v1671 = vsel %vm1659, %v1515, 0.0
    %v1672 = vadd.f32 %v1670, %v1671
    %v1673 = vsel %vm1659, %v1517, 0.0
    %v1674 = vadd.f32 %v1672, %v1673
    %v1675 = vsel %vm1659, %v1520, 0.0
    %v1676 = vadd.f32 %v1674, %v1675
    %v1677 = vsel %vm1659, %v1522, 0.0
    %v1678 = vadd.f32 %v1676, %v1677
    %v1679 = vsel %vm1659, %v1525, 0.0
    %v1680 = vadd.f32 %v1678, %v1679
    %v1681 = vsel %vm1659, %v1527, 0.0
    %v1682 = vadd.f32 %v1680, %v1681
    %v1683 = vsel %vm1659, %v1530, 0.0
    %v1684 = vadd.f32 %v1682, %v1683
    %v1685 = vsel %vm1659, %v1532, 0.0
    %v1686 = vadd.f32 %v1684, %v1685
    %v1687 = vsel %vm1659, %v1535, 0.0
    %v1688 = vadd.f32 %v1686, %v1687
    %v1689 = vsel %vm1659, %v1537, 0.0
    %v1690 = vadd.f32 %v1688, %v1689
    %v1691 = vsel %vm1659, %v1540, 0.0
    %v1692 = vadd.f32 %v1690, %v1691
    %v1693 = vsel %vm1659, %v1542, 0.0
    %v1694 = vadd.f32 %v1692, %v1693
    %v1695 = vsel %vm1659, %v1545, 0.0
    %v1696 = vadd.f32 %v1694, %v1695
    %v1697 = vsel %vm1659, %v1547, 0.0
    %v1698 = vadd.f32 %v1696, %v1697
    %v1699 = vsel %vm1659, %v1550, 0.0
    %v1700 = vadd.f32 %v1698, %v1699
    %v1701 = vsel %vm1659, %v1552, 0.0
    %v1702 = vadd.f32 %v1700, %v1701
    %v1703 = vsel %vm1659, %v1555, 0.0
    %v1704 = vadd.f32 %v1702, %v1703
    %v1705 = vsel %vm1659, %v1557, 0.0
    %v1706 = vadd.f32 %v1704, %v1705
    %v1707 = vsel %vm1659, %v1560, 0.0
    %v1708 = vadd.f32 %v1706, %v1707
    %v1709 = vsel %vm1659, %v1562, 0.0
    %v1710 = vadd.f32 %v1708, %v1709
    %v1711 = vsel %vm1659, %v1565, 0.0
    %v1712 = vadd.f32 %v1710, %v1711
    %v1713 = vsel %vm1659, %v1567, 0.0
    %v1714 = vadd.f32 %v1712, %v1713
    %v1715 = vsel %vm1659, %v1570, 0.0
    %v1716 = vadd.f32 %v1714, %v1715
    %v1717 = vsel %vm1659, %v1572, 0.0
    %v1718 = vadd.f32 %v1716, %v1717
    %v1719 = vsel %vm1659, %v1575, 0.0
    %v1720 = vadd.f32 %v1718, %v1719
    %v1721 = vsel %vm1659, %v1577, 0.0
    %v1722 = vadd.f32 %v1720, %v1721
    %v1723 = vsel %vm1659, %v1580, 0.0
    %v1724 = vadd.f32 %v1722, %v1723
    %v1725 = vsel %vm1659, %v1582, 0.0
    %v1726 = vadd.f32 %v1724, %v1725
    %v1727 = vsel %vm1659, %v1585, 0.0
    %v1728 = vadd.f32 %v1726, %v1727
    %v1729 = vsel %vm1659, %v1587, 0.0
    %v1730 = vadd.f32 %v1728, %v1729
    %v1731 = vsel %vm1659, %v1590, 0.0
    %v1732 = vadd.f32 %v1730, %v1731
    %v1733 = vsel %vm1659, %v1592, 0.0
    %v1734 = vadd.f32 %v1732, %v1733
    %v1735 = vsel %vm1659, %v1595, 0.0
    %v1736 = vadd.f32 %v1734, %v1735
    %v1737 = vsel %vm1659, %v1597, 0.0
    %v1738 = vadd.f32 %v1736, %v1737
    %v1739 = vsel %vm1659, %v1600, 0.0
    %v1740 = vadd.f32 %v1738, %v1739
    %v1741 = vsel %vm1659, %v1602, 0.0
    %v1742 = vadd.f32 %v1740, %v1741
    %v1743 = vsel %vm1659, %v1605, 0.0
    %v1744 = vadd.f32 %v1742, %v1743
    %v1745 = vsel %vm1659, %v1607, 0.0
    %v1746 = vadd.f32 %v1744, %v1745
    %v1747 = vsel %vm1659, %v1610, 0.0
    %v1748 = vadd.f32 %v1746, %v1747
    %v1749 = vsel %vm1659, %v1612, 0.0
    %v1750 = vadd.f32 %v1748, %v1749
    %v1751 = vsel %vm1659, %v1615, 0.0
    %v1752 = vadd.f32 %v1750, %v1751
    %v1753 = vsel %vm1659, %v1617, 0.0
    %v1754 = vadd.f32 %v1752, %v1753
    %v1755 = vsel %vm1659, %v1620, 0.0
    %v1756 = vadd.f32 %v1754, %v1755
    %v1757 = vsel %vm1659, %v1622, 0.0
    %v1758 = vadd.f32 %v1756, %v1757
    %v1759 = vsel %vm1659, %v1625, 0.0
    %v1760 = vadd.f32 %v1758, %v1759
    %v1761 = vsel %vm1659, %v1627, 0.0
    %v1762 = vadd.f32 %v1760, %v1761
    %v1763 = vsel %vm1659, %v1630, 0.0
    %v1764 = vadd.f32 %v1762, %v1763
    %v1765 = vsel %vm1659, %v1632, 0.0
    %v1766 = vadd.f32 %v1764, %v1765
    %v1767 = vsel %vm1659, %v1635, 0.0
    %v1768 = vadd.f32 %v1766, %v1767
    %v1769 = vsel %vm1659, %v1637, 0.0
    %v1770 = vadd.f32 %v1768, %v1769
    %v1771 = vsel %vm1659, %v1640, 0.0
    %v1772 = vadd.f32 %v1770, %v1771
    %v1773 = vsel %vm1659, %v1642, 0.0
    %v1774 = vadd.f32 %v1772, %v1773
    %v1775 = vsel %vm1659, %v1645, 0.0
    %v1776 = vadd.f32 %v1774, %v1775
    %v1777 = vsel %vm1659, %v1647, 0.0
    %v1778 = vadd.f32 %v1776, %v1777
    %v1779 = vsel %vm1659, %v1650, 0.0
    %v1780 = vadd.f32 %v1778, %v1779
    %v1781 = vsel %vm1659, %v1652, 0.0
    %v1782 = vadd.f32 %v1780, %v1781
    %v1783 = vsel %vm1659, %v1655, 0.0
    %v1784 = vadd.f32 %v1782, %v1783
    %v1785 = vsel %vm1659, %v1657, 0.0
    %v1786 = vadd.f32 %v1784, %v1785
    %v1787 = vrot.slane %v1786, 4
    %v1788 = vadd.f32 %v1786, %v1787
    %v1789 = vrot.slane %v1788, 2
    %v1790 = vadd.f32 %v1788, %v1789
    %v1791 = vrot.slane %v1790, 1
    %v1792 = vadd.f32 %v1790, %v1791
    %v1793 = vrcp.pop 512.0
    %v1794 = vmul.f32 512.0, %v1793
    %v1795 = vsub.f32 1.0, %v1794
    %v1796 = vmul.f32 %v1793, %v1795
    %v1797 = vadd.f32 %v1793, %v1796
    %vm1798 = vweird.f32 %v1793
    %v1799 = vsel %vm1798, %v1793, %v1797
    %v1800 = vmul.f32 %v1792, %v1799
    %v1801 = vmul.f32 %v1500, %v1500
    %v1802 = vmul.f32 %v1502, %v1502
    %v1803 = vmul.f32 %v1505, %v1505
    %v1804 = vmul.f32 %v1507, %v1507
    %v1805 = vmul.f32 %v1510, %v1510
    %v1806 = vmul.f32 %v1512, %v1512
    %v1807 = vmul.f32 %v1515, %v1515
    %v1808 = vmul.f32 %v1517, %v1517
    %v1809 = vmul.f32 %v1520, %v1520
    %v1810 = vmul.f32 %v1522, %v1522
    %v1811 = vmul.f32 %v1525, %v1525
    %v1812 = vmul.f32 %v1527, %v1527
    %v1813 = vmul.f32 %v1530, %v1530
    %v1814 = vmul.f32 %v1532, %v1532
    %v1815 = vmul.f32 %v1535, %v1535
    %v1816 = vmul.f32 %v1537, %v1537
    %v1817 = vmul.f32 %v1540, %v1540
    %v1818 = vmul.f32 %v1542, %v1542
    %v1819 = vmul.f32 %v1545, %v1545
    %v1820 = vmul.f32 %v1547, %v1547
    %v1821 = vmul.f32 %v1550, %v1550
    %v1822 = vmul.f32 %v1552, %v1552
    %v1823 = vmul.f32 %v1555, %v1555
    %v1824 = vmul.f32 %v1557, %v1557
    %v1825 = vmul.f32 %v1560, %v1560
    %v1826 = vmul.f32 %v1562, %v1562
    %v1827 = vmul.f32 %v1565, %v1565
    %v1828 = vmul.f32 %v1567, %v1567
    %v1829 = vmul.f32 %v1570, %v1570
    %v1830 = vmul.f32 %v1572, %v1572
    %v1831 = vmul.f32 %v1575, %v1575
    %v1832 = vmul.f32 %v1577, %v1577
    %v1833 = vmul.f32 %v1580, %v1580
    %v1834 = vmul.f32 %v1582, %v1582
    %v1835 = vmul.f32 %v1585, %v1585
    %v1836 = vmul.f32 %v1587, %v1587
    %v1837 = vmul.f32 %v1590, %v1590
    %v1838 = vmul.f32 %v1592, %v1592
    %v1839 = vmul.f32 %v1595, %v1595
    %v1840 = vmul.f32 %v1597, %v1597
    %v1841 = vmul.f32 %v1600, %v1600
    %v1842 = vmul.f32 %v1602, %v1602
    %v1843 = vmul.f32 %v1605, %v1605
    %v1844 = vmul.f32 %v1607, %v1607
    %v1845 = vmul.f32 %v1610, %v1610
    %v1846 = vmul.f32 %v1612, %v1612
    %v1847 = vmul.f32 %v1615, %v1615
    %v1848 = vmul.f32 %v1617, %v1617
    %v1849 = vmul.f32 %v1620, %v1620
    %v1850 = vmul.f32 %v1622, %v1622
    %v1851 = vmul.f32 %v1625, %v1625
    %v1852 = vmul.f32 %v1627, %v1627
    %v1853 = vmul.f32 %v1630, %v1630
    %v1854 = vmul.f32 %v1632, %v1632
    %v1855 = vmul.f32 %v1635, %v1635
    %v1856 = vmul.f32 %v1637, %v1637
    %v1857 = vmul.f32 %v1640, %v1640
    %v1858 = vmul.f32 %v1642, %v1642
    %v1859 = vmul.f32 %v1645, %v1645
    %v1860 = vmul.f32 %v1647, %v1647
    %v1861 = vmul.f32 %v1650, %v1650
    %v1862 = vmul.f32 %v1652, %v1652
    %v1863 = vmul.f32 %v1655, %v1655
    %v1864 = vmul.f32 %v1657, %v1657
    %v1865 = vsel %vm1659, %v1801, 0.0
    %v1866 = vsel %vm1659, %v1802, 0.0
    %v1867 = vadd.f32 %v1865, %v1866
    %v1868 = vsel %vm1659, %v1803, 0.0
    %v1869 = vadd.f32 %v1867, %v1868
    %v1870 = vsel %vm1659, %v1804, 0.0
    %v1871 = vadd.f32 %v1869, %v1870
    %v1872 = vsel %vm1659, %v1805, 0.0
    %v1873 = vadd.f32 %v1871, %v1872
    %v1874 = vsel %vm1659, %v1806, 0.0
    %v1875 = vadd.f32 %v1873, %v1874
    %v1876 = vsel %vm1659, %v1807, 0.0
    %v1877 = vadd.f32 %v1875, %v1876
    %v1878 = vsel %vm1659, %v1808, 0.0
    %v1879 = vadd.f32 %v1877, %v1878
    %v1880 = vsel %vm1659, %v1809, 0.0
    %v1881 = vadd.f32 %v1879, %v1880
    %v1882 = vsel %vm1659, %v1810, 0.0
    %v1883 = vadd.f32 %v1881, %v1882
    %v1884 = vsel %vm1659, %v1811, 0.0
    %v1885 = vadd.f32 %v1883, %v1884
    %v1886 = vsel %vm1659, %v1812, 0.0
    %v1887 = vadd.f32 %v1885, %v1886
    %v1888 = vsel %vm1659, %v1813, 0.0
    %v1889 = vadd.f32 %v1887, %v1888
    %v1890 = vsel %vm1659, %v1814, 0.0
    %v1891 = vadd.f32 %v1889, %v1890
    %v1892 = vsel %vm1659, %v1815, 0.0
    %v1893 = vadd.f32 %v1891, %v1892
    %v1894 = vsel %vm1659, %v1816, 0.0
    %v1895 = vadd.f32 %v1893, %v1894
    %v1896 = vsel %vm1659, %v1817, 0.0
    %v1897 = vadd.f32 %v1895, %v1896
    %v1898 = vsel %vm1659, %v1818, 0.0
    %v1899 = vadd.f32 %v1897, %v1898
    %v1900 = vsel %vm1659, %v1819, 0.0
    %v1901 = vadd.f32 %v1899, %v1900
    %v1902 = vsel %vm1659, %v1820, 0.0
    %v1903 = vadd.f32 %v1901, %v1902
    %v1904 = vsel %vm1659, %v1821, 0.0
    %v1905 = vadd.f32 %v1903, %v1904
    %v1906 = vsel %vm1659, %v1822, 0.0
    %v1907 = vadd.f32 %v1905, %v1906
    %v1908 = vsel %vm1659, %v1823, 0.0
    %v1909 = vadd.f32 %v1907, %v1908
    %v1910 = vsel %vm1659, %v1824, 0.0
    %v1911 = vadd.f32 %v1909, %v1910
    %v1912 = vsel %vm1659, %v1825, 0.0
    %v1913 = vadd.f32 %v1911, %v1912
    %v1914 = vsel %vm1659, %v1826, 0.0
    %v1915 = vadd.f32 %v1913, %v1914
    %v1916 = vsel %vm1659, %v1827, 0.0
    %v1917 = vadd.f32 %v1915, %v1916
    %v1918 = vsel %vm1659, %v1828, 0.0
    %v1919 = vadd.f32 %v1917, %v1918
    %v1920 = vsel %vm1659, %v1829, 0.0
    %v1921 = vadd.f32 %v1919, %v1920
    %v1922 = vsel %vm1659, %v1830, 0.0
    %v1923 = vadd.f32 %v1921, %v1922
    %v1924 = vsel %vm1659, %v1831, 0.0
    %v1925 = vadd.f32 %v1923, %v1924
    %v1926 = vsel %vm1659, %v1832, 0.0
    %v1927 = vadd.f32 %v1925, %v1926
    %v1928 = vsel %vm1659, %v1833, 0.0
    %v1929 = vadd.f32 %v1927, %v1928
    %v1930 = vsel %vm1659, %v1834, 0.0
    %v1931 = vadd.f32 %v1929, %v1930
    %v1932 = vsel %vm1659, %v1835, 0.0
    %v1933 = vadd.f32 %v1931, %v1932
    %v1934 = vsel %vm1659, %v1836, 0.0
    %v1935 = vadd.f32 %v1933, %v1934
    %v1936 = vsel %vm1659, %v1837, 0.0
    %v1937 = vadd.f32 %v1935, %v1936
    %v1938 = vsel %vm1659, %v1838, 0.0
    %v1939 = vadd.f32 %v1937, %v1938
    %v1940 = vsel %vm1659, %v1839, 0.0
    %v1941 = vadd.f32 %v1939, %v1940
    %v1942 = vsel %vm1659, %v1840, 0.0
    %v1943 = vadd.f32 %v1941, %v1942
    %v1944 = vsel %vm1659, %v1841, 0.0
    %v1945 = vadd.f32 %v1943, %v1944
    %v1946 = vsel %vm1659, %v1842, 0.0
    %v1947 = vadd.f32 %v1945, %v1946
    %v1948 = vsel %vm1659, %v1843, 0.0
    %v1949 = vadd.f32 %v1947, %v1948
    %v1950 = vsel %vm1659, %v1844, 0.0
    %v1951 = vadd.f32 %v1949, %v1950
    %v1952 = vsel %vm1659, %v1845, 0.0
    %v1953 = vadd.f32 %v1951, %v1952
    %v1954 = vsel %vm1659, %v1846, 0.0
    %v1955 = vadd.f32 %v1953, %v1954
    %v1956 = vsel %vm1659, %v1847, 0.0
    %v1957 = vadd.f32 %v1955, %v1956
    %v1958 = vsel %vm1659, %v1848, 0.0
    %v1959 = vadd.f32 %v1957, %v1958
    %v1960 = vsel %vm1659, %v1849, 0.0
    %v1961 = vadd.f32 %v1959, %v1960
    %v1962 = vsel %vm1659, %v1850, 0.0
    %v1963 = vadd.f32 %v1961, %v1962
    %v1964 = vsel %vm1659, %v1851, 0.0
    %v1965 = vadd.f32 %v1963, %v1964
    %v1966 = vsel %vm1659, %v1852, 0.0
    %v1967 = vadd.f32 %v1965, %v1966
    %v1968 = vsel %vm1659, %v1853, 0.0
    %v1969 = vadd.f32 %v1967, %v1968
    %v1970 = vsel %vm1659, %v1854, 0.0
    %v1971 = vadd.f32 %v1969, %v1970
    %v1972 = vsel %vm1659, %v1855, 0.0
    %v1973 = vadd.f32 %v1971, %v1972
    %v1974 = vsel %vm1659, %v1856, 0.0
    %v1975 = vadd.f32 %v1973, %v1974
    %v1976 = vsel %vm1659, %v1857, 0.0
    %v1977 = vadd.f32 %v1975, %v1976
    %v1978 = vsel %vm1659, %v1858, 0.0
    %v1979 = vadd.f32 %v1977, %v1978
    %v1980 = vsel %vm1659, %v1859, 0.0
    %v1981 = vadd.f32 %v1979, %v1980
    %v1982 = vsel %vm1659, %v1860, 0.0
    %v1983 = vadd.f32 %v1981, %v1982
    %v1984 = vsel %vm1659, %v1861, 0.0
    %v1985 = vadd.f32 %v1983, %v1984
    %v1986 = vsel %vm1659, %v1862, 0.0
    %v1987 = vadd.f32 %v1985, %v1986
    %v1988 = vsel %vm1659, %v1863, 0.0
    %v1989 = vadd.f32 %v1987, %v1988
    %v1990 = vsel %vm1659, %v1864, 0.0
    %v1991 = vadd.f32 %v1989, %v1990
    %v1992 = vrot.slane %v1991, 4
    %v1993 = vadd.f32 %v1991, %v1992
    %v1994 = vrot.slane %v1993, 2
    %v1995 = vadd.f32 %v1993, %v1994
    %v1996 = vrot.slane %v1995, 1
    %v1997 = vadd.f32 %v1995, %v1996
    %v1998 = vmul.f32 %v1997, %v1799
    %v1999 = vmul.f32 %v1800, %v1800
    %v2000 = vsub.f32 %v1998, %v1999
    %v2001 = vmax.f32 %v2000, 0.0
    %v2002 = vsub.f32 %v1500, %v1800
    %v2003 = vsub.f32 %v1502, %v1800
    %v2004 = vsub.f32 %v1505, %v1800
    %v2005 = vsub.f32 %v1507, %v1800
    %v2006 = vsub.f32 %v1510, %v1800
    %v2007 = vsub.f32 %v1512, %v1800
    %v2008 = vsub.f32 %v1515, %v1800
    %v2009 = vsub.f32 %v1517, %v1800
    %v2010 = vsub.f32 %v1520, %v1800
    %v2011 = vsub.f32 %v1522, %v1800
    %v2012 = vsub.f32 %v1525, %v1800
    %v2013 = vsub.f32 %v1527, %v1800
    %v2014 = vsub.f32 %v1530, %v1800
    %v2015 = vsub.f32 %v1532, %v1800
    %v2016 = vsub.f32 %v1535, %v1800
    %v2017 = vsub.f32 %v1537, %v1800
    %v2018 = vsub.f32 %v1540, %v1800
    %v2019 = vsub.f32 %v1542, %v1800
    %v2020 = vsub.f32 %v1545, %v1800
    %v2021 = vsub.f32 %v1547, %v1800
    %v2022 = vsub.f32 %v1550, %v1800
    %v2023 = vsub.f32 %v1552, %v1800
    %v2024 = vsub.f32 %v1555, %v1800
    %v2025 = vsub.f32 %v1557, %v1800
    %v2026 = vsub.f32 %v1560, %v1800
    %v2027 = vsub.f32 %v1562, %v1800
    %v2028 = vsub.f32 %v1565, %v1800
    %v2029 = vsub.f32 %v1567, %v1800
    %v2030 = vsub.f32 %v1570, %v1800
    %v2031 = vsub.f32 %v1572, %v1800
    %v2032 = vsub.f32 %v1575, %v1800
    %v2033 = vsub.f32 %v1577, %v1800
    %v2034 = vsub.f32 %v1580, %v1800
    %v2035 = vsub.f32 %v1582, %v1800
    %v2036 = vsub.f32 %v1585, %v1800
    %v2037 = vsub.f32 %v1587, %v1800
    %v2038 = vsub.f32 %v1590, %v1800
    %v2039 = vsub.f32 %v1592, %v1800
    %v2040 = vsub.f32 %v1595, %v1800
    %v2041 = vsub.f32 %v1597, %v1800
    %v2042 = vsub.f32 %v1600, %v1800
    %v2043 = vsub.f32 %v1602, %v1800
    %v2044 = vsub.f32 %v1605, %v1800
    %v2045 = vsub.f32 %v1607, %v1800
    %v2046 = vsub.f32 %v1610, %v1800
    %v2047 = vsub.f32 %v1612, %v1800
    %v2048 = vsub.f32 %v1615, %v1800
    %v2049 = vsub.f32 %v1617, %v1800
    %v2050 = vsub.f32 %v1620, %v1800
    %v2051 = vsub.f32 %v1622, %v1800
    %v2052 = vsub.f32 %v1625, %v1800
    %v2053 = vsub.f32 %v1627, %v1800
    %v2054 = vsub.f32 %v1630, %v1800
    %v2055 = vsub.f32 %v1632, %v1800
    %v2056 = vsub.f32 %v1635, %v1800
    %v2057 = vsub.f32 %v1637, %v1800
    %v2058 = vsub.f32 %v1640, %v1800
    %v2059 = vsub.f32 %v1642, %v1800
    %v2060 = vsub.f32 %v1645, %v1800
    %v2061 = vsub.f32 %v1647, %v1800
    %v2062 = vsub.f32 %v1650, %v1800
    %v2063 = vsub.f32 %v1652, %v1800
    %v2064 = vsub.f32 %v1655, %v1800
    %v2065 = vsub.f32 %v1657, %v1800
    %v2066 = vadd.f32 %v2001, 1e-05
    %v2067 = vrsqrt.pop %v2066
    %v2068 = vmul.f32 %v2067, %v2066
    %v2069 = vmul.f32 %v2068, %v2067
    %v2070 = vmul.f32 0.5, %v2069
    %v2071 = vsub.f32 1.5, %v2070
    %v2072 = vmul.f32 %v2067, %v2071
    %vm2073 = vweird.f32 %v2066
    %vm2074 = vweird.f32 %v2067
    %vm2075 = vmor %vm2073, %vm2074
    %v2076 = vsel %vm2075, %v2067, %v2072
    %v2077 = vmul.f32 %v2002, %v2076
    %v2078 = vmul.f32 %v2003, %v2076
    %v2079 = vmul.f32 %v2004, %v2076
    %v2080 = vmul.f32 %v2005, %v2076
    %v2081 = vmul.f32 %v2006, %v2076
    %v2082 = vmul.f32 %v2007, %v2076
    %v2083 = vmul.f32 %v2008, %v2076
    %v2084 = vmul.f32 %v2009, %v2076
    %v2085 = vmul.f32 %v2010, %v2076
    %v2086 = vmul.f32 %v2011, %v2076
    %v2087 = vmul.f32 %v2012, %v2076
    %v2088 = vmul.f32 %v2013, %v2076
    %v2089 = vmul.f32 %v2014, %v2076
    %v2090 = vmul.f32 %v2015, %v2076
    %v2091 = vmul.f32 %v2016, %v2076
    %v2092 = vmul.f32 %v2017, %v2076
    %v2093 = vmul.f32 %v2018, %v2076
    %v2094 = vmul.f32 %v2019, %v2076
    %v2095 = vmul.f32 %v2020, %v2076
    %v2096 = vmul.f32 %v2021, %v2076
    %v2097 = vmul.f32 %v2022, %v2076
    %v2098 = vmul.f32 %v2023, %v2076
    %v2099 = vmul.f32 %v2024, %v2076
    %v2100 = vmul.f32 %v2025, %v2076
    %v2101 = vmul.f32 %v2026, %v2076
    %v2102 = vmul.f32 %v2027, %v2076
    %v2103 = vmul.f32 %v2028, %v2076
    %v2104 = vmul.f32 %v2029, %v2076
    %v2105 = vmul.f32 %v2030, %v2076
    %v2106 = vmul.f32 %v2031, %v2076
    %v2107 = vmul.f32 %v2032, %v2076
    %v2108 = vmul.f32 %v2033, %v2076
    %v2109 = vmul.f32 %v2034, %v2076
    %v2110 = vmul.f32 %v2035, %v2076
    %v2111 = vmul.f32 %v2036, %v2076
    %v2112 = vmul.f32 %v2037, %v2076
    %v2113 = vmul.f32 %v2038, %v2076
    %v2114 = vmul.f32 %v2039, %v2076
    %v2115 = vmul.f32 %v2040, %v2076
    %v2116 = vmul.f32 %v2041, %v2076
    %v2117 = vmul.f32 %v2042, %v2076
    %v2118 = vmul.f32 %v2043, %v2076
    %v2119 = vmul.f32 %v2044, %v2076
    %v2120 = vmul.f32 %v2045, %v2076
    %v2121 = vmul.f32 %v2046, %v2076
    %v2122 = vmul.f32 %v2047, %v2076
    %v2123 = vmul.f32 %v2048, %v2076
    %v2124 = vmul.f32 %v2049, %v2076
    %v2125 = vmul.f32 %v2050, %v2076
    %v2126 = vmul.f32 %v2051, %v2076
    %v2127 = vmul.f32 %v2052, %v2076
    %v2128 = vmul.f32 %v2053, %v2076
    %v2129 = vmul.f32 %v2054, %v2076
    %v2130 = vmul.f32 %v2055, %v2076
    %v2131 = vmul.f32 %v2056, %v2076
    %v2132 = vmul.f32 %v2057, %v2076
    %v2133 = vmul.f32 %v2058, %v2076
    %v2134 = vmul.f32 %v2059, %v2076
    %v2135 = vmul.f32 %v2060, %v2076
    %v2136 = vmul.f32 %v2061, %v2076
    %v2137 = vmul.f32 %v2062, %v2076
    %v2138 = vmul.f32 %v2063, %v2076
    %v2139 = vmul.f32 %v2064, %v2076
    %v2140 = vmul.f32 %v2065, %v2076
    %v2141 = vld [vmem:[%s3] sm:$0x1]
    %v2143 = vperm.slane %v2141, 0
    %v2145 = vmul.f32 %v2077, %v2143
    %v2146 = vmul.f32 %v2078, %v2143
    %v2147 = vmul.f32 %v2079, %v2143
    %v2148 = vmul.f32 %v2080, %v2143
    %v2149 = vmul.f32 %v2081, %v2143
    %v2150 = vmul.f32 %v2082, %v2143
    %v2151 = vmul.f32 %v2083, %v2143
    %v2152 = vmul.f32 %v2084, %v2143
    %v2153 = vmul.f32 %v2085, %v2143
    %v2154 = vmul.f32 %v2086, %v2143
    %v2155 = vmul.f32 %v2087, %v2143
    %v2156 = vmul.f32 %v2088, %v2143
    %v2157 = vmul.f32 %v2089, %v2143
    %v2158 = vmul.f32 %v2090, %v2143
    %v2159 = vmul.f32 %v2091, %v2143
    %v2160 = vmul.f32 %v2092, %v2143
    %v2161 = vmul.f32 %v2093, %v2143
    %v2162 = vmul.f32 %v2094, %v2143
    %v2163 = vmul.f32 %v2095, %v2143
    %v2164 = vmul.f32 %v2096, %v2143
    %v2165 = vmul.f32 %v2097, %v2143
    %v2166 = vmul.f32 %v2098, %v2143
    %v2167 = vmul.f32 %v2099, %v2143
    %v2168 = vmul.f32 %v2100, %v2143
    %v2169 = vmul.f32 %v2101, %v2143
    %v2170 = vmul.f32 %v2102, %v2143
    %v2171 = vmul.f32 %v2103, %v2143
    %v2172 = vmul.f32 %v2104, %v2143
    %v2173 = vmul.f32 %v2105, %v2143
    %v2174 = vmul.f32 %v2106, %v2143
    %v2175 = vmul.f32 %v2107, %v2143
    %v2176 = vmul.f32 %v2108, %v2143
    %v2177 = vmul.f32 %v2109, %v2143
    %v2178 = vmul.f32 %v2110, %v2143
    %v2179 = vmul.f32 %v2111, %v2143
    %v2180 = vmul.f32 %v2112, %v2143
    %v2181 = vmul.f32 %v2113, %v2143
    %v2182 = vmul.f32 %v2114, %v2143
    %v2183 = vmul.f32 %v2115, %v2143
    %v2184 = vmul.f32 %v2116, %v2143
    %v2185 = vmul.f32 %v2117, %v2143
    %v2186 = vmul.f32 %v2118, %v2143
    %v2187 = vmul.f32 %v2119, %v2143
    %v2188 = vmul.f32 %v2120, %v2143
    %v2189 = vmul.f32 %v2121, %v2143
    %v2190 = vmul.f32 %v2122, %v2143
    %v2191 = vmul.f32 %v2123, %v2143
    %v2192 = vmul.f32 %v2124, %v2143
    %v2193 = vmul.f32 %v2125, %v2143
    %v2194 = vmul.f32 %v2126, %v2143
    %v2195 = vmul.f32 %v2127, %v2143
    %v2196 = vmul.f32 %v2128, %v2143
    %v2197 = vmul.f32 %v2129, %v2143
    %v2198 = vmul.f32 %v2130, %v2143
    %v2199 = vmul.f32 %v2131, %v2143
    %v2200 = vmul.f32 %v2132, %v2143
    %v2201 = vmul.f32 %v2133, %v2143
    %v2202 = vmul.f32 %v2134, %v2143
    %v2203 = vmul.f32 %v2135, %v2143
    %v2204 = vmul.f32 %v2136, %v2143
    %v2205 = vmul.f32 %v2137, %v2143
    %v2206 = vmul.f32 %v2138, %v2143
    %v2207 = vmul.f32 %v2139, %v2143
    %v2208 = vmul.f32 %v2140, %v2143
    %v2209 = vld [vmem:[%s4] sm:$0x1]
    %v2211 = vperm.slane %v2209, 0
    %v2213 = vadd.f32 %v2145, %v2211
    %v2214 = vadd.f32 %v2146, %v2211
    %v2215 = vadd.f32 %v2147, %v2211
    %v2216 = vadd.f32 %v2148, %v2211
    %v2217 = vadd.f32 %v2149, %v2211
    %v2218 = vadd.f32 %v2150, %v2211
    %v2219 = vadd.f32 %v2151, %v2211
    %v2220 = vadd.f32 %v2152, %v2211
    %v2221 = vadd.f32 %v2153, %v2211
    %v2222 = vadd.f32 %v2154, %v2211
    %v2223 = vadd.f32 %v2155, %v2211
    %v2224 = vadd.f32 %v2156, %v2211
    %v2225 = vadd.f32 %v2157, %v2211
    %v2226 = vadd.f32 %v2158, %v2211
    %v2227 = vadd.f32 %v2159, %v2211
    %v2228 = vadd.f32 %v2160, %v2211
    %v2229 = vadd.f32 %v2161, %v2211
    %v2230 = vadd.f32 %v2162, %v2211
    %v2231 = vadd.f32 %v2163, %v2211
    %v2232 = vadd.f32 %v2164, %v2211
    %v2233 = vadd.f32 %v2165, %v2211
    %v2234 = vadd.f32 %v2166, %v2211
    %v2235 = vadd.f32 %v2167, %v2211
    %v2236 = vadd.f32 %v2168, %v2211
    %v2237 = vadd.f32 %v2169, %v2211
    %v2238 = vadd.f32 %v2170, %v2211
    %v2239 = vadd.f32 %v2171, %v2211
    %v2240 = vadd.f32 %v2172, %v2211
    %v2241 = vadd.f32 %v2173, %v2211
    %v2242 = vadd.f32 %v2174, %v2211
    %v2243 = vadd.f32 %v2175, %v2211
    %v2244 = vadd.f32 %v2176, %v2211
    %v2245 = vadd.f32 %v2177, %v2211
    %v2246 = vadd.f32 %v2178, %v2211
    %v2247 = vadd.f32 %v2179, %v2211
    %v2248 = vadd.f32 %v2180, %v2211
    %v2249 = vadd.f32 %v2181, %v2211
    %v2250 = vadd.f32 %v2182, %v2211
    %v2251 = vadd.f32 %v2183, %v2211
    %v2252 = vadd.f32 %v2184, %v2211
    %v2253 = vadd.f32 %v2185, %v2211
    %v2254 = vadd.f32 %v2186, %v2211
    %v2255 = vadd.f32 %v2187, %v2211
    %v2256 = vadd.f32 %v2188, %v2211
    %v2257 = vadd.f32 %v2189, %v2211
    %v2258 = vadd.f32 %v2190, %v2211
    %v2259 = vadd.f32 %v2191, %v2211
    %v2260 = vadd.f32 %v2192, %v2211
    %v2261 = vadd.f32 %v2193, %v2211
    %v2262 = vadd.f32 %v2194, %v2211
    %v2263 = vadd.f32 %v2195, %v2211
    %v2264 = vadd.f32 %v2196, %v2211
    %v2265 = vadd.f32 %v2197, %v2211
    %v2266 = vadd.f32 %v2198, %v2211
    %v2267 = vadd.f32 %v2199, %v2211
    %v2268 = vadd.f32 %v2200, %v2211
    %v2269 = vadd.f32 %v2201, %v2211
    %v2270 = vadd.f32 %v2202, %v2211
    %v2271 = vadd.f32 %v2203, %v2211
    %v2272 = vadd.f32 %v2204, %v2211
    %v2273 = vadd.f32 %v2205, %v2211
    %v2274 = vadd.f32 %v2206, %v2211
    %v2275 = vadd.f32 %v2207, %v2211
    %v2276 = vadd.f32 %v2208, %v2211
    %v2277 = vmax.f32 %v2213, 0.0
    %v2278 = vmax.f32 %v2214, 0.0
    %v2279 = vmax.f32 %v2215, 0.0
    %v2280 = vmax.f32 %v2216, 0.0
    %v2281 = vmax.f32 %v2217, 0.0
    %v2282 = vmax.f32 %v2218, 0.0
    %v2283 = vmax.f32 %v2219, 0.0
    %v2284 = vmax.f32 %v2220, 0.0
    %v2285 = vmax.f32 %v2221, 0.0
    %v2286 = vmax.f32 %v2222, 0.0
    %v2287 = vmax.f32 %v2223, 0.0
    %v2288 = vmax.f32 %v2224, 0.0
    %v2289 = vmax.f32 %v2225, 0.0
    %v2290 = vmax.f32 %v2226, 0.0
    %v2291 = vmax.f32 %v2227, 0.0
    %v2292 = vmax.f32 %v2228, 0.0
    %v2293 = vmax.f32 %v2229, 0.0
    %v2294 = vmax.f32 %v2230, 0.0
    %v2295 = vmax.f32 %v2231, 0.0
    %v2296 = vmax.f32 %v2232, 0.0
    %v2297 = vmax.f32 %v2233, 0.0
    %v2298 = vmax.f32 %v2234, 0.0
    %v2299 = vmax.f32 %v2235, 0.0
    %v2300 = vmax.f32 %v2236, 0.0
    %v2301 = vmax.f32 %v2237, 0.0
    %v2302 = vmax.f32 %v2238, 0.0
    %v2303 = vmax.f32 %v2239, 0.0
    %v2304 = vmax.f32 %v2240, 0.0
    %v2305 = vmax.f32 %v2241, 0.0
    %v2306 = vmax.f32 %v2242, 0.0
    %v2307 = vmax.f32 %v2243, 0.0
    %v2308 = vmax.f32 %v2244, 0.0
    %v2309 = vmax.f32 %v2245, 0.0
    %v2310 = vmax.f32 %v2246, 0.0
    %v2311 = vmax.f32 %v2247, 0.0
    %v2312 = vmax.f32 %v2248, 0.0
    %v2313 = vmax.f32 %v2249, 0.0
    %v2314 = vmax.f32 %v2250, 0.0
    %v2315 = vmax.f32 %v2251, 0.0
    %v2316 = vmax.f32 %v2252, 0.0
    %v2317 = vmax.f32 %v2253, 0.0
    %v2318 = vmax.f32 %v2254, 0.0
    %v2319 = vmax.f32 %v2255, 0.0
    %v2320 = vmax.f32 %v2256, 0.0
    %v2321 = vmax.f32 %v2257, 0.0
    %v2322 = vmax.f32 %v2258, 0.0
    %v2323 = vmax.f32 %v2259, 0.0
    %v2324 = vmax.f32 %v2260, 0.0
    %v2325 = vmax.f32 %v2261, 0.0
    %v2326 = vmax.f32 %v2262, 0.0
    %v2327 = vmax.f32 %v2263, 0.0
    %v2328 = vmax.f32 %v2264, 0.0
    %v2329 = vmax.f32 %v2265, 0.0
    %v2330 = vmax.f32 %v2266, 0.0
    %v2331 = vmax.f32 %v2267, 0.0
    %v2332 = vmax.f32 %v2268, 0.0
    %v2333 = vmax.f32 %v2269, 0.0
    %v2334 = vmax.f32 %v2270, 0.0
    %v2335 = vmax.f32 %v2271, 0.0
    %v2336 = vmax.f32 %v2272, 0.0
    %v2337 = vmax.f32 %v2273, 0.0
    %v2338 = vmax.f32 %v2274, 0.0
    %v2339 = vmax.f32 %v2275, 0.0
    %v2340 = vmax.f32 %v2276, 0.0
    %2405 = vrot.lane.b32.xlu0 %v2277, 16
    %v2406 = vpop.permute.xlu0 %2405
    %2407 = vrot.lane.b32.xlu0 %v2278, 16
    %v2408 = vpop.permute.xlu0 %2407
    %2409 = vrot.lane.b32.xlu0 %v2279, 16
    %v2410 = vpop.permute.xlu0 %2409
    %2411 = vrot.lane.b32.xlu0 %v2280, 16
    %v2412 = vpop.permute.xlu0 %2411
    %2413 = vrot.lane.b32.xlu0 %v2281, 16
    %v2414 = vpop.permute.xlu0 %2413
    %2415 = vrot.lane.b32.xlu0 %v2282, 16
    %v2416 = vpop.permute.xlu0 %2415
    %2417 = vrot.lane.b32.xlu0 %v2283, 16
    %v2418 = vpop.permute.xlu0 %2417
    %2419 = vrot.lane.b32.xlu0 %v2284, 16
    %v2420 = vpop.permute.xlu0 %2419
    %2421 = vrot.lane.b32.xlu0 %v2285, 16
    %v2422 = vpop.permute.xlu0 %2421
    %2423 = vrot.lane.b32.xlu0 %v2286, 16
    %v2424 = vpop.permute.xlu0 %2423
    %2425 = vrot.lane.b32.xlu0 %v2287, 16
    %v2426 = vpop.permute.xlu0 %2425
    %2427 = vrot.lane.b32.xlu0 %v2288, 16
    %v2428 = vpop.permute.xlu0 %2427
    %2429 = vrot.lane.b32.xlu0 %v2289, 16
    %v2430 = vpop.permute.xlu0 %2429
    %2431 = vrot.lane.b32.xlu0 %v2290, 16
    %v2432 = vpop.permute.xlu0 %2431
    %2433 = vrot.lane.b32.xlu0 %v2291, 16
    %v2434 = vpop.permute.xlu0 %2433
    %2435 = vrot.lane.b32.xlu0 %v2292, 16
    %v2436 = vpop.permute.xlu0 %2435
    %2437 = vrot.lane.b32.xlu0 %v2293, 16
    %v2438 = vpop.permute.xlu0 %2437
    %2439 = vrot.lane.b32.xlu0 %v2294, 16
    %v2440 = vpop.permute.xlu0 %2439
    %2441 = vrot.lane.b32.xlu0 %v2295, 16
    %v2442 = vpop.permute.xlu0 %2441
    %2443 = vrot.lane.b32.xlu0 %v2296, 16
    %v2444 = vpop.permute.xlu0 %2443
    %2445 = vrot.lane.b32.xlu0 %v2297, 16
    %v2446 = vpop.permute.xlu0 %2445
    %2447 = vrot.lane.b32.xlu0 %v2298, 16
    %v2448 = vpop.permute.xlu0 %2447
    %2449 = vrot.lane.b32.xlu0 %v2299, 16
    %v2450 = vpop.permute.xlu0 %2449
    %2451 = vrot.lane.b32.xlu0 %v2300, 16
    %v2452 = vpop.permute.xlu0 %2451
    %2453 = vrot.lane.b32.xlu0 %v2301, 16
    %v2454 = vpop.permute.xlu0 %2453
    %2455 = vrot.lane.b32.xlu0 %v2302, 16
    %v2456 = vpop.permute.xlu0 %2455
    %2457 = vrot.lane.b32.xlu0 %v2303, 16
    %v2458 = vpop.permute.xlu0 %2457
    %2459 = vrot.lane.b32.xlu0 %v2304, 16
    %v2460 = vpop.permute.xlu0 %2459
    %2461 = vrot.lane.b32.xlu0 %v2305, 16
    %v2462 = vpop.permute.xlu0 %2461
    %2463 = vrot.lane.b32.xlu0 %v2306, 16
    %v2464 = vpop.permute.xlu0 %2463
    %2465 = vrot.lane.b32.xlu0 %v2307, 16
    %v2466 = vpop.permute.xlu0 %2465
    %2467 = vrot.lane.b32.xlu0 %v2308, 16
    %v2468 = vpop.permute.xlu0 %2467
    %2469 = vrot.lane.b32.xlu0 %v2309, 16
    %v2470 = vpop.permute.xlu0 %2469
    %2471 = vrot.lane.b32.xlu0 %v2310, 16
    %v2472 = vpop.permute.xlu0 %2471
    %2473 = vrot.lane.b32.xlu0 %v2311, 16
    %v2474 = vpop.permute.xlu0 %2473
    %2475 = vrot.lane.b32.xlu0 %v2312, 16
    %v2476 = vpop.permute.xlu0 %2475
    %2477 = vrot.lane.b32.xlu0 %v2313, 16
    %v2478 = vpop.permute.xlu0 %2477
    %2479 = vrot.lane.b32.xlu0 %v2314, 16
    %v2480 = vpop.permute.xlu0 %2479
    %2481 = vrot.lane.b32.xlu0 %v2315, 16
    %v2482 = vpop.permute.xlu0 %2481
    %2483 = vrot.lane.b32.xlu0 %v2316, 16
    %v2484 = vpop.permute.xlu0 %2483
    %2485 = vrot.lane.b32.xlu0 %v2317, 16
    %v2486 = vpop.permute.xlu0 %2485
    %2487 = vrot.lane.b32.xlu0 %v2318, 16
    %v2488 = vpop.permute.xlu0 %2487
    %2489 = vrot.lane.b32.xlu0 %v2319, 16
    %v2490 = vpop.permute.xlu0 %2489
    %2491 = vrot.lane.b32.xlu0 %v2320, 16
    %v2492 = vpop.permute.xlu0 %2491
    %2493 = vrot.lane.b32.xlu0 %v2321, 16
    %v2494 = vpop.permute.xlu0 %2493
    %2495 = vrot.lane.b32.xlu0 %v2322, 16
    %v2496 = vpop.permute.xlu0 %2495
    %2497 = vrot.lane.b32.xlu0 %v2323, 16
    %v2498 = vpop.permute.xlu0 %2497
    %2499 = vrot.lane.b32.xlu0 %v2324, 16
    %v2500 = vpop.permute.xlu0 %2499
    %2501 = vrot.lane.b32.xlu0 %v2325, 16
    %v2502 = vpop.permute.xlu0 %2501
    %2503 = vrot.lane.b32.xlu0 %v2326, 16
    %v2504 = vpop.permute.xlu0 %2503
    %2505 = vrot.lane.b32.xlu0 %v2327, 16
    %v2506 = vpop.permute.xlu0 %2505
    %2507 = vrot.lane.b32.xlu0 %v2328, 16
    %v2508 = vpop.permute.xlu0 %2507
    %2509 = vrot.lane.b32.xlu0 %v2329, 16
    %v2510 = vpop.permute.xlu0 %2509
    %2511 = vrot.lane.b32.xlu0 %v2330, 16
    %v2512 = vpop.permute.xlu0 %2511
    %2513 = vrot.lane.b32.xlu0 %v2331, 16
    %v2514 = vpop.permute.xlu0 %2513
    %2515 = vrot.lane.b32.xlu0 %v2332, 16
    %v2516 = vpop.permute.xlu0 %2515
    %2517 = vrot.lane.b32.xlu0 %v2333, 16
    %v2518 = vpop.permute.xlu0 %2517
    %2519 = vrot.lane.b32.xlu0 %v2334, 16
    %v2520 = vpop.permute.xlu0 %2519
    %2521 = vrot.lane.b32.xlu0 %v2335, 16
    %v2522 = vpop.permute.xlu0 %2521
    %2523 = vrot.lane.b32.xlu0 %v2336, 16
    %v2524 = vpop.permute.xlu0 %2523
    %2525 = vrot.lane.b32.xlu0 %v2337, 16
    %v2526 = vpop.permute.xlu0 %2525
    %2527 = vrot.lane.b32.xlu0 %v2338, 16
    %v2528 = vpop.permute.xlu0 %2527
    %2529 = vrot.lane.b32.xlu0 %v2339, 16
    %v2530 = vpop.permute.xlu0 %2529
    %2531 = vrot.lane.b32.xlu0 %v2340, 16
    %v2532 = vpop.permute.xlu0 %2531
    %vm2597 = vcmask 392448
    %2598 = vst.msk [vmem:[#allocation4] sm:$0xff] %vm2597, %v2406
    %2599 = vst.msk [vmem:[#allocation4 + $0x8] sm:$0xff] %vm2597, %v2408
    %2600 = vst.msk [vmem:[#allocation4 + $0x10] sm:$0xff] %vm2597, %v2410
    %2601 = vst.msk [vmem:[#allocation4 + $0x18] sm:$0xff] %vm2597, %v2412
    %2602 = vst.msk [vmem:[#allocation4 + $0x20] sm:$0xff] %vm2597, %v2414
    %2603 = vst.msk [vmem:[#allocation4 + $0x28] sm:$0xff] %vm2597, %v2416
    %2604 = vst.msk [vmem:[#allocation4 + $0x30] sm:$0xff] %vm2597, %v2418
    %2605 = vst.msk [vmem:[#allocation4 + $0x38] sm:$0xff] %vm2597, %v2420
    %2606 = vst.msk [vmem:[#allocation4 + $0x40] sm:$0xff] %vm2597, %v2422
    %2607 = vst.msk [vmem:[#allocation4 + $0x48] sm:$0xff] %vm2597, %v2424
    %2608 = vst.msk [vmem:[#allocation4 + $0x50] sm:$0xff] %vm2597, %v2426
    %2609 = vst.msk [vmem:[#allocation4 + $0x58] sm:$0xff] %vm2597, %v2428
    %2610 = vst.msk [vmem:[#allocation4 + $0x60] sm:$0xff] %vm2597, %v2430
    %2611 = vst.msk [vmem:[#allocation4 + $0x68] sm:$0xff] %vm2597, %v2432
    %2612 = vst.msk [vmem:[#allocation4 + $0x70] sm:$0xff] %vm2597, %v2434
    %2613 = vst.msk [vmem:[#allocation4 + $0x78] sm:$0xff] %vm2597, %v2436
    %2614 = vst.msk [vmem:[#allocation4 + $0x80] sm:$0xff] %vm2597, %v2438
    %2615 = vst.msk [vmem:[#allocation4 + $0x88] sm:$0xff] %vm2597, %v2440
    %2616 = vst.msk [vmem:[#allocation4 + $0x90] sm:$0xff] %vm2597, %v2442
    %2617 = vst.msk [vmem:[#allocation4 + $0x98] sm:$0xff] %vm2597, %v2444
    %2618 = vst.msk [vmem:[#allocation4 + $0xa0] sm:$0xff] %vm2597, %v2446
    %2619 = vst.msk [vmem:[#allocation4 + $0xa8] sm:$0xff] %vm2597, %v2448
    %2620 = vst.msk [vmem:[#allocation4 + $0xb0] sm:$0xff] %vm2597, %v2450
    %2621 = vst.msk [vmem:[#allocation4 + $0xb8] sm:$0xff] %vm2597, %v2452
    %2622 = vst.msk [vmem:[#allocation4 + $0xc0] sm:$0xff] %vm2597, %v2454
    %2623 = vst.msk [vmem:[#allocation4 + $0xc8] sm:$0xff] %vm2597, %v2456
    %2624 = vst.msk [vmem:[#allocation4 + $0xd0] sm:$0xff] %vm2597, %v2458
    %2625 = vst.msk [vmem:[#allocation4 + $0xd8] sm:$0xff] %vm2597, %v2460
    %2626 = vst.msk [vmem:[#allocation4 + $0xe0] sm:$0xff] %vm2597, %v2462
    %2627 = vst.msk [vmem:[#allocation4 + $0xe8] sm:$0xff] %vm2597, %v2464
    %2628 = vst.msk [vmem:[#allocation4 + $0xf0] sm:$0xff] %vm2597, %v2466
    %2629 = vst.msk [vmem:[#allocation4 + $0xf8] sm:$0xff] %vm2597, %v2468
    %2630 = vst.msk [vmem:[#allocation4 + $0x100] sm:$0xff] %vm2597, %v2470
    %2631 = vst.msk [vmem:[#allocation4 + $0x108] sm:$0xff] %vm2597, %v2472
    %2632 = vst.msk [vmem:[#allocation4 + $0x110] sm:$0xff] %vm2597, %v2474
    %2633 = vst.msk [vmem:[#allocation4 + $0x118] sm:$0xff] %vm2597, %v2476
    %2634 = vst.msk [vmem:[#allocation4 + $0x120] sm:$0xff] %vm2597, %v2478
    %2635 = vst.msk [vmem:[#allocation4 + $0x128] sm:$0xff] %vm2597, %v2480
    %2636 = vst.msk [vmem:[#allocation4 + $0x130] sm:$0xff] %vm2597, %v2482
    %2637 = vst.msk [vmem:[#allocation4 + $0x138] sm:$0xff] %vm2597, %v2484
    %2638 = vst.msk [vmem:[#allocation4 + $0x140] sm:$0xff] %vm2597, %v2486
    %2639 = vst.msk [vmem:[#allocation4 + $0x148] sm:$0xff] %vm2597, %v2488
    %2640 = vst.msk [vmem:[#allocation4 + $0x150] sm:$0xff] %vm2597, %v2490
    %2641 = vst.msk [vmem:[#allocation4 + $0x158] sm:$0xff] %vm2597, %v2492
    %2642 = vst.msk [vmem:[#allocation4 + $0x160] sm:$0xff] %vm2597, %v2494
    %2643 = vst.msk [vmem:[#allocation4 + $0x168] sm:$0xff] %vm2597, %v2496
    %2644 = vst.msk [vmem:[#allocation4 + $0x170] sm:$0xff] %vm2597, %v2498
    %2645 = vst.msk [vmem:[#allocation4 + $0x178] sm:$0xff] %vm2597, %v2500
    %2646 = vst.msk [vmem:[#allocation4 + $0x180] sm:$0xff] %vm2597, %v2502
    %2647 = vst.msk [vmem:[#allocation4 + $0x188] sm:$0xff] %vm2597, %v2504
    %2648 = vst.msk [vmem:[#allocation4 + $0x190] sm:$0xff] %vm2597, %v2506
    %2649 = vst.msk [vmem:[#allocation4 + $0x198] sm:$0xff] %vm2597, %v2508
    %2650 = vst.msk [vmem:[#allocation4 + $0x1a0] sm:$0xff] %vm2597, %v2510
    %2651 = vst.msk [vmem:[#allocation4 + $0x1a8] sm:$0xff] %vm2597, %v2512
    %2652 = vst.msk [vmem:[#allocation4 + $0x1b0] sm:$0xff] %vm2597, %v2514
    %2653 = vst.msk [vmem:[#allocation4 + $0x1b8] sm:$0xff] %vm2597, %v2516
    %2654 = vst.msk [vmem:[#allocation4 + $0x1c0] sm:$0xff] %vm2597, %v2518
    %2655 = vst.msk [vmem:[#allocation4 + $0x1c8] sm:$0xff] %vm2597, %v2520
    %2656 = vst.msk [vmem:[#allocation4 + $0x1d0] sm:$0xff] %vm2597, %v2522
    %2657 = vst.msk [vmem:[#allocation4 + $0x1d8] sm:$0xff] %vm2597, %v2524
    %2658 = vst.msk [vmem:[#allocation4 + $0x1e0] sm:$0xff] %vm2597, %v2526
    %2659 = vst.msk [vmem:[#allocation4 + $0x1e8] sm:$0xff] %vm2597, %v2528
    %2660 = vst.msk [vmem:[#allocation4 + $0x1f0] sm:$0xff] %vm2597, %v2530
    %2661 = vst.msk [vmem:[#allocation4 + $0x1f8] sm:$0xff] %vm2597, %v2532
    %vm2662 = vcmask 130048
    %2663 = vst.msk [vmem:[#allocation2] sm:$0xff] %vm2662, 0.0
    %2664 = vst.msk [vmem:[#allocation2 + $0x8] sm:$0xff] %vm2662, 0.0
    %vm2665 = vcmask 123904
    %2666 = vst.msk [vmem:[#allocation2 + $0x10] sm:$0x3] %vm2665, 0.0
    %2667 = vst.msk [vmem:[#allocation2 + $0x1b0] sm:$0xff] %vm2662, 0.0
    %2668 = vst.msk [vmem:[#allocation2 + $0x1b8] sm:$0xff] %vm2662, 0.0
    %2669 = vst.msk [vmem:[#allocation2 + $0x1c0] sm:$0x3] %vm2665, 0.0
    %s2670 = scalar_lea.vmem [#allocation2], 408
    %2671 = vst.msk [vmem:[%s2670] sm:$0xff] %vm2662, 0.0
    %2672 = vst.msk [vmem:[%s2670 + $0x8] sm:$0xff] %vm2662, 0.0
    %2673 = vst.msk [vmem:[%s2670 + $0x10] sm:$0x3] %vm2665, 0.0
    %2674 = vst.msk [vmem:[%s2670 + $0x1b0] sm:$0xff] %vm2662, 0.0
    %2675 = vst.msk [vmem:[%s2670 + $0x1b8] sm:$0xff] %vm2662, 0.0
    %2676 = vst.msk [vmem:[%s2670 + $0x1c0] sm:$0x3] %vm2665, 0.0
    %vm2677 = vcmask 122880
    %2678 = vst.msk [vmem:[#allocation2] sm:$0x1] %vm2677, 0.0
    %2679 = vst.msk [vmem:[#allocation2 + $0x18] sm:$0x1] %vm2677, 0.0
    %2680 = vst.msk [vmem:[#allocation2 + $0x30] sm:$0x1] %vm2677, 0.0
    %2681 = vst.msk [vmem:[#allocation2 + $0x48] sm:$0x1] %vm2677, 0.0
    %2682 = vst.msk [vmem:[#allocation2 + $0x60] sm:$0x1] %vm2677, 0.0
    %2683 = vst.msk [vmem:[#allocation2 + $0x78] sm:$0x1] %vm2677, 0.0
    %2684 = vst.msk [vmem:[#allocation2 + $0x90] sm:$0x1] %vm2677, 0.0
    %2685 = vst.msk [vmem:[#allocation2 + $0xa8] sm:$0x1] %vm2677, 0.0
    %2686 = vst.msk [vmem:[#allocation2 + $0xc0] sm:$0x1] %vm2677, 0.0
    %2687 = vst.msk [vmem:[#allocation2 + $0xd8] sm:$0x1] %vm2677, 0.0
    %2688 = vst.msk [vmem:[#allocation2 + $0xf0] sm:$0x1] %vm2677, 0.0
    %2689 = vst.msk [vmem:[#allocation2 + $0x108] sm:$0x1] %vm2677, 0.0
    %2690 = vst.msk [vmem:[#allocation2 + $0x120] sm:$0x1] %vm2677, 0.0
    %2691 = vst.msk [vmem:[#allocation2 + $0x138] sm:$0x1] %vm2677, 0.0
    %2692 = vst.msk [vmem:[#allocation2 + $0x150] sm:$0x1] %vm2677, 0.0
    %2693 = vst.msk [vmem:[#allocation2 + $0x168] sm:$0x1] %vm2677, 0.0
    %2694 = vst.msk [vmem:[#allocation2 + $0x180] sm:$0x1] %vm2677, 0.0
    %2695 = vst.msk [vmem:[#allocation2 + $0x198] sm:$0x1] %vm2677, 0.0
    %2696 = vst.msk [vmem:[#allocation2 + $0x1b0] sm:$0x1] %vm2677, 0.0
    %2697 = vst.msk [vmem:[#allocation2 + $0x1c8] sm:$0x1] %vm2677, 0.0
    %2698 = vst.msk [vmem:[#allocation2 + $0x1e0] sm:$0x1] %vm2677, 0.0
    %2699 = vst.msk [vmem:[#allocation2 + $0x1f8] sm:$0x1] %vm2677, 0.0
    %2700 = vst.msk [vmem:[#allocation2 + $0x210] sm:$0x1] %vm2677, 0.0
    %2701 = vst.msk [vmem:[#allocation2 + $0x228] sm:$0x1] %vm2677, 0.0
    %2702 = vst.msk [vmem:[#allocation2 + $0x240] sm:$0x1] %vm2677, 0.0
    %2703 = vst.msk [vmem:[#allocation2 + $0x258] sm:$0x1] %vm2677, 0.0
    %2704 = vst.msk [vmem:[#allocation2 + $0x270] sm:$0x1] %vm2677, 0.0
    %2705 = vst.msk [vmem:[#allocation2 + $0x288] sm:$0x1] %vm2677, 0.0
    %2706 = vst.msk [vmem:[#allocation2 + $0x2a0] sm:$0x1] %vm2677, 0.0
    %2707 = vst.msk [vmem:[#allocation2 + $0x2b8] sm:$0x1] %vm2677, 0.0
    %2708 = vst.msk [vmem:[#allocation2 + $0x2d0] sm:$0x1] %vm2677, 0.0
    %2709 = vst.msk [vmem:[#allocation2 + $0x2e8] sm:$0x1] %vm2677, 0.0
    %2710 = vst.msk [vmem:[#allocation2 + $0x300] sm:$0x1] %vm2677, 0.0
    %2711 = vst.msk [vmem:[#allocation2 + $0x318] sm:$0x1] %vm2677, 0.0
    %2712 = vst.msk [vmem:[#allocation2 + $0x330] sm:$0x1] %vm2677, 0.0
    %2713 = vst.msk [vmem:[#allocation2 + $0x348] sm:$0x1] %vm2677, 0.0
    %2714 = vst.msk [vmem:[#allocation2 + $0x11] sm:$0x1] %vm2677, 0.0
    %2715 = vst.msk [vmem:[#allocation2 + $0x29] sm:$0x1] %vm2677, 0.0
    %2716 = vst.msk [vmem:[#allocation2 + $0x41] sm:$0x1] %vm2677, 0.0
    %2717 = vst.msk [vmem:[#allocation2 + $0x59] sm:$0x1] %vm2677, 0.0
    %2718 = vst.msk [vmem:[#allocation2 + $0x71] sm:$0x1] %vm2677, 0.0
    %2719 = vst.msk [vmem:[#allocation2 + $0x89] sm:$0x1] %vm2677, 0.0
    %2720 = vst.msk [vmem:[#allocation2 + $0xa1] sm:$0x1] %vm2677, 0.0
    %2721 = vst.msk [vmem:[#allocation2 + $0xb9] sm:$0x1] %vm2677, 0.0
    %2722 = vst.msk [vmem:[#allocation2 + $0xd1] sm:$0x1] %vm2677, 0.0
    %2723 = vst.msk [vmem:[#allocation2 + $0xe9] sm:$0x1] %vm2677, 0.0
    %2724 = vst.msk [vmem:[#allocation2 + $0x101] sm:$0x1] %vm2677, 0.0
    %2725 = vst.msk [vmem:[#allocation2 + $0x119] sm:$0x1] %vm2677, 0.0
    %2726 = vst.msk [vmem:[#allocation2 + $0x131] sm:$0x1] %vm2677, 0.0
    %2727 = vst.msk [vmem:[#allocation2 + $0x149] sm:$0x1] %vm2677, 0.0
    %2728 = vst.msk [vmem:[#allocation2 + $0x161] sm:$0x1] %vm2677, 0.0
    %2729 = vst.msk [vmem:[#allocation2 + $0x179] sm:$0x1] %vm2677, 0.0
    %2730 = vst.msk [vmem:[#allocation2 + $0x191] sm:$0x1] %vm2677, 0.0
    %2731 = vst.msk [vmem:[#allocation2 + $0x1a9] sm:$0x1] %vm2677, 0.0
    %2732 = vst.msk [vmem:[#allocation2 + $0x1c1] sm:$0x1] %vm2677, 0.0
    %2733 = vst.msk [vmem:[#allocation2 + $0x1d9] sm:$0x1] %vm2677, 0.0
    %2734 = vst.msk [vmem:[#allocation2 + $0x1f1] sm:$0x1] %vm2677, 0.0
    %2735 = vst.msk [vmem:[#allocation2 + $0x209] sm:$0x1] %vm2677, 0.0
    %2736 = vst.msk [vmem:[#allocation2 + $0x221] sm:$0x1] %vm2677, 0.0
    %2737 = vst.msk [vmem:[#allocation2 + $0x239] sm:$0x1] %vm2677, 0.0
    %2738 = vst.msk [vmem:[#allocation2 + $0x251] sm:$0x1] %vm2677, 0.0
    %2739 = vst.msk [vmem:[#allocation2 + $0x269] sm:$0x1] %vm2677, 0.0
    %2740 = vst.msk [vmem:[#allocation2 + $0x281] sm:$0x1] %vm2677, 0.0
    %2741 = vst.msk [vmem:[#allocation2 + $0x299] sm:$0x1] %vm2677, 0.0
    %2742 = vst.msk [vmem:[#allocation2 + $0x2b1] sm:$0x1] %vm2677, 0.0
    %2743 = vst.msk [vmem:[#allocation2 + $0x2c9] sm:$0x1] %vm2677, 0.0
    %2744 = vst.msk [vmem:[#allocation2 + $0x2e1] sm:$0x1] %vm2677, 0.0
    %2745 = vst.msk [vmem:[#allocation2 + $0x2f9] sm:$0x1] %vm2677, 0.0
    %2746 = vst.msk [vmem:[#allocation2 + $0x311] sm:$0x1] %vm2677, 0.0
    %2747 = vst.msk [vmem:[#allocation2 + $0x329] sm:$0x1] %vm2677, 0.0
    %2748 = vst.msk [vmem:[#allocation2 + $0x341] sm:$0x1] %vm2677, 0.0
    %2749 = vst.msk [vmem:[#allocation2 + $0x359] sm:$0x1] %vm2677, 0.0
    %s2750 = scalar_lea.vmem [#allocation2], 24
    %2751 = vst.msk [vmem:[%s2750 + $0x1] sm:$0xff] %vm1389, %v2277
    %2752 = vst.msk [vmem:[%s2750 + $0x9] sm:$0xff] %vm1389, %v2278
    %2753 = vst.msk [vmem:[%s2750 + $0x19] sm:$0xff] %vm1389, %v2279
    %2754 = vst.msk [vmem:[%s2750 + $0x21] sm:$0xff] %vm1389, %v2280
    %2755 = vst.msk [vmem:[%s2750 + $0x31] sm:$0xff] %vm1389, %v2281
    %2756 = vst.msk [vmem:[%s2750 + $0x39] sm:$0xff] %vm1389, %v2282
    %2757 = vst.msk [vmem:[%s2750 + $0x49] sm:$0xff] %vm1389, %v2283
    %2758 = vst.msk [vmem:[%s2750 + $0x51] sm:$0xff] %vm1389, %v2284
    %2759 = vst.msk [vmem:[%s2750 + $0x61] sm:$0xff] %vm1389, %v2285
    %2760 = vst.msk [vmem:[%s2750 + $0x69] sm:$0xff] %vm1389, %v2286
    %2761 = vst.msk [vmem:[%s2750 + $0x79] sm:$0xff] %vm1389, %v2287
    %2762 = vst.msk [vmem:[%s2750 + $0x81] sm:$0xff] %vm1389, %v2288
    %2763 = vst.msk [vmem:[%s2750 + $0x91] sm:$0xff] %vm1389, %v2289
    %2764 = vst.msk [vmem:[%s2750 + $0x99] sm:$0xff] %vm1389, %v2290
    %2765 = vst.msk [vmem:[%s2750 + $0xa9] sm:$0xff] %vm1389, %v2291
    %2766 = vst.msk [vmem:[%s2750 + $0xb1] sm:$0xff] %vm1389, %v2292
    %2767 = vst.msk [vmem:[%s2750 + $0xc1] sm:$0xff] %vm1389, %v2293
    %2768 = vst.msk [vmem:[%s2750 + $0xc9] sm:$0xff] %vm1389, %v2294
    %2769 = vst.msk [vmem:[%s2750 + $0xd9] sm:$0xff] %vm1389, %v2295
    %2770 = vst.msk [vmem:[%s2750 + $0xe1] sm:$0xff] %vm1389, %v2296
    %2771 = vst.msk [vmem:[%s2750 + $0xf1] sm:$0xff] %vm1389, %v2297
    %2772 = vst.msk [vmem:[%s2750 + $0xf9] sm:$0xff] %vm1389, %v2298
    %2773 = vst.msk [vmem:[%s2750 + $0x109] sm:$0xff] %vm1389, %v2299
    %2774 = vst.msk [vmem:[%s2750 + $0x111] sm:$0xff] %vm1389, %v2300
    %2775 = vst.msk [vmem:[%s2750 + $0x121] sm:$0xff] %vm1389, %v2301
    %2776 = vst.msk [vmem:[%s2750 + $0x129] sm:$0xff] %vm1389, %v2302
    %2777 = vst.msk [vmem:[%s2750 + $0x139] sm:$0xff] %vm1389, %v2303
    %2778 = vst.msk [vmem:[%s2750 + $0x141] sm:$0xff] %vm1389, %v2304
    %2779 = vst.msk [vmem:[%s2750 + $0x151] sm:$0xff] %vm1389, %v2305
    %2780 = vst.msk [vmem:[%s2750 + $0x159] sm:$0xff] %vm1389, %v2306
    %2781 = vst.msk [vmem:[%s2750 + $0x169] sm:$0xff] %vm1389, %v2307
    %2782 = vst.msk [vmem:[%s2750 + $0x171] sm:$0xff] %vm1389, %v2308
    %2783 = vst.msk [vmem:[%s2750 + $0x1b1] sm:$0xff] %vm1389, %v2309
    %2784 = vst.msk [vmem:[%s2750 + $0x1b9] sm:$0xff] %vm1389, %v2310
    %2785 = vst.msk [vmem:[%s2750 + $0x1c9] sm:$0xff] %vm1389, %v2311
    %2786 = vst.msk [vmem:[%s2750 + $0x1d1] sm:$0xff] %vm1389, %v2312
    %2787 = vst.msk [vmem:[%s2750 + $0x1e1] sm:$0xff] %vm1389, %v2313
    %2788 = vst.msk [vmem:[%s2750 + $0x1e9] sm:$0xff] %vm1389, %v2314
    %2789 = vst.msk [vmem:[%s2750 + $0x1f9] sm:$0xff] %vm1389, %v2315
    %2790 = vst.msk [vmem:[%s2750 + $0x201] sm:$0xff] %vm1389, %v2316
    %2791 = vst.msk [vmem:[%s2750 + $0x211] sm:$0xff] %vm1389, %v2317
    %2792 = vst.msk [vmem:[%s2750 + $0x219] sm:$0xff] %vm1389, %v2318
    %2793 = vst.msk [vmem:[%s2750 + $0x229] sm:$0xff] %vm1389, %v2319
    %2794 = vst.msk [vmem:[%s2750 + $0x231] sm:$0xff] %vm1389, %v2320
    %2795 = vst.msk [vmem:[%s2750 + $0x241] sm:$0xff] %vm1389, %v2321
    %2796 = vst.msk [vmem:[%s2750 + $0x249] sm:$0xff] %vm1389, %v2322
    %2797 = vst.msk [vmem:[%s2750 + $0x259] sm:$0xff] %vm1389, %v2323
    %2798 = vst.msk [vmem:[%s2750 + $0x261] sm:$0xff] %vm1389, %v2324
    %2799 = vst.msk [vmem:[%s2750 + $0x271] sm:$0xff] %vm1389, %v2325
    %2800 = vst.msk [vmem:[%s2750 + $0x279] sm:$0xff] %vm1389, %v2326
    %2801 = vst.msk [vmem:[%s2750 + $0x289] sm:$0xff] %vm1389, %v2327
    %2802 = vst.msk [vmem:[%s2750 + $0x291] sm:$0xff] %vm1389, %v2328
    %2803 = vst.msk [vmem:[%s2750 + $0x2a1] sm:$0xff] %vm1389, %v2329
    %2804 = vst.msk [vmem:[%s2750 + $0x2a9] sm:$0xff] %vm1389, %v2330
    %2805 = vst.msk [vmem:[%s2750 + $0x2b9] sm:$0xff] %vm1389, %v2331
    %2806 = vst.msk [vmem:[%s2750 + $0x2c1] sm:$0xff] %vm1389, %v2332
    %2807 = vst.msk [vmem:[%s2750 + $0x2d1] sm:$0xff] %vm1389, %v2333
    %2808 = vst.msk [vmem:[%s2750 + $0x2d9] sm:$0xff] %vm1389, %v2334
    %2809 = vst.msk [vmem:[%s2750 + $0x2e9] sm:$0xff] %vm1389, %v2335
    %2810 = vst.msk [vmem:[%s2750 + $0x2f1] sm:$0xff] %vm1389, %v2336
    %2811 = vst.msk [vmem:[%s2750 + $0x301] sm:$0xff] %vm1389, %v2337
    %2812 = vst.msk [vmem:[%s2750 + $0x309] sm:$0xff] %vm1389, %v2338
    %2813 = vst.msk [vmem:[%s2750 + $0x319] sm:$0xff] %vm1389, %v2339
    %2814 = vst.msk [vmem:[%s2750 + $0x321] sm:$0xff] %vm1389, %v2340
    %v2815 = vld [vmem:[#allocation2] sm:$0xff]
    %v2816 = vld [vmem:[#allocation2 + $0x8] sm:$0xff]
    %v2817 = vld [vmem:[#allocation2 + $0x18] sm:$0xff]
    %v2818 = vld [vmem:[#allocation2 + $0x20] sm:$0xff]
    %v2819 = vld [vmem:[#allocation2 + $0x30] sm:$0xff]
    %v2820 = vld [vmem:[#allocation2 + $0x38] sm:$0xff]
    %v2821 = vld [vmem:[#allocation2 + $0x48] sm:$0xff]
    %v2822 = vld [vmem:[#allocation2 + $0x50] sm:$0xff]
    %v2823 = vld [vmem:[#allocation2 + $0x60] sm:$0xff]
    %v2824 = vld [vmem:[#allocation2 + $0x68] sm:$0xff]
    %v2825 = vld [vmem:[#allocation2 + $0x78] sm:$0xff]
    %v2826 = vld [vmem:[#allocation2 + $0x80] sm:$0xff]
    %v2827 = vld [vmem:[#allocation2 + $0x90] sm:$0xff]
    %v2828 = vld [vmem:[#allocation2 + $0x98] sm:$0xff]
    %v2829 = vld [vmem:[#allocation2 + $0xa8] sm:$0xff]
    %v2830 = vld [vmem:[#allocation2 + $0xb0] sm:$0xff]
    %v2831 = vld [vmem:[#allocation2 + $0xc0] sm:$0xff]
    %v2832 = vld [vmem:[#allocation2 + $0xc8] sm:$0xff]
    %v2833 = vld [vmem:[#allocation2 + $0xd8] sm:$0xff]
    %v2834 = vld [vmem:[#allocation2 + $0xe0] sm:$0xff]
    %v2835 = vld [vmem:[#allocation2 + $0xf0] sm:$0xff]
    %v2836 = vld [vmem:[#allocation2 + $0xf8] sm:$0xff]
    %v2837 = vld [vmem:[#allocation2 + $0x108] sm:$0xff]
    %v2838 = vld [vmem:[#allocation2 + $0x110] sm:$0xff]
    %v2839 = vld [vmem:[#allocation2 + $0x120] sm:$0xff]
    %v2840 = vld [vmem:[#allocation2 + $0x128] sm:$0xff]
    %v2841 = vld [vmem:[#allocation2 + $0x138] sm:$0xff]
    %v2842 = vld [vmem:[#allocation2 + $0x140] sm:$0xff]
    %v2843 = vld [vmem:[#allocation2 + $0x150] sm:$0xff]
    %v2844 = vld [vmem:[#allocation2 + $0x158] sm:$0xff]
    %v2845 = vld [vmem:[#allocation2 + $0x168] sm:$0xff]
    %v2846 = vld [vmem:[#allocation2 + $0x170] sm:$0xff]
    %v2847 = vld [vmem:[#allocation2 + $0x1b0] sm:$0xff]
    %v2848 = vld [vmem:[#allocation2 + $0x1b8] sm:$0xff]
    %v2849 = vld [vmem:[#allocation2 + $0x1c8] sm:$0xff]
    %v2850 = vld [vmem:[#allocation2 + $0x1d0] sm:$0xff]
    %v2851 = vld [vmem:[#allocation2 + $0x1e0] sm:$0xff]
    %v2852 = vld [vmem:[#allocation2 + $0x1e8] sm:$0xff]
    %v2853 = vld [vmem:[#allocation2 + $0x1f8] sm:$0xff]
    %v2854 = vld [vmem:[#allocation2 + $0x200] sm:$0xff]
    %v2855 = vld [vmem:[#allocation2 + $0x210] sm:$0xff]
    %v2856 = vld [vmem:[#allocation2 + $0x218] sm:$0xff]
    %v2857 = vld [vmem:[#allocation2 + $0x228] sm:$0xff]
    %v2858 = vld [vmem:[#allocation2 + $0x230] sm:$0xff]
    %v2859 = vld [vmem:[#allocation2 + $0x240] sm:$0xff]
    %v2860 = vld [vmem:[#allocation2 + $0x248] sm:$0xff]
    %v2861 = vld [vmem:[#allocation2 + $0x258] sm:$0xff]
    %v2862 = vld [vmem:[#allocation2 + $0x260] sm:$0xff]
    %v2863 = vld [vmem:[#allocation2 + $0x270] sm:$0xff]
    %v2864 = vld [vmem:[#allocation2 + $0x278] sm:$0xff]
    %v2865 = vld [vmem:[#allocation2 + $0x288] sm:$0xff]
    %v2866 = vld [vmem:[#allocation2 + $0x290] sm:$0xff]
    %v2867 = vld [vmem:[#allocation2 + $0x2a0] sm:$0xff]
    %v2868 = vld [vmem:[#allocation2 + $0x2a8] sm:$0xff]
    %v2869 = vld [vmem:[#allocation2 + $0x2b8] sm:$0xff]
    %v2870 = vld [vmem:[#allocation2 + $0x2c0] sm:$0xff]
    %v2871 = vld [vmem:[#allocation2 + $0x2d0] sm:$0xff]
    %v2872 = vld [vmem:[#allocation2 + $0x2d8] sm:$0xff]
    %v2873 = vld [vmem:[#allocation2 + $0x2e8] sm:$0xff]
    %v2874 = vld [vmem:[#allocation2 + $0x2f0] sm:$0xff]
    %v2875 = vld [vmem:[#allocation2 + $0x300] sm:$0xff]
    %v2876 = vld [vmem:[#allocation2 + $0x308] sm:$0xff]
    %v2877 = vld [vmem:[#allocation2 + $0x318] sm:$0xff]
    %v2878 = vld [vmem:[#allocation2 + $0x320] sm:$0xff]
    %v2879 = vld [vmem:[#allocation2 + $0x1] sm:$0xff]
    %v2880 = vld [vmem:[#allocation2 + $0x9] sm:$0xff]
    %v2881 = vld [vmem:[#allocation2 + $0x19] sm:$0xff]
    %v2882 = vld [vmem:[#allocation2 + $0x21] sm:$0xff]
    %v2883 = vld [vmem:[#allocation2 + $0x31] sm:$0xff]
    %v2884 = vld [vmem:[#allocation2 + $0x39] sm:$0xff]
    %v2885 = vld [vmem:[#allocation2 + $0x49] sm:$0xff]
    %v2886 = vld [vmem:[#allocation2 + $0x51] sm:$0xff]
    %v2887 = vld [vmem:[#allocation2 + $0x61] sm:$0xff]
    %v2888 = vld [vmem:[#allocation2 + $0x69] sm:$0xff]
    %v2889 = vld [vmem:[#allocation2 + $0x79] sm:$0xff]
    %v2890 = vld [vmem:[#allocation2 + $0x81] sm:$0xff]
    %v2891 = vld [vmem:[#allocation2 + $0x91] sm:$0xff]
    %v2892 = vld [vmem:[#allocation2 + $0x99] sm:$0xff]
    %v2893 = vld [vmem:[#allocation2 + $0xa9] sm:$0xff]
    %v2894 = vld [vmem:[#allocation2 + $0xb1] sm:$0xff]
    %v2895 = vld [vmem:[#allocation2 + $0xc1] sm:$0xff]
    %v2896 = vld [vmem:[#allocation2 + $0xc9] sm:$0xff]
    %v2897 = vld [vmem:[#allocation2 + $0xd9] sm:$0xff]
    %v2898 = vld [vmem:[#allocation2 + $0xe1] sm:$0xff]
    %v2899 = vld [vmem:[#allocation2 + $0xf1] sm:$0xff]
    %v2900 = vld [vmem:[#allocation2 + $0xf9] sm:$0xff]
    %v2901 = vld [vmem:[#allocation2 + $0x109] sm:$0xff]
    %v2902 = vld [vmem:[#allocation2 + $0x111] sm:$0xff]
    %v2903 = vld [vmem:[#allocation2 + $0x121] sm:$0xff]
    %v2904 = vld [vmem:[#allocation2 + $0x129] sm:$0xff]
    %v2905 = vld [vmem:[#allocation2 + $0x139] sm:$0xff]
    %v2906 = vld [vmem:[#allocation2 + $0x141] sm:$0xff]
    %v2907 = vld [vmem:[#allocation2 + $0x151] sm:$0xff]
    %v2908 = vld [vmem:[#allocation2 + $0x159] sm:$0xff]
    %v2909 = vld [vmem:[#allocation2 + $0x169] sm:$0xff]
    %v2910 = vld [vmem:[#allocation2 + $0x171] sm:$0xff]
    %v2911 = vld [vmem:[#allocation2 + $0x1b1] sm:$0xff]
    %v2912 = vld [vmem:[#allocation2 + $0x1b9] sm:$0xff]
    %v2913 = vld [vmem:[#allocation2 + $0x1c9] sm:$0xff]
    %v2914 = vld [vmem:[#allocation2 + $0x1d1] sm:$0xff]
    %v2915 = vld [vmem:[#allocation2 + $0x1e1] sm:$0xff]
    %v2916 = vld [vmem:[#allocation2 + $0x1e9] sm:$0xff]
    %v2917 = vld [vmem:[#allocation2 + $0x1f9] sm:$0xff]
    %v2918 = vld [vmem:[#allocation2 + $0x201] sm:$0xff]
    %v2919 = vld [vmem:[#allocation2 + $0x211] sm:$0xff]
    %v2920 = vld [vmem:[#allocation2 + $0x219] sm:$0xff]
    %v2921 = vld [vmem:[#allocation2 + $0x229] sm:$0xff]
    %v2922 = vld [vmem:[#allocation2 + $0x231] sm:$0xff]
    %v2923 = vld [vmem:[#allocation2 + $0x241] sm:$0xff]
    %v2924 = vld [vmem:[#allocation2 + $0x249] sm:$0xff]
    %v2925 = vld [vmem:[#allocation2 + $0x259] sm:$0xff]
    %v2926 = vld [vmem:[#allocation2 + $0x261] sm:$0xff]
    %v2927 = vld [vmem:[#allocation2 + $0x271] sm:$0xff]
    %v2928 = vld [vmem:[#allocation2 + $0x279] sm:$0xff]
    %v2929 = vld [vmem:[#allocation2 + $0x289] sm:$0xff]
    %v2930 = vld [vmem:[#allocation2 + $0x291] sm:$0xff]
    %v2931 = vld [vmem:[#allocation2 + $0x2a1] sm:$0xff]
    %v2932 = vld [vmem:[#allocation2 + $0x2a9] sm:$0xff]
    %v2933 = vld [vmem:[#allocation2 + $0x2b9] sm:$0xff]
    %v2934 = vld [vmem:[#allocation2 + $0x2c1] sm:$0xff]
    %v2935 = vld [vmem:[#allocation2 + $0x2d1] sm:$0xff]
    %v2936 = vld [vmem:[#allocation2 + $0x2d9] sm:$0xff]
    %v2937 = vld [vmem:[#allocation2 + $0x2e9] sm:$0xff]
    %v2938 = vld [vmem:[#allocation2 + $0x2f1] sm:$0xff]
    %v2939 = vld [vmem:[#allocation2 + $0x301] sm:$0xff]
    %v2940 = vld [vmem:[#allocation2 + $0x309] sm:$0xff]
    %v2941 = vld [vmem:[#allocation2 + $0x319] sm:$0xff]
    %v2942 = vld [vmem:[#allocation2 + $0x321] sm:$0xff]
    %v2943 = vld [vmem:[#allocation2 + $0x2] sm:$0xff]
    %v2944 = vld [vmem:[#allocation2 + $0xa] sm:$0xff]
    %v2945 = vld [vmem:[#allocation2 + $0x1a] sm:$0xff]
    %v2946 = vld [vmem:[#allocation2 + $0x22] sm:$0xff]
    %v2947 = vld [vmem:[#allocation2 + $0x32] sm:$0xff]
    %v2948 = vld [vmem:[#allocation2 + $0x3a] sm:$0xff]
    %v2949 = vld [vmem:[#allocation2 + $0x4a] sm:$0xff]
    %v2950 = vld [vmem:[#allocation2 + $0x52] sm:$0xff]
    %v2951 = vld [vmem:[#allocation2 + $0x62] sm:$0xff]
    %v2952 = vld [vmem:[#allocation2 + $0x6a] sm:$0xff]
    %v2953 = vld [vmem:[#allocation2 + $0x7a] sm:$0xff]
    %v2954 = vld [vmem:[#allocation2 + $0x82] sm:$0xff]
    %v2955 = vld [vmem:[#allocation2 + $0x92] sm:$0xff]
    %v2956 = vld [vmem:[#allocation2 + $0x9a] sm:$0xff]
    %v2957 = vld [vmem:[#allocation2 + $0xaa] sm:$0xff]
    %v2958 = vld [vmem:[#allocation2 + $0xb2] sm:$0xff]
    %v2959 = vld [vmem:[#allocation2 + $0xc2] sm:$0xff]
    %v2960 = vld [vmem:[#allocation2 + $0xca] sm:$0xff]
    %v2961 = vld [vmem:[#allocation2 + $0xda] sm:$0xff]
    %v2962 = vld [vmem:[#allocation2 + $0xe2] sm:$0xff]
    %v2963 = vld [vmem:[#allocation2 + $0xf2] sm:$0xff]
    %v2964 = vld [vmem:[#allocation2 + $0xfa] sm:$0xff]
    %v2965 = vld [vmem:[#allocation2 + $0x10a] sm:$0xff]
    %v2966 = vld [vmem:[#allocation2 + $0x112] sm:$0xff]
    %v2967 = vld [vmem:[#allocation2 + $0x122] sm:$0xff]
    %v2968 = vld [vmem:[#allocation2 + $0x12a] sm:$0xff]
    %v2969 = vld [vmem:[#allocation2 + $0x13a] sm:$0xff]
    %v2970 = vld [vmem:[#allocation2 + $0x142] sm:$0xff]
    %v2971 = vld [vmem:[#allocation2 + $0x152] sm:$0xff]
    %v2972 = vld [vmem:[#allocation2 + $0x15a] sm:$0xff]
    %v2973 = vld [vmem:[#allocation2 + $0x16a] sm:$0xff]
    %v2974 = vld [vmem:[#allocation2 + $0x172] sm:$0xff]
    %v2975 = vld [vmem:[#allocation2 + $0x1b2] sm:$0xff]
    %v2976 = vld [vmem:[#allocation2 + $0x1ba] sm:$0xff]
    %v2977 = vld [vmem:[#allocation2 + $0x1ca] sm:$0xff]
    %v2978 = vld [vmem:[#allocation2 + $0x1d2] sm:$0xff]
    %v2979 = vld [vmem:[#allocation2 + $0x1e2] sm:$0xff]
    %v2980 = vld [vmem:[#allocation2 + $0x1ea] sm:$0xff]
    %v2981 = vld [vmem:[#allocation2 + $0x1fa] sm:$0xff]
    %v2982 = vld [vmem:[#allocation2 + $0x202] sm:$0xff]
    %v2983 = vld [vmem:[#allocation2 + $0x212] sm:$0xff]
    %v2984 = vld [vmem:[#allocation2 + $0x21a] sm:$0xff]
    %v2985 = vld [vmem:[#allocation2 + $0x22a] sm:$0xff]
    %v2986 = vld [vmem:[#allocation2 + $0x232] sm:$0xff]
    %v2987 = vld [vmem:[#allocation2 + $0x242] sm:$0xff]
    %v2988 = vld [vmem:[#allocation2 + $0x24a] sm:$0xff]
    %v2989 = vld [vmem:[#allocation2 + $0x25a] sm:$0xff]
    %v2990 = vld [vmem:[#allocation2 + $0x262] sm:$0xff]
    %v2991 = vld [vmem:[#allocation2 + $0x272] sm:$0xff]
    %v2992 = vld [vmem:[#allocation2 + $0x27a] sm:$0xff]
    %v2993 = vld [vmem:[#allocation2 + $0x28a] sm:$0xff]
    %v2994 = vld [vmem:[#allocation2 + $0x292] sm:$0xff]
    %v2995 = vld [vmem:[#allocation2 + $0x2a2] sm:$0xff]
    %v2996 = vld [vmem:[#allocation2 + $0x2aa] sm:$0xff]
    %v2997 = vld [vmem:[#allocation2 + $0x2ba] sm:$0xff]
    %v2998 = vld [vmem:[#allocation2 + $0x2c2] sm:$0xff]
    %v2999 = vld [vmem:[#allocation2 + $0x2d2] sm:$0xff]
    %v3000 = vld [vmem:[#allocation2 + $0x2da] sm:$0xff]
    %v3001 = vld [vmem:[#allocation2 + $0x2ea] sm:$0xff]
    %v3002 = vld [vmem:[#allocation2 + $0x2f2] sm:$0xff]
    %v3003 = vld [vmem:[#allocation2 + $0x302] sm:$0xff]
    %v3004 = vld [vmem:[#allocation2 + $0x30a] sm:$0xff]
    %v3005 = vld [vmem:[#allocation2 + $0x31a] sm:$0xff]
    %v3006 = vld [vmem:[#allocation2 + $0x322] sm:$0xff]
    %v3007 = vld [vmem:[%s2750] sm:$0xff]
    %v3008 = vld [vmem:[%s2750 + $0x8] sm:$0xff]
    %v3009 = vld [vmem:[%s2750 + $0x18] sm:$0xff]
    %v3010 = vld [vmem:[%s2750 + $0x20] sm:$0xff]
    %v3011 = vld [vmem:[%s2750 + $0x30] sm:$0xff]
    %v3012 = vld [vmem:[%s2750 + $0x38] sm:$0xff]
    %v3013 = vld [vmem:[%s2750 + $0x48] sm:$0xff]
    %v3014 = vld [vmem:[%s2750 + $0x50] sm:$0xff]
    %v3015 = vld [vmem:[%s2750 + $0x60] sm:$0xff]
    %v3016 = vld [vmem:[%s2750 + $0x68] sm:$0xff]
    %v3017 = vld [vmem:[%s2750 + $0x78] sm:$0xff]
    %v3018 = vld [vmem:[%s2750 + $0x80] sm:$0xff]
    %v3019 = vld [vmem:[%s2750 + $0x90] sm:$0xff]
    %v3020 = vld [vmem:[%s2750 + $0x98] sm:$0xff]
    %v3021 = vld [vmem:[%s2750 + $0xa8] sm:$0xff]
    %v3022 = vld [vmem:[%s2750 + $0xb0] sm:$0xff]
    %v3023 = vld [vmem:[%s2750 + $0xc0] sm:$0xff]
    %v3024 = vld [vmem:[%s2750 + $0xc8] sm:$0xff]
    %v3025 = vld [vmem:[%s2750 + $0xd8] sm:$0xff]
    %v3026 = vld [vmem:[%s2750 + $0xe0] sm:$0xff]
    %v3027 = vld [vmem:[%s2750 + $0xf0] sm:$0xff]
    %v3028 = vld [vmem:[%s2750 + $0xf8] sm:$0xff]
    %v3029 = vld [vmem:[%s2750 + $0x108] sm:$0xff]
    %v3030 = vld [vmem:[%s2750 + $0x110] sm:$0xff]
    %v3031 = vld [vmem:[%s2750 + $0x120] sm:$0xff]
    %v3032 = vld [vmem:[%s2750 + $0x128] sm:$0xff]
    %v3033 = vld [vmem:[%s2750 + $0x138] sm:$0xff]
    %v3034 = vld [vmem:[%s2750 + $0x140] sm:$0xff]
    %v3035 = vld [vmem:[%s2750 + $0x150] sm:$0xff]
    %v3036 = vld [vmem:[%s2750 + $0x158] sm:$0xff]
    %v3037 = vld [vmem:[%s2750 + $0x168] sm:$0xff]
    %v3038 = vld [vmem:[%s2750 + $0x170] sm:$0xff]
    %v3039 = vld [vmem:[%s2750 + $0x1b0] sm:$0xff]
    %v3040 = vld [vmem:[%s2750 + $0x1b8] sm:$0xff]
    %v3041 = vld [vmem:[%s2750 + $0x1c8] sm:$0xff]
    %v3042 = vld [vmem:[%s2750 + $0x1d0] sm:$0xff]
    %v3043 = vld [vmem:[%s2750 + $0x1e0] sm:$0xff]
    %v3044 = vld [vmem:[%s2750 + $0x1e8] sm:$0xff]
    %v3045 = vld [vmem:[%s2750 + $0x1f8] sm:$0xff]
    %v3046 = vld [vmem:[%s2750 + $0x200] sm:$0xff]
    %v3047 = vld [vmem:[%s2750 + $0x210] sm:$0xff]
    %v3048 = vld [vmem:[%s2750 + $0x218] sm:$0xff]
    %v3049 = vld [vmem:[%s2750 + $0x228] sm:$0xff]
    %v3050 = vld [vmem:[%s2750 + $0x230] sm:$0xff]
    %v3051 = vld [vmem:[%s2750 + $0x240] sm:$0xff]
    %v3052 = vld [vmem:[%s2750 + $0x248] sm:$0xff]
    %v3053 = vld [vmem:[%s2750 + $0x258] sm:$0xff]
    %v3054 = vld [vmem:[%s2750 + $0x260] sm:$0xff]
    %v3055 = vld [vmem:[%s2750 + $0x270] sm:$0xff]
    %v3056 = vld [vmem:[%s2750 + $0x278] sm:$0xff]
    %v3057 = vld [vmem:[%s2750 + $0x288] sm:$0xff]
    %v3058 = vld [vmem:[%s2750 + $0x290] sm:$0xff]
    %v3059 = vld [vmem:[%s2750 + $0x2a0] sm:$0xff]
    %v3060 = vld [vmem:[%s2750 + $0x2a8] sm:$0xff]
    %v3061 = vld [vmem:[%s2750 + $0x2b8] sm:$0xff]
    %v3062 = vld [vmem:[%s2750 + $0x2c0] sm:$0xff]
    %v3063 = vld [vmem:[%s2750 + $0x2d0] sm:$0xff]
    %v3064 = vld [vmem:[%s2750 + $0x2d8] sm:$0xff]
    %v3065 = vld [vmem:[%s2750 + $0x2e8] sm:$0xff]
    %v3066 = vld [vmem:[%s2750 + $0x2f0] sm:$0xff]
    %v3067 = vld [vmem:[%s2750 + $0x300] sm:$0xff]
    %v3068 = vld [vmem:[%s2750 + $0x308] sm:$0xff]
    %v3069 = vld [vmem:[%s2750 + $0x318] sm:$0xff]
    %v3070 = vld [vmem:[%s2750 + $0x320] sm:$0xff]
    %v3071 = vld [vmem:[%s2750 + $0x1] sm:$0xff]
    %v3072 = vld [vmem:[%s2750 + $0x9] sm:$0xff]
    %v3073 = vld [vmem:[%s2750 + $0x19] sm:$0xff]
    %v3074 = vld [vmem:[%s2750 + $0x21] sm:$0xff]
    %v3075 = vld [vmem:[%s2750 + $0x31] sm:$0xff]
    %v3076 = vld [vmem:[%s2750 + $0x39] sm:$0xff]
    %v3077 = vld [vmem:[%s2750 + $0x49] sm:$0xff]
    %v3078 = vld [vmem:[%s2750 + $0x51] sm:$0xff]
    %v3079 = vld [vmem:[%s2750 + $0x61] sm:$0xff]
    %v3080 = vld [vmem:[%s2750 + $0x69] sm:$0xff]
    %v3081 = vld [vmem:[%s2750 + $0x79] sm:$0xff]
    %v3082 = vld [vmem:[%s2750 + $0x81] sm:$0xff]
    %v3083 = vld [vmem:[%s2750 + $0x91] sm:$0xff]
    %v3084 = vld [vmem:[%s2750 + $0x99] sm:$0xff]
    %v3085 = vld [vmem:[%s2750 + $0xa9] sm:$0xff]
    %v3086 = vld [vmem:[%s2750 + $0xb1] sm:$0xff]
    %v3087 = vld [vmem:[%s2750 + $0xc1] sm:$0xff]
    %v3088 = vld [vmem:[%s2750 + $0xc9] sm:$0xff]
    %v3089 = vld [vmem:[%s2750 + $0xd9] sm:$0xff]
    %v3090 = vld [vmem:[%s2750 + $0xe1] sm:$0xff]
    %v3091 = vld [vmem:[%s2750 + $0xf1] sm:$0xff]
    %v3092 = vld [vmem:[%s2750 + $0xf9] sm:$0xff]
    %v3093 = vld [vmem:[%s2750 + $0x109] sm:$0xff]
    %v3094 = vld [vmem:[%s2750 + $0x111] sm:$0xff]
    %v3095 = vld [vmem:[%s2750 + $0x121] sm:$0xff]
    %v3096 = vld [vmem:[%s2750 + $0x129] sm:$0xff]
    %v3097 = vld [vmem:[%s2750 + $0x139] sm:$0xff]
    %v3098 = vld [vmem:[%s2750 + $0x141] sm:$0xff]
    %v3099 = vld [vmem:[%s2750 + $0x151] sm:$0xff]
    %v3100 = vld [vmem:[%s2750 + $0x159] sm:$0xff]
    %v3101 = vld [vmem:[%s2750 + $0x169] sm:$0xff]
    %v3102 = vld [vmem:[%s2750 + $0x171] sm:$0xff]
    %v3103 = vld [vmem:[%s2750 + $0x1b1] sm:$0xff]
    %v3104 = vld [vmem:[%s2750 + $0x1b9] sm:$0xff]
    %v3105 = vld [vmem:[%s2750 + $0x1c9] sm:$0xff]
    %v3106 = vld [vmem:[%s2750 + $0x1d1] sm:$0xff]
    %v3107 = vld [vmem:[%s2750 + $0x1e1] sm:$0xff]
    %v3108 = vld [vmem:[%s2750 + $0x1e9] sm:$0xff]
    %v3109 = vld [vmem:[%s2750 + $0x1f9] sm:$0xff]
    %v3110 = vld [vmem:[%s2750 + $0x201] sm:$0xff]
    %v3111 = vld [vmem:[%s2750 + $0x211] sm:$0xff]
    %v3112 = vld [vmem:[%s2750 + $0x219] sm:$0xff]
    %v3113 = vld [vmem:[%s2750 + $0x229] sm:$0xff]
    %v3114 = vld [vmem:[%s2750 + $0x231] sm:$0xff]
    %v3115 = vld [vmem:[%s2750 + $0x241] sm:$0xff]
    %v3116 = vld [vmem:[%s2750 + $0x249] sm:$0xff]
    %v3117 = vld [vmem:[%s2750 + $0x259] sm:$0xff]
    %v3118 = vld [vmem:[%s2750 + $0x261] sm:$0xff]
    %v3119 = vld [vmem:[%s2750 + $0x271] sm:$0xff]
    %v3120 = vld [vmem:[%s2750 + $0x279] sm:$0xff]
    %v3121 = vld [vmem:[%s2750 + $0x289] sm:$0xff]
    %v3122 = vld [vmem:[%s2750 + $0x291] sm:$0xff]
    %v3123 = vld [vmem:[%s2750 + $0x2a1] sm:$0xff]
    %v3124 = vld [vmem:[%s2750 + $0x2a9] sm:$0xff]
    %v3125 = vld [vmem:[%s2750 + $0x2b9] sm:$0xff]
    %v3126 = vld [vmem:[%s2750 + $0x2c1] sm:$0xff]
    %v3127 = vld [vmem:[%s2750 + $0x2d1] sm:$0xff]
    %v3128 = vld [vmem:[%s2750 + $0x2d9] sm:$0xff]
    %v3129 = vld [vmem:[%s2750 + $0x2e9] sm:$0xff]
    %v3130 = vld [vmem:[%s2750 + $0x2f1] sm:$0xff]
    %v3131 = vld [vmem:[%s2750 + $0x301] sm:$0xff]
    %v3132 = vld [vmem:[%s2750 + $0x309] sm:$0xff]
    %v3133 = vld [vmem:[%s2750 + $0x319] sm:$0xff]
    %v3134 = vld [vmem:[%s2750 + $0x321] sm:$0xff]
    %v3135 = vld [vmem:[%s2750 + $0x2] sm:$0xff]
    %v3136 = vld [vmem:[%s2750 + $0xa] sm:$0xff]
    %v3137 = vld [vmem:[%s2750 + $0x1a] sm:$0xff]
    %v3138 = vld [vmem:[%s2750 + $0x22] sm:$0xff]
    %v3139 = vld [vmem:[%s2750 + $0x32] sm:$0xff]
    %v3140 = vld [vmem:[%s2750 + $0x3a] sm:$0xff]
    %v3141 = vld [vmem:[%s2750 + $0x4a] sm:$0xff]
    %v3142 = vld [vmem:[%s2750 + $0x52] sm:$0xff]
    %v3143 = vld [vmem:[%s2750 + $0x62] sm:$0xff]
    %v3144 = vld [vmem:[%s2750 + $0x6a] sm:$0xff]
    %v3145 = vld [vmem:[%s2750 + $0x7a] sm:$0xff]
    %v3146 = vld [vmem:[%s2750 + $0x82] sm:$0xff]
    %v3147 = vld [vmem:[%s2750 + $0x92] sm:$0xff]
    %v3148 = vld [vmem:[%s2750 + $0x9a] sm:$0xff]
    %v3149 = vld [vmem:[%s2750 + $0xaa] sm:$0xff]
    %v3150 = vld [vmem:[%s2750 + $0xb2] sm:$0xff]
    %v3151 = vld [vmem:[%s2750 + $0xc2] sm:$0xff]
    %v3152 = vld [vmem:[%s2750 + $0xca] sm:$0xff]
    %v3153 = vld [vmem:[%s2750 + $0xda] sm:$0xff]
    %v3154 = vld [vmem:[%s2750 + $0xe2] sm:$0xff]
    %v3155 = vld [vmem:[%s2750 + $0xf2] sm:$0xff]
    %v3156 = vld [vmem:[%s2750 + $0xfa] sm:$0xff]
    %v3157 = vld [vmem:[%s2750 + $0x10a] sm:$0xff]
    %v3158 = vld [vmem:[%s2750 + $0x112] sm:$0xff]
    %v3159 = vld [vmem:[%s2750 + $0x122] sm:$0xff]
    %v3160 = vld [vmem:[%s2750 + $0x12a] sm:$0xff]
    %v3161 = vld [vmem:[%s2750 + $0x13a] sm:$0xff]
    %v3162 = vld [vmem:[%s2750 + $0x142] sm:$0xff]
    %v3163 = vld [vmem:[%s2750 + $0x152] sm:$0xff]
    %v3164 = vld [vmem:[%s2750 + $0x15a] sm:$0xff]
    %v3165 = vld [vmem:[%s2750 + $0x16a] sm:$0xff]
    %v3166 = vld [vmem:[%s2750 + $0x172] sm:$0xff]
    %v3167 = vld [vmem:[%s2750 + $0x1b2] sm:$0xff]
    %v3168 = vld [vmem:[%s2750 + $0x1ba] sm:$0xff]
    %v3169 = vld [vmem:[%s2750 + $0x1ca] sm:$0xff]
    %v3170 = vld [vmem:[%s2750 + $0x1d2] sm:$0xff]
    %v3171 = vld [vmem:[%s2750 + $0x1e2] sm:$0xff]
    %v3172 = vld [vmem:[%s2750 + $0x1ea] sm:$0xff]
    %v3173 = vld [vmem:[%s2750 + $0x1fa] sm:$0xff]
    %v3174 = vld [vmem:[%s2750 + $0x202] sm:$0xff]
    %v3175 = vld [vmem:[%s2750 + $0x212] sm:$0xff]
    %v3176 = vld [vmem:[%s2750 + $0x21a] sm:$0xff]
    %v3177 = vld [vmem:[%s2750 + $0x22a] sm:$0xff]
    %v3178 = vld [vmem:[%s2750 + $0x232] sm:$0xff]
    %v3179 = vld [vmem:[%s2750 + $0x242] sm:$0xff]
    %v3180 = vld [vmem:[%s2750 + $0x24a] sm:$0xff]
    %v3181 = vld [vmem:[%s2750 + $0x25a] sm:$0xff]
    %v3182 = vld [vmem:[%s2750 + $0x262] sm:$0xff]
    %v3183 = vld [vmem:[%s2750 + $0x272] sm:$0xff]
    %v3184 = vld [vmem:[%s2750 + $0x27a] sm:$0xff]
    %v3185 = vld [vmem:[%s2750 + $0x28a] sm:$0xff]
    %v3186 = vld [vmem:[%s2750 + $0x292] sm:$0xff]
    %v3187 = vld [vmem:[%s2750 + $0x2a2] sm:$0xff]
    %v3188 = vld [vmem:[%s2750 + $0x2aa] sm:$0xff]
    %v3189 = vld [vmem:[%s2750 + $0x2ba] sm:$0xff]
    %v3190 = vld [vmem:[%s2750 + $0x2c2] sm:$0xff]
    %v3191 = vld [vmem:[%s2750 + $0x2d2] sm:$0xff]
    %v3192 = vld [vmem:[%s2750 + $0x2da] sm:$0xff]
    %v3193 = vld [vmem:[%s2750 + $0x2ea] sm:$0xff]
    %v3194 = vld [vmem:[%s2750 + $0x2f2] sm:$0xff]
    %v3195 = vld [vmem:[%s2750 + $0x302] sm:$0xff]
    %v3196 = vld [vmem:[%s2750 + $0x30a] sm:$0xff]
    %v3197 = vld [vmem:[%s2750 + $0x31a] sm:$0xff]
    %v3198 = vld [vmem:[%s2750 + $0x322] sm:$0xff]
    %s3199 = scalar_lea.vmem [#allocation2], 48
    %v3200 = vld [vmem:[%s3199] sm:$0xff]
    %v3201 = vld [vmem:[%s3199 + $0x8] sm:$0xff]
    %v3202 = vld [vmem:[%s3199 + $0x18] sm:$0xff]
    %v3203 = vld [vmem:[%s3199 + $0x20] sm:$0xff]
    %v3204 = vld [vmem:[%s3199 + $0x30] sm:$0xff]
    %v3205 = vld [vmem:[%s3199 + $0x38] sm:$0xff]
    %v3206 = vld [vmem:[%s3199 + $0x48] sm:$0xff]
    %v3207 = vld [vmem:[%s3199 + $0x50] sm:$0xff]
    %v3208 = vld [vmem:[%s3199 + $0x60] sm:$0xff]
    %v3209 = vld [vmem:[%s3199 + $0x68] sm:$0xff]
    %v3210 = vld [vmem:[%s3199 + $0x78] sm:$0xff]
    %v3211 = vld [vmem:[%s3199 + $0x80] sm:$0xff]
    %v3212 = vld [vmem:[%s3199 + $0x90] sm:$0xff]
    %v3213 = vld [vmem:[%s3199 + $0x98] sm:$0xff]
    %v3214 = vld [vmem:[%s3199 + $0xa8] sm:$0xff]
    %v3215 = vld [vmem:[%s3199 + $0xb0] sm:$0xff]
    %v3216 = vld [vmem:[%s3199 + $0xc0] sm:$0xff]
    %v3217 = vld [vmem:[%s3199 + $0xc8] sm:$0xff]
    %v3218 = vld [vmem:[%s3199 + $0xd8] sm:$0xff]
    %v3219 = vld [vmem:[%s3199 + $0xe0] sm:$0xff]
    %v3220 = vld [vmem:[%s3199 + $0xf0] sm:$0xff]
    %v3221 = vld [vmem:[%s3199 + $0xf8] sm:$0xff]
    %v3222 = vld [vmem:[%s3199 + $0x108] sm:$0xff]
    %v3223 = vld [vmem:[%s3199 + $0x110] sm:$0xff]
    %v3224 = vld [vmem:[%s3199 + $0x120] sm:$0xff]
    %v3225 = vld [vmem:[%s3199 + $0x128] sm:$0xff]
    %v3226 = vld [vmem:[%s3199 + $0x138] sm:$0xff]
    %v3227 = vld [vmem:[%s3199 + $0x140] sm:$0xff]
    %v3228 = vld [vmem:[%s3199 + $0x150] sm:$0xff]
    %v3229 = vld [vmem:[%s3199 + $0x158] sm:$0xff]
    %v3230 = vld [vmem:[%s3199 + $0x168] sm:$0xff]
    %v3231 = vld [vmem:[%s3199 + $0x170] sm:$0xff]
    %v3232 = vld [vmem:[%s3199 + $0x1b0] sm:$0xff]
    %v3233 = vld [vmem:[%s3199 + $0x1b8] sm:$0xff]
    %v3234 = vld [vmem:[%s3199 + $0x1c8] sm:$0xff]
    %v3235 = vld [vmem:[%s3199 + $0x1d0] sm:$0xff]
    %v3236 = vld [vmem:[%s3199 + $0x1e0] sm:$0xff]
    %v3237 = vld [vmem:[%s3199 + $0x1e8] sm:$0xff]
    %v3238 = vld [vmem:[%s3199 + $0x1f8] sm:$0xff]
    %v3239 = vld [vmem:[%s3199 + $0x200] sm:$0xff]
    %v3240 = vld [vmem:[%s3199 + $0x210] sm:$0xff]
    %v3241 = vld [vmem:[%s3199 + $0x218] sm:$0xff]
    %v3242 = vld [vmem:[%s3199 + $0x228] sm:$0xff]
    %v3243 = vld [vmem:[%s3199 + $0x230] sm:$0xff]
    %v3244 = vld [vmem:[%s3199 + $0x240] sm:$0xff]
    %v3245 = vld [vmem:[%s3199 + $0x248] sm:$0xff]
    %v3246 = vld [vmem:[%s3199 + $0x258] sm:$0xff]
    %v3247 = vld [vmem:[%s3199 + $0x260] sm:$0xff]
    %v3248 = vld [vmem:[%s3199 + $0x270] sm:$0xff]
    %v3249 = vld [vmem:[%s3199 + $0x278] sm:$0xff]
    %v3250 = vld [vmem:[%s3199 + $0x288] sm:$0xff]
    %v3251 = vld [vmem:[%s3199 + $0x290] sm:$0xff]
    %v3252 = vld [vmem:[%s3199 + $0x2a0] sm:$0xff]
    %v3253 = vld [vmem:[%s3199 + $0x2a8] sm:$0xff]
    %v3254 = vld [vmem:[%s3199 + $0x2b8] sm:$0xff]
    %v3255 = vld [vmem:[%s3199 + $0x2c0] sm:$0xff]
    %v3256 = vld [vmem:[%s3199 + $0x2d0] sm:$0xff]
    %v3257 = vld [vmem:[%s3199 + $0x2d8] sm:$0xff]
    %v3258 = vld [vmem:[%s3199 + $0x2e8] sm:$0xff]
    %v3259 = vld [vmem:[%s3199 + $0x2f0] sm:$0xff]
    %v3260 = vld [vmem:[%s3199 + $0x300] sm:$0xff]
    %v3261 = vld [vmem:[%s3199 + $0x308] sm:$0xff]
    %v3262 = vld [vmem:[%s3199 + $0x318] sm:$0xff]
    %v3263 = vld [vmem:[%s3199 + $0x320] sm:$0xff]
    %v3264 = vld [vmem:[%s3199 + $0x1] sm:$0xff]
    %v3265 = vld [vmem:[%s3199 + $0x9] sm:$0xff]
    %v3266 = vld [vmem:[%s3199 + $0x19] sm:$0xff]
    %v3267 = vld [vmem:[%s3199 + $0x21] sm:$0xff]
    %v3268 = vld [vmem:[%s3199 + $0x31] sm:$0xff]
    %v3269 = vld [vmem:[%s3199 + $0x39] sm:$0xff]
    %v3270 = vld [vmem:[%s3199 + $0x49] sm:$0xff]
    %v3271 = vld [vmem:[%s3199 + $0x51] sm:$0xff]
    %v3272 = vld [vmem:[%s3199 + $0x61] sm:$0xff]
    %v3273 = vld [vmem:[%s3199 + $0x69] sm:$0xff]
    %v3274 = vld [vmem:[%s3199 + $0x79] sm:$0xff]
    %v3275 = vld [vmem:[%s3199 + $0x81] sm:$0xff]
    %v3276 = vld [vmem:[%s3199 + $0x91] sm:$0xff]
    %v3277 = vld [vmem:[%s3199 + $0x99] sm:$0xff]
    %v3278 = vld [vmem:[%s3199 + $0xa9] sm:$0xff]
    %v3279 = vld [vmem:[%s3199 + $0xb1] sm:$0xff]
    %v3280 = vld [vmem:[%s3199 + $0xc1] sm:$0xff]
    %v3281 = vld [vmem:[%s3199 + $0xc9] sm:$0xff]
    %v3282 = vld [vmem:[%s3199 + $0xd9] sm:$0xff]
    %v3283 = vld [vmem:[%s3199 + $0xe1] sm:$0xff]
    %v3284 = vld [vmem:[%s3199 + $0xf1] sm:$0xff]
    %v3285 = vld [vmem:[%s3199 + $0xf9] sm:$0xff]
    %v3286 = vld [vmem:[%s3199 + $0x109] sm:$0xff]
    %v3287 = vld [vmem:[%s3199 + $0x111] sm:$0xff]
    %v3288 = vld [vmem:[%s3199 + $0x121] sm:$0xff]
    %v3289 = vld [vmem:[%s3199 + $0x129] sm:$0xff]
    %v3290 = vld [vmem:[%s3199 + $0x139] sm:$0xff]
    %v3291 = vld [vmem:[%s3199 + $0x141] sm:$0xff]
    %v3292 = vld [vmem:[%s3199 + $0x151] sm:$0xff]
    %v3293 = vld [vmem:[%s3199 + $0x159] sm:$0xff]
    %v3294 = vld [vmem:[%s3199 + $0x169] sm:$0xff]
    %v3295 = vld [vmem:[%s3199 + $0x171] sm:$0xff]
    %v3296 = vld [vmem:[%s3199 + $0x1b1] sm:$0xff]
    %v3297 = vld [vmem:[%s3199 + $0x1b9] sm:$0xff]
    %v3298 = vld [vmem:[%s3199 + $0x1c9] sm:$0xff]
    %v3299 = vld [vmem:[%s3199 + $0x1d1] sm:$0xff]
    %v3300 = vld [vmem:[%s3199 + $0x1e1] sm:$0xff]
    %v3301 = vld [vmem:[%s3199 + $0x1e9] sm:$0xff]
    %v3302 = vld [vmem:[%s3199 + $0x1f9] sm:$0xff]
    %v3303 = vld [vmem:[%s3199 + $0x201] sm:$0xff]
    %v3304 = vld [vmem:[%s3199 + $0x211] sm:$0xff]
    %v3305 = vld [vmem:[%s3199 + $0x219] sm:$0xff]
    %v3306 = vld [vmem:[%s3199 + $0x229] sm:$0xff]
    %v3307 = vld [vmem:[%s3199 + $0x231] sm:$0xff]
    %v3308 = vld [vmem:[%s3199 + $0x241] sm:$0xff]
    %v3309 = vld [vmem:[%s3199 + $0x249] sm:$0xff]
    %v3310 = vld [vmem:[%s3199 + $0x259] sm:$0xff]
    %v3311 = vld [vmem:[%s3199 + $0x261] sm:$0xff]
    %v3312 = vld [vmem:[%s3199 + $0x271] sm:$0xff]
    %v3313 = vld [vmem:[%s3199 + $0x279] sm:$0xff]
    %v3314 = vld [vmem:[%s3199 + $0x289] sm:$0xff]
    %v3315 = vld [vmem:[%s3199 + $0x291] sm:$0xff]
    %v3316 = vld [vmem:[%s3199 + $0x2a1] sm:$0xff]
    %v3317 = vld [vmem:[%s3199 + $0x2a9] sm:$0xff]
    %v3318 = vld [vmem:[%s3199 + $0x2b9] sm:$0xff]
    %v3319 = vld [vmem:[%s3199 + $0x2c1] sm:$0xff]
    %v3320 = vld [vmem:[%s3199 + $0x2d1] sm:$0xff]
    %v3321 = vld [vmem:[%s3199 + $0x2d9] sm:$0xff]
    %v3322 = vld [vmem:[%s3199 + $0x2e9] sm:$0xff]
    %v3323 = vld [vmem:[%s3199 + $0x2f1] sm:$0xff]
    %v3324 = vld [vmem:[%s3199 + $0x301] sm:$0xff]
    %v3325 = vld [vmem:[%s3199 + $0x309] sm:$0xff]
    %v3326 = vld [vmem:[%s3199 + $0x319] sm:$0xff]
    %v3327 = vld [vmem:[%s3199 + $0x321] sm:$0xff]
    %v3328 = vld [vmem:[%s3199 + $0x2] sm:$0xff]
    %v3329 = vld [vmem:[%s3199 + $0xa] sm:$0xff]
    %v3330 = vld [vmem:[%s3199 + $0x1a] sm:$0xff]
    %v3331 = vld [vmem:[%s3199 + $0x22] sm:$0xff]
    %v3332 = vld [vmem:[%s3199 + $0x32] sm:$0xff]
    %v3333 = vld [vmem:[%s3199 + $0x3a] sm:$0xff]
    %v3334 = vld [vmem:[%s3199 + $0x4a] sm:$0xff]
    %v3335 = vld [vmem:[%s3199 + $0x52] sm:$0xff]
    %v3336 = vld [vmem:[%s3199 + $0x62] sm:$0xff]
    %v3337 = vld [vmem:[%s3199 + $0x6a] sm:$0xff]
    %v3338 = vld [vmem:[%s3199 + $0x7a] sm:$0xff]
    %v3339 = vld [vmem:[%s3199 + $0x82] sm:$0xff]
    %v3340 = vld [vmem:[%s3199 + $0x92] sm:$0xff]
    %v3341 = vld [vmem:[%s3199 + $0x9a] sm:$0xff]
    %v3342 = vld [vmem:[%s3199 + $0xaa] sm:$0xff]
    %v3343 = vld [vmem:[%s3199 + $0xb2] sm:$0xff]
    %v3344 = vld [vmem:[%s3199 + $0xc2] sm:$0xff]
    %v3345 = vld [vmem:[%s3199 + $0xca] sm:$0xff]
    %v3346 = vld [vmem:[%s3199 + $0xda] sm:$0xff]
    %v3347 = vld [vmem:[%s3199 + $0xe2] sm:$0xff]
    %v3348 = vld [vmem:[%s3199 + $0xf2] sm:$0xff]
    %v3349 = vld [vmem:[%s3199 + $0xfa] sm:$0xff]
    %v3350 = vld [vmem:[%s3199 + $0x10a] sm:$0xff]
    %v3351 = vld [vmem:[%s3199 + $0x112] sm:$0xff]
    %v3352 = vld [vmem:[%s3199 + $0x122] sm:$0xff]
    %v3353 = vld [vmem:[%s3199 + $0x12a] sm:$0xff]
    %v3354 = vld [vmem:[%s3199 + $0x13a] sm:$0xff]
    %v3355 = vld [vmem:[%s3199 + $0x142] sm:$0xff]
    %v3356 = vld [vmem:[%s3199 + $0x152] sm:$0xff]
    %v3357 = vld [vmem:[%s3199 + $0x15a] sm:$0xff]
    %v3358 = vld [vmem:[%s3199 + $0x16a] sm:$0xff]
    %v3359 = vld [vmem:[%s3199 + $0x172] sm:$0xff]
    %v3360 = vld [vmem:[%s3199 + $0x1b2] sm:$0xff]
    %v3361 = vld [vmem:[%s3199 + $0x1ba] sm:$0xff]
    %v3362 = vld [vmem:[%s3199 + $0x1ca] sm:$0xff]
    %v3363 = vld [vmem:[%s3199 + $0x1d2] sm:$0xff]
    %v3364 = vld [vmem:[%s3199 + $0x1e2] sm:$0xff]
    %v3365 = vld [vmem:[%s3199 + $0x1ea] sm:$0xff]
    %v3366 = vld [vmem:[%s3199 + $0x1fa] sm:$0xff]
    %v3367 = vld [vmem:[%s3199 + $0x202] sm:$0xff]
    %v3368 = vld [vmem:[%s3199 + $0x212] sm:$0xff]
    %v3369 = vld [vmem:[%s3199 + $0x21a] sm:$0xff]
    %v3370 = vld [vmem:[%s3199 + $0x22a] sm:$0xff]
    %v3371 = vld [vmem:[%s3199 + $0x232] sm:$0xff]
    %v3372 = vld [vmem:[%s3199 + $0x242] sm:$0xff]
    %v3373 = vld [vmem:[%s3199 + $0x24a] sm:$0xff]
    %v3374 = vld [vmem:[%s3199 + $0x25a] sm:$0xff]
    %v3375 = vld [vmem:[%s3199 + $0x262] sm:$0xff]
    %v3376 = vld [vmem:[%s3199 + $0x272] sm:$0xff]
    %v3377 = vld [vmem:[%s3199 + $0x27a] sm:$0xff]
    %v3378 = vld [vmem:[%s3199 + $0x28a] sm:$0xff]
    %v3379 = vld [vmem:[%s3199 + $0x292] sm:$0xff]
    %v3380 = vld [vmem:[%s3199 + $0x2a2] sm:$0xff]
    %v3381 = vld [vmem:[%s3199 + $0x2aa] sm:$0xff]
    %v3382 = vld [vmem:[%s3199 + $0x2ba] sm:$0xff]
    %v3383 = vld [vmem:[%s3199 + $0x2c2] sm:$0xff]
    %v3384 = vld [vmem:[%s3199 + $0x2d2] sm:$0xff]
    %v3385 = vld [vmem:[%s3199 + $0x2da] sm:$0xff]
    %v3386 = vld [vmem:[%s3199 + $0x2ea] sm:$0xff]
    %v3387 = vld [vmem:[%s3199 + $0x2f2] sm:$0xff]
    %v3388 = vld [vmem:[%s3199 + $0x302] sm:$0xff]
    %v3389 = vld [vmem:[%s3199 + $0x30a] sm:$0xff]
    %v3390 = vld [vmem:[%s3199 + $0x31a] sm:$0xff]
    %v3391 = vld [vmem:[%s3199 + $0x322] sm:$0xff]
    %3456 = vrot.lane.b32.xlu0 %v2879, 8
    %v3457 = vpop.permute.xlu0 %3456
    %3458 = vrot.lane.b32.xlu0 %v2880, 8
    %v3459 = vpop.permute.xlu0 %3458
    %3460 = vrot.lane.b32.xlu0 %v2881, 8
    %v3461 = vpop.permute.xlu0 %3460
    %3462 = vrot.lane.b32.xlu0 %v2882, 8
    %v3463 = vpop.permute.xlu0 %3462
    %3464 = vrot.lane.b32.xlu0 %v2883, 8
    %v3465 = vpop.permute.xlu0 %3464
    %3466 = vrot.lane.b32.xlu0 %v2884, 8
    %v3467 = vpop.permute.xlu0 %3466
    %3468 = vrot.lane.b32.xlu0 %v2885, 8
    %v3469 = vpop.permute.xlu0 %3468
    %3470 = vrot.lane.b32.xlu0 %v2886, 8
    %v3471 = vpop.permute.xlu0 %3470
    %3472 = vrot.lane.b32.xlu0 %v2887, 8
    %v3473 = vpop.permute.xlu0 %3472
    %3474 = vrot.lane.b32.xlu0 %v2888, 8
    %v3475 = vpop.permute.xlu0 %3474
    %3476 = vrot.lane.b32.xlu0 %v2889, 8
    %v3477 = vpop.permute.xlu0 %3476
    %3478 = vrot.lane.b32.xlu0 %v2890, 8
    %v3479 = vpop.permute.xlu0 %3478
    %3480 = vrot.lane.b32.xlu0 %v2891, 8
    %v3481 = vpop.permute.xlu0 %3480
    %3482 = vrot.lane.b32.xlu0 %v2892, 8
    %v3483 = vpop.permute.xlu0 %3482
    %3484 = vrot.lane.b32.xlu0 %v2893, 8
    %v3485 = vpop.permute.xlu0 %3484
    %3486 = vrot.lane.b32.xlu0 %v2894, 8
    %v3487 = vpop.permute.xlu0 %3486
    %3488 = vrot.lane.b32.xlu0 %v2895, 8
    %v3489 = vpop.permute.xlu0 %3488
    %3490 = vrot.lane.b32.xlu0 %v2896, 8
    %v3491 = vpop.permute.xlu0 %3490
    %3492 = vrot.lane.b32.xlu0 %v2897, 8
    %v3493 = vpop.permute.xlu0 %3492
    %3494 = vrot.lane.b32.xlu0 %v2898, 8
    %v3495 = vpop.permute.xlu0 %3494
    %3496 = vrot.lane.b32.xlu0 %v2899, 8
    %v3497 = vpop.permute.xlu0 %3496
    %3498 = vrot.lane.b32.xlu0 %v2900, 8
    %v3499 = vpop.permute.xlu0 %3498
    %3500 = vrot.lane.b32.xlu0 %v2901, 8
    %v3501 = vpop.permute.xlu0 %3500
    %3502 = vrot.lane.b32.xlu0 %v2902, 8
    %v3503 = vpop.permute.xlu0 %3502
    %3504 = vrot.lane.b32.xlu0 %v2903, 8
    %v3505 = vpop.permute.xlu0 %3504
    %3506 = vrot.lane.b32.xlu0 %v2904, 8
    %v3507 = vpop.permute.xlu0 %3506
    %3508 = vrot.lane.b32.xlu0 %v2905, 8
    %v3509 = vpop.permute.xlu0 %3508
    %3510 = vrot.lane.b32.xlu0 %v2906, 8
    %v3511 = vpop.permute.xlu0 %3510
    %3512 = vrot.lane.b32.xlu0 %v2907, 8
    %v3513 = vpop.permute.xlu0 %3512
    %3514 = vrot.lane.b32.xlu0 %v2908, 8
    %v3515 = vpop.permute.xlu0 %3514
    %3516 = vrot.lane.b32.xlu0 %v2909, 8
    %v3517 = vpop.permute.xlu0 %3516
    %3518 = vrot.lane.b32.xlu0 %v2910, 8
    %v3519 = vpop.permute.xlu0 %3518
    %3520 = vrot.lane.b32.xlu0 %v2911, 8
    %v3521 = vpop.permute.xlu0 %3520
    %3522 = vrot.lane.b32.xlu0 %v2912, 8
    %v3523 = vpop.permute.xlu0 %3522
    %3524 = vrot.lane.b32.xlu0 %v2913, 8
    %v3525 = vpop.permute.xlu0 %3524
    %3526 = vrot.lane.b32.xlu0 %v2914, 8
    %v3527 = vpop.permute.xlu0 %3526
    %3528 = vrot.lane.b32.xlu0 %v2915, 8
    %v3529 = vpop.permute.xlu0 %3528
    %3530 = vrot.lane.b32.xlu0 %v2916, 8
    %v3531 = vpop.permute.xlu0 %3530
    %3532 = vrot.lane.b32.xlu0 %v2917, 8
    %v3533 = vpop.permute.xlu0 %3532
    %3534 = vrot.lane.b32.xlu0 %v2918, 8
    %v3535 = vpop.permute.xlu0 %3534
    %3536 = vrot.lane.b32.xlu0 %v2919, 8
    %v3537 = vpop.permute.xlu0 %3536
    %3538 = vrot.lane.b32.xlu0 %v2920, 8
    %v3539 = vpop.permute.xlu0 %3538
    %3540 = vrot.lane.b32.xlu0 %v2921, 8
    %v3541 = vpop.permute.xlu0 %3540
    %3542 = vrot.lane.b32.xlu0 %v2922, 8
    %v3543 = vpop.permute.xlu0 %3542
    %3544 = vrot.lane.b32.xlu0 %v2923, 8
    %v3545 = vpop.permute.xlu0 %3544
    %3546 = vrot.lane.b32.xlu0 %v2924, 8
    %v3547 = vpop.permute.xlu0 %3546
    %3548 = vrot.lane.b32.xlu0 %v2925, 8
    %v3549 = vpop.permute.xlu0 %3548
    %3550 = vrot.lane.b32.xlu0 %v2926, 8
    %v3551 = vpop.permute.xlu0 %3550
    %3552 = vrot.lane.b32.xlu0 %v2927, 8
    %v3553 = vpop.permute.xlu0 %3552
    %3554 = vrot.lane.b32.xlu0 %v2928, 8
    %v3555 = vpop.permute.xlu0 %3554
    %3556 = vrot.lane.b32.xlu0 %v2929, 8
    %v3557 = vpop.permute.xlu0 %3556
    %3558 = vrot.lane.b32.xlu0 %v2930, 8
    %v3559 = vpop.permute.xlu0 %3558
    %3560 = vrot.lane.b32.xlu0 %v2931, 8
    %v3561 = vpop.permute.xlu0 %3560
    %3562 = vrot.lane.b32.xlu0 %v2932, 8
    %v3563 = vpop.permute.xlu0 %3562
    %3564 = vrot.lane.b32.xlu0 %v2933, 8
    %v3565 = vpop.permute.xlu0 %3564
    %3566 = vrot.lane.b32.xlu0 %v2934, 8
    %v3567 = vpop.permute.xlu0 %3566
    %3568 = vrot.lane.b32.xlu0 %v2935, 8
    %v3569 = vpop.permute.xlu0 %3568
    %3570 = vrot.lane.b32.xlu0 %v2936, 8
    %v3571 = vpop.permute.xlu0 %3570
    %3572 = vrot.lane.b32.xlu0 %v2937, 8
    %v3573 = vpop.permute.xlu0 %3572
    %3574 = vrot.lane.b32.xlu0 %v2938, 8
    %v3575 = vpop.permute.xlu0 %3574
    %3576 = vrot.lane.b32.xlu0 %v2939, 8
    %v3577 = vpop.permute.xlu0 %3576
    %3578 = vrot.lane.b32.xlu0 %v2940, 8
    %v3579 = vpop.permute.xlu0 %3578
    %3580 = vrot.lane.b32.xlu0 %v2941, 8
    %v3581 = vpop.permute.xlu0 %3580
    %3582 = vrot.lane.b32.xlu0 %v2942, 8
    %v3583 = vpop.permute.xlu0 %3582
    %3712 = vrot.lane.b32.xlu0 %v2943, 16
    %v3713 = vpop.permute.xlu0 %3712
    %3714 = vrot.lane.b32.xlu0 %v2944, 16
    %v3715 = vpop.permute.xlu0 %3714
    %3716 = vrot.lane.b32.xlu0 %v2945, 16
    %v3717 = vpop.permute.xlu0 %3716
    %3718 = vrot.lane.b32.xlu0 %v2946, 16
    %v3719 = vpop.permute.xlu0 %3718
    %3720 = vrot.lane.b32.xlu0 %v2947, 16
    %v3721 = vpop.permute.xlu0 %3720
    %3722 = vrot.lane.b32.xlu0 %v2948, 16
    %v3723 = vpop.permute.xlu0 %3722
    %3724 = vrot.lane.b32.xlu0 %v2949, 16
    %v3725 = vpop.permute.xlu0 %3724
    %3726 = vrot.lane.b32.xlu0 %v2950, 16
    %v3727 = vpop.permute.xlu0 %3726
    %3728 = vrot.lane.b32.xlu0 %v2951, 16
    %v3729 = vpop.permute.xlu0 %3728
    %3730 = vrot.lane.b32.xlu0 %v2952, 16
    %v3731 = vpop.permute.xlu0 %3730
    %3732 = vrot.lane.b32.xlu0 %v2953, 16
    %v3733 = vpop.permute.xlu0 %3732
    %3734 = vrot.lane.b32.xlu0 %v2954, 16
    %v3735 = vpop.permute.xlu0 %3734
    %3736 = vrot.lane.b32.xlu0 %v2955, 16
    %v3737 = vpop.permute.xlu0 %3736
    %3738 = vrot.lane.b32.xlu0 %v2956, 16
    %v3739 = vpop.permute.xlu0 %3738
    %3740 = vrot.lane.b32.xlu0 %v2957, 16
    %v3741 = vpop.permute.xlu0 %3740
    %3742 = vrot.lane.b32.xlu0 %v2958, 16
    %v3743 = vpop.permute.xlu0 %3742
    %3744 = vrot.lane.b32.xlu0 %v2959, 16
    %v3745 = vpop.permute.xlu0 %3744
    %3746 = vrot.lane.b32.xlu0 %v2960, 16
    %v3747 = vpop.permute.xlu0 %3746
    %3748 = vrot.lane.b32.xlu0 %v2961, 16
    %v3749 = vpop.permute.xlu0 %3748
    %3750 = vrot.lane.b32.xlu0 %v2962, 16
    %v3751 = vpop.permute.xlu0 %3750
    %3752 = vrot.lane.b32.xlu0 %v2963, 16
    %v3753 = vpop.permute.xlu0 %3752
    %3754 = vrot.lane.b32.xlu0 %v2964, 16
    %v3755 = vpop.permute.xlu0 %3754
    %3756 = vrot.lane.b32.xlu0 %v2965, 16
    %v3757 = vpop.permute.xlu0 %3756
    %3758 = vrot.lane.b32.xlu0 %v2966, 16
    %v3759 = vpop.permute.xlu0 %3758
    %3760 = vrot.lane.b32.xlu0 %v2967, 16
    %v3761 = vpop.permute.xlu0 %3760
    %3762 = vrot.lane.b32.xlu0 %v2968, 16
    %v3763 = vpop.permute.xlu0 %3762
    %3764 = vrot.lane.b32.xlu0 %v2969, 16
    %v3765 = vpop.permute.xlu0 %3764
    %3766 = vrot.lane.b32.xlu0 %v2970, 16
    %v3767 = vpop.permute.xlu0 %3766
    %3768 = vrot.lane.b32.xlu0 %v2971, 16
    %v3769 = vpop.permute.xlu0 %3768
    %3770 = vrot.lane.b32.xlu0 %v2972, 16
    %v3771 = vpop.permute.xlu0 %3770
    %3772 = vrot.lane.b32.xlu0 %v2973, 16
    %v3773 = vpop.permute.xlu0 %3772
    %3774 = vrot.lane.b32.xlu0 %v2974, 16
    %v3775 = vpop.permute.xlu0 %3774
    %3776 = vrot.lane.b32.xlu0 %v2975, 16
    %v3777 = vpop.permute.xlu0 %3776
    %3778 = vrot.lane.b32.xlu0 %v2976, 16
    %v3779 = vpop.permute.xlu0 %3778
    %3780 = vrot.lane.b32.xlu0 %v2977, 16
    %v3781 = vpop.permute.xlu0 %3780
    %3782 = vrot.lane.b32.xlu0 %v2978, 16
    %v3783 = vpop.permute.xlu0 %3782
    %3784 = vrot.lane.b32.xlu0 %v2979, 16
    %v3785 = vpop.permute.xlu0 %3784
    %3786 = vrot.lane.b32.xlu0 %v2980, 16
    %v3787 = vpop.permute.xlu0 %3786
    %3788 = vrot.lane.b32.xlu0 %v2981, 16
    %v3789 = vpop.permute.xlu0 %3788
    %3790 = vrot.lane.b32.xlu0 %v2982, 16
    %v3791 = vpop.permute.xlu0 %3790
    %3792 = vrot.lane.b32.xlu0 %v2983, 16
    %v3793 = vpop.permute.xlu0 %3792
    %3794 = vrot.lane.b32.xlu0 %v2984, 16
    %v3795 = vpop.permute.xlu0 %3794
    %3796 = vrot.lane.b32.xlu0 %v2985, 16
    %v3797 = vpop.permute.xlu0 %3796
    %3798 = vrot.lane.b32.xlu0 %v2986, 16
    %v3799 = vpop.permute.xlu0 %3798
    %3800 = vrot.lane.b32.xlu0 %v2987, 16
    %v3801 = vpop.permute.xlu0 %3800
    %3802 = vrot.lane.b32.xlu0 %v2988, 16
    %v3803 = vpop.permute.xlu0 %3802
    %3804 = vrot.lane.b32.xlu0 %v2989, 16
    %v3805 = vpop.permute.xlu0 %3804
    %3806 = vrot.lane.b32.xlu0 %v2990, 16
    %v3807 = vpop.permute.xlu0 %3806
    %3808 = vrot.lane.b32.xlu0 %v2991, 16
    %v3809 = vpop.permute.xlu0 %3808
    %3810 = vrot.lane.b32.xlu0 %v2992, 16
    %v3811 = vpop.permute.xlu0 %3810
    %3812 = vrot.lane.b32.xlu0 %v2993, 16
    %v3813 = vpop.permute.xlu0 %3812
    %3814 = vrot.lane.b32.xlu0 %v2994, 16
    %v3815 = vpop.permute.xlu0 %3814
    %3816 = vrot.lane.b32.xlu0 %v2995, 16
    %v3817 = vpop.permute.xlu0 %3816
    %3818 = vrot.lane.b32.xlu0 %v2996, 16
    %v3819 = vpop.permute.xlu0 %3818
    %3820 = vrot.lane.b32.xlu0 %v2997, 16
    %v3821 = vpop.permute.xlu0 %3820
    %3822 = vrot.lane.b32.xlu0 %v2998, 16
    %v3823 = vpop.permute.xlu0 %3822
    %3824 = vrot.lane.b32.xlu0 %v2999, 16
    %v3825 = vpop.permute.xlu0 %3824
    %3826 = vrot.lane.b32.xlu0 %v3000, 16
    %v3827 = vpop.permute.xlu0 %3826
    %3828 = vrot.lane.b32.xlu0 %v3001, 16
    %v3829 = vpop.permute.xlu0 %3828
    %3830 = vrot.lane.b32.xlu0 %v3002, 16
    %v3831 = vpop.permute.xlu0 %3830
    %3832 = vrot.lane.b32.xlu0 %v3003, 16
    %v3833 = vpop.permute.xlu0 %3832
    %3834 = vrot.lane.b32.xlu0 %v3004, 16
    %v3835 = vpop.permute.xlu0 %3834
    %3836 = vrot.lane.b32.xlu0 %v3005, 16
    %v3837 = vpop.permute.xlu0 %3836
    %3838 = vrot.lane.b32.xlu0 %v3006, 16
    %v3839 = vpop.permute.xlu0 %3838
    %3968 = vrot.lane.b32.xlu0 %v3007, 24
    %v3969 = vpop.permute.xlu0 %3968
    %3970 = vrot.lane.b32.xlu0 %v3008, 24
    %v3971 = vpop.permute.xlu0 %3970
    %3972 = vrot.lane.b32.xlu0 %v3009, 24
    %v3973 = vpop.permute.xlu0 %3972
    %3974 = vrot.lane.b32.xlu0 %v3010, 24
    %v3975 = vpop.permute.xlu0 %3974
    %3976 = vrot.lane.b32.xlu0 %v3011, 24
    %v3977 = vpop.permute.xlu0 %3976
    %3978 = vrot.lane.b32.xlu0 %v3012, 24
    %v3979 = vpop.permute.xlu0 %3978
    %3980 = vrot.lane.b32.xlu0 %v3013, 24
    %v3981 = vpop.permute.xlu0 %3980
    %3982 = vrot.lane.b32.xlu0 %v3014, 24
    %v3983 = vpop.permute.xlu0 %3982
    %3984 = vrot.lane.b32.xlu0 %v3015, 24
    %v3985 = vpop.permute.xlu0 %3984
    %3986 = vrot.lane.b32.xlu0 %v3016, 24
    %v3987 = vpop.permute.xlu0 %3986
    %3988 = vrot.lane.b32.xlu0 %v3017, 24
    %v3989 = vpop.permute.xlu0 %3988
    %3990 = vrot.lane.b32.xlu0 %v3018, 24
    %v3991 = vpop.permute.xlu0 %3990
    %3992 = vrot.lane.b32.xlu0 %v3019, 24
    %v3993 = vpop.permute.xlu0 %3992
    %3994 = vrot.lane.b32.xlu0 %v3020, 24
    %v3995 = vpop.permute.xlu0 %3994
    %3996 = vrot.lane.b32.xlu0 %v3021, 24
    %v3997 = vpop.permute.xlu0 %3996
    %3998 = vrot.lane.b32.xlu0 %v3022, 24
    %v3999 = vpop.permute.xlu0 %3998
    %4000 = vrot.lane.b32.xlu0 %v3023, 24
    %v4001 = vpop.permute.xlu0 %4000
    %4002 = vrot.lane.b32.xlu0 %v3024, 24
    %v4003 = vpop.permute.xlu0 %4002
    %4004 = vrot.lane.b32.xlu0 %v3025, 24
    %v4005 = vpop.permute.xlu0 %4004
    %4006 = vrot.lane.b32.xlu0 %v3026, 24
    %v4007 = vpop.permute.xlu0 %4006
    %4008 = vrot.lane.b32.xlu0 %v3027, 24
    %v4009 = vpop.permute.xlu0 %4008
    %4010 = vrot.lane.b32.xlu0 %v3028, 24
    %v4011 = vpop.permute.xlu0 %4010
    %4012 = vrot.lane.b32.xlu0 %v3029, 24
    %v4013 = vpop.permute.xlu0 %4012
    %4014 = vrot.lane.b32.xlu0 %v3030, 24
    %v4015 = vpop.permute.xlu0 %4014
    %4016 = vrot.lane.b32.xlu0 %v3031, 24
    %v4017 = vpop.permute.xlu0 %4016
    %4018 = vrot.lane.b32.xlu0 %v3032, 24
    %v4019 = vpop.permute.xlu0 %4018
    %4020 = vrot.lane.b32.xlu0 %v3033, 24
    %v4021 = vpop.permute.xlu0 %4020
    %4022 = vrot.lane.b32.xlu0 %v3034, 24
    %v4023 = vpop.permute.xlu0 %4022
    %4024 = vrot.lane.b32.xlu0 %v3035, 24
    %v4025 = vpop.permute.xlu0 %4024
    %4026 = vrot.lane.b32.xlu0 %v3036, 24
    %v4027 = vpop.permute.xlu0 %4026
    %4028 = vrot.lane.b32.xlu0 %v3037, 24
    %v4029 = vpop.permute.xlu0 %4028
    %4030 = vrot.lane.b32.xlu0 %v3038, 24
    %v4031 = vpop.permute.xlu0 %4030
    %4032 = vrot.lane.b32.xlu0 %v3039, 24
    %v4033 = vpop.permute.xlu0 %4032
    %4034 = vrot.lane.b32.xlu0 %v3040, 24
    %v4035 = vpop.permute.xlu0 %4034
    %4036 = vrot.lane.b32.xlu0 %v3041, 24
    %v4037 = vpop.permute.xlu0 %4036
    %4038 = vrot.lane.b32.xlu0 %v3042, 24
    %v4039 = vpop.permute.xlu0 %4038
    %4040 = vrot.lane.b32.xlu0 %v3043, 24
    %v4041 = vpop.permute.xlu0 %4040
    %4042 = vrot.lane.b32.xlu0 %v3044, 24
    %v4043 = vpop.permute.xlu0 %4042
    %4044 = vrot.lane.b32.xlu0 %v3045, 24
    %v4045 = vpop.permute.xlu0 %4044
    %4046 = vrot.lane.b32.xlu0 %v3046, 24
    %v4047 = vpop.permute.xlu0 %4046
    %4048 = vrot.lane.b32.xlu0 %v3047, 24
    %v4049 = vpop.permute.xlu0 %4048
    %4050 = vrot.lane.b32.xlu0 %v3048, 24
    %v4051 = vpop.permute.xlu0 %4050
    %4052 = vrot.lane.b32.xlu0 %v3049, 24
    %v4053 = vpop.permute.xlu0 %4052
    %4054 = vrot.lane.b32.xlu0 %v3050, 24
    %v4055 = vpop.permute.xlu0 %4054
    %4056 = vrot.lane.b32.xlu0 %v3051, 24
    %v4057 = vpop.permute.xlu0 %4056
    %4058 = vrot.lane.b32.xlu0 %v3052, 24
    %v4059 = vpop.permute.xlu0 %4058
    %4060 = vrot.lane.b32.xlu0 %v3053, 24
    %v4061 = vpop.permute.xlu0 %4060
    %4062 = vrot.lane.b32.xlu0 %v3054, 24
    %v4063 = vpop.permute.xlu0 %4062
    %4064 = vrot.lane.b32.xlu0 %v3055, 24
    %v4065 = vpop.permute.xlu0 %4064
    %4066 = vrot.lane.b32.xlu0 %v3056, 24
    %v4067 = vpop.permute.xlu0 %4066
    %4068 = vrot.lane.b32.xlu0 %v3057, 24
    %v4069 = vpop.permute.xlu0 %4068
    %4070 = vrot.lane.b32.xlu0 %v3058, 24
    %v4071 = vpop.permute.xlu0 %4070
    %4072 = vrot.lane.b32.xlu0 %v3059, 24
    %v4073 = vpop.permute.xlu0 %4072
    %4074 = vrot.lane.b32.xlu0 %v3060, 24
    %v4075 = vpop.permute.xlu0 %4074
    %4076 = vrot.lane.b32.xlu0 %v3061, 24
    %v4077 = vpop.permute.xlu0 %4076
    %4078 = vrot.lane.b32.xlu0 %v3062, 24
    %v4079 = vpop.permute.xlu0 %4078
    %4080 = vrot.lane.b32.xlu0 %v3063, 24
    %v4081 = vpop.permute.xlu0 %4080
    %4082 = vrot.lane.b32.xlu0 %v3064, 24
    %v4083 = vpop.permute.xlu0 %4082
    %4084 = vrot.lane.b32.xlu0 %v3065, 24
    %v4085 = vpop.permute.xlu0 %4084
    %4086 = vrot.lane.b32.xlu0 %v3066, 24
    %v4087 = vpop.permute.xlu0 %4086
    %4088 = vrot.lane.b32.xlu0 %v3067, 24
    %v4089 = vpop.permute.xlu0 %4088
    %4090 = vrot.lane.b32.xlu0 %v3068, 24
    %v4091 = vpop.permute.xlu0 %4090
    %4092 = vrot.lane.b32.xlu0 %v3069, 24
    %v4093 = vpop.permute.xlu0 %4092
    %4094 = vrot.lane.b32.xlu0 %v3070, 24
    %v4095 = vpop.permute.xlu0 %4094
    %4224 = vrot.lane.b32.xlu0 %v3071, 32
    %v4225 = vpop.permute.xlu0 %4224
    %4226 = vrot.lane.b32.xlu0 %v3072, 32
    %v4227 = vpop.permute.xlu0 %4226
    %4228 = vrot.lane.b32.xlu0 %v3073, 32
    %v4229 = vpop.permute.xlu0 %4228
    %4230 = vrot.lane.b32.xlu0 %v3074, 32
    %v4231 = vpop.permute.xlu0 %4230
    %4232 = vrot.lane.b32.xlu0 %v3075, 32
    %v4233 = vpop.permute.xlu0 %4232
    %4234 = vrot.lane.b32.xlu0 %v3076, 32
    %v4235 = vpop.permute.xlu0 %4234
    %4236 = vrot.lane.b32.xlu0 %v3077, 32
    %v4237 = vpop.permute.xlu0 %4236
    %4238 = vrot.lane.b32.xlu0 %v3078, 32
    %v4239 = vpop.permute.xlu0 %4238
    %4240 = vrot.lane.b32.xlu0 %v3079, 32
    %v4241 = vpop.permute.xlu0 %4240
    %4242 = vrot.lane.b32.xlu0 %v3080, 32
    %v4243 = vpop.permute.xlu0 %4242
    %4244 = vrot.lane.b32.xlu0 %v3081, 32
    %v4245 = vpop.permute.xlu0 %4244
    %4246 = vrot.lane.b32.xlu0 %v3082, 32
    %v4247 = vpop.permute.xlu0 %4246
    %4248 = vrot.lane.b32.xlu0 %v3083, 32
    %v4249 = vpop.permute.xlu0 %4248
    %4250 = vrot.lane.b32.xlu0 %v3084, 32
    %v4251 = vpop.permute.xlu0 %4250
    %4252 = vrot.lane.b32.xlu0 %v3085, 32
    %v4253 = vpop.permute.xlu0 %4252
    %4254 = vrot.lane.b32.xlu0 %v3086, 32
    %v4255 = vpop.permute.xlu0 %4254
    %4256 = vrot.lane.b32.xlu0 %v3087, 32
    %v4257 = vpop.permute.xlu0 %4256
    %4258 = vrot.lane.b32.xlu0 %v3088, 32
    %v4259 = vpop.permute.xlu0 %4258
    %4260 = vrot.lane.b32.xlu0 %v3089, 32
    %v4261 = vpop.permute.xlu0 %4260
    %4262 = vrot.lane.b32.xlu0 %v3090, 32
    %v4263 = vpop.permute.xlu0 %4262
    %4264 = vrot.lane.b32.xlu0 %v3091, 32
    %v4265 = vpop.permute.xlu0 %4264
    %4266 = vrot.lane.b32.xlu0 %v3092, 32
    %v4267 = vpop.permute.xlu0 %4266
    %4268 = vrot.lane.b32.xlu0 %v3093, 32
    %v4269 = vpop.permute.xlu0 %4268
    %4270 = vrot.lane.b32.xlu0 %v3094, 32
    %v4271 = vpop.permute.xlu0 %4270
    %4272 = vrot.lane.b32.xlu0 %v3095, 32
    %v4273 = vpop.permute.xlu0 %4272
    %4274 = vrot.lane.b32.xlu0 %v3096, 32
    %v4275 = vpop.permute.xlu0 %4274
    %4276 = vrot.lane.b32.xlu0 %v3097, 32
    %v4277 = vpop.permute.xlu0 %4276
    %4278 = vrot.lane.b32.xlu0 %v3098, 32
    %v4279 = vpop.permute.xlu0 %4278
    %4280 = vrot.lane.b32.xlu0 %v3099, 32
    %v4281 = vpop.permute.xlu0 %4280
    %4282 = vrot.lane.b32.xlu0 %v3100, 32
    %v4283 = vpop.permute.xlu0 %4282
    %4284 = vrot.lane.b32.xlu0 %v3101, 32
    %v4285 = vpop.permute.xlu0 %4284
    %4286 = vrot.lane.b32.xlu0 %v3102, 32
    %v4287 = vpop.permute.xlu0 %4286
    %4288 = vrot.lane.b32.xlu0 %v3103, 32
    %v4289 = vpop.permute.xlu0 %4288
    %4290 = vrot.lane.b32.xlu0 %v3104, 32
    %v4291 = vpop.permute.xlu0 %4290
    %4292 = vrot.lane.b32.xlu0 %v3105, 32
    %v4293 = vpop.permute.xlu0 %4292
    %4294 = vrot.lane.b32.xlu0 %v3106, 32
    %v4295 = vpop.permute.xlu0 %4294
    %4296 = vrot.lane.b32.xlu0 %v3107, 32
    %v4297 = vpop.permute.xlu0 %4296
    %4298 = vrot.lane.b32.xlu0 %v3108, 32
    %v4299 = vpop.permute.xlu0 %4298
    %4300 = vrot.lane.b32.xlu0 %v3109, 32
    %v4301 = vpop.permute.xlu0 %4300
    %4302 = vrot.lane.b32.xlu0 %v3110, 32
    %v4303 = vpop.permute.xlu0 %4302
    %4304 = vrot.lane.b32.xlu0 %v3111, 32
    %v4305 = vpop.permute.xlu0 %4304
    %4306 = vrot.lane.b32.xlu0 %v3112, 32
    %v4307 = vpop.permute.xlu0 %4306
    %4308 = vrot.lane.b32.xlu0 %v3113, 32
    %v4309 = vpop.permute.xlu0 %4308
    %4310 = vrot.lane.b32.xlu0 %v3114, 32
    %v4311 = vpop.permute.xlu0 %4310
    %4312 = vrot.lane.b32.xlu0 %v3115, 32
    %v4313 = vpop.permute.xlu0 %4312
    %4314 = vrot.lane.b32.xlu0 %v3116, 32
    %v4315 = vpop.permute.xlu0 %4314
    %4316 = vrot.lane.b32.xlu0 %v3117, 32
    %v4317 = vpop.permute.xlu0 %4316
    %4318 = vrot.lane.b32.xlu0 %v3118, 32
    %v4319 = vpop.permute.xlu0 %4318
    %4320 = vrot.lane.b32.xlu0 %v3119, 32
    %v4321 = vpop.permute.xlu0 %4320
    %4322 = vrot.lane.b32.xlu0 %v3120, 32
    %v4323 = vpop.permute.xlu0 %4322
    %4324 = vrot.lane.b32.xlu0 %v3121, 32
    %v4325 = vpop.permute.xlu0 %4324
    %4326 = vrot.lane.b32.xlu0 %v3122, 32
    %v4327 = vpop.permute.xlu0 %4326
    %4328 = vrot.lane.b32.xlu0 %v3123, 32
    %v4329 = vpop.permute.xlu0 %4328
    %4330 = vrot.lane.b32.xlu0 %v3124, 32
    %v4331 = vpop.permute.xlu0 %4330
    %4332 = vrot.lane.b32.xlu0 %v3125, 32
    %v4333 = vpop.permute.xlu0 %4332
    %4334 = vrot.lane.b32.xlu0 %v3126, 32
    %v4335 = vpop.permute.xlu0 %4334
    %4336 = vrot.lane.b32.xlu0 %v3127, 32
    %v4337 = vpop.permute.xlu0 %4336
    %4338 = vrot.lane.b32.xlu0 %v3128, 32
    %v4339 = vpop.permute.xlu0 %4338
    %4340 = vrot.lane.b32.xlu0 %v3129, 32
    %v4341 = vpop.permute.xlu0 %4340
    %4342 = vrot.lane.b32.xlu0 %v3130, 32
    %v4343 = vpop.permute.xlu0 %4342
    %4344 = vrot.lane.b32.xlu0 %v3131, 32
    %v4345 = vpop.permute.xlu0 %4344
    %4346 = vrot.lane.b32.xlu0 %v3132, 32
    %v4347 = vpop.permute.xlu0 %4346
    %4348 = vrot.lane.b32.xlu0 %v3133, 32
    %v4349 = vpop.permute.xlu0 %4348
    %4350 = vrot.lane.b32.xlu0 %v3134, 32
    %v4351 = vpop.permute.xlu0 %4350
    %4480 = vrot.lane.b32.xlu0 %v3135, 40
    %v4481 = vpop.permute.xlu0 %4480
    %4482 = vrot.lane.b32.xlu0 %v3136, 40
    %v4483 = vpop.permute.xlu0 %4482
    %4484 = vrot.lane.b32.xlu0 %v3137, 40
    %v4485 = vpop.permute.xlu0 %4484
    %4486 = vrot.lane.b32.xlu0 %v3138, 40
    %v4487 = vpop.permute.xlu0 %4486
    %4488 = vrot.lane.b32.xlu0 %v3139, 40
    %v4489 = vpop.permute.xlu0 %4488
    %4490 = vrot.lane.b32.xlu0 %v3140, 40
    %v4491 = vpop.permute.xlu0 %4490
    %4492 = vrot.lane.b32.xlu0 %v3141, 40
    %v4493 = vpop.permute.xlu0 %4492
    %4494 = vrot.lane.b32.xlu0 %v3142, 40
    %v4495 = vpop.permute.xlu0 %4494
    %4496 = vrot.lane.b32.xlu0 %v3143, 40
    %v4497 = vpop.permute.xlu0 %4496
    %4498 = vrot.lane.b32.xlu0 %v3144, 40
    %v4499 = vpop.permute.xlu0 %4498
    %4500 = vrot.lane.b32.xlu0 %v3145, 40
    %v4501 = vpop.permute.xlu0 %4500
    %4502 = vrot.lane.b32.xlu0 %v3146, 40
    %v4503 = vpop.permute.xlu0 %4502
    %4504 = vrot.lane.b32.xlu0 %v3147, 40
    %v4505 = vpop.permute.xlu0 %4504
    %4506 = vrot.lane.b32.xlu0 %v3148, 40
    %v4507 = vpop.permute.xlu0 %4506
    %4508 = vrot.lane.b32.xlu0 %v3149, 40
    %v4509 = vpop.permute.xlu0 %4508
    %4510 = vrot.lane.b32.xlu0 %v3150, 40
    %v4511 = vpop.permute.xlu0 %4510
    %4512 = vrot.lane.b32.xlu0 %v3151, 40
    %v4513 = vpop.permute.xlu0 %4512
    %4514 = vrot.lane.b32.xlu0 %v3152, 40
    %v4515 = vpop.permute.xlu0 %4514
    %4516 = vrot.lane.b32.xlu0 %v3153, 40
    %v4517 = vpop.permute.xlu0 %4516
    %4518 = vrot.lane.b32.xlu0 %v3154, 40
    %v4519 = vpop.permute.xlu0 %4518
    %4520 = vrot.lane.b32.xlu0 %v3155, 40
    %v4521 = vpop.permute.xlu0 %4520
    %4522 = vrot.lane.b32.xlu0 %v3156, 40
    %v4523 = vpop.permute.xlu0 %4522
    %4524 = vrot.lane.b32.xlu0 %v3157, 40
    %v4525 = vpop.permute.xlu0 %4524
    %4526 = vrot.lane.b32.xlu0 %v3158, 40
    %v4527 = vpop.permute.xlu0 %4526
    %4528 = vrot.lane.b32.xlu0 %v3159, 40
    %v4529 = vpop.permute.xlu0 %4528
    %4530 = vrot.lane.b32.xlu0 %v3160, 40
    %v4531 = vpop.permute.xlu0 %4530
    %4532 = vrot.lane.b32.xlu0 %v3161, 40
    %v4533 = vpop.permute.xlu0 %4532
    %4534 = vrot.lane.b32.xlu0 %v3162, 40
    %v4535 = vpop.permute.xlu0 %4534
    %4536 = vrot.lane.b32.xlu0 %v3163, 40
    %v4537 = vpop.permute.xlu0 %4536
    %4538 = vrot.lane.b32.xlu0 %v3164, 40
    %v4539 = vpop.permute.xlu0 %4538
    %4540 = vrot.lane.b32.xlu0 %v3165, 40
    %v4541 = vpop.permute.xlu0 %4540
    %4542 = vrot.lane.b32.xlu0 %v3166, 40
    %v4543 = vpop.permute.xlu0 %4542
    %4544 = vrot.lane.b32.xlu0 %v3167, 40
    %v4545 = vpop.permute.xlu0 %4544
    %4546 = vrot.lane.b32.xlu0 %v3168, 40
    %v4547 = vpop.permute.xlu0 %4546
    %4548 = vrot.lane.b32.xlu0 %v3169, 40
    %v4549 = vpop.permute.xlu0 %4548
    %4550 = vrot.lane.b32.xlu0 %v3170, 40
    %v4551 = vpop.permute.xlu0 %4550
    %4552 = vrot.lane.b32.xlu0 %v3171, 40
    %v4553 = vpop.permute.xlu0 %4552
    %4554 = vrot.lane.b32.xlu0 %v3172, 40
    %v4555 = vpop.permute.xlu0 %4554
    %4556 = vrot.lane.b32.xlu0 %v3173, 40
    %v4557 = vpop.permute.xlu0 %4556
    %4558 = vrot.lane.b32.xlu0 %v3174, 40
    %v4559 = vpop.permute.xlu0 %4558
    %4560 = vrot.lane.b32.xlu0 %v3175, 40
    %v4561 = vpop.permute.xlu0 %4560
    %4562 = vrot.lane.b32.xlu0 %v3176, 40
    %v4563 = vpop.permute.xlu0 %4562
    %4564 = vrot.lane.b32.xlu0 %v3177, 40
    %v4565 = vpop.permute.xlu0 %4564
    %4566 = vrot.lane.b32.xlu0 %v3178, 40
    %v4567 = vpop.permute.xlu0 %4566
    %4568 = vrot.lane.b32.xlu0 %v3179, 40
    %v4569 = vpop.permute.xlu0 %4568
    %4570 = vrot.lane.b32.xlu0 %v3180, 40
    %v4571 = vpop.permute.xlu0 %4570
    %4572 = vrot.lane.b32.xlu0 %v3181, 40
    %v4573 = vpop.permute.xlu0 %4572
    %4574 = vrot.lane.b32.xlu0 %v3182, 40
    %v4575 = vpop.permute.xlu0 %4574
    %4576 = vrot.lane.b32.xlu0 %v3183, 40
    %v4577 = vpop.permute.xlu0 %4576
    %4578 = vrot.lane.b32.xlu0 %v3184, 40
    %v4579 = vpop.permute.xlu0 %4578
    %4580 = vrot.lane.b32.xlu0 %v3185, 40
    %v4581 = vpop.permute.xlu0 %4580
    %4582 = vrot.lane.b32.xlu0 %v3186, 40
    %v4583 = vpop.permute.xlu0 %4582
    %4584 = vrot.lane.b32.xlu0 %v3187, 40
    %v4585 = vpop.permute.xlu0 %4584
    %4586 = vrot.lane.b32.xlu0 %v3188, 40
    %v4587 = vpop.permute.xlu0 %4586
    %4588 = vrot.lane.b32.xlu0 %v3189, 40
    %v4589 = vpop.permute.xlu0 %4588
    %4590 = vrot.lane.b32.xlu0 %v3190, 40
    %v4591 = vpop.permute.xlu0 %4590
    %4592 = vrot.lane.b32.xlu0 %v3191, 40
    %v4593 = vpop.permute.xlu0 %4592
    %4594 = vrot.lane.b32.xlu0 %v3192, 40
    %v4595 = vpop.permute.xlu0 %4594
    %4596 = vrot.lane.b32.xlu0 %v3193, 40
    %v4597 = vpop.permute.xlu0 %4596
    %4598 = vrot.lane.b32.xlu0 %v3194, 40
    %v4599 = vpop.permute.xlu0 %4598
    %4600 = vrot.lane.b32.xlu0 %v3195, 40
    %v4601 = vpop.permute.xlu0 %4600
    %4602 = vrot.lane.b32.xlu0 %v3196, 40
    %v4603 = vpop.permute.xlu0 %4602
    %4604 = vrot.lane.b32.xlu0 %v3197, 40
    %v4605 = vpop.permute.xlu0 %4604
    %4606 = vrot.lane.b32.xlu0 %v3198, 40
    %v4607 = vpop.permute.xlu0 %4606
    %4736 = vrot.lane.b32.xlu0 %v3200, 48
    %v4737 = vpop.permute.xlu0 %4736
    %4738 = vrot.lane.b32.xlu0 %v3201, 48
    %v4739 = vpop.permute.xlu0 %4738
    %4740 = vrot.lane.b32.xlu0 %v3202, 48
    %v4741 = vpop.permute.xlu0 %4740
    %4742 = vrot.lane.b32.xlu0 %v3203, 48
    %v4743 = vpop.permute.xlu0 %4742
    %4744 = vrot.lane.b32.xlu0 %v3204, 48
    %v4745 = vpop.permute.xlu0 %4744
    %4746 = vrot.lane.b32.xlu0 %v3205, 48
    %v4747 = vpop.permute.xlu0 %4746
    %4748 = vrot.lane.b32.xlu0 %v3206, 48
    %v4749 = vpop.permute.xlu0 %4748
    %4750 = vrot.lane.b32.xlu0 %v3207, 48
    %v4751 = vpop.permute.xlu0 %4750
    %4752 = vrot.lane.b32.xlu0 %v3208, 48
    %v4753 = vpop.permute.xlu0 %4752
    %4754 = vrot.lane.b32.xlu0 %v3209, 48
    %v4755 = vpop.permute.xlu0 %4754
    %4756 = vrot.lane.b32.xlu0 %v3210, 48
    %v4757 = vpop.permute.xlu0 %4756
    %4758 = vrot.lane.b32.xlu0 %v3211, 48
    %v4759 = vpop.permute.xlu0 %4758
    %4760 = vrot.lane.b32.xlu0 %v3212, 48
    %v4761 = vpop.permute.xlu0 %4760
    %4762 = vrot.lane.b32.xlu0 %v3213, 48
    %v4763 = vpop.permute.xlu0 %4762
    %4764 = vrot.lane.b32.xlu0 %v3214, 48
    %v4765 = vpop.permute.xlu0 %4764
    %4766 = vrot.lane.b32.xlu0 %v3215, 48
    %v4767 = vpop.permute.xlu0 %4766
    %4768 = vrot.lane.b32.xlu0 %v3216, 48
    %v4769 = vpop.permute.xlu0 %4768
    %4770 = vrot.lane.b32.xlu0 %v3217, 48
    %v4771 = vpop.permute.xlu0 %4770
    %4772 = vrot.lane.b32.xlu0 %v3218, 48
    %v4773 = vpop.permute.xlu0 %4772
    %4774 = vrot.lane.b32.xlu0 %v3219, 48
    %v4775 = vpop.permute.xlu0 %4774
    %4776 = vrot.lane.b32.xlu0 %v3220, 48
    %v4777 = vpop.permute.xlu0 %4776
    %4778 = vrot.lane.b32.xlu0 %v3221, 48
    %v4779 = vpop.permute.xlu0 %4778
    %4780 = vrot.lane.b32.xlu0 %v3222, 48
    %v4781 = vpop.permute.xlu0 %4780
    %4782 = vrot.lane.b32.xlu0 %v3223, 48
    %v4783 = vpop.permute.xlu0 %4782
    %4784 = vrot.lane.b32.xlu0 %v3224, 48
    %v4785 = vpop.permute.xlu0 %4784
    %4786 = vrot.lane.b32.xlu0 %v3225, 48
    %v4787 = vpop.permute.xlu0 %4786
    %4788 = vrot.lane.b32.xlu0 %v3226, 48
    %v4789 = vpop.permute.xlu0 %4788
    %4790 = vrot.lane.b32.xlu0 %v3227, 48
    %v4791 = vpop.permute.xlu0 %4790
    %4792 = vrot.lane.b32.xlu0 %v3228, 48
    %v4793 = vpop.permute.xlu0 %4792
    %4794 = vrot.lane.b32.xlu0 %v3229, 48
    %v4795 = vpop.permute.xlu0 %4794
    %4796 = vrot.lane.b32.xlu0 %v3230, 48
    %v4797 = vpop.permute.xlu0 %4796
    %4798 = vrot.lane.b32.xlu0 %v3231, 48
    %v4799 = vpop.permute.xlu0 %4798
    %4800 = vrot.lane.b32.xlu0 %v3232, 48
    %v4801 = vpop.permute.xlu0 %4800
    %4802 = vrot.lane.b32.xlu0 %v3233, 48
    %v4803 = vpop.permute.xlu0 %4802
    %4804 = vrot.lane.b32.xlu0 %v3234, 48
    %v4805 = vpop.permute.xlu0 %4804
    %4806 = vrot.lane.b32.xlu0 %v3235, 48
    %v4807 = vpop.permute.xlu0 %4806
    %4808 = vrot.lane.b32.xlu0 %v3236, 48
    %v4809 = vpop.permute.xlu0 %4808
    %4810 = vrot.lane.b32.xlu0 %v3237, 48
    %v4811 = vpop.permute.xlu0 %4810
    %4812 = vrot.lane.b32.xlu0 %v3238, 48
    %v4813 = vpop.permute.xlu0 %4812
    %4814 = vrot.lane.b32.xlu0 %v3239, 48
    %v4815 = vpop.permute.xlu0 %4814
    %4816 = vrot.lane.b32.xlu0 %v3240, 48
    %v4817 = vpop.permute.xlu0 %4816
    %4818 = vrot.lane.b32.xlu0 %v3241, 48
    %v4819 = vpop.permute.xlu0 %4818
    %4820 = vrot.lane.b32.xlu0 %v3242, 48
    %v4821 = vpop.permute.xlu0 %4820
    %4822 = vrot.lane.b32.xlu0 %v3243, 48
    %v4823 = vpop.permute.xlu0 %4822
    %4824 = vrot.lane.b32.xlu0 %v3244, 48
    %v4825 = vpop.permute.xlu0 %4824
    %4826 = vrot.lane.b32.xlu0 %v3245, 48
    %v4827 = vpop.permute.xlu0 %4826
    %4828 = vrot.lane.b32.xlu0 %v3246, 48
    %v4829 = vpop.permute.xlu0 %4828
    %4830 = vrot.lane.b32.xlu0 %v3247, 48
    %v4831 = vpop.permute.xlu0 %4830
    %4832 = vrot.lane.b32.xlu0 %v3248, 48
    %v4833 = vpop.permute.xlu0 %4832
    %4834 = vrot.lane.b32.xlu0 %v3249, 48
    %v4835 = vpop.permute.xlu0 %4834
    %4836 = vrot.lane.b32.xlu0 %v3250, 48
    %v4837 = vpop.permute.xlu0 %4836
    %4838 = vrot.lane.b32.xlu0 %v3251, 48
    %v4839 = vpop.permute.xlu0 %4838
    %4840 = vrot.lane.b32.xlu0 %v3252, 48
    %v4841 = vpop.permute.xlu0 %4840
    %4842 = vrot.lane.b32.xlu0 %v3253, 48
    %v4843 = vpop.permute.xlu0 %4842
    %4844 = vrot.lane.b32.xlu0 %v3254, 48
    %v4845 = vpop.permute.xlu0 %4844
    %4846 = vrot.lane.b32.xlu0 %v3255, 48
    %v4847 = vpop.permute.xlu0 %4846
    %4848 = vrot.lane.b32.xlu0 %v3256, 48
    %v4849 = vpop.permute.xlu0 %4848
    %4850 = vrot.lane.b32.xlu0 %v3257, 48
    %v4851 = vpop.permute.xlu0 %4850
    %4852 = vrot.lane.b32.xlu0 %v3258, 48
    %v4853 = vpop.permute.xlu0 %4852
    %4854 = vrot.lane.b32.xlu0 %v3259, 48
    %v4855 = vpop.permute.xlu0 %4854
    %4856 = vrot.lane.b32.xlu0 %v3260, 48
    %v4857 = vpop.permute.xlu0 %4856
    %4858 = vrot.lane.b32.xlu0 %v3261, 48
    %v4859 = vpop.permute.xlu0 %4858
    %4860 = vrot.lane.b32.xlu0 %v3262, 48
    %v4861 = vpop.permute.xlu0 %4860
    %4862 = vrot.lane.b32.xlu0 %v3263, 48
    %v4863 = vpop.permute.xlu0 %4862
    %4992 = vrot.lane.b32.xlu0 %v3264, 56
    %v4993 = vpop.permute.xlu0 %4992
    %4994 = vrot.lane.b32.xlu0 %v3265, 56
    %v4995 = vpop.permute.xlu0 %4994
    %4996 = vrot.lane.b32.xlu0 %v3266, 56
    %v4997 = vpop.permute.xlu0 %4996
    %4998 = vrot.lane.b32.xlu0 %v3267, 56
    %v4999 = vpop.permute.xlu0 %4998
    %5000 = vrot.lane.b32.xlu0 %v3268, 56
    %v5001 = vpop.permute.xlu0 %5000
    %5002 = vrot.lane.b32.xlu0 %v3269, 56
    %v5003 = vpop.permute.xlu0 %5002
    %5004 = vrot.lane.b32.xlu0 %v3270, 56
    %v5005 = vpop.permute.xlu0 %5004
    %5006 = vrot.lane.b32.xlu0 %v3271, 56
    %v5007 = vpop.permute.xlu0 %5006
    %5008 = vrot.lane.b32.xlu0 %v3272, 56
    %v5009 = vpop.permute.xlu0 %5008
    %5010 = vrot.lane.b32.xlu0 %v3273, 56
    %v5011 = vpop.permute.xlu0 %5010
    %5012 = vrot.lane.b32.xlu0 %v3274, 56
    %v5013 = vpop.permute.xlu0 %5012
    %5014 = vrot.lane.b32.xlu0 %v3275, 56
    %v5015 = vpop.permute.xlu0 %5014
    %5016 = vrot.lane.b32.xlu0 %v3276, 56
    %v5017 = vpop.permute.xlu0 %5016
    %5018 = vrot.lane.b32.xlu0 %v3277, 56
    %v5019 = vpop.permute.xlu0 %5018
    %5020 = vrot.lane.b32.xlu0 %v3278, 56
    %v5021 = vpop.permute.xlu0 %5020
    %5022 = vrot.lane.b32.xlu0 %v3279, 56
    %v5023 = vpop.permute.xlu0 %5022
    %5024 = vrot.lane.b32.xlu0 %v3280, 56
    %v5025 = vpop.permute.xlu0 %5024
    %5026 = vrot.lane.b32.xlu0 %v3281, 56
    %v5027 = vpop.permute.xlu0 %5026
    %5028 = vrot.lane.b32.xlu0 %v3282, 56
    %v5029 = vpop.permute.xlu0 %5028
    %5030 = vrot.lane.b32.xlu0 %v3283, 56
    %v5031 = vpop.permute.xlu0 %5030
    %5032 = vrot.lane.b32.xlu0 %v3284, 56
    %v5033 = vpop.permute.xlu0 %5032
    %5034 = vrot.lane.b32.xlu0 %v3285, 56
    %v5035 = vpop.permute.xlu0 %5034
    %5036 = vrot.lane.b32.xlu0 %v3286, 56
    %v5037 = vpop.permute.xlu0 %5036
    %5038 = vrot.lane.b32.xlu0 %v3287, 56
    %v5039 = vpop.permute.xlu0 %5038
    %5040 = vrot.lane.b32.xlu0 %v3288, 56
    %v5041 = vpop.permute.xlu0 %5040
    %5042 = vrot.lane.b32.xlu0 %v3289, 56
    %v5043 = vpop.permute.xlu0 %5042
    %5044 = vrot.lane.b32.xlu0 %v3290, 56
    %v5045 = vpop.permute.xlu0 %5044
    %5046 = vrot.lane.b32.xlu0 %v3291, 56
    %v5047 = vpop.permute.xlu0 %5046
    %5048 = vrot.lane.b32.xlu0 %v3292, 56
    %v5049 = vpop.permute.xlu0 %5048
    %5050 = vrot.lane.b32.xlu0 %v3293, 56
    %v5051 = vpop.permute.xlu0 %5050
    %5052 = vrot.lane.b32.xlu0 %v3294, 56
    %v5053 = vpop.permute.xlu0 %5052
    %5054 = vrot.lane.b32.xlu0 %v3295, 56
    %v5055 = vpop.permute.xlu0 %5054
    %5056 = vrot.lane.b32.xlu0 %v3296, 56
    %v5057 = vpop.permute.xlu0 %5056
    %5058 = vrot.lane.b32.xlu0 %v3297, 56
    %v5059 = vpop.permute.xlu0 %5058
    %5060 = vrot.lane.b32.xlu0 %v3298, 56
    %v5061 = vpop.permute.xlu0 %5060
    %5062 = vrot.lane.b32.xlu0 %v3299, 56
    %v5063 = vpop.permute.xlu0 %5062
    %5064 = vrot.lane.b32.xlu0 %v3300, 56
    %v5065 = vpop.permute.xlu0 %5064
    %5066 = vrot.lane.b32.xlu0 %v3301, 56
    %v5067 = vpop.permute.xlu0 %5066
    %5068 = vrot.lane.b32.xlu0 %v3302, 56
    %v5069 = vpop.permute.xlu0 %5068
    %5070 = vrot.lane.b32.xlu0 %v3303, 56
    %v5071 = vpop.permute.xlu0 %5070
    %5072 = vrot.lane.b32.xlu0 %v3304, 56
    %v5073 = vpop.permute.xlu0 %5072
    %5074 = vrot.lane.b32.xlu0 %v3305, 56
    %v5075 = vpop.permute.xlu0 %5074
    %5076 = vrot.lane.b32.xlu0 %v3306, 56
    %v5077 = vpop.permute.xlu0 %5076
    %5078 = vrot.lane.b32.xlu0 %v3307, 56
    %v5079 = vpop.permute.xlu0 %5078
    %5080 = vrot.lane.b32.xlu0 %v3308, 56
    %v5081 = vpop.permute.xlu0 %5080
    %5082 = vrot.lane.b32.xlu0 %v3309, 56
    %v5083 = vpop.permute.xlu0 %5082
    %5084 = vrot.lane.b32.xlu0 %v3310, 56
    %v5085 = vpop.permute.xlu0 %5084
    %5086 = vrot.lane.b32.xlu0 %v3311, 56
    %v5087 = vpop.permute.xlu0 %5086
    %5088 = vrot.lane.b32.xlu0 %v3312, 56
    %v5089 = vpop.permute.xlu0 %5088
    %5090 = vrot.lane.b32.xlu0 %v3313, 56
    %v5091 = vpop.permute.xlu0 %5090
    %5092 = vrot.lane.b32.xlu0 %v3314, 56
    %v5093 = vpop.permute.xlu0 %5092
    %5094 = vrot.lane.b32.xlu0 %v3315, 56
    %v5095 = vpop.permute.xlu0 %5094
    %5096 = vrot.lane.b32.xlu0 %v3316, 56
    %v5097 = vpop.permute.xlu0 %5096
    %5098 = vrot.lane.b32.xlu0 %v3317, 56
    %v5099 = vpop.permute.xlu0 %5098
    %5100 = vrot.lane.b32.xlu0 %v3318, 56
    %v5101 = vpop.permute.xlu0 %5100
    %5102 = vrot.lane.b32.xlu0 %v3319, 56
    %v5103 = vpop.permute.xlu0 %5102
    %5104 = vrot.lane.b32.xlu0 %v3320, 56
    %v5105 = vpop.permute.xlu0 %5104
    %5106 = vrot.lane.b32.xlu0 %v3321, 56
    %v5107 = vpop.permute.xlu0 %5106
    %5108 = vrot.lane.b32.xlu0 %v3322, 56
    %v5109 = vpop.permute.xlu0 %5108
    %5110 = vrot.lane.b32.xlu0 %v3323, 56
    %v5111 = vpop.permute.xlu0 %5110
    %5112 = vrot.lane.b32.xlu0 %v3324, 56
    %v5113 = vpop.permute.xlu0 %5112
    %5114 = vrot.lane.b32.xlu0 %v3325, 56
    %v5115 = vpop.permute.xlu0 %5114
    %5116 = vrot.lane.b32.xlu0 %v3326, 56
    %v5117 = vpop.permute.xlu0 %5116
    %5118 = vrot.lane.b32.xlu0 %v3327, 56
    %v5119 = vpop.permute.xlu0 %5118
    %5248 = vrot.lane.b32.xlu0 %v3328, 64
    %v5249 = vpop.permute.xlu0 %5248
    %5250 = vrot.lane.b32.xlu0 %v3329, 64
    %v5251 = vpop.permute.xlu0 %5250
    %5252 = vrot.lane.b32.xlu0 %v3330, 64
    %v5253 = vpop.permute.xlu0 %5252
    %5254 = vrot.lane.b32.xlu0 %v3331, 64
    %v5255 = vpop.permute.xlu0 %5254
    %5256 = vrot.lane.b32.xlu0 %v3332, 64
    %v5257 = vpop.permute.xlu0 %5256
    %5258 = vrot.lane.b32.xlu0 %v3333, 64
    %v5259 = vpop.permute.xlu0 %5258
    %5260 = vrot.lane.b32.xlu0 %v3334, 64
    %v5261 = vpop.permute.xlu0 %5260
    %5262 = vrot.lane.b32.xlu0 %v3335, 64
    %v5263 = vpop.permute.xlu0 %5262
    %5264 = vrot.lane.b32.xlu0 %v3336, 64
    %v5265 = vpop.permute.xlu0 %5264
    %5266 = vrot.lane.b32.xlu0 %v3337, 64
    %v5267 = vpop.permute.xlu0 %5266
    %5268 = vrot.lane.b32.xlu0 %v3338, 64
    %v5269 = vpop.permute.xlu0 %5268
    %5270 = vrot.lane.b32.xlu0 %v3339, 64
    %v5271 = vpop.permute.xlu0 %5270
    %5272 = vrot.lane.b32.xlu0 %v3340, 64
    %v5273 = vpop.permute.xlu0 %5272
    %5274 = vrot.lane.b32.xlu0 %v3341, 64
    %v5275 = vpop.permute.xlu0 %5274
    %5276 = vrot.lane.b32.xlu0 %v3342, 64
    %v5277 = vpop.permute.xlu0 %5276
    %5278 = vrot.lane.b32.xlu0 %v3343, 64
    %v5279 = vpop.permute.xlu0 %5278
    %5280 = vrot.lane.b32.xlu0 %v3344, 64
    %v5281 = vpop.permute.xlu0 %5280
    %5282 = vrot.lane.b32.xlu0 %v3345, 64
    %v5283 = vpop.permute.xlu0 %5282
    %5284 = vrot.lane.b32.xlu0 %v3346, 64
    %v5285 = vpop.permute.xlu0 %5284
    %5286 = vrot.lane.b32.xlu0 %v3347, 64
    %v5287 = vpop.permute.xlu0 %5286
    %5288 = vrot.lane.b32.xlu0 %v3348, 64
    %v5289 = vpop.permute.xlu0 %5288
    %5290 = vrot.lane.b32.xlu0 %v3349, 64
    %v5291 = vpop.permute.xlu0 %5290
    %5292 = vrot.lane.b32.xlu0 %v3350, 64
    %v5293 = vpop.permute.xlu0 %5292
    %5294 = vrot.lane.b32.xlu0 %v3351, 64
    %v5295 = vpop.permute.xlu0 %5294
    %5296 = vrot.lane.b32.xlu0 %v3352, 64
    %v5297 = vpop.permute.xlu0 %5296
    %5298 = vrot.lane.b32.xlu0 %v3353, 64
    %v5299 = vpop.permute.xlu0 %5298
    %5300 = vrot.lane.b32.xlu0 %v3354, 64
    %v5301 = vpop.permute.xlu0 %5300
    %5302 = vrot.lane.b32.xlu0 %v3355, 64
    %v5303 = vpop.permute.xlu0 %5302
    %5304 = vrot.lane.b32.xlu0 %v3356, 64
    %v5305 = vpop.permute.xlu0 %5304
    %5306 = vrot.lane.b32.xlu0 %v3357, 64
    %v5307 = vpop.permute.xlu0 %5306
    %5308 = vrot.lane.b32.xlu0 %v3358, 64
    %v5309 = vpop.permute.xlu0 %5308
    %5310 = vrot.lane.b32.xlu0 %v3359, 64
    %v5311 = vpop.permute.xlu0 %5310
    %5312 = vrot.lane.b32.xlu0 %v3360, 64
    %v5313 = vpop.permute.xlu0 %5312
    %5314 = vrot.lane.b32.xlu0 %v3361, 64
    %v5315 = vpop.permute.xlu0 %5314
    %5316 = vrot.lane.b32.xlu0 %v3362, 64
    %v5317 = vpop.permute.xlu0 %5316
    %5318 = vrot.lane.b32.xlu0 %v3363, 64
    %v5319 = vpop.permute.xlu0 %5318
    %5320 = vrot.lane.b32.xlu0 %v3364, 64
    %v5321 = vpop.permute.xlu0 %5320
    %5322 = vrot.lane.b32.xlu0 %v3365, 64
    %v5323 = vpop.permute.xlu0 %5322
    %5324 = vrot.lane.b32.xlu0 %v3366, 64
    %v5325 = vpop.permute.xlu0 %5324
    %5326 = vrot.lane.b32.xlu0 %v3367, 64
    %v5327 = vpop.permute.xlu0 %5326
    %5328 = vrot.lane.b32.xlu0 %v3368, 64
    %v5329 = vpop.permute.xlu0 %5328
    %5330 = vrot.lane.b32.xlu0 %v3369, 64
    %v5331 = vpop.permute.xlu0 %5330
    %5332 = vrot.lane.b32.xlu0 %v3370, 64
    %v5333 = vpop.permute.xlu0 %5332
    %5334 = vrot.lane.b32.xlu0 %v3371, 64
    %v5335 = vpop.permute.xlu0 %5334
    %5336 = vrot.lane.b32.xlu0 %v3372, 64
    %v5337 = vpop.permute.xlu0 %5336
    %5338 = vrot.lane.b32.xlu0 %v3373, 64
    %v5339 = vpop.permute.xlu0 %5338
    %5340 = vrot.lane.b32.xlu0 %v3374, 64
    %v5341 = vpop.permute.xlu0 %5340
    %5342 = vrot.lane.b32.xlu0 %v3375, 64
    %v5343 = vpop.permute.xlu0 %5342
    %5344 = vrot.lane.b32.xlu0 %v3376, 64
    %v5345 = vpop.permute.xlu0 %5344
    %5346 = vrot.lane.b32.xlu0 %v3377, 64
    %v5347 = vpop.permute.xlu0 %5346
    %5348 = vrot.lane.b32.xlu0 %v3378, 64
    %v5349 = vpop.permute.xlu0 %5348
    %5350 = vrot.lane.b32.xlu0 %v3379, 64
    %v5351 = vpop.permute.xlu0 %5350
    %5352 = vrot.lane.b32.xlu0 %v3380, 64
    %v5353 = vpop.permute.xlu0 %5352
    %5354 = vrot.lane.b32.xlu0 %v3381, 64
    %v5355 = vpop.permute.xlu0 %5354
    %5356 = vrot.lane.b32.xlu0 %v3382, 64
    %v5357 = vpop.permute.xlu0 %5356
    %5358 = vrot.lane.b32.xlu0 %v3383, 64
    %v5359 = vpop.permute.xlu0 %5358
    %5360 = vrot.lane.b32.xlu0 %v3384, 64
    %v5361 = vpop.permute.xlu0 %5360
    %5362 = vrot.lane.b32.xlu0 %v3385, 64
    %v5363 = vpop.permute.xlu0 %5362
    %5364 = vrot.lane.b32.xlu0 %v3386, 64
    %v5365 = vpop.permute.xlu0 %5364
    %5366 = vrot.lane.b32.xlu0 %v3387, 64
    %v5367 = vpop.permute.xlu0 %5366
    %5368 = vrot.lane.b32.xlu0 %v3388, 64
    %v5369 = vpop.permute.xlu0 %5368
    %5370 = vrot.lane.b32.xlu0 %v3389, 64
    %v5371 = vpop.permute.xlu0 %5370
    %5372 = vrot.lane.b32.xlu0 %v3390, 64
    %v5373 = vpop.permute.xlu0 %5372
    %5374 = vrot.lane.b32.xlu0 %v3391, 64
    %v5375 = vpop.permute.xlu0 %5374
    %v5440 = vsel %vm1389, %v2815, %v3457
    %v5441 = vsel %vm1389, %v2816, %v3459
    %v5442 = vsel %vm1389, %v2817, %v3461
    %v5443 = vsel %vm1389, %v2818, %v3463
    %v5444 = vsel %vm1389, %v2819, %v3465
    %v5445 = vsel %vm1389, %v2820, %v3467
    %v5446 = vsel %vm1389, %v2821, %v3469
    %v5447 = vsel %vm1389, %v2822, %v3471
    %v5448 = vsel %vm1389, %v2823, %v3473
    %v5449 = vsel %vm1389, %v2824, %v3475
    %v5450 = vsel %vm1389, %v2825, %v3477
    %v5451 = vsel %vm1389, %v2826, %v3479
    %v5452 = vsel %vm1389, %v2827, %v3481
    %v5453 = vsel %vm1389, %v2828, %v3483
    %v5454 = vsel %vm1389, %v2829, %v3485
    %v5455 = vsel %vm1389, %v2830, %v3487
    %v5456 = vsel %vm1389, %v2831, %v3489
    %v5457 = vsel %vm1389, %v2832, %v3491
    %v5458 = vsel %vm1389, %v2833, %v3493
    %v5459 = vsel %vm1389, %v2834, %v3495
    %v5460 = vsel %vm1389, %v2835, %v3497
    %v5461 = vsel %vm1389, %v2836, %v3499
    %v5462 = vsel %vm1389, %v2837, %v3501
    %v5463 = vsel %vm1389, %v2838, %v3503
    %v5464 = vsel %vm1389, %v2839, %v3505
    %v5465 = vsel %vm1389, %v2840, %v3507
    %v5466 = vsel %vm1389, %v2841, %v3509
    %v5467 = vsel %vm1389, %v2842, %v3511
    %v5468 = vsel %vm1389, %v2843, %v3513
    %v5469 = vsel %vm1389, %v2844, %v3515
    %v5470 = vsel %vm1389, %v2845, %v3517
    %v5471 = vsel %vm1389, %v2846, %v3519
    %v5472 = vsel %vm1389, %v2847, %v3521
    %v5473 = vsel %vm1389, %v2848, %v3523
    %v5474 = vsel %vm1389, %v2849, %v3525
    %v5475 = vsel %vm1389, %v2850, %v3527
    %v5476 = vsel %vm1389, %v2851, %v3529
    %v5477 = vsel %vm1389, %v2852, %v3531
    %v5478 = vsel %vm1389, %v2853, %v3533
    %v5479 = vsel %vm1389, %v2854, %v3535
    %v5480 = vsel %vm1389, %v2855, %v3537
    %v5481 = vsel %vm1389, %v2856, %v3539
    %v5482 = vsel %vm1389, %v2857, %v3541
    %v5483 = vsel %vm1389, %v2858, %v3543
    %v5484 = vsel %vm1389, %v2859, %v3545
    %v5485 = vsel %vm1389, %v2860, %v3547
    %v5486 = vsel %vm1389, %v2861, %v3549
    %v5487 = vsel %vm1389, %v2862, %v3551
    %v5488 = vsel %vm1389, %v2863, %v3553
    %v5489 = vsel %vm1389, %v2864, %v3555
    %v5490 = vsel %vm1389, %v2865, %v3557
    %v5491 = vsel %vm1389, %v2866, %v3559
    %v5492 = vsel %vm1389, %v2867, %v3561
    %v5493 = vsel %vm1389, %v2868, %v3563
    %v5494 = vsel %vm1389, %v2869, %v3565
    %v5495 = vsel %vm1389, %v2870, %v3567
    %v5496 = vsel %vm1389, %v2871, %v3569
    %v5497 = vsel %vm1389, %v2872, %v3571
    %v5498 = vsel %vm1389, %v2873, %v3573
    %v5499 = vsel %vm1389, %v2874, %v3575
    %v5500 = vsel %vm1389, %v2875, %v3577
    %v5501 = vsel %vm1389, %v2876, %v3579
    %v5502 = vsel %vm1389, %v2877, %v3581
    %v5503 = vsel %vm1389, %v2878, %v3583
    %v5504 = vsel %vm2662, %v5440, %v3713
    %v5505 = vsel %vm2662, %v5441, %v3715
    %v5506 = vsel %vm2662, %v5442, %v3717
    %v5507 = vsel %vm2662, %v5443, %v3719
    %v5508 = vsel %vm2662, %v5444, %v3721
    %v5509 = vsel %vm2662, %v5445, %v3723
    %v5510 = vsel %vm2662, %v5446, %v3725
    %v5511 = vsel %vm2662, %v5447, %v3727
    %v5512 = vsel %vm2662, %v5448, %v3729
    %v5513 = vsel %vm2662, %v5449, %v3731
    %v5514 = vsel %vm2662, %v5450, %v3733
    %v5515 = vsel %vm2662, %v5451, %v3735
    %v5516 = vsel %vm2662, %v5452, %v3737
    %v5517 = vsel %vm2662, %v5453, %v3739
    %v5518 = vsel %vm2662, %v5454, %v3741
    %v5519 = vsel %vm2662, %v5455, %v3743
    %v5520 = vsel %vm2662, %v5456, %v3745
    %v5521 = vsel %vm2662, %v5457, %v3747
    %v5522 = vsel %vm2662, %v5458, %v3749
    %v5523 = vsel %vm2662, %v5459, %v3751
    %v5524 = vsel %vm2662, %v5460, %v3753
    %v5525 = vsel %vm2662, %v5461, %v3755
    %v5526 = vsel %vm2662, %v5462, %v3757
    %v5527 = vsel %vm2662, %v5463, %v3759
    %v5528 = vsel %vm2662, %v5464, %v3761
    %v5529 = vsel %vm2662, %v5465, %v3763
    %v5530 = vsel %vm2662, %v5466, %v3765
    %v5531 = vsel %vm2662, %v5467, %v3767
    %v5532 = vsel %vm2662, %v5468, %v3769
    %v5533 = vsel %vm2662, %v5469, %v3771
    %v5534 = vsel %vm2662, %v5470, %v3773
    %v5535 = vsel %vm2662, %v5471, %v3775
    %v5536 = vsel %vm2662, %v5472, %v3777
    %v5537 = vsel %vm2662, %v5473, %v3779
    %v5538 = vsel %vm2662, %v5474, %v3781
    %v5539 = vsel %vm2662, %v5475, %v3783
    %v5540 = vsel %vm2662, %v5476, %v3785
    %v5541 = vsel %vm2662, %v5477, %v3787
    %v5542 = vsel %vm2662, %v5478, %v3789
    %v5543 = vsel %vm2662, %v5479, %v3791
    %v5544 = vsel %vm2662, %v5480, %v3793
    %v5545 = vsel %vm2662, %v5481, %v3795
    %v5546 = vsel %vm2662, %v5482, %v3797
    %v5547 = vsel %vm2662, %v5483, %v3799
    %v5548 = vsel %vm2662, %v5484, %v3801
    %v5549 = vsel %vm2662, %v5485, %v3803
    %v5550 = vsel %vm2662, %v5486, %v3805
    %v5551 = vsel %vm2662, %v5487, %v3807
    %v5552 = vsel %vm2662, %v5488, %v3809
    %v5553 = vsel %vm2662, %v5489, %v3811
    %v5554 = vsel %vm2662, %v5490, %v3813
    %v5555 = vsel %vm2662, %v5491, %v3815
    %v5556 = vsel %vm2662, %v5492, %v3817
    %v5557 = vsel %vm2662, %v5493, %v3819
    %v5558 = vsel %vm2662, %v5494, %v3821
    %v5559 = vsel %vm2662, %v5495, %v3823
    %v5560 = vsel %vm2662, %v5496, %v3825
    %v5561 = vsel %vm2662, %v5497, %v3827
    %v5562 = vsel %vm2662, %v5498, %v3829
    %v5563 = vsel %vm2662, %v5499, %v3831
    %v5564 = vsel %vm2662, %v5500, %v3833
    %v5565 = vsel %vm2662, %v5501, %v3835
    %v5566 = vsel %vm2662, %v5502, %v3837
    %v5567 = vsel %vm2662, %v5503, %v3839
    %vm5568 = vcmask 195584
    %v5569 = vsel %vm5568, %v5504, %v3969
    %v5570 = vsel %vm5568, %v5505, %v3971
    %v5571 = vsel %vm5568, %v5506, %v3973
    %v5572 = vsel %vm5568, %v5507, %v3975
    %v5573 = vsel %vm5568, %v5508, %v3977
    %v5574 = vsel %vm5568, %v5509, %v3979
    %v5575 = vsel %vm5568, %v5510, %v3981
    %v5576 = vsel %vm5568, %v5511, %v3983
    %v5577 = vsel %vm5568, %v5512, %v3985
    %v5578 = vsel %vm5568, %v5513, %v3987
    %v5579 = vsel %vm5568, %v5514, %v3989
    %v5580 = vsel %vm5568, %v5515, %v3991
    %v5581 = vsel %vm5568, %v5516, %v3993
    %v5582 = vsel %vm5568, %v5517, %v3995
    %v5583 = vsel %vm5568, %v5518, %v3997
    %v5584 = vsel %vm5568, %v5519, %v3999
    %v5585 = vsel %vm5568, %v5520, %v4001
    %v5586 = vsel %vm5568, %v5521, %v4003
    %v5587 = vsel %vm5568, %v5522, %v4005
    %v5588 = vsel %vm5568, %v5523, %v4007
    %v5589 = vsel %vm5568, %v5524, %v4009
    %v5590 = vsel %vm5568, %v5525, %v4011
    %v5591 = vsel %vm5568, %v5526, %v4013
    %v5592 = vsel %vm5568, %v5527, %v4015
    %v5593 = vsel %vm5568, %v5528, %v4017
    %v5594 = vsel %vm5568, %v5529, %v4019
    %v5595 = vsel %vm5568, %v5530, %v4021
    %v5596 = vsel %vm5568, %v5531, %v4023
    %v5597 = vsel %vm5568, %v5532, %v4025
    %v5598 = vsel %vm5568, %v5533, %v4027
    %v5599 = vsel %vm5568, %v5534, %v4029
    %v5600 = vsel %vm5568, %v5535, %v4031
    %v5601 = vsel %vm5568, %v5536, %v4033
    %v5602 = vsel %vm5568, %v5537, %v4035
    %v5603 = vsel %vm5568, %v5538, %v4037
    %v5604 = vsel %vm5568, %v5539, %v4039
    %v5605 = vsel %vm5568, %v5540, %v4041
    %v5606 = vsel %vm5568, %v5541, %v4043
    %v5607 = vsel %vm5568, %v5542, %v4045
    %v5608 = vsel %vm5568, %v5543, %v4047
    %v5609 = vsel %vm5568, %v5544, %v4049
    %v5610 = vsel %vm5568, %v5545, %v4051
    %v5611 = vsel %vm5568, %v5546, %v4053
    %v5612 = vsel %vm5568, %v5547, %v4055
    %v5613 = vsel %vm5568, %v5548, %v4057
    %v5614 = vsel %vm5568, %v5549, %v4059
    %v5615 = vsel %vm5568, %v5550, %v4061
    %v5616 = vsel %vm5568, %v5551, %v4063
    %v5617 = vsel %vm5568, %v5552, %v4065
    %v5618 = vsel %vm5568, %v5553, %v4067
    %v5619 = vsel %vm5568, %v5554, %v4069
    %v5620 = vsel %vm5568, %v5555, %v4071
    %v5621 = vsel %vm5568, %v5556, %v4073
    %v5622 = vsel %vm5568, %v5557, %v4075
    %v5623 = vsel %vm5568, %v5558, %v4077
    %v5624 = vsel %vm5568, %v5559, %v4079
    %v5625 = vsel %vm5568, %v5560, %v4081
    %v5626 = vsel %vm5568, %v5561, %v4083
    %v5627 = vsel %vm5568, %v5562, %v4085
    %v5628 = vsel %vm5568, %v5563, %v4087
    %v5629 = vsel %vm5568, %v5564, %v4089
    %v5630 = vsel %vm5568, %v5565, %v4091
    %v5631 = vsel %vm5568, %v5566, %v4093
    %v5632 = vsel %vm5568, %v5567, %v4095
    %v5633 = vsel %vm1659, %v5569, %v4225
    %v5634 = vsel %vm1659, %v5570, %v4227
    %v5635 = vsel %vm1659, %v5571, %v4229
    %v5636 = vsel %vm1659, %v5572, %v4231
    %v5637 = vsel %vm1659, %v5573, %v4233
    %v5638 = vsel %vm1659, %v5574, %v4235
    %v5639 = vsel %vm1659, %v5575, %v4237
    %v5640 = vsel %vm1659, %v5576, %v4239
    %v5641 = vsel %vm1659, %v5577, %v4241
    %v5642 = vsel %vm1659, %v5578, %v4243
    %v5643 = vsel %vm1659, %v5579, %v4245
    %v5644 = vsel %vm1659, %v5580, %v4247
    %v5645 = vsel %vm1659, %v5581, %v4249
    %v5646 = vsel %vm1659, %v5582, %v4251
    %v5647 = vsel %vm1659, %v5583, %v4253
    %v5648 = vsel %vm1659, %v5584, %v4255
    %v5649 = vsel %vm1659, %v5585, %v4257
    %v5650 = vsel %vm1659, %v5586, %v4259
    %v5651 = vsel %vm1659, %v5587, %v4261
    %v5652 = vsel %vm1659, %v5588, %v4263
    %v5653 = vsel %vm1659, %v5589, %v4265
    %v5654 = vsel %vm1659, %v5590, %v4267
    %v5655 = vsel %vm1659, %v5591, %v4269
    %v5656 = vsel %vm1659, %v5592, %v4271
    %v5657 = vsel %vm1659, %v5593, %v4273
    %v5658 = vsel %vm1659, %v5594, %v4275
    %v5659 = vsel %vm1659, %v5595, %v4277
    %v5660 = vsel %vm1659, %v5596, %v4279
    %v5661 = vsel %vm1659, %v5597, %v4281
    %v5662 = vsel %vm1659, %v5598, %v4283
    %v5663 = vsel %vm1659, %v5599, %v4285
    %v5664 = vsel %vm1659, %v5600, %v4287
    %v5665 = vsel %vm1659, %v5601, %v4289
    %v5666 = vsel %vm1659, %v5602, %v4291
    %v5667 = vsel %vm1659, %v5603, %v4293
    %v5668 = vsel %vm1659, %v5604, %v4295
    %v5669 = vsel %vm1659, %v5605, %v4297
    %v5670 = vsel %vm1659, %v5606, %v4299
    %v5671 = vsel %vm1659, %v5607, %v4301
    %v5672 = vsel %vm1659, %v5608, %v4303
    %v5673 = vsel %vm1659, %v5609, %v4305
    %v5674 = vsel %vm1659, %v5610, %v4307
    %v5675 = vsel %vm1659, %v5611, %v4309
    %v5676 = vsel %vm1659, %v5612, %v4311
    %v5677 = vsel %vm1659, %v5613, %v4313
    %v5678 = vsel %vm1659, %v5614, %v4315
    %v5679 = vsel %vm1659, %v5615, %v4317
    %v5680 = vsel %vm1659, %v5616, %v4319
    %v5681 = vsel %vm1659, %v5617, %v4321
    %v5682 = vsel %vm1659, %v5618, %v4323
    %v5683 = vsel %vm1659, %v5619, %v4325
    %v5684 = vsel %vm1659, %v5620, %v4327
    %v5685 = vsel %vm1659, %v5621, %v4329
    %v5686 = vsel %vm1659, %v5622, %v4331
    %v5687 = vsel %vm1659, %v5623, %v4333
    %v5688 = vsel %vm1659, %v5624, %v4335
    %v5689 = vsel %vm1659, %v5625, %v4337
    %v5690 = vsel %vm1659, %v5626, %v4339
    %v5691 = vsel %vm1659, %v5627, %v4341
    %v5692 = vsel %vm1659, %v5628, %v4343
    %v5693 = vsel %vm1659, %v5629, %v4345
    %v5694 = vsel %vm1659, %v5630, %v4347
    %v5695 = vsel %vm1659, %v5631, %v4349
    %v5696 = vsel %vm1659, %v5632, %v4351
    %vm5697 = vcmask 326656
    %v5698 = vsel %vm5697, %v5633, %v4481
    %v5699 = vsel %vm5697, %v5634, %v4483
    %v5700 = vsel %vm5697, %v5635, %v4485
    %v5701 = vsel %vm5697, %v5636, %v4487
    %v5702 = vsel %vm5697, %v5637, %v4489
    %v5703 = vsel %vm5697, %v5638, %v4491
    %v5704 = vsel %vm5697, %v5639, %v4493
    %v5705 = vsel %vm5697, %v5640, %v4495
    %v5706 = vsel %vm5697, %v5641, %v4497
    %v5707 = vsel %vm5697, %v5642, %v4499
    %v5708 = vsel %vm5697, %v5643, %v4501
    %v5709 = vsel %vm5697, %v5644, %v4503
    %v5710 = vsel %vm5697, %v5645, %v4505
    %v5711 = vsel %vm5697, %v5646, %v4507
    %v5712 = vsel %vm5697, %v5647, %v4509
    %v5713 = vsel %vm5697, %v5648, %v4511
    %v5714 = vsel %vm5697, %v5649, %v4513
    %v5715 = vsel %vm5697, %v5650, %v4515
    %v5716 = vsel %vm5697, %v5651, %v4517
    %v5717 = vsel %vm5697, %v5652, %v4519
    %v5718 = vsel %vm5697, %v5653, %v4521
    %v5719 = vsel %vm5697, %v5654, %v4523
    %v5720 = vsel %vm5697, %v5655, %v4525
    %v5721 = vsel %vm5697, %v5656, %v4527
    %v5722 = vsel %vm5697, %v5657, %v4529
    %v5723 = vsel %vm5697, %v5658, %v4531
    %v5724 = vsel %vm5697, %v5659, %v4533
    %v5725 = vsel %vm5697, %v5660, %v4535
    %v5726 = vsel %vm5697, %v5661, %v4537
    %v5727 = vsel %vm5697, %v5662, %v4539
    %v5728 = vsel %vm5697, %v5663, %v4541
    %v5729 = vsel %vm5697, %v5664, %v4543
    %v5730 = vsel %vm5697, %v5665, %v4545
    %v5731 = vsel %vm5697, %v5666, %v4547
    %v5732 = vsel %vm5697, %v5667, %v4549
    %v5733 = vsel %vm5697, %v5668, %v4551
    %v5734 = vsel %vm5697, %v5669, %v4553
    %v5735 = vsel %vm5697, %v5670, %v4555
    %v5736 = vsel %vm5697, %v5671, %v4557
    %v5737 = vsel %vm5697, %v5672, %v4559
    %v5738 = vsel %vm5697, %v5673, %v4561
    %v5739 = vsel %vm5697, %v5674, %v4563
    %v5740 = vsel %vm5697, %v5675, %v4565
    %v5741 = vsel %vm5697, %v5676, %v4567
    %v5742 = vsel %vm5697, %v5677, %v4569
    %v5743 = vsel %vm5697, %v5678, %v4571
    %v5744 = vsel %vm5697, %v5679, %v4573
    %v5745 = vsel %vm5697, %v5680, %v4575
    %v5746 = vsel %vm5697, %v5681, %v4577
    %v5747 = vsel %vm5697, %v5682, %v4579
    %v5748 = vsel %vm5697, %v5683, %v4581
    %v5749 = vsel %vm5697, %v5684, %v4583
    %v5750 = vsel %vm5697, %v5685, %v4585
    %v5751 = vsel %vm5697, %v5686, %v4587
    %v5752 = vsel %vm5697, %v5687, %v4589
    %v5753 = vsel %vm5697, %v5688, %v4591
    %v5754 = vsel %vm5697, %v5689, %v4593
    %v5755 = vsel %vm5697, %v5690, %v4595
    %v5756 = vsel %vm5697, %v5691, %v4597
    %v5757 = vsel %vm5697, %v5692, %v4599
    %v5758 = vsel %vm5697, %v5693, %v4601
    %v5759 = vsel %vm5697, %v5694, %v4603
    %v5760 = vsel %vm5697, %v5695, %v4605
    %v5761 = vsel %vm5697, %v5696, %v4607
    %vm5762 = vcmask 392192
    %v5763 = vsel %vm5762, %v5698, %v4737
    %v5764 = vsel %vm5762, %v5699, %v4739
    %v5765 = vsel %vm5762, %v5700, %v4741
    %v5766 = vsel %vm5762, %v5701, %v4743
    %v5767 = vsel %vm5762, %v5702, %v4745
    %v5768 = vsel %vm5762, %v5703, %v4747
    %v5769 = vsel %vm5762, %v5704, %v4749
    %v5770 = vsel %vm5762, %v5705, %v4751
    %v5771 = vsel %vm5762, %v5706, %v4753
    %v5772 = vsel %vm5762, %v5707, %v4755
    %v5773 = vsel %vm5762, %v5708, %v4757
    %v5774 = vsel %vm5762, %v5709, %v4759
    %v5775 = vsel %vm5762, %v5710, %v4761
    %v5776 = vsel %vm5762, %v5711, %v4763
    %v5777 = vsel %vm5762, %v5712, %v4765
    %v5778 = vsel %vm5762, %v5713, %v4767
    %v5779 = vsel %vm5762, %v5714, %v4769
    %v5780 = vsel %vm5762, %v5715, %v4771
    %v5781 = vsel %vm5762, %v5716, %v4773
    %v5782 = vsel %vm5762, %v5717, %v4775
    %v5783 = vsel %vm5762, %v5718, %v4777
    %v5784 = vsel %vm5762, %v5719, %v4779
    %v5785 = vsel %vm5762, %v5720, %v4781
    %v5786 = vsel %vm5762, %v5721, %v4783
    %v5787 = vsel %vm5762, %v5722, %v4785
    %v5788 = vsel %vm5762, %v5723, %v4787
    %v5789 = vsel %vm5762, %v5724, %v4789
    %v5790 = vsel %vm5762, %v5725, %v4791
    %v5791 = vsel %vm5762, %v5726, %v4793
    %v5792 = vsel %vm5762, %v5727, %v4795
    %v5793 = vsel %vm5762, %v5728, %v4797
    %v5794 = vsel %vm5762, %v5729, %v4799
    %v5795 = vsel %vm5762, %v5730, %v4801
    %v5796 = vsel %vm5762, %v5731, %v4803
    %v5797 = vsel %vm5762, %v5732, %v4805
    %v5798 = vsel %vm5762, %v5733, %v4807
    %v5799 = vsel %vm5762, %v5734, %v4809
    %v5800 = vsel %vm5762, %v5735, %v4811
    %v5801 = vsel %vm5762, %v5736, %v4813
    %v5802 = vsel %vm5762, %v5737, %v4815
    %v5803 = vsel %vm5762, %v5738, %v4817
    %v5804 = vsel %vm5762, %v5739, %v4819
    %v5805 = vsel %vm5762, %v5740, %v4821
    %v5806 = vsel %vm5762, %v5741, %v4823
    %v5807 = vsel %vm5762, %v5742, %v4825
    %v5808 = vsel %vm5762, %v5743, %v4827
    %v5809 = vsel %vm5762, %v5744, %v4829
    %v5810 = vsel %vm5762, %v5745, %v4831
    %v5811 = vsel %vm5762, %v5746, %v4833
    %v5812 = vsel %vm5762, %v5747, %v4835
    %v5813 = vsel %vm5762, %v5748, %v4837
    %v5814 = vsel %vm5762, %v5749, %v4839
    %v5815 = vsel %vm5762, %v5750, %v4841
    %v5816 = vsel %vm5762, %v5751, %v4843
    %v5817 = vsel %vm5762, %v5752, %v4845
    %v5818 = vsel %vm5762, %v5753, %v4847
    %v5819 = vsel %vm5762, %v5754, %v4849
    %v5820 = vsel %vm5762, %v5755, %v4851
    %v5821 = vsel %vm5762, %v5756, %v4853
    %v5822 = vsel %vm5762, %v5757, %v4855
    %v5823 = vsel %vm5762, %v5758, %v4857
    %v5824 = vsel %vm5762, %v5759, %v4859
    %v5825 = vsel %vm5762, %v5760, %v4861
    %v5826 = vsel %vm5762, %v5761, %v4863
    %vm5827 = vcmask 457728
    %v5828 = vsel %vm5827, %v5763, %v4993
    %v5829 = vsel %vm5827, %v5764, %v4995
    %v5830 = vsel %vm5827, %v5765, %v4997
    %v5831 = vsel %vm5827, %v5766, %v4999
    %v5832 = vsel %vm5827, %v5767, %v5001
    %v5833 = vsel %vm5827, %v5768, %v5003
    %v5834 = vsel %vm5827, %v5769, %v5005
    %v5835 = vsel %vm5827, %v5770, %v5007
    %v5836 = vsel %vm5827, %v5771, %v5009
    %v5837 = vsel %vm5827, %v5772, %v5011
    %v5838 = vsel %vm5827, %v5773, %v5013
    %v5839 = vsel %vm5827, %v5774, %v5015
    %v5840 = vsel %vm5827, %v5775, %v5017
    %v5841 = vsel %vm5827, %v5776, %v5019
    %v5842 = vsel %vm5827, %v5777, %v5021
    %v5843 = vsel %vm5827, %v5778, %v5023
    %v5844 = vsel %vm5827, %v5779, %v5025
    %v5845 = vsel %vm5827, %v5780, %v5027
    %v5846 = vsel %vm5827, %v5781, %v5029
    %v5847 = vsel %vm5827, %v5782, %v5031
    %v5848 = vsel %vm5827, %v5783, %v5033
    %v5849 = vsel %vm5827, %v5784, %v5035
    %v5850 = vsel %vm5827, %v5785, %v5037
    %v5851 = vsel %vm5827, %v5786, %v5039
    %v5852 = vsel %vm5827, %v5787, %v5041
    %v5853 = vsel %vm5827, %v5788, %v5043
    %v5854 = vsel %vm5827, %v5789, %v5045
    %v5855 = vsel %vm5827, %v5790, %v5047
    %v5856 = vsel %vm5827, %v5791, %v5049
    %v5857 = vsel %vm5827, %v5792, %v5051
    %v5858 = vsel %vm5827, %v5793, %v5053
    %v5859 = vsel %vm5827, %v5794, %v5055
    %v5860 = vsel %vm5827, %v5795, %v5057
    %v5861 = vsel %vm5827, %v5796, %v5059
    %v5862 = vsel %vm5827, %v5797, %v5061
    %v5863 = vsel %vm5827, %v5798, %v5063
    %v5864 = vsel %vm5827, %v5799, %v5065
    %v5865 = vsel %vm5827, %v5800, %v5067
    %v5866 = vsel %vm5827, %v5801, %v5069
    %v5867 = vsel %vm5827, %v5802, %v5071
    %v5868 = vsel %vm5827, %v5803, %v5073
    %v5869 = vsel %vm5827, %v5804, %v5075
    %v5870 = vsel %vm5827, %v5805, %v5077
    %v5871 = vsel %vm5827, %v5806, %v5079
    %v5872 = vsel %vm5827, %v5807, %v5081
    %v5873 = vsel %vm5827, %v5808, %v5083
    %v5874 = vsel %vm5827, %v5809, %v5085
    %v5875 = vsel %vm5827, %v5810, %v5087
    %v5876 = vsel %vm5827, %v5811, %v5089
    %v5877 = vsel %vm5827, %v5812, %v5091
    %v5878 = vsel %vm5827, %v5813, %v5093
    %v5879 = vsel %vm5827, %v5814, %v5095
    %v5880 = vsel %vm5827, %v5815, %v5097
    %v5881 = vsel %vm5827, %v5816, %v5099
    %v5882 = vsel %vm5827, %v5817, %v5101
    %v5883 = vsel %vm5827, %v5818, %v5103
    %v5884 = vsel %vm5827, %v5819, %v5105
    %v5885 = vsel %vm5827, %v5820, %v5107
    %v5886 = vsel %vm5827, %v5821, %v5109
    %v5887 = vsel %vm5827, %v5822, %v5111
    %v5888 = vsel %vm5827, %v5823, %v5113
    %v5889 = vsel %vm5827, %v5824, %v5115
    %v5890 = vsel %vm5827, %v5825, %v5117
    %v5891 = vsel %vm5827, %v5826, %v5119
    %vm5892 = vcmask 523264
    %v5893 = vsel %vm5892, %v5828, %v5249
    %v5894 = vsel %vm5892, %v5829, %v5251
    %v5895 = vsel %vm5892, %v5830, %v5253
    %v5896 = vsel %vm5892, %v5831, %v5255
    %v5897 = vsel %vm5892, %v5832, %v5257
    %v5898 = vsel %vm5892, %v5833, %v5259
    %v5899 = vsel %vm5892, %v5834, %v5261
    %v5900 = vsel %vm5892, %v5835, %v5263
    %v5901 = vsel %vm5892, %v5836, %v5265
    %v5902 = vsel %vm5892, %v5837, %v5267
    %v5903 = vsel %vm5892, %v5838, %v5269
    %v5904 = vsel %vm5892, %v5839, %v5271
    %v5905 = vsel %vm5892, %v5840, %v5273
    %v5906 = vsel %vm5892, %v5841, %v5275
    %v5907 = vsel %vm5892, %v5842, %v5277
    %v5908 = vsel %vm5892, %v5843, %v5279
    %v5909 = vsel %vm5892, %v5844, %v5281
    %v5910 = vsel %vm5892, %v5845, %v5283
    %v5911 = vsel %vm5892, %v5846, %v5285
    %v5912 = vsel %vm5892, %v5847, %v5287
    %v5913 = vsel %vm5892, %v5848, %v5289
    %v5914 = vsel %vm5892, %v5849, %v5291
    %v5915 = vsel %vm5892, %v5850, %v5293
    %v5916 = vsel %vm5892, %v5851, %v5295
    %v5917 = vsel %vm5892, %v5852, %v5297
    %v5918 = vsel %vm5892, %v5853, %v5299
    %v5919 = vsel %vm5892, %v5854, %v5301
    %v5920 = vsel %vm5892, %v5855, %v5303
    %v5921 = vsel %vm5892, %v5856, %v5305
    %v5922 = vsel %vm5892, %v5857, %v5307
    %v5923 = vsel %vm5892, %v5858, %v5309
    %v5924 = vsel %vm5892, %v5859, %v5311
    %v5925 = vsel %vm5892, %v5860, %v5313
    %v5926 = vsel %vm5892, %v5861, %v5315
    %v5927 = vsel %vm5892, %v5862, %v5317
    %v5928 = vsel %vm5892, %v5863, %v5319
    %v5929 = vsel %vm5892, %v5864, %v5321
    %v5930 = vsel %vm5892, %v5865, %v5323
    %v5931 = vsel %vm5892, %v5866, %v5325
    %v5932 = vsel %vm5892, %v5867, %v5327
    %v5933 = vsel %vm5892, %v5868, %v5329
    %v5934 = vsel %vm5892, %v5869, %v5331
    %v5935 = vsel %vm5892, %v5870, %v5333
    %v5936 = vsel %vm5892, %v5871, %v5335
    %v5937 = vsel %vm5892, %v5872, %v5337
    %v5938 = vsel %vm5892, %v5873, %v5339
    %v5939 = vsel %vm5892, %v5874, %v5341
    %v5940 = vsel %vm5892, %v5875, %v5343
    %v5941 = vsel %vm5892, %v5876, %v5345
    %v5942 = vsel %vm5892, %v5877, %v5347
    %v5943 = vsel %vm5892, %v5878, %v5349
    %v5944 = vsel %vm5892, %v5879, %v5351
    %v5945 = vsel %vm5892, %v5880, %v5353
    %v5946 = vsel %vm5892, %v5881, %v5355
    %v5947 = vsel %vm5892, %v5882, %v5357
    %v5948 = vsel %vm5892, %v5883, %v5359
    %v5949 = vsel %vm5892, %v5884, %v5361
    %v5950 = vsel %vm5892, %v5885, %v5363
    %v5951 = vsel %vm5892, %v5886, %v5365
    %v5952 = vsel %vm5892, %v5887, %v5367
    %v5953 = vsel %vm5892, %v5888, %v5369
    %v5954 = vsel %vm5892, %v5889, %v5371
    %v5955 = vsel %vm5892, %v5890, %v5373
    %v5956 = vsel %vm5892, %v5891, %v5375
    %v5957 = vpack.c.bf16 %v5893, %v5893
    %v5958 = vpack.c.bf16 %v5894, %v5894
    %v5959 = vpack.c.bf16 %v5895, %v5895
    %v5960 = vpack.c.bf16 %v5896, %v5896
    %v5961 = vpack.c.bf16 %v5897, %v5897
    %v5962 = vpack.c.bf16 %v5898, %v5898
    %v5963 = vpack.c.bf16 %v5899, %v5899
    %v5964 = vpack.c.bf16 %v5900, %v5900
    %v5965 = vpack.c.bf16 %v5901, %v5901
    %v5966 = vpack.c.bf16 %v5902, %v5902
    %v5967 = vpack.c.bf16 %v5903, %v5903
    %v5968 = vpack.c.bf16 %v5904, %v5904
    %v5969 = vpack.c.bf16 %v5905, %v5905
    %v5970 = vpack.c.bf16 %v5906, %v5906
    %v5971 = vpack.c.bf16 %v5907, %v5907
    %v5972 = vpack.c.bf16 %v5908, %v5908
    %v5973 = vpack.c.bf16 %v5909, %v5909
    %v5974 = vpack.c.bf16 %v5910, %v5910
    %v5975 = vpack.c.bf16 %v5911, %v5911
    %v5976 = vpack.c.bf16 %v5912, %v5912
    %v5977 = vpack.c.bf16 %v5913, %v5913
    %v5978 = vpack.c.bf16 %v5914, %v5914
    %v5979 = vpack.c.bf16 %v5915, %v5915
    %v5980 = vpack.c.bf16 %v5916, %v5916
    %v5981 = vpack.c.bf16 %v5917, %v5917
    %v5982 = vpack.c.bf16 %v5918, %v5918
    %v5983 = vpack.c.bf16 %v5919, %v5919
    %v5984 = vpack.c.bf16 %v5920, %v5920
    %v5985 = vpack.c.bf16 %v5921, %v5921
    %v5986 = vpack.c.bf16 %v5922, %v5922
    %v5987 = vpack.c.bf16 %v5923, %v5923
    %v5988 = vpack.c.bf16 %v5924, %v5924
    %v5989 = vpack.c.bf16 %v5925, %v5925
    %v5990 = vpack.c.bf16 %v5926, %v5926
    %v5991 = vpack.c.bf16 %v5927, %v5927
    %v5992 = vpack.c.bf16 %v5928, %v5928
    %v5993 = vpack.c.bf16 %v5929, %v5929
    %v5994 = vpack.c.bf16 %v5930, %v5930
    %v5995 = vpack.c.bf16 %v5931, %v5931
    %v5996 = vpack.c.bf16 %v5932, %v5932
    %v5997 = vpack.c.bf16 %v5933, %v5933
    %v5998 = vpack.c.bf16 %v5934, %v5934
    %v5999 = vpack.c.bf16 %v5935, %v5935
    %v6000 = vpack.c.bf16 %v5936, %v5936
    %v6001 = vpack.c.bf16 %v5937, %v5937
    %v6002 = vpack.c.bf16 %v5938, %v5938
    %v6003 = vpack.c.bf16 %v5939, %v5939
    %v6004 = vpack.c.bf16 %v5940, %v5940
    %v6005 = vpack.c.bf16 %v5941, %v5941
    %v6006 = vpack.c.bf16 %v5942, %v5942
    %v6007 = vpack.c.bf16 %v5943, %v5943
    %v6008 = vpack.c.bf16 %v5944, %v5944
    %v6009 = vpack.c.bf16 %v5945, %v5945
    %v6010 = vpack.c.bf16 %v5946, %v5946
    %v6011 = vpack.c.bf16 %v5947, %v5947
    %v6012 = vpack.c.bf16 %v5948, %v5948
    %v6013 = vpack.c.bf16 %v5949, %v5949
    %v6014 = vpack.c.bf16 %v5950, %v5950
    %v6015 = vpack.c.bf16 %v5951, %v5951
    %v6016 = vpack.c.bf16 %v5952, %v5952
    %v6017 = vpack.c.bf16 %v5953, %v5953
    %v6018 = vpack.c.bf16 %v5954, %v5954
    %v6019 = vpack.c.bf16 %v5955, %v5955
    %v6020 = vpack.c.bf16 %v5956, %v5956
    %v6021 = vld [vmem:[%s5] sm:$0xf]
    %v6022 = vld [vmem:[%s5 + $0x4] sm:$0xf]
    %v6023 = vld [vmem:[%s5 + $0x8] sm:$0xf]
    %v6024 = vld [vmem:[%s5 + $0xc] sm:$0xf]
    %v6025 = vld [vmem:[%s5 + $0x10] sm:$0xf]
    %v6026 = vld [vmem:[%s5 + $0x14] sm:$0xf]
    %v6027 = vld [vmem:[%s5 + $0x18] sm:$0xf]
    %v6028 = vld [vmem:[%s5 + $0x1c] sm:$0xf]
    %v6029 = vld [vmem:[%s5 + $0x20] sm:$0xf]
    %v6030 = vld [vmem:[%s6] sm:$0x1]
    %v6032 = vperm.slane %v6030, 0
    %v6098 = vunpack.c.l.b16 %v5957
    %v6099 = vunpack.c.l.b16 %v5958
    %v6100 = vunpack.c.l.b16 %v5959
    %v6101 = vunpack.c.l.b16 %v5960
    %v6102 = vunpack.c.l.b16 %v5961
    %v6103 = vunpack.c.l.b16 %v5962
    %v6104 = vunpack.c.l.b16 %v5963
    %v6105 = vunpack.c.l.b16 %v5964
    %v6106 = vunpack.c.l.b16 %v5965
    %v6107 = vunpack.c.l.b16 %v5966
    %v6108 = vunpack.c.l.b16 %v5967
    %v6109 = vunpack.c.l.b16 %v5968
    %v6110 = vunpack.c.l.b16 %v5969
    %v6111 = vunpack.c.l.b16 %v5970
    %v6112 = vunpack.c.l.b16 %v5971
    %v6113 = vunpack.c.l.b16 %v5972
    %v6114 = vunpack.c.l.b16 %v5973
    %v6115 = vunpack.c.l.b16 %v5974
    %v6116 = vunpack.c.l.b16 %v5975
    %v6117 = vunpack.c.l.b16 %v5976
    %v6118 = vunpack.c.l.b16 %v5977
    %v6119 = vunpack.c.l.b16 %v5978
    %v6120 = vunpack.c.l.b16 %v5979
    %v6121 = vunpack.c.l.b16 %v5980
    %v6122 = vunpack.c.l.b16 %v5981
    %v6123 = vunpack.c.l.b16 %v5982
    %v6124 = vunpack.c.l.b16 %v5983
    %v6125 = vunpack.c.l.b16 %v5984
    %v6126 = vunpack.c.l.b16 %v5985
    %v6127 = vunpack.c.l.b16 %v5986
    %v6128 = vunpack.c.l.b16 %v5987
    %v6129 = vunpack.c.l.b16 %v5988
    %v6130 = vunpack.c.l.b16 %v5989
    %v6131 = vunpack.c.l.b16 %v5990
    %v6132 = vunpack.c.l.b16 %v5991
    %v6133 = vunpack.c.l.b16 %v5992
    %v6134 = vunpack.c.l.b16 %v5993
    %v6135 = vunpack.c.l.b16 %v5994
    %v6136 = vunpack.c.l.b16 %v5995
    %v6137 = vunpack.c.l.b16 %v5996
    %v6138 = vunpack.c.l.b16 %v5997
    %v6139 = vunpack.c.l.b16 %v5998
    %v6140 = vunpack.c.l.b16 %v5999
    %v6141 = vunpack.c.l.b16 %v6000
    %v6142 = vunpack.c.l.b16 %v6001
    %v6143 = vunpack.c.l.b16 %v6002
    %v6144 = vunpack.c.l.b16 %v6003
    %v6145 = vunpack.c.l.b16 %v6004
    %v6146 = vunpack.c.l.b16 %v6005
    %v6147 = vunpack.c.l.b16 %v6006
    %v6148 = vunpack.c.l.b16 %v6007
    %v6149 = vunpack.c.l.b16 %v6008
    %v6150 = vunpack.c.l.b16 %v6009
    %v6151 = vunpack.c.l.b16 %v6010
    %v6152 = vunpack.c.l.b16 %v6011
    %v6153 = vunpack.c.l.b16 %v6012
    %v6154 = vunpack.c.l.b16 %v6013
    %v6155 = vunpack.c.l.b16 %v6014
    %v6156 = vunpack.c.l.b16 %v6015
    %v6157 = vunpack.c.l.b16 %v6016
    %v6158 = vunpack.c.l.b16 %v6017
    %v6159 = vunpack.c.l.b16 %v6018
    %v6160 = vunpack.c.l.b16 %v6019
    %v6161 = vunpack.c.l.b16 %v6020
    %v6162 = vpack.c.b16 %v6099, %v6098
    %v6163 = vpack.c.b16 %v6101, %v6100
    %v6164 = vpack.c.b16 %v6103, %v6102
    %v6165 = vpack.c.b16 %v6105, %v6104
    %v6166 = vpack.c.b16 %v6107, %v6106
    %v6167 = vpack.c.b16 %v6109, %v6108
    %v6168 = vpack.c.b16 %v6111, %v6110
    %v6169 = vpack.c.b16 %v6113, %v6112
    %v6170 = vpack.c.b16 %v6115, %v6114
    %v6171 = vpack.c.b16 %v6117, %v6116
    %v6172 = vpack.c.b16 %v6119, %v6118
    %v6173 = vpack.c.b16 %v6121, %v6120
    %v6174 = vpack.c.b16 %v6123, %v6122
    %v6175 = vpack.c.b16 %v6125, %v6124
    %v6176 = vpack.c.b16 %v6127, %v6126
    %v6177 = vpack.c.b16 %v6129, %v6128
    %v6178 = vpack.c.b16 %v6131, %v6130
    %v6179 = vpack.c.b16 %v6133, %v6132
    %v6180 = vpack.c.b16 %v6135, %v6134
    %v6181 = vpack.c.b16 %v6137, %v6136
    %v6182 = vpack.c.b16 %v6139, %v6138
    %v6183 = vpack.c.b16 %v6141, %v6140
    %v6184 = vpack.c.b16 %v6143, %v6142
    %v6185 = vpack.c.b16 %v6145, %v6144
    %v6186 = vpack.c.b16 %v6147, %v6146
    %v6187 = vpack.c.b16 %v6149, %v6148
    %v6188 = vpack.c.b16 %v6151, %v6150
    %v6189 = vpack.c.b16 %v6153, %v6152
    %v6190 = vpack.c.b16 %v6155, %v6154
    %v6191 = vpack.c.b16 %v6157, %v6156
    %v6192 = vpack.c.b16 %v6159, %v6158
    %v6193 = vpack.c.b16 %v6161, %v6160
    %v6203 = vunpack.c.l.b16 %v6021
    %v6204 = vunpack.c.l.b16 %v6022
    %v6205 = vunpack.c.l.b16 %v6023
    %v6206 = vunpack.c.l.b16 %v6024
    %v6207 = vunpack.c.l.b16 %v6025
    %v6208 = vunpack.c.l.b16 %v6026
    %v6209 = vunpack.c.l.b16 %v6027
    %v6210 = vunpack.c.l.b16 %v6028
    %v6211 = vunpack.c.l.b16 %v6029
    %v6212 = vpack.c.b16 %v6204, %v6203
    %v6213 = vpack.c.b16 %v6206, %v6205
    %v6214 = vpack.c.b16 %v6208, %v6207
    %v6215 = vpack.c.b16 %v6210, %v6209
    %v6216 = vpack.c.b16 %v6211, %v6211
    %vm6221 = vcmask 588800
    %v6223 = vsel %vm6221, %v6162, 0
    %v6226 = vsel %vm6221, %v6163, 0
    %v6229 = vsel %vm6221, %v6164, 0
    %v6232 = vsel %vm6221, %v6165, 0
    %v6235 = vsel %vm6221, %v6166, 0
    %v6238 = vsel %vm6221, %v6167, 0
    %v6241 = vsel %vm6221, %v6168, 0
    %v6244 = vsel %vm6221, %v6169, 0
    %v6247 = vsel %vm6221, %v6170, 0
    %v6250 = vsel %vm6221, %v6171, 0
    %v6253 = vsel %vm6221, %v6172, 0
    %v6256 = vsel %vm6221, %v6173, 0
    %v6259 = vsel %vm6221, %v6174, 0
    %v6262 = vsel %vm6221, %v6175, 0
    %v6265 = vsel %vm6221, %v6176, 0
    %v6268 = vsel %vm6221, %v6177, 0
    %v6271 = vsel %vm6221, %v6178, 0
    %v6274 = vsel %vm6221, %v6179, 0
    %v6277 = vsel %vm6221, %v6180, 0
    %v6280 = vsel %vm6221, %v6181, 0
    %v6283 = vsel %vm6221, %v6182, 0
    %v6286 = vsel %vm6221, %v6183, 0
    %v6289 = vsel %vm6221, %v6184, 0
    %v6292 = vsel %vm6221, %v6185, 0
    %v6295 = vsel %vm6221, %v6186, 0
    %v6298 = vsel %vm6221, %v6187, 0
    %v6301 = vsel %vm6221, %v6188, 0
    %v6304 = vsel %vm6221, %v6189, 0
    %v6307 = vsel %vm6221, %v6190, 0
    %v6310 = vsel %vm6221, %v6191, 0
    %v6313 = vsel %vm6221, %v6192, 0
    %v6316 = vsel %vm6221, %v6193, 0
    %v6319 = vsel %vm1486, %v6216, 0
    %6321 = vmatpush.bf16.msra.mxu0 0
    %6322 = vmatpush.bf16.msra.mxu0 0
    %6323 = vmatpush.bf16.msra.mxu0 0
    %6324 = vmatpush.bf16.msra.mxu0 %v6319
    %6325 = vmatpush.bf16.msra.mxu0 %v6215
    %6326 = vmatpush.bf16.msra.mxu0 %v6214
    %6327 = vmatpush.bf16.msra.mxu0 %v6213
    %6328 = vmatpush.bf16.msra.mxu0 %v6212
    %6329 = vmatmul.bf16.gmra.mxu0 %v6223
    %v6330 = vpop.f32.mrf.mxu0
    %v6331 = vadd.f32 %v6032, %v6330
    %v6332 = vpop.f32.mrf.mxu0
    %v6333 = vadd.f32 %v6032, %v6332
    %6334 = vmatmul.bf16.gmra.mxu0 %v6226
    %v6335 = vpop.f32.mrf.mxu0
    %v6336 = vadd.f32 %v6032, %v6335
    %v6337 = vpop.f32.mrf.mxu0
    %v6338 = vadd.f32 %v6032, %v6337
    %6339 = vmatmul.bf16.gmra.mxu0 %v6229
    %v6340 = vpop.f32.mrf.mxu0
    %v6341 = vadd.f32 %v6032, %v6340
    %v6342 = vpop.f32.mrf.mxu0
    %v6343 = vadd.f32 %v6032, %v6342
    %6344 = vmatmul.bf16.gmra.mxu0 %v6232
    %v6345 = vpop.f32.mrf.mxu0
    %v6346 = vadd.f32 %v6032, %v6345
    %v6347 = vpop.f32.mrf.mxu0
    %v6348 = vadd.f32 %v6032, %v6347
    %6349 = vmatmul.bf16.gmra.mxu0 %v6235
    %v6350 = vpop.f32.mrf.mxu0
    %v6351 = vadd.f32 %v6032, %v6350
    %v6352 = vpop.f32.mrf.mxu0
    %v6353 = vadd.f32 %v6032, %v6352
    %6354 = vmatmul.bf16.gmra.mxu0 %v6238
    %v6355 = vpop.f32.mrf.mxu0
    %v6356 = vadd.f32 %v6032, %v6355
    %v6357 = vpop.f32.mrf.mxu0
    %v6358 = vadd.f32 %v6032, %v6357
    %6359 = vmatmul.bf16.gmra.mxu0 %v6241
    %v6360 = vpop.f32.mrf.mxu0
    %v6361 = vadd.f32 %v6032, %v6360
    %v6362 = vpop.f32.mrf.mxu0
    %v6363 = vadd.f32 %v6032, %v6362
    %6364 = vmatmul.bf16.gmra.mxu0 %v6244
    %v6365 = vpop.f32.mrf.mxu0
    %v6366 = vadd.f32 %v6032, %v6365
    %v6367 = vpop.f32.mrf.mxu0
    %v6368 = vadd.f32 %v6032, %v6367
    %6369 = vmatmul.bf16.gmra.mxu0 %v6247
    %v6370 = vpop.f32.mrf.mxu0
    %v6371 = vadd.f32 %v6032, %v6370
    %v6372 = vpop.f32.mrf.mxu0
    %v6373 = vadd.f32 %v6032, %v6372
    %6374 = vmatmul.bf16.gmra.mxu0 %v6250
    %v6375 = vpop.f32.mrf.mxu0
    %v6376 = vadd.f32 %v6032, %v6375
    %v6377 = vpop.f32.mrf.mxu0
    %v6378 = vadd.f32 %v6032, %v6377
    %6379 = vmatmul.bf16.gmra.mxu0 %v6253
    %v6380 = vpop.f32.mrf.mxu0
    %v6381 = vadd.f32 %v6032, %v6380
    %v6382 = vpop.f32.mrf.mxu0
    %v6383 = vadd.f32 %v6032, %v6382
    %6384 = vmatmul.bf16.gmra.mxu0 %v6256
    %v6385 = vpop.f32.mrf.mxu0
    %v6386 = vadd.f32 %v6032, %v6385
    %v6387 = vpop.f32.mrf.mxu0
    %v6388 = vadd.f32 %v6032, %v6387
    %6389 = vmatmul.bf16.gmra.mxu0 %v6259
    %v6390 = vpop.f32.mrf.mxu0
    %v6391 = vadd.f32 %v6032, %v6390
    %v6392 = vpop.f32.mrf.mxu0
    %v6393 = vadd.f32 %v6032, %v6392
    %6394 = vmatmul.bf16.gmra.mxu0 %v6262
    %v6395 = vpop.f32.mrf.mxu0
    %v6396 = vadd.f32 %v6032, %v6395
    %v6397 = vpop.f32.mrf.mxu0
    %v6398 = vadd.f32 %v6032, %v6397
    %6399 = vmatmul.bf16.gmra.mxu0 %v6265
    %v6400 = vpop.f32.mrf.mxu0
    %v6401 = vadd.f32 %v6032, %v6400
    %v6402 = vpop.f32.mrf.mxu0
    %v6403 = vadd.f32 %v6032, %v6402
    %6404 = vmatmul.bf16.gmra.mxu0 %v6268
    %v6405 = vpop.f32.mrf.mxu0
    %v6406 = vadd.f32 %v6032, %v6405
    %v6407 = vpop.f32.mrf.mxu0
    %v6408 = vadd.f32 %v6032, %v6407
    %6409 = vmatmul.bf16.gmra.mxu0 %v6271
    %v6410 = vpop.f32.mrf.mxu0
    %v6411 = vadd.f32 %v6032, %v6410
    %v6412 = vpop.f32.mrf.mxu0
    %v6413 = vadd.f32 %v6032, %v6412
    %6414 = vmatmul.bf16.gmra.mxu0 %v6274
    %v6415 = vpop.f32.mrf.mxu0
    %v6416 = vadd.f32 %v6032, %v6415
    %v6417 = vpop.f32.mrf.mxu0
    %v6418 = vadd.f32 %v6032, %v6417
    %6419 = vmatmul.bf16.gmra.mxu0 %v6277
    %v6420 = vpop.f32.mrf.mxu0
    %v6421 = vadd.f32 %v6032, %v6420
    %v6422 = vpop.f32.mrf.mxu0
    %v6423 = vadd.f32 %v6032, %v6422
    %6424 = vmatmul.bf16.gmra.mxu0 %v6280
    %v6425 = vpop.f32.mrf.mxu0
    %v6426 = vadd.f32 %v6032, %v6425
    %v6427 = vpop.f32.mrf.mxu0
    %v6428 = vadd.f32 %v6032, %v6427
    %6429 = vmatmul.bf16.gmra.mxu0 %v6283
    %v6430 = vpop.f32.mrf.mxu0
    %v6431 = vadd.f32 %v6032, %v6430
    %v6432 = vpop.f32.mrf.mxu0
    %v6433 = vadd.f32 %v6032, %v6432
    %6434 = vmatmul.bf16.gmra.mxu0 %v6286
    %v6435 = vpop.f32.mrf.mxu0
    %v6436 = vadd.f32 %v6032, %v6435
    %v6437 = vpop.f32.mrf.mxu0
    %v6438 = vadd.f32 %v6032, %v6437
    %6439 = vmatmul.bf16.gmra.mxu0 %v6289
    %v6440 = vpop.f32.mrf.mxu0
    %v6441 = vadd.f32 %v6032, %v6440
    %v6442 = vpop.f32.mrf.mxu0
    %v6443 = vadd.f32 %v6032, %v6442
    %6444 = vmatmul.bf16.gmra.mxu0 %v6292
    %v6445 = vpop.f32.mrf.mxu0
    %v6446 = vadd.f32 %v6032, %v6445
    %v6447 = vpop.f32.mrf.mxu0
    %v6448 = vadd.f32 %v6032, %v6447
    %6449 = vmatmul.bf16.gmra.mxu0 %v6295
    %v6450 = vpop.f32.mrf.mxu0
    %v6451 = vadd.f32 %v6032, %v6450
    %v6452 = vpop.f32.mrf.mxu0
    %v6453 = vadd.f32 %v6032, %v6452
    %6454 = vmatmul.bf16.gmra.mxu0 %v6298
    %v6455 = vpop.f32.mrf.mxu0
    %v6456 = vadd.f32 %v6032, %v6455
    %v6457 = vpop.f32.mrf.mxu0
    %v6458 = vadd.f32 %v6032, %v6457
    %6459 = vmatmul.bf16.gmra.mxu0 %v6301
    %v6460 = vpop.f32.mrf.mxu0
    %v6461 = vadd.f32 %v6032, %v6460
    %v6462 = vpop.f32.mrf.mxu0
    %v6463 = vadd.f32 %v6032, %v6462
    %6464 = vmatmul.bf16.gmra.mxu0 %v6304
    %v6465 = vpop.f32.mrf.mxu0
    %v6466 = vadd.f32 %v6032, %v6465
    %v6467 = vpop.f32.mrf.mxu0
    %v6468 = vadd.f32 %v6032, %v6467
    %6469 = vmatmul.bf16.gmra.mxu0 %v6307
    %v6470 = vpop.f32.mrf.mxu0
    %v6471 = vadd.f32 %v6032, %v6470
    %v6472 = vpop.f32.mrf.mxu0
    %v6473 = vadd.f32 %v6032, %v6472
    %6474 = vmatmul.bf16.gmra.mxu0 %v6310
    %v6475 = vpop.f32.mrf.mxu0
    %v6476 = vadd.f32 %v6032, %v6475
    %v6477 = vpop.f32.mrf.mxu0
    %v6478 = vadd.f32 %v6032, %v6477
    %6479 = vmatmul.bf16.gmra.mxu0 %v6313
    %v6480 = vpop.f32.mrf.mxu0
    %v6481 = vadd.f32 %v6032, %v6480
    %v6482 = vpop.f32.mrf.mxu0
    %v6483 = vadd.f32 %v6032, %v6482
    %6484 = vmatmul.bf16.gmra.mxu0 %v6316
    %v6485 = vpop.f32.mrf.mxu0
    %v6486 = vadd.f32 %v6032, %v6485
    %v6487 = vpop.f32.mrf.mxu0
    %v6488 = vadd.f32 %v6032, %v6487
    %6489 = vdwg.mxu0
    %v6490 = vsel %vm1389, %v6331, 0.0
    %v6491 = vsel %vm1389, %v6333, 0.0
    %v6492 = vadd.f32 %v6490, %v6491
    %v6493 = vsel %vm1389, %v6336, 0.0
    %v6494 = vadd.f32 %v6492, %v6493
    %v6495 = vsel %vm1389, %v6338, 0.0
    %v6496 = vadd.f32 %v6494, %v6495
    %v6497 = vsel %vm1389, %v6341, 0.0
    %v6498 = vadd.f32 %v6496, %v6497
    %v6499 = vsel %vm1389, %v6343, 0.0
    %v6500 = vadd.f32 %v6498, %v6499
    %v6501 = vsel %vm1389, %v6346, 0.0
    %v6502 = vadd.f32 %v6500, %v6501
    %v6503 = vsel %vm1389, %v6348, 0.0
    %v6504 = vadd.f32 %v6502, %v6503
    %v6505 = vsel %vm1389, %v6351, 0.0
    %v6506 = vadd.f32 %v6504, %v6505
    %v6507 = vsel %vm1389, %v6353, 0.0
    %v6508 = vadd.f32 %v6506, %v6507
    %v6509 = vsel %vm1389, %v6356, 0.0
    %v6510 = vadd.f32 %v6508, %v6509
    %v6511 = vsel %vm1389, %v6358, 0.0
    %v6512 = vadd.f32 %v6510, %v6511
    %v6513 = vsel %vm1389, %v6361, 0.0
    %v6514 = vadd.f32 %v6512, %v6513
    %v6515 = vsel %vm1389, %v6363, 0.0
    %v6516 = vadd.f32 %v6514, %v6515
    %v6517 = vsel %vm1389, %v6366, 0.0
    %v6518 = vadd.f32 %v6516, %v6517
    %v6519 = vsel %vm1389, %v6368, 0.0
    %v6520 = vadd.f32 %v6518, %v6519
    %v6521 = vsel %vm1389, %v6371, 0.0
    %v6522 = vadd.f32 %v6520, %v6521
    %v6523 = vsel %vm1389, %v6373, 0.0
    %v6524 = vadd.f32 %v6522, %v6523
    %v6525 = vsel %vm1389, %v6376, 0.0
    %v6526 = vadd.f32 %v6524, %v6525
    %v6527 = vsel %vm1389, %v6378, 0.0
    %v6528 = vadd.f32 %v6526, %v6527
    %v6529 = vsel %vm1389, %v6381, 0.0
    %v6530 = vadd.f32 %v6528, %v6529
    %v6531 = vsel %vm1389, %v6383, 0.0
    %v6532 = vadd.f32 %v6530, %v6531
    %v6533 = vsel %vm1389, %v6386, 0.0
    %v6534 = vadd.f32 %v6532, %v6533
    %v6535 = vsel %vm1389, %v6388, 0.0
    %v6536 = vadd.f32 %v6534, %v6535
    %v6537 = vsel %vm1389, %v6391, 0.0
    %v6538 = vadd.f32 %v6536, %v6537
    %v6539 = vsel %vm1389, %v6393, 0.0
    %v6540 = vadd.f32 %v6538, %v6539
    %v6541 = vsel %vm1389, %v6396, 0.0
    %v6542 = vadd.f32 %v6540, %v6541
    %v6543 = vsel %vm1389, %v6398, 0.0
    %v6544 = vadd.f32 %v6542, %v6543
    %v6545 = vsel %vm1389, %v6401, 0.0
    %v6546 = vadd.f32 %v6544, %v6545
    %v6547 = vsel %vm1389, %v6403, 0.0
    %v6548 = vadd.f32 %v6546, %v6547
    %v6549 = vsel %vm1389, %v6406, 0.0
    %v6550 = vadd.f32 %v6548, %v6549
    %v6551 = vsel %vm1389, %v6408, 0.0
    %v6552 = vadd.f32 %v6550, %v6551
    %v6553 = vsel %vm1389, %v6411, 0.0
    %v6554 = vadd.f32 %v6552, %v6553
    %v6555 = vsel %vm1389, %v6413, 0.0
    %v6556 = vadd.f32 %v6554, %v6555
    %v6557 = vsel %vm1389, %v6416, 0.0
    %v6558 = vadd.f32 %v6556, %v6557
    %v6559 = vsel %vm1389, %v6418, 0.0
    %v6560 = vadd.f32 %v6558, %v6559
    %v6561 = vsel %vm1389, %v6421, 0.0
    %v6562 = vadd.f32 %v6560, %v6561
    %v6563 = vsel %vm1389, %v6423, 0.0
    %v6564 = vadd.f32 %v6562, %v6563
    %v6565 = vsel %vm1389, %v6426, 0.0
    %v6566 = vadd.f32 %v6564, %v6565
    %v6567 = vsel %vm1389, %v6428, 0.0
    %v6568 = vadd.f32 %v6566, %v6567
    %v6569 = vsel %vm1389, %v6431, 0.0
    %v6570 = vadd.f32 %v6568, %v6569
    %v6571 = vsel %vm1389, %v6433, 0.0
    %v6572 = vadd.f32 %v6570, %v6571
    %v6573 = vsel %vm1389, %v6436, 0.0
    %v6574 = vadd.f32 %v6572, %v6573
    %v6575 = vsel %vm1389, %v6438, 0.0
    %v6576 = vadd.f32 %v6574, %v6575
    %v6577 = vsel %vm1389, %v6441, 0.0
    %v6578 = vadd.f32 %v6576, %v6577
    %v6579 = vsel %vm1389, %v6443, 0.0
    %v6580 = vadd.f32 %v6578, %v6579
    %v6581 = vsel %vm1389, %v6446, 0.0
    %v6582 = vadd.f32 %v6580, %v6581
    %v6583 = vsel %vm1389, %v6448, 0.0
    %v6584 = vadd.f32 %v6582, %v6583
    %v6585 = vsel %vm1389, %v6451, 0.0
    %v6586 = vadd.f32 %v6584, %v6585
    %v6587 = vsel %vm1389, %v6453, 0.0
    %v6588 = vadd.f32 %v6586, %v6587
    %v6589 = vsel %vm1389, %v6456, 0.0
    %v6590 = vadd.f32 %v6588, %v6589
    %v6591 = vsel %vm1389, %v6458, 0.0
    %v6592 = vadd.f32 %v6590, %v6591
    %v6593 = vsel %vm1389, %v6461, 0.0
    %v6594 = vadd.f32 %v6592, %v6593
    %v6595 = vsel %vm1389, %v6463, 0.0
    %v6596 = vadd.f32 %v6594, %v6595
    %v6597 = vsel %vm1389, %v6466, 0.0
    %v6598 = vadd.f32 %v6596, %v6597
    %v6599 = vsel %vm1389, %v6468, 0.0
    %v6600 = vadd.f32 %v6598, %v6599
    %v6601 = vsel %vm1389, %v6471, 0.0
    %v6602 = vadd.f32 %v6600, %v6601
    %v6603 = vsel %vm1389, %v6473, 0.0
    %v6604 = vadd.f32 %v6602, %v6603
    %v6605 = vsel %vm1389, %v6476, 0.0
    %v6606 = vadd.f32 %v6604, %v6605
    %v6607 = vsel %vm1389, %v6478, 0.0
    %v6608 = vadd.f32 %v6606, %v6607
    %v6609 = vsel %vm1389, %v6481, 0.0
    %v6610 = vadd.f32 %v6608, %v6609
    %v6611 = vsel %vm1389, %v6483, 0.0
    %v6612 = vadd.f32 %v6610, %v6611
    %v6613 = vsel %vm1389, %v6486, 0.0
    %v6614 = vadd.f32 %v6612, %v6613
    %v6615 = vsel %vm1389, %v6488, 0.0
    %v6616 = vadd.f32 %v6614, %v6615
    %v6617 = vrot.slane %v6616, 4
    %v6618 = vadd.f32 %v6616, %v6617
    %v6619 = vrot.slane %v6618, 2
    %v6620 = vadd.f32 %v6618, %v6619
    %v6621 = vrot.slane %v6620, 1
    %v6622 = vadd.f32 %v6620, %v6621
    %v6623 = vmul.f32 %v6622, %v1799
    %v6624 = vmul.f32 %v6331, %v6331
    %v6625 = vmul.f32 %v6333, %v6333
    %v6626 = vmul.f32 %v6336, %v6336
    %v6627 = vmul.f32 %v6338, %v6338
    %v6628 = vmul.f32 %v6341, %v6341
    %v6629 = vmul.f32 %v6343, %v6343
    %v6630 = vmul.f32 %v6346, %v6346
    %v6631 = vmul.f32 %v6348, %v6348
    %v6632 = vmul.f32 %v6351, %v6351
    %v6633 = vmul.f32 %v6353, %v6353
    %v6634 = vmul.f32 %v6356, %v6356
    %v6635 = vmul.f32 %v6358, %v6358
    %v6636 = vmul.f32 %v6361, %v6361
    %v6637 = vmul.f32 %v6363, %v6363
    %v6638 = vmul.f32 %v6366, %v6366
    %v6639 = vmul.f32 %v6368, %v6368
    %v6640 = vmul.f32 %v6371, %v6371
    %v6641 = vmul.f32 %v6373, %v6373
    %v6642 = vmul.f32 %v6376, %v6376
    %v6643 = vmul.f32 %v6378, %v6378
    %v6644 = vmul.f32 %v6381, %v6381
    %v6645 = vmul.f32 %v6383, %v6383
    %v6646 = vmul.f32 %v6386, %v6386
    %v6647 = vmul.f32 %v6388, %v6388
    %v6648 = vmul.f32 %v6391, %v6391
    %v6649 = vmul.f32 %v6393, %v6393
    %v6650 = vmul.f32 %v6396, %v6396
    %v6651 = vmul.f32 %v6398, %v6398
    %v6652 = vmul.f32 %v6401, %v6401
    %v6653 = vmul.f32 %v6403, %v6403
    %v6654 = vmul.f32 %v6406, %v6406
    %v6655 = vmul.f32 %v6408, %v6408
    %v6656 = vmul.f32 %v6411, %v6411
    %v6657 = vmul.f32 %v6413, %v6413
    %v6658 = vmul.f32 %v6416, %v6416
    %v6659 = vmul.f32 %v6418, %v6418
    %v6660 = vmul.f32 %v6421, %v6421
    %v6661 = vmul.f32 %v6423, %v6423
    %v6662 = vmul.f32 %v6426, %v6426
    %v6663 = vmul.f32 %v6428, %v6428
    %v6664 = vmul.f32 %v6431, %v6431
    %v6665 = vmul.f32 %v6433, %v6433
    %v6666 = vmul.f32 %v6436, %v6436
    %v6667 = vmul.f32 %v6438, %v6438
    %v6668 = vmul.f32 %v6441, %v6441
    %v6669 = vmul.f32 %v6443, %v6443
    %v6670 = vmul.f32 %v6446, %v6446
    %v6671 = vmul.f32 %v6448, %v6448
    %v6672 = vmul.f32 %v6451, %v6451
    %v6673 = vmul.f32 %v6453, %v6453
    %v6674 = vmul.f32 %v6456, %v6456
    %v6675 = vmul.f32 %v6458, %v6458
    %v6676 = vmul.f32 %v6461, %v6461
    %v6677 = vmul.f32 %v6463, %v6463
    %v6678 = vmul.f32 %v6466, %v6466
    %v6679 = vmul.f32 %v6468, %v6468
    %v6680 = vmul.f32 %v6471, %v6471
    %v6681 = vmul.f32 %v6473, %v6473
    %v6682 = vmul.f32 %v6476, %v6476
    %v6683 = vmul.f32 %v6478, %v6478
    %v6684 = vmul.f32 %v6481, %v6481
    %v6685 = vmul.f32 %v6483, %v6483
    %v6686 = vmul.f32 %v6486, %v6486
    %v6687 = vmul.f32 %v6488, %v6488
    %v6688 = vsel %vm1389, %v6624, 0.0
    %v6689 = vsel %vm1389, %v6625, 0.0
    %v6690 = vadd.f32 %v6688, %v6689
    %v6691 = vsel %vm1389, %v6626, 0.0
    %v6692 = vadd.f32 %v6690, %v6691
    %v6693 = vsel %vm1389, %v6627, 0.0
    %v6694 = vadd.f32 %v6692, %v6693
    %v6695 = vsel %vm1389, %v6628, 0.0
    %v6696 = vadd.f32 %v6694, %v6695
    %v6697 = vsel %vm1389, %v6629, 0.0
    %v6698 = vadd.f32 %v6696, %v6697
    %v6699 = vsel %vm1389, %v6630, 0.0
    %v6700 = vadd.f32 %v6698, %v6699
    %v6701 = vsel %vm1389, %v6631, 0.0
    %v6702 = vadd.f32 %v6700, %v6701
    %v6703 = vsel %vm1389, %v6632, 0.0
    %v6704 = vadd.f32 %v6702, %v6703
    %v6705 = vsel %vm1389, %v6633, 0.0
    %v6706 = vadd.f32 %v6704, %v6705
    %v6707 = vsel %vm1389, %v6634, 0.0
    %v6708 = vadd.f32 %v6706, %v6707
    %v6709 = vsel %vm1389, %v6635, 0.0
    %v6710 = vadd.f32 %v6708, %v6709
    %v6711 = vsel %vm1389, %v6636, 0.0
    %v6712 = vadd.f32 %v6710, %v6711
    %v6713 = vsel %vm1389, %v6637, 0.0
    %v6714 = vadd.f32 %v6712, %v6713
    %v6715 = vsel %vm1389, %v6638, 0.0
    %v6716 = vadd.f32 %v6714, %v6715
    %v6717 = vsel %vm1389, %v6639, 0.0
    %v6718 = vadd.f32 %v6716, %v6717
    %v6719 = vsel %vm1389, %v6640, 0.0
    %v6720 = vadd.f32 %v6718, %v6719
    %v6721 = vsel %vm1389, %v6641, 0.0
    %v6722 = vadd.f32 %v6720, %v6721
    %v6723 = vsel %vm1389, %v6642, 0.0
    %v6724 = vadd.f32 %v6722, %v6723
    %v6725 = vsel %vm1389, %v6643, 0.0
    %v6726 = vadd.f32 %v6724, %v6725
    %v6727 = vsel %vm1389, %v6644, 0.0
    %v6728 = vadd.f32 %v6726, %v6727
    %v6729 = vsel %vm1389, %v6645, 0.0
    %v6730 = vadd.f32 %v6728, %v6729
    %v6731 = vsel %vm1389, %v6646, 0.0
    %v6732 = vadd.f32 %v6730, %v6731
    %v6733 = vsel %vm1389, %v6647, 0.0
    %v6734 = vadd.f32 %v6732, %v6733
    %v6735 = vsel %vm1389, %v6648, 0.0
    %v6736 = vadd.f32 %v6734, %v6735
    %v6737 = vsel %vm1389, %v6649, 0.0
    %v6738 = vadd.f32 %v6736, %v6737
    %v6739 = vsel %vm1389, %v6650, 0.0
    %v6740 = vadd.f32 %v6738, %v6739
    %v6741 = vsel %vm1389, %v6651, 0.0
    %v6742 = vadd.f32 %v6740, %v6741
    %v6743 = vsel %vm1389, %v6652, 0.0
    %v6744 = vadd.f32 %v6742, %v6743
    %v6745 = vsel %vm1389, %v6653, 0.0
    %v6746 = vadd.f32 %v6744, %v6745
    %v6747 = vsel %vm1389, %v6654, 0.0
    %v6748 = vadd.f32 %v6746, %v6747
    %v6749 = vsel %vm1389, %v6655, 0.0
    %v6750 = vadd.f32 %v6748, %v6749
    %v6751 = vsel %vm1389, %v6656, 0.0
    %v6752 = vadd.f32 %v6750, %v6751
    %v6753 = vsel %vm1389, %v6657, 0.0
    %v6754 = vadd.f32 %v6752, %v6753
    %v6755 = vsel %vm1389, %v6658, 0.0
    %v6756 = vadd.f32 %v6754, %v6755
    %v6757 = vsel %vm1389, %v6659, 0.0
    %v6758 = vadd.f32 %v6756, %v6757
    %v6759 = vsel %vm1389, %v6660, 0.0
    %v6760 = vadd.f32 %v6758, %v6759
    %v6761 = vsel %vm1389, %v6661, 0.0
    %v6762 = vadd.f32 %v6760, %v6761
    %v6763 = vsel %vm1389, %v6662, 0.0
    %v6764 = vadd.f32 %v6762, %v6763
    %v6765 = vsel %vm1389, %v6663, 0.0
    %v6766 = vadd.f32 %v6764, %v6765
    %v6767 = vsel %vm1389, %v6664, 0.0
    %v6768 = vadd.f32 %v6766, %v6767
    %v6769 = vsel %vm1389, %v6665, 0.0
    %v6770 = vadd.f32 %v6768, %v6769
    %v6771 = vsel %vm1389, %v6666, 0.0
    %v6772 = vadd.f32 %v6770, %v6771
    %v6773 = vsel %vm1389, %v6667, 0.0
    %v6774 = vadd.f32 %v6772, %v6773
    %v6775 = vsel %vm1389, %v6668, 0.0
    %v6776 = vadd.f32 %v6774, %v6775
    %v6777 = vsel %vm1389, %v6669, 0.0
    %v6778 = vadd.f32 %v6776, %v6777
    %v6779 = vsel %vm1389, %v6670, 0.0
    %v6780 = vadd.f32 %v6778, %v6779
    %v6781 = vsel %vm1389, %v6671, 0.0
    %v6782 = vadd.f32 %v6780, %v6781
    %v6783 = vsel %vm1389, %v6672, 0.0
    %v6784 = vadd.f32 %v6782, %v6783
    %v6785 = vsel %vm1389, %v6673, 0.0
    %v6786 = vadd.f32 %v6784, %v6785
    %v6787 = vsel %vm1389, %v6674, 0.0
    %v6788 = vadd.f32 %v6786, %v6787
    %v6789 = vsel %vm1389, %v6675, 0.0
    %v6790 = vadd.f32 %v6788, %v6789
    %v6791 = vsel %vm1389, %v6676, 0.0
    %v6792 = vadd.f32 %v6790, %v6791
    %v6793 = vsel %vm1389, %v6677, 0.0
    %v6794 = vadd.f32 %v6792, %v6793
    %v6795 = vsel %vm1389, %v6678, 0.0
    %v6796 = vadd.f32 %v6794, %v6795
    %v6797 = vsel %vm1389, %v6679, 0.0
    %v6798 = vadd.f32 %v6796, %v6797
    %v6799 = vsel %vm1389, %v6680, 0.0
    %v6800 = vadd.f32 %v6798, %v6799
    %v6801 = vsel %vm1389, %v6681, 0.0
    %v6802 = vadd.f32 %v6800, %v6801
    %v6803 = vsel %vm1389, %v6682, 0.0
    %v6804 = vadd.f32 %v6802, %v6803
    %v6805 = vsel %vm1389, %v6683, 0.0
    %v6806 = vadd.f32 %v6804, %v6805
    %v6807 = vsel %vm1389, %v6684, 0.0
    %v6808 = vadd.f32 %v6806, %v6807
    %v6809 = vsel %vm1389, %v6685, 0.0
    %v6810 = vadd.f32 %v6808, %v6809
    %v6811 = vsel %vm1389, %v6686, 0.0
    %v6812 = vadd.f32 %v6810, %v6811
    %v6813 = vsel %vm1389, %v6687, 0.0
    %v6814 = vadd.f32 %v6812, %v6813
    %v6815 = vrot.slane %v6814, 4
    %v6816 = vadd.f32 %v6814, %v6815
    %v6817 = vrot.slane %v6816, 2
    %v6818 = vadd.f32 %v6816, %v6817
    %v6819 = vrot.slane %v6818, 1
    %v6820 = vadd.f32 %v6818, %v6819
    %v6821 = vmul.f32 %v6820, %v1799
    %v6822 = vmul.f32 %v6623, %v6623
    %v6823 = vsub.f32 %v6821, %v6822
    %v6824 = vmax.f32 %v6823, 0.0
    %v6825 = vsub.f32 %v6331, %v6623
    %v6826 = vsub.f32 %v6333, %v6623
    %v6827 = vsub.f32 %v6336, %v6623
    %v6828 = vsub.f32 %v6338, %v6623
    %v6829 = vsub.f32 %v6341, %v6623
    %v6830 = vsub.f32 %v6343, %v6623
    %v6831 = vsub.f32 %v6346, %v6623
    %v6832 = vsub.f32 %v6348, %v6623
    %v6833 = vsub.f32 %v6351, %v6623
    %v6834 = vsub.f32 %v6353, %v6623
    %v6835 = vsub.f32 %v6356, %v6623
    %v6836 = vsub.f32 %v6358, %v6623
    %v6837 = vsub.f32 %v6361, %v6623
    %v6838 = vsub.f32 %v6363, %v6623
    %v6839 = vsub.f32 %v6366, %v6623
    %v6840 = vsub.f32 %v6368, %v6623
    %v6841 = vsub.f32 %v6371, %v6623
    %v6842 = vsub.f32 %v6373, %v6623
    %v6843 = vsub.f32 %v6376, %v6623
    %v6844 = vsub.f32 %v6378, %v6623
    %v6845 = vsub.f32 %v6381, %v6623
    %v6846 = vsub.f32 %v6383, %v6623
    %v6847 = vsub.f32 %v6386, %v6623
    %v6848 = vsub.f32 %v6388, %v6623
    %v6849 = vsub.f32 %v6391, %v6623
    %v6850 = vsub.f32 %v6393, %v6623
    %v6851 = vsub.f32 %v6396, %v6623
    %v6852 = vsub.f32 %v6398, %v6623
    %v6853 = vsub.f32 %v6401, %v6623
    %v6854 = vsub.f32 %v6403, %v6623
    %v6855 = vsub.f32 %v6406, %v6623
    %v6856 = vsub.f32 %v6408, %v6623
    %v6857 = vsub.f32 %v6411, %v6623
    %v6858 = vsub.f32 %v6413, %v6623
    %v6859 = vsub.f32 %v6416, %v6623
    %v6860 = vsub.f32 %v6418, %v6623
    %v6861 = vsub.f32 %v6421, %v6623
    %v6862 = vsub.f32 %v6423, %v6623
    %v6863 = vsub.f32 %v6426, %v6623
    %v6864 = vsub.f32 %v6428, %v6623
    %v6865 = vsub.f32 %v6431, %v6623
    %v6866 = vsub.f32 %v6433, %v6623
    %v6867 = vsub.f32 %v6436, %v6623
    %v6868 = vsub.f32 %v6438, %v6623
    %v6869 = vsub.f32 %v6441, %v6623
    %v6870 = vsub.f32 %v6443, %v6623
    %v6871 = vsub.f32 %v6446, %v6623
    %v6872 = vsub.f32 %v6448, %v6623
    %v6873 = vsub.f32 %v6451, %v6623
    %v6874 = vsub.f32 %v6453, %v6623
    %v6875 = vsub.f32 %v6456, %v6623
    %v6876 = vsub.f32 %v6458, %v6623
    %v6877 = vsub.f32 %v6461, %v6623
    %v6878 = vsub.f32 %v6463, %v6623
    %v6879 = vsub.f32 %v6466, %v6623
    %v6880 = vsub.f32 %v6468, %v6623
    %v6881 = vsub.f32 %v6471, %v6623
    %v6882 = vsub.f32 %v6473, %v6623
    %v6883 = vsub.f32 %v6476, %v6623
    %v6884 = vsub.f32 %v6478, %v6623
    %v6885 = vsub.f32 %v6481, %v6623
    %v6886 = vsub.f32 %v6483, %v6623
    %v6887 = vsub.f32 %v6486, %v6623
    %v6888 = vsub.f32 %v6488, %v6623
    %v6889 = vadd.f32 %v6824, 1e-05
    %v6890 = vrsqrt.pop %v6889
    %v6891 = vmul.f32 %v6890, %v6889
    %v6892 = vmul.f32 %v6891, %v6890
    %v6893 = vmul.f32 0.5, %v6892
    %v6894 = vsub.f32 1.5, %v6893
    %v6895 = vmul.f32 %v6890, %v6894
    %vm6896 = vweird.f32 %v6889
    %vm6897 = vweird.f32 %v6890
    %vm6898 = vmor %vm6896, %vm6897
    %v6899 = vsel %vm6898, %v6890, %v6895
    %v6900 = vmul.f32 %v6825, %v6899
    %v6901 = vmul.f32 %v6826, %v6899
    %v6902 = vmul.f32 %v6827, %v6899
    %v6903 = vmul.f32 %v6828, %v6899
    %v6904 = vmul.f32 %v6829, %v6899
    %v6905 = vmul.f32 %v6830, %v6899
    %v6906 = vmul.f32 %v6831, %v6899
    %v6907 = vmul.f32 %v6832, %v6899
    %v6908 = vmul.f32 %v6833, %v6899
    %v6909 = vmul.f32 %v6834, %v6899
    %v6910 = vmul.f32 %v6835, %v6899
    %v6911 = vmul.f32 %v6836, %v6899
    %v6912 = vmul.f32 %v6837, %v6899
    %v6913 = vmul.f32 %v6838, %v6899
    %v6914 = vmul.f32 %v6839, %v6899
    %v6915 = vmul.f32 %v6840, %v6899
    %v6916 = vmul.f32 %v6841, %v6899
    %v6917 = vmul.f32 %v6842, %v6899
    %v6918 = vmul.f32 %v6843, %v6899
    %v6919 = vmul.f32 %v6844, %v6899
    %v6920 = vmul.f32 %v6845, %v6899
    %v6921 = vmul.f32 %v6846, %v6899
    %v6922 = vmul.f32 %v6847, %v6899
    %v6923 = vmul.f32 %v6848, %v6899
    %v6924 = vmul.f32 %v6849, %v6899
    %v6925 = vmul.f32 %v6850, %v6899
    %v6926 = vmul.f32 %v6851, %v6899
    %v6927 = vmul.f32 %v6852, %v6899
    %v6928 = vmul.f32 %v6853, %v6899
    %v6929 = vmul.f32 %v6854, %v6899
    %v6930 = vmul.f32 %v6855, %v6899
    %v6931 = vmul.f32 %v6856, %v6899
    %v6932 = vmul.f32 %v6857, %v6899
    %v6933 = vmul.f32 %v6858, %v6899
    %v6934 = vmul.f32 %v6859, %v6899
    %v6935 = vmul.f32 %v6860, %v6899
    %v6936 = vmul.f32 %v6861, %v6899
    %v6937 = vmul.f32 %v6862, %v6899
    %v6938 = vmul.f32 %v6863, %v6899
    %v6939 = vmul.f32 %v6864, %v6899
    %v6940 = vmul.f32 %v6865, %v6899
    %v6941 = vmul.f32 %v6866, %v6899
    %v6942 = vmul.f32 %v6867, %v6899
    %v6943 = vmul.f32 %v6868, %v6899
    %v6944 = vmul.f32 %v6869, %v6899
    %v6945 = vmul.f32 %v6870, %v6899
    %v6946 = vmul.f32 %v6871, %v6899
    %v6947 = vmul.f32 %v6872, %v6899
    %v6948 = vmul.f32 %v6873, %v6899
    %v6949 = vmul.f32 %v6874, %v6899
    %v6950 = vmul.f32 %v6875, %v6899
    %v6951 = vmul.f32 %v6876, %v6899
    %v6952 = vmul.f32 %v6877, %v6899
    %v6953 = vmul.f32 %v6878, %v6899
    %v6954 = vmul.f32 %v6879, %v6899
    %v6955 = vmul.f32 %v6880, %v6899
    %v6956 = vmul.f32 %v6881, %v6899
    %v6957 = vmul.f32 %v6882, %v6899
    %v6958 = vmul.f32 %v6883, %v6899
    %v6959 = vmul.f32 %v6884, %v6899
    %v6960 = vmul.f32 %v6885, %v6899
    %v6961 = vmul.f32 %v6886, %v6899
    %v6962 = vmul.f32 %v6887, %v6899
    %v6963 = vmul.f32 %v6888, %v6899
    %v6964 = vld [vmem:[%s7] sm:$0x1]
    %v6966 = vperm.slane %v6964, 0
    %v6968 = vmul.f32 %v6900, %v6966
    %v6969 = vmul.f32 %v6901, %v6966
    %v6970 = vmul.f32 %v6902, %v6966
    %v6971 = vmul.f32 %v6903, %v6966
    %v6972 = vmul.f32 %v6904, %v6966
    %v6973 = vmul.f32 %v6905, %v6966
    %v6974 = vmul.f32 %v6906, %v6966
    %v6975 = vmul.f32 %v6907, %v6966
    %v6976 = vmul.f32 %v6908, %v6966
    %v6977 = vmul.f32 %v6909, %v6966
    %v6978 = vmul.f32 %v6910, %v6966
    %v6979 = vmul.f32 %v6911, %v6966
    %v6980 = vmul.f32 %v6912, %v6966
    %v6981 = vmul.f32 %v6913, %v6966
    %v6982 = vmul.f32 %v6914, %v6966
    %v6983 = vmul.f32 %v6915, %v6966
    %v6984 = vmul.f32 %v6916, %v6966
    %v6985 = vmul.f32 %v6917, %v6966
    %v6986 = vmul.f32 %v6918, %v6966
    %v6987 = vmul.f32 %v6919, %v6966
    %v6988 = vmul.f32 %v6920, %v6966
    %v6989 = vmul.f32 %v6921, %v6966
    %v6990 = vmul.f32 %v6922, %v6966
    %v6991 = vmul.f32 %v6923, %v6966
    %v6992 = vmul.f32 %v6924, %v6966
    %v6993 = vmul.f32 %v6925, %v6966
    %v6994 = vmul.f32 %v6926, %v6966
    %v6995 = vmul.f32 %v6927, %v6966
    %v6996 = vmul.f32 %v6928, %v6966
    %v6997 = vmul.f32 %v6929, %v6966
    %v6998 = vmul.f32 %v6930, %v6966
    %v6999 = vmul.f32 %v6931, %v6966
    %v7000 = vmul.f32 %v6932, %v6966
    %v7001 = vmul.f32 %v6933, %v6966
    %v7002 = vmul.f32 %v6934, %v6966
    %v7003 = vmul.f32 %v6935, %v6966
    %v7004 = vmul.f32 %v6936, %v6966
    %v7005 = vmul.f32 %v6937, %v6966
    %v7006 = vmul.f32 %v6938, %v6966
    %v7007 = vmul.f32 %v6939, %v6966
    %v7008 = vmul.f32 %v6940, %v6966
    %v7009 = vmul.f32 %v6941, %v6966
    %v7010 = vmul.f32 %v6942, %v6966
    %v7011 = vmul.f32 %v6943, %v6966
    %v7012 = vmul.f32 %v6944, %v6966
    %v7013 = vmul.f32 %v6945, %v6966
    %v7014 = vmul.f32 %v6946, %v6966
    %v7015 = vmul.f32 %v6947, %v6966
    %v7016 = vmul.f32 %v6948, %v6966
    %v7017 = vmul.f32 %v6949, %v6966
    %v7018 = vmul.f32 %v6950, %v6966
    %v7019 = vmul.f32 %v6951, %v6966
    %v7020 = vmul.f32 %v6952, %v6966
    %v7021 = vmul.f32 %v6953, %v6966
    %v7022 = vmul.f32 %v6954, %v6966
    %v7023 = vmul.f32 %v6955, %v6966
    %v7024 = vmul.f32 %v6956, %v6966
    %v7025 = vmul.f32 %v6957, %v6966
    %v7026 = vmul.f32 %v6958, %v6966
    %v7027 = vmul.f32 %v6959, %v6966
    %v7028 = vmul.f32 %v6960, %v6966
    %v7029 = vmul.f32 %v6961, %v6966
    %v7030 = vmul.f32 %v6962, %v6966
    %v7031 = vmul.f32 %v6963, %v6966
    %v7032 = vld [vmem:[%s8] sm:$0x1]
    %v7034 = vperm.slane %v7032, 0
    %v7036 = vadd.f32 %v6968, %v7034
    %v7037 = vadd.f32 %v6969, %v7034
    %v7038 = vadd.f32 %v6970, %v7034
    %v7039 = vadd.f32 %v6971, %v7034
    %v7040 = vadd.f32 %v6972, %v7034
    %v7041 = vadd.f32 %v6973, %v7034
    %v7042 = vadd.f32 %v6974, %v7034
    %v7043 = vadd.f32 %v6975, %v7034
    %v7044 = vadd.f32 %v6976, %v7034
    %v7045 = vadd.f32 %v6977, %v7034
    %v7046 = vadd.f32 %v6978, %v7034
    %v7047 = vadd.f32 %v6979, %v7034
    %v7048 = vadd.f32 %v6980, %v7034
    %v7049 = vadd.f32 %v6981, %v7034
    %v7050 = vadd.f32 %v6982, %v7034
    %v7051 = vadd.f32 %v6983, %v7034
    %v7052 = vadd.f32 %v6984, %v7034
    %v7053 = vadd.f32 %v6985, %v7034
    %v7054 = vadd.f32 %v6986, %v7034
    %v7055 = vadd.f32 %v6987, %v7034
    %v7056 = vadd.f32 %v6988, %v7034
    %v7057 = vadd.f32 %v6989, %v7034
    %v7058 = vadd.f32 %v6990, %v7034
    %v7059 = vadd.f32 %v6991, %v7034
    %v7060 = vadd.f32 %v6992, %v7034
    %v7061 = vadd.f32 %v6993, %v7034
    %v7062 = vadd.f32 %v6994, %v7034
    %v7063 = vadd.f32 %v6995, %v7034
    %v7064 = vadd.f32 %v6996, %v7034
    %v7065 = vadd.f32 %v6997, %v7034
    %v7066 = vadd.f32 %v6998, %v7034
    %v7067 = vadd.f32 %v6999, %v7034
    %v7068 = vadd.f32 %v7000, %v7034
    %v7069 = vadd.f32 %v7001, %v7034
    %v7070 = vadd.f32 %v7002, %v7034
    %v7071 = vadd.f32 %v7003, %v7034
    %v7072 = vadd.f32 %v7004, %v7034
    %v7073 = vadd.f32 %v7005, %v7034
    %v7074 = vadd.f32 %v7006, %v7034
    %v7075 = vadd.f32 %v7007, %v7034
    %v7076 = vadd.f32 %v7008, %v7034
    %v7077 = vadd.f32 %v7009, %v7034
    %v7078 = vadd.f32 %v7010, %v7034
    %v7079 = vadd.f32 %v7011, %v7034
    %v7080 = vadd.f32 %v7012, %v7034
    %v7081 = vadd.f32 %v7013, %v7034
    %v7082 = vadd.f32 %v7014, %v7034
    %v7083 = vadd.f32 %v7015, %v7034
    %v7084 = vadd.f32 %v7016, %v7034
    %v7085 = vadd.f32 %v7017, %v7034
    %v7086 = vadd.f32 %v7018, %v7034
    %v7087 = vadd.f32 %v7019, %v7034
    %v7088 = vadd.f32 %v7020, %v7034
    %v7089 = vadd.f32 %v7021, %v7034
    %v7090 = vadd.f32 %v7022, %v7034
    %v7091 = vadd.f32 %v7023, %v7034
    %v7092 = vadd.f32 %v7024, %v7034
    %v7093 = vadd.f32 %v7025, %v7034
    %v7094 = vadd.f32 %v7026, %v7034
    %v7095 = vadd.f32 %v7027, %v7034
    %v7096 = vadd.f32 %v7028, %v7034
    %v7097 = vadd.f32 %v7029, %v7034
    %v7098 = vadd.f32 %v7030, %v7034
    %v7099 = vadd.f32 %v7031, %v7034
    %v7100 = vmax.f32 %v7036, 0.0
    %v7101 = vmax.f32 %v7037, 0.0
    %v7102 = vmax.f32 %v7038, 0.0
    %v7103 = vmax.f32 %v7039, 0.0
    %v7104 = vmax.f32 %v7040, 0.0
    %v7105 = vmax.f32 %v7041, 0.0
    %v7106 = vmax.f32 %v7042, 0.0
    %v7107 = vmax.f32 %v7043, 0.0
    %v7108 = vmax.f32 %v7044, 0.0
    %v7109 = vmax.f32 %v7045, 0.0
    %v7110 = vmax.f32 %v7046, 0.0
    %v7111 = vmax.f32 %v7047, 0.0
    %v7112 = vmax.f32 %v7048, 0.0
    %v7113 = vmax.f32 %v7049, 0.0
    %v7114 = vmax.f32 %v7050, 0.0
    %v7115 = vmax.f32 %v7051, 0.0
    %v7116 = vmax.f32 %v7052, 0.0
    %v7117 = vmax.f32 %v7053, 0.0
    %v7118 = vmax.f32 %v7054, 0.0
    %v7119 = vmax.f32 %v7055, 0.0
    %v7120 = vmax.f32 %v7056, 0.0
    %v7121 = vmax.f32 %v7057, 0.0
    %v7122 = vmax.f32 %v7058, 0.0
    %v7123 = vmax.f32 %v7059, 0.0
    %v7124 = vmax.f32 %v7060, 0.0
    %v7125 = vmax.f32 %v7061, 0.0
    %v7126 = vmax.f32 %v7062, 0.0
    %v7127 = vmax.f32 %v7063, 0.0
    %v7128 = vmax.f32 %v7064, 0.0
    %v7129 = vmax.f32 %v7065, 0.0
    %v7130 = vmax.f32 %v7066, 0.0
    %v7131 = vmax.f32 %v7067, 0.0
    %v7132 = vmax.f32 %v7068, 0.0
    %v7133 = vmax.f32 %v7069, 0.0
    %v7134 = vmax.f32 %v7070, 0.0
    %v7135 = vmax.f32 %v7071, 0.0
    %v7136 = vmax.f32 %v7072, 0.0
    %v7137 = vmax.f32 %v7073, 0.0
    %v7138 = vmax.f32 %v7074, 0.0
    %v7139 = vmax.f32 %v7075, 0.0
    %v7140 = vmax.f32 %v7076, 0.0
    %v7141 = vmax.f32 %v7077, 0.0
    %v7142 = vmax.f32 %v7078, 0.0
    %v7143 = vmax.f32 %v7079, 0.0
    %v7144 = vmax.f32 %v7080, 0.0
    %v7145 = vmax.f32 %v7081, 0.0
    %v7146 = vmax.f32 %v7082, 0.0
    %v7147 = vmax.f32 %v7083, 0.0
    %v7148 = vmax.f32 %v7084, 0.0
    %v7149 = vmax.f32 %v7085, 0.0
    %v7150 = vmax.f32 %v7086, 0.0
    %v7151 = vmax.f32 %v7087, 0.0
    %v7152 = vmax.f32 %v7088, 0.0
    %v7153 = vmax.f32 %v7089, 0.0
    %v7154 = vmax.f32 %v7090, 0.0
    %v7155 = vmax.f32 %v7091, 0.0
    %v7156 = vmax.f32 %v7092, 0.0
    %v7157 = vmax.f32 %v7093, 0.0
    %v7158 = vmax.f32 %v7094, 0.0
    %v7159 = vmax.f32 %v7095, 0.0
    %v7160 = vmax.f32 %v7096, 0.0
    %v7161 = vmax.f32 %v7097, 0.0
    %v7162 = vmax.f32 %v7098, 0.0
    %v7163 = vmax.f32 %v7099, 0.0
    %7164 = vst.msk [vmem:[%s2750 + $0x1] sm:$0xff] %vm1389, %v7100
    %7165 = vst.msk [vmem:[%s2750 + $0x9] sm:$0xff] %vm1389, %v7101
    %7166 = vst.msk [vmem:[%s2750 + $0x19] sm:$0xff] %vm1389, %v7102
    %7167 = vst.msk [vmem:[%s2750 + $0x21] sm:$0xff] %vm1389, %v7103
    %7168 = vst.msk [vmem:[%s2750 + $0x31] sm:$0xff] %vm1389, %v7104
    %7169 = vst.msk [vmem:[%s2750 + $0x39] sm:$0xff] %vm1389, %v7105
    %7170 = vst.msk [vmem:[%s2750 + $0x49] sm:$0xff] %vm1389, %v7106
    %7171 = vst.msk [vmem:[%s2750 + $0x51] sm:$0xff] %vm1389, %v7107
    %7172 = vst.msk [vmem:[%s2750 + $0x61] sm:$0xff] %vm1389, %v7108
    %7173 = vst.msk [vmem:[%s2750 + $0x69] sm:$0xff] %vm1389, %v7109
    %7174 = vst.msk [vmem:[%s2750 + $0x79] sm:$0xff] %vm1389, %v7110
    %7175 = vst.msk [vmem:[%s2750 + $0x81] sm:$0xff] %vm1389, %v7111
    %7176 = vst.msk [vmem:[%s2750 + $0x91] sm:$0xff] %vm1389, %v7112
    %7177 = vst.msk [vmem:[%s2750 + $0x99] sm:$0xff] %vm1389, %v7113
    %7178 = vst.msk [vmem:[%s2750 + $0xa9] sm:$0xff] %vm1389, %v7114
    %7179 = vst.msk [vmem:[%s2750 + $0xb1] sm:$0xff] %vm1389, %v7115
    %7180 = vst.msk [vmem:[%s2750 + $0xc1] sm:$0xff] %vm1389, %v7116
    %7181 = vst.msk [vmem:[%s2750 + $0xc9] sm:$0xff] %vm1389, %v7117
    %7182 = vst.msk [vmem:[%s2750 + $0xd9] sm:$0xff] %vm1389, %v7118
    %7183 = vst.msk [vmem:[%s2750 + $0xe1] sm:$0xff] %vm1389, %v7119
    %7184 = vst.msk [vmem:[%s2750 + $0xf1] sm:$0xff] %vm1389, %v7120
    %7185 = vst.msk [vmem:[%s2750 + $0xf9] sm:$0xff] %vm1389, %v7121
    %7186 = vst.msk [vmem:[%s2750 + $0x109] sm:$0xff] %vm1389, %v7122
    %7187 = vst.msk [vmem:[%s2750 + $0x111] sm:$0xff] %vm1389, %v7123
    %7188 = vst.msk [vmem:[%s2750 + $0x121] sm:$0xff] %vm1389, %v7124
    %7189 = vst.msk [vmem:[%s2750 + $0x129] sm:$0xff] %vm1389, %v7125
    %7190 = vst.msk [vmem:[%s2750 + $0x139] sm:$0xff] %vm1389, %v7126
    %7191 = vst.msk [vmem:[%s2750 + $0x141] sm:$0xff] %vm1389, %v7127
    %7192 = vst.msk [vmem:[%s2750 + $0x151] sm:$0xff] %vm1389, %v7128
    %7193 = vst.msk [vmem:[%s2750 + $0x159] sm:$0xff] %vm1389, %v7129
    %7194 = vst.msk [vmem:[%s2750 + $0x169] sm:$0xff] %vm1389, %v7130
    %7195 = vst.msk [vmem:[%s2750 + $0x171] sm:$0xff] %vm1389, %v7131
    %7196 = vst.msk [vmem:[%s2750 + $0x1b1] sm:$0xff] %vm1389, %v7132
    %7197 = vst.msk [vmem:[%s2750 + $0x1b9] sm:$0xff] %vm1389, %v7133
    %7198 = vst.msk [vmem:[%s2750 + $0x1c9] sm:$0xff] %vm1389, %v7134
    %7199 = vst.msk [vmem:[%s2750 + $0x1d1] sm:$0xff] %vm1389, %v7135
    %7200 = vst.msk [vmem:[%s2750 + $0x1e1] sm:$0xff] %vm1389, %v7136
    %7201 = vst.msk [vmem:[%s2750 + $0x1e9] sm:$0xff] %vm1389, %v7137
    %7202 = vst.msk [vmem:[%s2750 + $0x1f9] sm:$0xff] %vm1389, %v7138
    %7203 = vst.msk [vmem:[%s2750 + $0x201] sm:$0xff] %vm1389, %v7139
    %7204 = vst.msk [vmem:[%s2750 + $0x211] sm:$0xff] %vm1389, %v7140
    %7205 = vst.msk [vmem:[%s2750 + $0x219] sm:$0xff] %vm1389, %v7141
    %7206 = vst.msk [vmem:[%s2750 + $0x229] sm:$0xff] %vm1389, %v7142
    %7207 = vst.msk [vmem:[%s2750 + $0x231] sm:$0xff] %vm1389, %v7143
    %7208 = vst.msk [vmem:[%s2750 + $0x241] sm:$0xff] %vm1389, %v7144
    %7209 = vst.msk [vmem:[%s2750 + $0x249] sm:$0xff] %vm1389, %v7145
    %7210 = vst.msk [vmem:[%s2750 + $0x259] sm:$0xff] %vm1389, %v7146
    %7211 = vst.msk [vmem:[%s2750 + $0x261] sm:$0xff] %vm1389, %v7147
    %7212 = vst.msk [vmem:[%s2750 + $0x271] sm:$0xff] %vm1389, %v7148
    %7213 = vst.msk [vmem:[%s2750 + $0x279] sm:$0xff] %vm1389, %v7149
    %7214 = vst.msk [vmem:[%s2750 + $0x289] sm:$0xff] %vm1389, %v7150
    %7215 = vst.msk [vmem:[%s2750 + $0x291] sm:$0xff] %vm1389, %v7151
    %7216 = vst.msk [vmem:[%s2750 + $0x2a1] sm:$0xff] %vm1389, %v7152
    %7217 = vst.msk [vmem:[%s2750 + $0x2a9] sm:$0xff] %vm1389, %v7153
    %7218 = vst.msk [vmem:[%s2750 + $0x2b9] sm:$0xff] %vm1389, %v7154
    %7219 = vst.msk [vmem:[%s2750 + $0x2c1] sm:$0xff] %vm1389, %v7155
    %7220 = vst.msk [vmem:[%s2750 + $0x2d1] sm:$0xff] %vm1389, %v7156
    %7221 = vst.msk [vmem:[%s2750 + $0x2d9] sm:$0xff] %vm1389, %v7157
    %7222 = vst.msk [vmem:[%s2750 + $0x2e9] sm:$0xff] %vm1389, %v7158
    %7223 = vst.msk [vmem:[%s2750 + $0x2f1] sm:$0xff] %vm1389, %v7159
    %7224 = vst.msk [vmem:[%s2750 + $0x301] sm:$0xff] %vm1389, %v7160
    %7225 = vst.msk [vmem:[%s2750 + $0x309] sm:$0xff] %vm1389, %v7161
    %7226 = vst.msk [vmem:[%s2750 + $0x319] sm:$0xff] %vm1389, %v7162
    %7227 = vst.msk [vmem:[%s2750 + $0x321] sm:$0xff] %vm1389, %v7163
    %vm7228 = vcmask 130112
    %7229 = vst.msk [vmem:[%s2750 + $0x1] sm:$0xff] %vm7228, %v2277
    %7230 = vst.msk [vmem:[%s2750 + $0x9] sm:$0xff] %vm7228, %v2278
    %7231 = vst.msk [vmem:[%s2750 + $0x19] sm:$0xff] %vm7228, %v2279
    %7232 = vst.msk [vmem:[%s2750 + $0x21] sm:$0xff] %vm7228, %v2280
    %7233 = vst.msk [vmem:[%s2750 + $0x31] sm:$0xff] %vm7228, %v2281
    %7234 = vst.msk [vmem:[%s2750 + $0x39] sm:$0xff] %vm7228, %v2282
    %7235 = vst.msk [vmem:[%s2750 + $0x49] sm:$0xff] %vm7228, %v2283
    %7236 = vst.msk [vmem:[%s2750 + $0x51] sm:$0xff] %vm7228, %v2284
    %7237 = vst.msk [vmem:[%s2750 + $0x61] sm:$0xff] %vm7228, %v2285
    %7238 = vst.msk [vmem:[%s2750 + $0x69] sm:$0xff] %vm7228, %v2286
    %7239 = vst.msk [vmem:[%s2750 + $0x79] sm:$0xff] %vm7228, %v2287
    %7240 = vst.msk [vmem:[%s2750 + $0x81] sm:$0xff] %vm7228, %v2288
    %7241 = vst.msk [vmem:[%s2750 + $0x91] sm:$0xff] %vm7228, %v2289
    %7242 = vst.msk [vmem:[%s2750 + $0x99] sm:$0xff] %vm7228, %v2290
    %7243 = vst.msk [vmem:[%s2750 + $0xa9] sm:$0xff] %vm7228, %v2291
    %7244 = vst.msk [vmem:[%s2750 + $0xb1] sm:$0xff] %vm7228, %v2292
    %7245 = vst.msk [vmem:[%s2750 + $0xc1] sm:$0xff] %vm7228, %v2293
    %7246 = vst.msk [vmem:[%s2750 + $0xc9] sm:$0xff] %vm7228, %v2294
    %7247 = vst.msk [vmem:[%s2750 + $0xd9] sm:$0xff] %vm7228, %v2295
    %7248 = vst.msk [vmem:[%s2750 + $0xe1] sm:$0xff] %vm7228, %v2296
    %7249 = vst.msk [vmem:[%s2750 + $0xf1] sm:$0xff] %vm7228, %v2297
    %7250 = vst.msk [vmem:[%s2750 + $0xf9] sm:$0xff] %vm7228, %v2298
    %7251 = vst.msk [vmem:[%s2750 + $0x109] sm:$0xff] %vm7228, %v2299
    %7252 = vst.msk [vmem:[%s2750 + $0x111] sm:$0xff] %vm7228, %v2300
    %7253 = vst.msk [vmem:[%s2750 + $0x121] sm:$0xff] %vm7228, %v2301
    %7254 = vst.msk [vmem:[%s2750 + $0x129] sm:$0xff] %vm7228, %v2302
    %7255 = vst.msk [vmem:[%s2750 + $0x139] sm:$0xff] %vm7228, %v2303
    %7256 = vst.msk [vmem:[%s2750 + $0x141] sm:$0xff] %vm7228, %v2304
    %7257 = vst.msk [vmem:[%s2750 + $0x151] sm:$0xff] %vm7228, %v2305
    %7258 = vst.msk [vmem:[%s2750 + $0x159] sm:$0xff] %vm7228, %v2306
    %7259 = vst.msk [vmem:[%s2750 + $0x169] sm:$0xff] %vm7228, %v2307
    %7260 = vst.msk [vmem:[%s2750 + $0x171] sm:$0xff] %vm7228, %v2308
    %7261 = vst.msk [vmem:[%s2750 + $0x1b1] sm:$0xff] %vm7228, %v2309
    %7262 = vst.msk [vmem:[%s2750 + $0x1b9] sm:$0xff] %vm7228, %v2310
    %7263 = vst.msk [vmem:[%s2750 + $0x1c9] sm:$0xff] %vm7228, %v2311
    %7264 = vst.msk [vmem:[%s2750 + $0x1d1] sm:$0xff] %vm7228, %v2312
    %7265 = vst.msk [vmem:[%s2750 + $0x1e1] sm:$0xff] %vm7228, %v2313
    %7266 = vst.msk [vmem:[%s2750 + $0x1e9] sm:$0xff] %vm7228, %v2314
    %7267 = vst.msk [vmem:[%s2750 + $0x1f9] sm:$0xff] %vm7228, %v2315
    %7268 = vst.msk [vmem:[%s2750 + $0x201] sm:$0xff] %vm7228, %v2316
    %7269 = vst.msk [vmem:[%s2750 + $0x211] sm:$0xff] %vm7228, %v2317
    %7270 = vst.msk [vmem:[%s2750 + $0x219] sm:$0xff] %vm7228, %v2318
    %7271 = vst.msk [vmem:[%s2750 + $0x229] sm:$0xff] %vm7228, %v2319
    %7272 = vst.msk [vmem:[%s2750 + $0x231] sm:$0xff] %vm7228, %v2320
    %7273 = vst.msk [vmem:[%s2750 + $0x241] sm:$0xff] %vm7228, %v2321
    %7274 = vst.msk [vmem:[%s2750 + $0x249] sm:$0xff] %vm7228, %v2322
    %7275 = vst.msk [vmem:[%s2750 + $0x259] sm:$0xff] %vm7228, %v2323
    %7276 = vst.msk [vmem:[%s2750 + $0x261] sm:$0xff] %vm7228, %v2324
    %7277 = vst.msk [vmem:[%s2750 + $0x271] sm:$0xff] %vm7228, %v2325
    %7278 = vst.msk [vmem:[%s2750 + $0x279] sm:$0xff] %vm7228, %v2326
    %7279 = vst.msk [vmem:[%s2750 + $0x289] sm:$0xff] %vm7228, %v2327
    %7280 = vst.msk [vmem:[%s2750 + $0x291] sm:$0xff] %vm7228, %v2328
    %7281 = vst.msk [vmem:[%s2750 + $0x2a1] sm:$0xff] %vm7228, %v2329
    %7282 = vst.msk [vmem:[%s2750 + $0x2a9] sm:$0xff] %vm7228, %v2330
    %7283 = vst.msk [vmem:[%s2750 + $0x2b9] sm:$0xff] %vm7228, %v2331
    %7284 = vst.msk [vmem:[%s2750 + $0x2c1] sm:$0xff] %vm7228, %v2332
    %7285 = vst.msk [vmem:[%s2750 + $0x2d1] sm:$0xff] %vm7228, %v2333
    %7286 = vst.msk [vmem:[%s2750 + $0x2d9] sm:$0xff] %vm7228, %v2334
    %7287 = vst.msk [vmem:[%s2750 + $0x2e9] sm:$0xff] %vm7228, %v2335
    %7288 = vst.msk [vmem:[%s2750 + $0x2f1] sm:$0xff] %vm7228, %v2336
    %7289 = vst.msk [vmem:[%s2750 + $0x301] sm:$0xff] %vm7228, %v2337
    %7290 = vst.msk [vmem:[%s2750 + $0x309] sm:$0xff] %vm7228, %v2338
    %7291 = vst.msk [vmem:[%s2750 + $0x319] sm:$0xff] %vm7228, %v2339
    %7292 = vst.msk [vmem:[%s2750 + $0x321] sm:$0xff] %vm7228, %v2340
    %v7293 = vld [vmem:[#allocation2] sm:$0xff]
    %v7294 = vld [vmem:[#allocation2 + $0x8] sm:$0xff]
    %v7295 = vld [vmem:[#allocation2 + $0x18] sm:$0xff]
    %v7296 = vld [vmem:[#allocation2 + $0x20] sm:$0xff]
    %v7297 = vld [vmem:[#allocation2 + $0x30] sm:$0xff]
    %v7298 = vld [vmem:[#allocation2 + $0x38] sm:$0xff]
    %v7299 = vld [vmem:[#allocation2 + $0x48] sm:$0xff]
    %v7300 = vld [vmem:[#allocation2 + $0x50] sm:$0xff]
    %v7301 = vld [vmem:[#allocation2 + $0x60] sm:$0xff]
    %v7302 = vld [vmem:[#allocation2 + $0x68] sm:$0xff]
    %v7303 = vld [vmem:[#allocation2 + $0x78] sm:$0xff]
    %v7304 = vld [vmem:[#allocation2 + $0x80] sm:$0xff]
    %v7305 = vld [vmem:[#allocation2 + $0x90] sm:$0xff]
    %v7306 = vld [vmem:[#allocation2 + $0x98] sm:$0xff]
    %v7307 = vld [vmem:[#allocation2 + $0xa8] sm:$0xff]
    %v7308 = vld [vmem:[#allocation2 + $0xb0] sm:$0xff]
    %v7309 = vld [vmem:[#allocation2 + $0xc0] sm:$0xff]
    %v7310 = vld [vmem:[#allocation2 + $0xc8] sm:$0xff]
    %v7311 = vld [vmem:[#allocation2 + $0xd8] sm:$0xff]
    %v7312 = vld [vmem:[#allocation2 + $0xe0] sm:$0xff]
    %v7313 = vld [vmem:[#allocation2 + $0xf0] sm:$0xff]
    %v7314 = vld [vmem:[#allocation2 + $0xf8] sm:$0xff]
    %v7315 = vld [vmem:[#allocation2 + $0x108] sm:$0xff]
    %v7316 = vld [vmem:[#allocation2 + $0x110] sm:$0xff]
    %v7317 = vld [vmem:[#allocation2 + $0x120] sm:$0xff]
    %v7318 = vld [vmem:[#allocation2 + $0x128] sm:$0xff]
    %v7319 = vld [vmem:[#allocation2 + $0x138] sm:$0xff]
    %v7320 = vld [vmem:[#allocation2 + $0x140] sm:$0xff]
    %v7321 = vld [vmem:[#allocation2 + $0x150] sm:$0xff]
    %v7322 = vld [vmem:[#allocation2 + $0x158] sm:$0xff]
    %v7323 = vld [vmem:[#allocation2 + $0x168] sm:$0xff]
    %v7324 = vld [vmem:[#allocation2 + $0x170] sm:$0xff]
    %v7325 = vld [vmem:[#allocation2 + $0x1b0] sm:$0xff]
    %v7326 = vld [vmem:[#allocation2 + $0x1b8] sm:$0xff]
    %v7327 = vld [vmem:[#allocation2 + $0x1c8] sm:$0xff]
    %v7328 = vld [vmem:[#allocation2 + $0x1d0] sm:$0xff]
    %v7329 = vld [vmem:[#allocation2 + $0x1e0] sm:$0xff]
    %v7330 = vld [vmem:[#allocation2 + $0x1e8] sm:$0xff]
    %v7331 = vld [vmem:[#allocation2 + $0x1f8] sm:$0xff]
    %v7332 = vld [vmem:[#allocation2 + $0x200] sm:$0xff]
    %v7333 = vld [vmem:[#allocation2 + $0x210] sm:$0xff]
    %v7334 = vld [vmem:[#allocation2 + $0x218] sm:$0xff]
    %v7335 = vld [vmem:[#allocation2 + $0x228] sm:$0xff]
    %v7336 = vld [vmem:[#allocation2 + $0x230] sm:$0xff]
    %v7337 = vld [vmem:[#allocation2 + $0x240] sm:$0xff]
    %v7338 = vld [vmem:[#allocation2 + $0x248] sm:$0xff]
    %v7339 = vld [vmem:[#allocation2 + $0x258] sm:$0xff]
    %v7340 = vld [vmem:[#allocation2 + $0x260] sm:$0xff]
    %v7341 = vld [vmem:[#allocation2 + $0x270] sm:$0xff]
    %v7342 = vld [vmem:[#allocation2 + $0x278] sm:$0xff]
    %v7343 = vld [vmem:[#allocation2 + $0x288] sm:$0xff]
    %v7344 = vld [vmem:[#allocation2 + $0x290] sm:$0xff]
    %v7345 = vld [vmem:[#allocation2 + $0x2a0] sm:$0xff]
    %v7346 = vld [vmem:[#allocation2 + $0x2a8] sm:$0xff]
    %v7347 = vld [vmem:[#allocation2 + $0x2b8] sm:$0xff]
    %v7348 = vld [vmem:[#allocation2 + $0x2c0] sm:$0xff]
    %v7349 = vld [vmem:[#allocation2 + $0x2d0] sm:$0xff]
    %v7350 = vld [vmem:[#allocation2 + $0x2d8] sm:$0xff]
    %v7351 = vld [vmem:[#allocation2 + $0x2e8] sm:$0xff]
    %v7352 = vld [vmem:[#allocation2 + $0x2f0] sm:$0xff]
    %v7353 = vld [vmem:[#allocation2 + $0x300] sm:$0xff]
    %v7354 = vld [vmem:[#allocation2 + $0x308] sm:$0xff]
    %v7355 = vld [vmem:[#allocation2 + $0x318] sm:$0xff]
    %v7356 = vld [vmem:[#allocation2 + $0x320] sm:$0xff]
    %v7357 = vld [vmem:[#allocation2 + $0x1] sm:$0xff]
    %v7358 = vld [vmem:[#allocation2 + $0x9] sm:$0xff]
    %v7359 = vld [vmem:[#allocation2 + $0x19] sm:$0xff]
    %v7360 = vld [vmem:[#allocation2 + $0x21] sm:$0xff]
    %v7361 = vld [vmem:[#allocation2 + $0x31] sm:$0xff]
    %v7362 = vld [vmem:[#allocation2 + $0x39] sm:$0xff]
    %v7363 = vld [vmem:[#allocation2 + $0x49] sm:$0xff]
    %v7364 = vld [vmem:[#allocation2 + $0x51] sm:$0xff]
    %v7365 = vld [vmem:[#allocation2 + $0x61] sm:$0xff]
    %v7366 = vld [vmem:[#allocation2 + $0x69] sm:$0xff]
    %v7367 = vld [vmem:[#allocation2 + $0x79] sm:$0xff]
    %v7368 = vld [vmem:[#allocation2 + $0x81] sm:$0xff]
    %v7369 = vld [vmem:[#allocation2 + $0x91] sm:$0xff]
    %v7370 = vld [vmem:[#allocation2 + $0x99] sm:$0xff]
    %v7371 = vld [vmem:[#allocation2 + $0xa9] sm:$0xff]
    %v7372 = vld [vmem:[#allocation2 + $0xb1] sm:$0xff]
    %v7373 = vld [vmem:[#allocation2 + $0xc1] sm:$0xff]
    %v7374 = vld [vmem:[#allocation2 + $0xc9] sm:$0xff]
    %v7375 = vld [vmem:[#allocation2 + $0xd9] sm:$0xff]
    %v7376 = vld [vmem:[#allocation2 + $0xe1] sm:$0xff]
    %v7377 = vld [vmem:[#allocation2 + $0xf1] sm:$0xff]
    %v7378 = vld [vmem:[#allocation2 + $0xf9] sm:$0xff]
    %v7379 = vld [vmem:[#allocation2 + $0x109] sm:$0xff]
    %v7380 = vld [vmem:[#allocation2 + $0x111] sm:$0xff]
    %v7381 = vld [vmem:[#allocation2 + $0x121] sm:$0xff]
    %v7382 = vld [vmem:[#allocation2 + $0x129] sm:$0xff]
    %v7383 = vld [vmem:[#allocation2 + $0x139] sm:$0xff]
    %v7384 = vld [vmem:[#allocation2 + $0x141] sm:$0xff]
    %v7385 = vld [vmem:[#allocation2 + $0x151] sm:$0xff]
    %v7386 = vld [vmem:[#allocation2 + $0x159] sm:$0xff]
    %v7387 = vld [vmem:[#allocation2 + $0x169] sm:$0xff]
    %v7388 = vld [vmem:[#allocation2 + $0x171] sm:$0xff]
    %v7389 = vld [vmem:[#allocation2 + $0x1b1] sm:$0xff]
    %v7390 = vld [vmem:[#allocation2 + $0x1b9] sm:$0xff]
    %v7391 = vld [vmem:[#allocation2 + $0x1c9] sm:$0xff]
    %v7392 = vld [vmem:[#allocation2 + $0x1d1] sm:$0xff]
    %v7393 = vld [vmem:[#allocation2 + $0x1e1] sm:$0xff]
    %v7394 = vld [vmem:[#allocation2 + $0x1e9] sm:$0xff]
    %v7395 = vld [vmem:[#allocation2 + $0x1f9] sm:$0xff]
    %v7396 = vld [vmem:[#allocation2 + $0x201] sm:$0xff]
    %v7397 = vld [vmem:[#allocation2 + $0x211] sm:$0xff]
    %v7398 = vld [vmem:[#allocation2 + $0x219] sm:$0xff]
    %v7399 = vld [vmem:[#allocation2 + $0x229] sm:$0xff]
    %v7400 = vld [vmem:[#allocation2 + $0x231] sm:$0xff]
    %v7401 = vld [vmem:[#allocation2 + $0x241] sm:$0xff]
    %v7402 = vld [vmem:[#allocation2 + $0x249] sm:$0xff]
    %v7403 = vld [vmem:[#allocation2 + $0x259] sm:$0xff]
    %v7404 = vld [vmem:[#allocation2 + $0x261] sm:$0xff]
    %v7405 = vld [vmem:[#allocation2 + $0x271] sm:$0xff]
    %v7406 = vld [vmem:[#allocation2 + $0x279] sm:$0xff]
    %v7407 = vld [vmem:[#allocation2 + $0x289] sm:$0xff]
    %v7408 = vld [vmem:[#allocation2 + $0x291] sm:$0xff]
    %v7409 = vld [vmem:[#allocation2 + $0x2a1] sm:$0xff]
    %v7410 = vld [vmem:[#allocation2 + $0x2a9] sm:$0xff]
    %v7411 = vld [vmem:[#allocation2 + $0x2b9] sm:$0xff]
    %v7412 = vld [vmem:[#allocation2 + $0x2c1] sm:$0xff]
    %v7413 = vld [vmem:[#allocation2 + $0x2d1] sm:$0xff]
    %v7414 = vld [vmem:[#allocation2 + $0x2d9] sm:$0xff]
    %v7415 = vld [vmem:[#allocation2 + $0x2e9] sm:$0xff]
    %v7416 = vld [vmem:[#allocation2 + $0x2f1] sm:$0xff]
    %v7417 = vld [vmem:[#allocation2 + $0x301] sm:$0xff]
    %v7418 = vld [vmem:[#allocation2 + $0x309] sm:$0xff]
    %v7419 = vld [vmem:[#allocation2 + $0x319] sm:$0xff]
    %v7420 = vld [vmem:[#allocation2 + $0x321] sm:$0xff]
    %v7421 = vld [vmem:[#allocation2 + $0x2] sm:$0xff]
    %v7422 = vld [vmem:[#allocation2 + $0xa] sm:$0xff]
    %v7423 = vld [vmem:[#allocation2 + $0x1a] sm:$0xff]
    %v7424 = vld [vmem:[#allocation2 + $0x22] sm:$0xff]
    %v7425 = vld [vmem:[#allocation2 + $0x32] sm:$0xff]
    %v7426 = vld [vmem:[#allocation2 + $0x3a] sm:$0xff]
    %v7427 = vld [vmem:[#allocation2 + $0x4a] sm:$0xff]
    %v7428 = vld [vmem:[#allocation2 + $0x52] sm:$0xff]
    %v7429 = vld [vmem:[#allocation2 + $0x62] sm:$0xff]
    %v7430 = vld [vmem:[#allocation2 + $0x6a] sm:$0xff]
    %v7431 = vld [vmem:[#allocation2 + $0x7a] sm:$0xff]
    %v7432 = vld [vmem:[#allocation2 + $0x82] sm:$0xff]
    %v7433 = vld [vmem:[#allocation2 + $0x92] sm:$0xff]
    %v7434 = vld [vmem:[#allocation2 + $0x9a] sm:$0xff]
    %v7435 = vld [vmem:[#allocation2 + $0xaa] sm:$0xff]
    %v7436 = vld [vmem:[#allocation2 + $0xb2] sm:$0xff]
    %v7437 = vld [vmem:[#allocation2 + $0xc2] sm:$0xff]
    %v7438 = vld [vmem:[#allocation2 + $0xca] sm:$0xff]
    %v7439 = vld [vmem:[#allocation2 + $0xda] sm:$0xff]
    %v7440 = vld [vmem:[#allocation2 + $0xe2] sm:$0xff]
    %v7441 = vld [vmem:[#allocation2 + $0xf2] sm:$0xff]
    %v7442 = vld [vmem:[#allocation2 + $0xfa] sm:$0xff]
    %v7443 = vld [vmem:[#allocation2 + $0x10a] sm:$0xff]
    %v7444 = vld [vmem:[#allocation2 + $0x112] sm:$0xff]
    %v7445 = vld [vmem:[#allocation2 + $0x122] sm:$0xff]
    %v7446 = vld [vmem:[#allocation2 + $0x12a] sm:$0xff]
    %v7447 = vld [vmem:[#allocation2 + $0x13a] sm:$0xff]
    %v7448 = vld [vmem:[#allocation2 + $0x142] sm:$0xff]
    %v7449 = vld [vmem:[#allocation2 + $0x152] sm:$0xff]
    %v7450 = vld [vmem:[#allocation2 + $0x15a] sm:$0xff]
    %v7451 = vld [vmem:[#allocation2 + $0x16a] sm:$0xff]
    %v7452 = vld [vmem:[#allocation2 + $0x172] sm:$0xff]
    %v7453 = vld [vmem:[#allocation2 + $0x1b2] sm:$0xff]
    %v7454 = vld [vmem:[#allocation2 + $0x1ba] sm:$0xff]
    %v7455 = vld [vmem:[#allocation2 + $0x1ca] sm:$0xff]
    %v7456 = vld [vmem:[#allocation2 + $0x1d2] sm:$0xff]
    %v7457 = vld [vmem:[#allocation2 + $0x1e2] sm:$0xff]
    %v7458 = vld [vmem:[#allocation2 + $0x1ea] sm:$0xff]
    %v7459 = vld [vmem:[#allocation2 + $0x1fa] sm:$0xff]
    %v7460 = vld [vmem:[#allocation2 + $0x202] sm:$0xff]
    %v7461 = vld [vmem:[#allocation2 + $0x212] sm:$0xff]
    %v7462 = vld [vmem:[#allocation2 + $0x21a] sm:$0xff]
    %v7463 = vld [vmem:[#allocation2 + $0x22a] sm:$0xff]
    %v7464 = vld [vmem:[#allocation2 + $0x232] sm:$0xff]
    %v7465 = vld [vmem:[#allocation2 + $0x242] sm:$0xff]
    %v7466 = vld [vmem:[#allocation2 + $0x24a] sm:$0xff]
    %v7467 = vld [vmem:[#allocation2 + $0x25a] sm:$0xff]
    %v7468 = vld [vmem:[#allocation2 + $0x262] sm:$0xff]
    %v7469 = vld [vmem:[#allocation2 + $0x272] sm:$0xff]
    %v7470 = vld [vmem:[#allocation2 + $0x27a] sm:$0xff]
    %v7471 = vld [vmem:[#allocation2 + $0x28a] sm:$0xff]
    %v7472 = vld [vmem:[#allocation2 + $0x292] sm:$0xff]
    %v7473 = vld [vmem:[#allocation2 + $0x2a2] sm:$0xff]
    %v7474 = vld [vmem:[#allocation2 + $0x2aa] sm:$0xff]
    %v7475 = vld [vmem:[#allocation2 + $0x2ba] sm:$0xff]
    %v7476 = vld [vmem:[#allocation2 + $0x2c2] sm:$0xff]
    %v7477 = vld [vmem:[#allocation2 + $0x2d2] sm:$0xff]
    %v7478 = vld [vmem:[#allocation2 + $0x2da] sm:$0xff]
    %v7479 = vld [vmem:[#allocation2 + $0x2ea] sm:$0xff]
    %v7480 = vld [vmem:[#allocation2 + $0x2f2] sm:$0xff]
    %v7481 = vld [vmem:[#allocation2 + $0x302] sm:$0xff]
    %v7482 = vld [vmem:[#allocation2 + $0x30a] sm:$0xff]
    %v7483 = vld [vmem:[#allocation2 + $0x31a] sm:$0xff]
    %v7484 = vld [vmem:[#allocation2 + $0x322] sm:$0xff]
    %v7485 = vld [vmem:[%s2750] sm:$0xff]
    %v7486 = vld [vmem:[%s2750 + $0x8] sm:$0xff]
    %v7487 = vld [vmem:[%s2750 + $0x18] sm:$0xff]
    %v7488 = vld [vmem:[%s2750 + $0x20] sm:$0xff]
    %v7489 = vld [vmem:[%s2750 + $0x30] sm:$0xff]
    %v7490 = vld [vmem:[%s2750 + $0x38] sm:$0xff]
    %v7491 = vld [vmem:[%s2750 + $0x48] sm:$0xff]
    %v7492 = vld [vmem:[%s2750 + $0x50] sm:$0xff]
    %v7493 = vld [vmem:[%s2750 + $0x60] sm:$0xff]
    %v7494 = vld [vmem:[%s2750 + $0x68] sm:$0xff]
    %v7495 = vld [vmem:[%s2750 + $0x78] sm:$0xff]
    %v7496 = vld [vmem:[%s2750 + $0x80] sm:$0xff]
    %v7497 = vld [vmem:[%s2750 + $0x90] sm:$0xff]
    %v7498 = vld [vmem:[%s2750 + $0x98] sm:$0xff]
    %v7499 = vld [vmem:[%s2750 + $0xa8] sm:$0xff]
    %v7500 = vld [vmem:[%s2750 + $0xb0] sm:$0xff]
    %v7501 = vld [vmem:[%s2750 + $0xc0] sm:$0xff]
    %v7502 = vld [vmem:[%s2750 + $0xc8] sm:$0xff]
    %v7503 = vld [vmem:[%s2750 + $0xd8] sm:$0xff]
    %v7504 = vld [vmem:[%s2750 + $0xe0] sm:$0xff]
    %v7505 = vld [vmem:[%s2750 + $0xf0] sm:$0xff]
    %v7506 = vld [vmem:[%s2750 + $0xf8] sm:$0xff]
    %v7507 = vld [vmem:[%s2750 + $0x108] sm:$0xff]
    %v7508 = vld [vmem:[%s2750 + $0x110] sm:$0xff]
    %v7509 = vld [vmem:[%s2750 + $0x120] sm:$0xff]
    %v7510 = vld [vmem:[%s2750 + $0x128] sm:$0xff]
    %v7511 = vld [vmem:[%s2750 + $0x138] sm:$0xff]
    %v7512 = vld [vmem:[%s2750 + $0x140] sm:$0xff]
    %v7513 = vld [vmem:[%s2750 + $0x150] sm:$0xff]
    %v7514 = vld [vmem:[%s2750 + $0x158] sm:$0xff]
    %v7515 = vld [vmem:[%s2750 + $0x168] sm:$0xff]
    %v7516 = vld [vmem:[%s2750 + $0x170] sm:$0xff]
    %v7517 = vld [vmem:[%s2750 + $0x1b0] sm:$0xff]
    %v7518 = vld [vmem:[%s2750 + $0x1b8] sm:$0xff]
    %v7519 = vld [vmem:[%s2750 + $0x1c8] sm:$0xff]
    %v7520 = vld [vmem:[%s2750 + $0x1d0] sm:$0xff]
    %v7521 = vld [vmem:[%s2750 + $0x1e0] sm:$0xff]
    %v7522 = vld [vmem:[%s2750 + $0x1e8] sm:$0xff]
    %v7523 = vld [vmem:[%s2750 + $0x1f8] sm:$0xff]
    %v7524 = vld [vmem:[%s2750 + $0x200] sm:$0xff]
    %v7525 = vld [vmem:[%s2750 + $0x210] sm:$0xff]
    %v7526 = vld [vmem:[%s2750 + $0x218] sm:$0xff]
    %v7527 = vld [vmem:[%s2750 + $0x228] sm:$0xff]
    %v7528 = vld [vmem:[%s2750 + $0x230] sm:$0xff]
    %v7529 = vld [vmem:[%s2750 + $0x240] sm:$0xff]
    %v7530 = vld [vmem:[%s2750 + $0x248] sm:$0xff]
    %v7531 = vld [vmem:[%s2750 + $0x258] sm:$0xff]
    %v7532 = vld [vmem:[%s2750 + $0x260] sm:$0xff]
    %v7533 = vld [vmem:[%s2750 + $0x270] sm:$0xff]
    %v7534 = vld [vmem:[%s2750 + $0x278] sm:$0xff]
    %v7535 = vld [vmem:[%s2750 + $0x288] sm:$0xff]
    %v7536 = vld [vmem:[%s2750 + $0x290] sm:$0xff]
    %v7537 = vld [vmem:[%s2750 + $0x2a0] sm:$0xff]
    %v7538 = vld [vmem:[%s2750 + $0x2a8] sm:$0xff]
    %v7539 = vld [vmem:[%s2750 + $0x2b8] sm:$0xff]
    %v7540 = vld [vmem:[%s2750 + $0x2c0] sm:$0xff]
    %v7541 = vld [vmem:[%s2750 + $0x2d0] sm:$0xff]
    %v7542 = vld [vmem:[%s2750 + $0x2d8] sm:$0xff]
    %v7543 = vld [vmem:[%s2750 + $0x2e8] sm:$0xff]
    %v7544 = vld [vmem:[%s2750 + $0x2f0] sm:$0xff]
    %v7545 = vld [vmem:[%s2750 + $0x300] sm:$0xff]
    %v7546 = vld [vmem:[%s2750 + $0x308] sm:$0xff]
    %v7547 = vld [vmem:[%s2750 + $0x318] sm:$0xff]
    %v7548 = vld [vmem:[%s2750 + $0x320] sm:$0xff]
    %v7549 = vld [vmem:[%s2750 + $0x1] sm:$0xff]
    %v7550 = vld [vmem:[%s2750 + $0x9] sm:$0xff]
    %v7551 = vld [vmem:[%s2750 + $0x19] sm:$0xff]
    %v7552 = vld [vmem:[%s2750 + $0x21] sm:$0xff]
    %v7553 = vld [vmem:[%s2750 + $0x31] sm:$0xff]
    %v7554 = vld [vmem:[%s2750 + $0x39] sm:$0xff]
    %v7555 = vld [vmem:[%s2750 + $0x49] sm:$0xff]
    %v7556 = vld [vmem:[%s2750 + $0x51] sm:$0xff]
    %v7557 = vld [vmem:[%s2750 + $0x61] sm:$0xff]
    %v7558 = vld [vmem:[%s2750 + $0x69] sm:$0xff]
    %v7559 = vld [vmem:[%s2750 + $0x79] sm:$0xff]
    %v7560 = vld [vmem:[%s2750 + $0x81] sm:$0xff]
    %v7561 = vld [vmem:[%s2750 + $0x91] sm:$0xff]
    %v7562 = vld [vmem:[%s2750 + $0x99] sm:$0xff]
    %v7563 = vld [vmem:[%s2750 + $0xa9] sm:$0xff]
    %v7564 = vld [vmem:[%s2750 + $0xb1] sm:$0xff]
    %v7565 = vld [vmem:[%s2750 + $0xc1] sm:$0xff]
    %v7566 = vld [vmem:[%s2750 + $0xc9] sm:$0xff]
    %v7567 = vld [vmem:[%s2750 + $0xd9] sm:$0xff]
    %v7568 = vld [vmem:[%s2750 + $0xe1] sm:$0xff]
    %v7569 = vld [vmem:[%s2750 + $0xf1] sm:$0xff]
    %v7570 = vld [vmem:[%s2750 + $0xf9] sm:$0xff]
    %v7571 = vld [vmem:[%s2750 + $0x109] sm:$0xff]
    %v7572 = vld [vmem:[%s2750 + $0x111] sm:$0xff]
    %v7573 = vld [vmem:[%s2750 + $0x121] sm:$0xff]
    %v7574 = vld [vmem:[%s2750 + $0x129] sm:$0xff]
    %v7575 = vld [vmem:[%s2750 + $0x139] sm:$0xff]
    %v7576 = vld [vmem:[%s2750 + $0x141] sm:$0xff]
    %v7577 = vld [vmem:[%s2750 + $0x151] sm:$0xff]
    %v7578 = vld [vmem:[%s2750 + $0x159] sm:$0xff]
    %v7579 = vld [vmem:[%s2750 + $0x169] sm:$0xff]
    %v7580 = vld [vmem:[%s2750 + $0x171] sm:$0xff]
    %v7581 = vld [vmem:[%s2750 + $0x1b1] sm:$0xff]
    %v7582 = vld [vmem:[%s2750 + $0x1b9] sm:$0xff]
    %v7583 = vld [vmem:[%s2750 + $0x1c9] sm:$0xff]
    %v7584 = vld [vmem:[%s2750 + $0x1d1] sm:$0xff]
    %v7585 = vld [vmem:[%s2750 + $0x1e1] sm:$0xff]
    %v7586 = vld [vmem:[%s2750 + $0x1e9] sm:$0xff]
    %v7587 = vld [vmem:[%s2750 + $0x1f9] sm:$0xff]
    %v7588 = vld [vmem:[%s2750 + $0x201] sm:$0xff]
    %v7589 = vld [vmem:[%s2750 + $0x211] sm:$0xff]
    %v7590 = vld [vmem:[%s2750 + $0x219] sm:$0xff]
    %v7591 = vld [vmem:[%s2750 + $0x229] sm:$0xff]
    %v7592 = vld [vmem:[%s2750 + $0x231] sm:$0xff]
    %v7593 = vld [vmem:[%s2750 + $0x241] sm:$0xff]
    %v7594 = vld [vmem:[%s2750 + $0x249] sm:$0xff]
    %v7595 = vld [vmem:[%s2750 + $0x259] sm:$0xff]
    %v7596 = vld [vmem:[%s2750 + $0x261] sm:$0xff]
    %v7597 = vld [vmem:[%s2750 + $0x271] sm:$0xff]
    %v7598 = vld [vmem:[%s2750 + $0x279] sm:$0xff]
    %v7599 = vld [vmem:[%s2750 + $0x289] sm:$0xff]
    %v7600 = vld [vmem:[%s2750 + $0x291] sm:$0xff]
    %v7601 = vld [vmem:[%s2750 + $0x2a1] sm:$0xff]
    %v7602 = vld [vmem:[%s2750 + $0x2a9] sm:$0xff]
    %v7603 = vld [vmem:[%s2750 + $0x2b9] sm:$0xff]
    %v7604 = vld [vmem:[%s2750 + $0x2c1] sm:$0xff]
    %v7605 = vld [vmem:[%s2750 + $0x2d1] sm:$0xff]
    %v7606 = vld [vmem:[%s2750 + $0x2d9] sm:$0xff]
    %v7607 = vld [vmem:[%s2750 + $0x2e9] sm:$0xff]
    %v7608 = vld [vmem:[%s2750 + $0x2f1] sm:$0xff]
    %v7609 = vld [vmem:[%s2750 + $0x301] sm:$0xff]
    %v7610 = vld [vmem:[%s2750 + $0x309] sm:$0xff]
    %v7611 = vld [vmem:[%s2750 + $0x319] sm:$0xff]
    %v7612 = vld [vmem:[%s2750 + $0x321] sm:$0xff]
    %v7613 = vld [vmem:[%s2750 + $0x2] sm:$0xff]
    %v7614 = vld [vmem:[%s2750 + $0xa] sm:$0xff]
    %v7615 = vld [vmem:[%s2750 + $0x1a] sm:$0xff]
    %v7616 = vld [vmem:[%s2750 + $0x22] sm:$0xff]
    %v7617 = vld [vmem:[%s2750 + $0x32] sm:$0xff]
    %v7618 = vld [vmem:[%s2750 + $0x3a] sm:$0xff]
    %v7619 = vld [vmem:[%s2750 + $0x4a] sm:$0xff]
    %v7620 = vld [vmem:[%s2750 + $0x52] sm:$0xff]
    %v7621 = vld [vmem:[%s2750 + $0x62] sm:$0xff]
    %v7622 = vld [vmem:[%s2750 + $0x6a] sm:$0xff]
    %v7623 = vld [vmem:[%s2750 + $0x7a] sm:$0xff]
    %v7624 = vld [vmem:[%s2750 + $0x82] sm:$0xff]
    %v7625 = vld [vmem:[%s2750 + $0x92] sm:$0xff]
    %v7626 = vld [vmem:[%s2750 + $0x9a] sm:$0xff]
    %v7627 = vld [vmem:[%s2750 + $0xaa] sm:$0xff]
    %v7628 = vld [vmem:[%s2750 + $0xb2] sm:$0xff]
    %v7629 = vld [vmem:[%s2750 + $0xc2] sm:$0xff]
    %v7630 = vld [vmem:[%s2750 + $0xca] sm:$0xff]
    %v7631 = vld [vmem:[%s2750 + $0xda] sm:$0xff]
    %v7632 = vld [vmem:[%s2750 + $0xe2] sm:$0xff]
    %v7633 = vld [vmem:[%s2750 + $0xf2] sm:$0xff]
    %v7634 = vld [vmem:[%s2750 + $0xfa] sm:$0xff]
    %v7635 = vld [vmem:[%s2750 + $0x10a] sm:$0xff]
    %v7636 = vld [vmem:[%s2750 + $0x112] sm:$0xff]
    %v7637 = vld [vmem:[%s2750 + $0x122] sm:$0xff]
    %v7638 = vld [vmem:[%s2750 + $0x12a] sm:$0xff]
    %v7639 = vld [vmem:[%s2750 + $0x13a] sm:$0xff]
    %v7640 = vld [vmem:[%s2750 + $0x142] sm:$0xff]
    %v7641 = vld [vmem:[%s2750 + $0x152] sm:$0xff]
    %v7642 = vld [vmem:[%s2750 + $0x15a] sm:$0xff]
    %v7643 = vld [vmem:[%s2750 + $0x16a] sm:$0xff]
    %v7644 = vld [vmem:[%s2750 + $0x172] sm:$0xff]
    %v7645 = vld [vmem:[%s2750 + $0x1b2] sm:$0xff]
    %v7646 = vld [vmem:[%s2750 + $0x1ba] sm:$0xff]
    %v7647 = vld [vmem:[%s2750 + $0x1ca] sm:$0xff]
    %v7648 = vld [vmem:[%s2750 + $0x1d2] sm:$0xff]
    %v7649 = vld [vmem:[%s2750 + $0x1e2] sm:$0xff]
    %v7650 = vld [vmem:[%s2750 + $0x1ea] sm:$0xff]
    %v7651 = vld [vmem:[%s2750 + $0x1fa] sm:$0xff]
    %v7652 = vld [vmem:[%s2750 + $0x202] sm:$0xff]
    %v7653 = vld [vmem:[%s2750 + $0x212] sm:$0xff]
    %v7654 = vld [vmem:[%s2750 + $0x21a] sm:$0xff]
    %v7655 = vld [vmem:[%s2750 + $0x22a] sm:$0xff]
    %v7656 = vld [vmem:[%s2750 + $0x232] sm:$0xff]
    %v7657 = vld [vmem:[%s2750 + $0x242] sm:$0xff]
    %v7658 = vld [vmem:[%s2750 + $0x24a] sm:$0xff]
    %v7659 = vld [vmem:[%s2750 + $0x25a] sm:$0xff]
    %v7660 = vld [vmem:[%s2750 + $0x262] sm:$0xff]
    %v7661 = vld [vmem:[%s2750 + $0x272] sm:$0xff]
    %v7662 = vld [vmem:[%s2750 + $0x27a] sm:$0xff]
    %v7663 = vld [vmem:[%s2750 + $0x28a] sm:$0xff]
    %v7664 = vld [vmem:[%s2750 + $0x292] sm:$0xff]
    %v7665 = vld [vmem:[%s2750 + $0x2a2] sm:$0xff]
    %v7666 = vld [vmem:[%s2750 + $0x2aa] sm:$0xff]
    %v7667 = vld [vmem:[%s2750 + $0x2ba] sm:$0xff]
    %v7668 = vld [vmem:[%s2750 + $0x2c2] sm:$0xff]
    %v7669 = vld [vmem:[%s2750 + $0x2d2] sm:$0xff]
    %v7670 = vld [vmem:[%s2750 + $0x2da] sm:$0xff]
    %v7671 = vld [vmem:[%s2750 + $0x2ea] sm:$0xff]
    %v7672 = vld [vmem:[%s2750 + $0x2f2] sm:$0xff]
    %v7673 = vld [vmem:[%s2750 + $0x302] sm:$0xff]
    %v7674 = vld [vmem:[%s2750 + $0x30a] sm:$0xff]
    %v7675 = vld [vmem:[%s2750 + $0x31a] sm:$0xff]
    %v7676 = vld [vmem:[%s2750 + $0x322] sm:$0xff]
    %v7677 = vld [vmem:[%s3199] sm:$0xff]
    %v7678 = vld [vmem:[%s3199 + $0x8] sm:$0xff]
    %v7679 = vld [vmem:[%s3199 + $0x18] sm:$0xff]
    %v7680 = vld [vmem:[%s3199 + $0x20] sm:$0xff]
    %v7681 = vld [vmem:[%s3199 + $0x30] sm:$0xff]
    %v7682 = vld [vmem:[%s3199 + $0x38] sm:$0xff]
    %v7683 = vld [vmem:[%s3199 + $0x48] sm:$0xff]
    %v7684 = vld [vmem:[%s3199 + $0x50] sm:$0xff]
    %v7685 = vld [vmem:[%s3199 + $0x60] sm:$0xff]
    %v7686 = vld [vmem:[%s3199 + $0x68] sm:$0xff]
    %v7687 = vld [vmem:[%s3199 + $0x78] sm:$0xff]
    %v7688 = vld [vmem:[%s3199 + $0x80] sm:$0xff]
    %v7689 = vld [vmem:[%s3199 + $0x90] sm:$0xff]
    %v7690 = vld [vmem:[%s3199 + $0x98] sm:$0xff]
    %v7691 = vld [vmem:[%s3199 + $0xa8] sm:$0xff]
    %v7692 = vld [vmem:[%s3199 + $0xb0] sm:$0xff]
    %v7693 = vld [vmem:[%s3199 + $0xc0] sm:$0xff]
    %v7694 = vld [vmem:[%s3199 + $0xc8] sm:$0xff]
    %v7695 = vld [vmem:[%s3199 + $0xd8] sm:$0xff]
    %v7696 = vld [vmem:[%s3199 + $0xe0] sm:$0xff]
    %v7697 = vld [vmem:[%s3199 + $0xf0] sm:$0xff]
    %v7698 = vld [vmem:[%s3199 + $0xf8] sm:$0xff]
    %v7699 = vld [vmem:[%s3199 + $0x108] sm:$0xff]
    %v7700 = vld [vmem:[%s3199 + $0x110] sm:$0xff]
    %v7701 = vld [vmem:[%s3199 + $0x120] sm:$0xff]
    %v7702 = vld [vmem:[%s3199 + $0x128] sm:$0xff]
    %v7703 = vld [vmem:[%s3199 + $0x138] sm:$0xff]
    %v7704 = vld [vmem:[%s3199 + $0x140] sm:$0xff]
    %v7705 = vld [vmem:[%s3199 + $0x150] sm:$0xff]
    %v7706 = vld [vmem:[%s3199 + $0x158] sm:$0xff]
    %v7707 = vld [vmem:[%s3199 + $0x168] sm:$0xff]
    %v7708 = vld [vmem:[%s3199 + $0x170] sm:$0xff]
    %v7709 = vld [vmem:[%s3199 + $0x1b0] sm:$0xff]
    %v7710 = vld [vmem:[%s3199 + $0x1b8] sm:$0xff]
    %v7711 = vld [vmem:[%s3199 + $0x1c8] sm:$0xff]
    %v7712 = vld [vmem:[%s3199 + $0x1d0] sm:$0xff]
    %v7713 = vld [vmem:[%s3199 + $0x1e0] sm:$0xff]
    %v7714 = vld [vmem:[%s3199 + $0x1e8] sm:$0xff]
    %v7715 = vld [vmem:[%s3199 + $0x1f8] sm:$0xff]
    %v7716 = vld [vmem:[%s3199 + $0x200] sm:$0xff]
    %v7717 = vld [vmem:[%s3199 + $0x210] sm:$0xff]
    %v7718 = vld [vmem:[%s3199 + $0x218] sm:$0xff]
    %v7719 = vld [vmem:[%s3199 + $0x228] sm:$0xff]
    %v7720 = vld [vmem:[%s3199 + $0x230] sm:$0xff]
    %v7721 = vld [vmem:[%s3199 + $0x240] sm:$0xff]
    %v7722 = vld [vmem:[%s3199 + $0x248] sm:$0xff]
    %v7723 = vld [vmem:[%s3199 + $0x258] sm:$0xff]
    %v7724 = vld [vmem:[%s3199 + $0x260] sm:$0xff]
    %v7725 = vld [vmem:[%s3199 + $0x270] sm:$0xff]
    %v7726 = vld [vmem:[%s3199 + $0x278] sm:$0xff]
    %v7727 = vld [vmem:[%s3199 + $0x288] sm:$0xff]
    %v7728 = vld [vmem:[%s3199 + $0x290] sm:$0xff]
    %v7729 = vld [vmem:[%s3199 + $0x2a0] sm:$0xff]
    %v7730 = vld [vmem:[%s3199 + $0x2a8] sm:$0xff]
    %v7731 = vld [vmem:[%s3199 + $0x2b8] sm:$0xff]
    %v7732 = vld [vmem:[%s3199 + $0x2c0] sm:$0xff]
    %v7733 = vld [vmem:[%s3199 + $0x2d0] sm:$0xff]
    %v7734 = vld [vmem:[%s3199 + $0x2d8] sm:$0xff]
    %v7735 = vld [vmem:[%s3199 + $0x2e8] sm:$0xff]
    %v7736 = vld [vmem:[%s3199 + $0x2f0] sm:$0xff]
    %v7737 = vld [vmem:[%s3199 + $0x300] sm:$0xff]
    %v7738 = vld [vmem:[%s3199 + $0x308] sm:$0xff]
    %v7739 = vld [vmem:[%s3199 + $0x318] sm:$0xff]
    %v7740 = vld [vmem:[%s3199 + $0x320] sm:$0xff]
    %v7741 = vld [vmem:[%s3199 + $0x1] sm:$0xff]
    %v7742 = vld [vmem:[%s3199 + $0x9] sm:$0xff]
    %v7743 = vld [vmem:[%s3199 + $0x19] sm:$0xff]
    %v7744 = vld [vmem:[%s3199 + $0x21] sm:$0xff]
    %v7745 = vld [vmem:[%s3199 + $0x31] sm:$0xff]
    %v7746 = vld [vmem:[%s3199 + $0x39] sm:$0xff]
    %v7747 = vld [vmem:[%s3199 + $0x49] sm:$0xff]
    %v7748 = vld [vmem:[%s3199 + $0x51] sm:$0xff]
    %v7749 = vld [vmem:[%s3199 + $0x61] sm:$0xff]
    %v7750 = vld [vmem:[%s3199 + $0x69] sm:$0xff]
    %v7751 = vld [vmem:[%s3199 + $0x79] sm:$0xff]
    %v7752 = vld [vmem:[%s3199 + $0x81] sm:$0xff]
    %v7753 = vld [vmem:[%s3199 + $0x91] sm:$0xff]
    %v7754 = vld [vmem:[%s3199 + $0x99] sm:$0xff]
    %v7755 = vld [vmem:[%s3199 + $0xa9] sm:$0xff]
    %v7756 = vld [vmem:[%s3199 + $0xb1] sm:$0xff]
    %v7757 = vld [vmem:[%s3199 + $0xc1] sm:$0xff]
    %v7758 = vld [vmem:[%s3199 + $0xc9] sm:$0xff]
    %v7759 = vld [vmem:[%s3199 + $0xd9] sm:$0xff]
    %v7760 = vld [vmem:[%s3199 + $0xe1] sm:$0xff]
    %v7761 = vld [vmem:[%s3199 + $0xf1] sm:$0xff]
    %v7762 = vld [vmem:[%s3199 + $0xf9] sm:$0xff]
    %v7763 = vld [vmem:[%s3199 + $0x109] sm:$0xff]
    %v7764 = vld [vmem:[%s3199 + $0x111] sm:$0xff]
    %v7765 = vld [vmem:[%s3199 + $0x121] sm:$0xff]
    %v7766 = vld [vmem:[%s3199 + $0x129] sm:$0xff]
    %v7767 = vld [vmem:[%s3199 + $0x139] sm:$0xff]
    %v7768 = vld [vmem:[%s3199 + $0x141] sm:$0xff]
    %v7769 = vld [vmem:[%s3199 + $0x151] sm:$0xff]
    %v7770 = vld [vmem:[%s3199 + $0x159] sm:$0xff]
    %v7771 = vld [vmem:[%s3199 + $0x169] sm:$0xff]
    %v7772 = vld [vmem:[%s3199 + $0x171] sm:$0xff]
    %v7773 = vld [vmem:[%s3199 + $0x1b1] sm:$0xff]
    %v7774 = vld [vmem:[%s3199 + $0x1b9] sm:$0xff]
    %v7775 = vld [vmem:[%s3199 + $0x1c9] sm:$0xff]
    %v7776 = vld [vmem:[%s3199 + $0x1d1] sm:$0xff]
    %v7777 = vld [vmem:[%s3199 + $0x1e1] sm:$0xff]
    %v7778 = vld [vmem:[%s3199 + $0x1e9] sm:$0xff]
    %v7779 = vld [vmem:[%s3199 + $0x1f9] sm:$0xff]
    %v7780 = vld [vmem:[%s3199 + $0x201] sm:$0xff]
    %v7781 = vld [vmem:[%s3199 + $0x211] sm:$0xff]
    %v7782 = vld [vmem:[%s3199 + $0x219] sm:$0xff]
    %v7783 = vld [vmem:[%s3199 + $0x229] sm:$0xff]
    %v7784 = vld [vmem:[%s3199 + $0x231] sm:$0xff]
    %v7785 = vld [vmem:[%s3199 + $0x241] sm:$0xff]
    %v7786 = vld [vmem:[%s3199 + $0x249] sm:$0xff]
    %v7787 = vld [vmem:[%s3199 + $0x259] sm:$0xff]
    %v7788 = vld [vmem:[%s3199 + $0x261] sm:$0xff]
    %v7789 = vld [vmem:[%s3199 + $0x271] sm:$0xff]
    %v7790 = vld [vmem:[%s3199 + $0x279] sm:$0xff]
    %v7791 = vld [vmem:[%s3199 + $0x289] sm:$0xff]
    %v7792 = vld [vmem:[%s3199 + $0x291] sm:$0xff]
    %v7793 = vld [vmem:[%s3199 + $0x2a1] sm:$0xff]
    %v7794 = vld [vmem:[%s3199 + $0x2a9] sm:$0xff]
    %v7795 = vld [vmem:[%s3199 + $0x2b9] sm:$0xff]
    %v7796 = vld [vmem:[%s3199 + $0x2c1] sm:$0xff]
    %v7797 = vld [vmem:[%s3199 + $0x2d1] sm:$0xff]
    %v7798 = vld [vmem:[%s3199 + $0x2d9] sm:$0xff]
    %v7799 = vld [vmem:[%s3199 + $0x2e9] sm:$0xff]
    %v7800 = vld [vmem:[%s3199 + $0x2f1] sm:$0xff]
    %v7801 = vld [vmem:[%s3199 + $0x301] sm:$0xff]
    %v7802 = vld [vmem:[%s3199 + $0x309] sm:$0xff]
    %v7803 = vld [vmem:[%s3199 + $0x319] sm:$0xff]
    %v7804 = vld [vmem:[%s3199 + $0x321] sm:$0xff]
    %v7805 = vld [vmem:[%s3199 + $0x2] sm:$0xff]
    %v7806 = vld [vmem:[%s3199 + $0xa] sm:$0xff]
    %v7807 = vld [vmem:[%s3199 + $0x1a] sm:$0xff]
    %v7808 = vld [vmem:[%s3199 + $0x22] sm:$0xff]
    %v7809 = vld [vmem:[%s3199 + $0x32] sm:$0xff]
    %v7810 = vld [vmem:[%s3199 + $0x3a] sm:$0xff]
    %v7811 = vld [vmem:[%s3199 + $0x4a] sm:$0xff]
    %v7812 = vld [vmem:[%s3199 + $0x52] sm:$0xff]
    %v7813 = vld [vmem:[%s3199 + $0x62] sm:$0xff]
    %v7814 = vld [vmem:[%s3199 + $0x6a] sm:$0xff]
    %v7815 = vld [vmem:[%s3199 + $0x7a] sm:$0xff]
    %v7816 = vld [vmem:[%s3199 + $0x82] sm:$0xff]
    %v7817 = vld [vmem:[%s3199 + $0x92] sm:$0xff]
    %v7818 = vld [vmem:[%s3199 + $0x9a] sm:$0xff]
    %v7819 = vld [vmem:[%s3199 + $0xaa] sm:$0xff]
    %v7820 = vld [vmem:[%s3199 + $0xb2] sm:$0xff]
    %v7821 = vld [vmem:[%s3199 + $0xc2] sm:$0xff]
    %v7822 = vld [vmem:[%s3199 + $0xca] sm:$0xff]
    %v7823 = vld [vmem:[%s3199 + $0xda] sm:$0xff]
    %v7824 = vld [vmem:[%s3199 + $0xe2] sm:$0xff]
    %v7825 = vld [vmem:[%s3199 + $0xf2] sm:$0xff]
    %v7826 = vld [vmem:[%s3199 + $0xfa] sm:$0xff]
    %v7827 = vld [vmem:[%s3199 + $0x10a] sm:$0xff]
    %v7828 = vld [vmem:[%s3199 + $0x112] sm:$0xff]
    %v7829 = vld [vmem:[%s3199 + $0x122] sm:$0xff]
    %v7830 = vld [vmem:[%s3199 + $0x12a] sm:$0xff]
    %v7831 = vld [vmem:[%s3199 + $0x13a] sm:$0xff]
    %v7832 = vld [vmem:[%s3199 + $0x142] sm:$0xff]
    %v7833 = vld [vmem:[%s3199 + $0x152] sm:$0xff]
    %v7834 = vld [vmem:[%s3199 + $0x15a] sm:$0xff]
    %v7835 = vld [vmem:[%s3199 + $0x16a] sm:$0xff]
    %v7836 = vld [vmem:[%s3199 + $0x172] sm:$0xff]
    %v7837 = vld [vmem:[%s3199 + $0x1b2] sm:$0xff]
    %v7838 = vld [vmem:[%s3199 + $0x1ba] sm:$0xff]
    %v7839 = vld [vmem:[%s3199 + $0x1ca] sm:$0xff]
    %v7840 = vld [vmem:[%s3199 + $0x1d2] sm:$0xff]
    %v7841 = vld [vmem:[%s3199 + $0x1e2] sm:$0xff]
    %v7842 = vld [vmem:[%s3199 + $0x1ea] sm:$0xff]
    %v7843 = vld [vmem:[%s3199 + $0x1fa] sm:$0xff]
    %v7844 = vld [vmem:[%s3199 + $0x202] sm:$0xff]
    %v7845 = vld [vmem:[%s3199 + $0x212] sm:$0xff]
    %v7846 = vld [vmem:[%s3199 + $0x21a] sm:$0xff]
    %v7847 = vld [vmem:[%s3199 + $0x22a] sm:$0xff]
    %v7848 = vld [vmem:[%s3199 + $0x232] sm:$0xff]
    %v7849 = vld [vmem:[%s3199 + $0x242] sm:$0xff]
    %v7850 = vld [vmem:[%s3199 + $0x24a] sm:$0xff]
    %v7851 = vld [vmem:[%s3199 + $0x25a] sm:$0xff]
    %v7852 = vld [vmem:[%s3199 + $0x262] sm:$0xff]
    %v7853 = vld [vmem:[%s3199 + $0x272] sm:$0xff]
    %v7854 = vld [vmem:[%s3199 + $0x27a] sm:$0xff]
    %v7855 = vld [vmem:[%s3199 + $0x28a] sm:$0xff]
    %v7856 = vld [vmem:[%s3199 + $0x292] sm:$0xff]
    %v7857 = vld [vmem:[%s3199 + $0x2a2] sm:$0xff]
    %v7858 = vld [vmem:[%s3199 + $0x2aa] sm:$0xff]
    %v7859 = vld [vmem:[%s3199 + $0x2ba] sm:$0xff]
    %v7860 = vld [vmem:[%s3199 + $0x2c2] sm:$0xff]
    %v7861 = vld [vmem:[%s3199 + $0x2d2] sm:$0xff]
    %v7862 = vld [vmem:[%s3199 + $0x2da] sm:$0xff]
    %v7863 = vld [vmem:[%s3199 + $0x2ea] sm:$0xff]
    %v7864 = vld [vmem:[%s3199 + $0x2f2] sm:$0xff]
    %v7865 = vld [vmem:[%s3199 + $0x302] sm:$0xff]
    %v7866 = vld [vmem:[%s3199 + $0x30a] sm:$0xff]
    %v7867 = vld [vmem:[%s3199 + $0x31a] sm:$0xff]
    %v7868 = vld [vmem:[%s3199 + $0x322] sm:$0xff]
    %7933 = vrot.lane.b32.xlu0 %v7357, 16
    %v7934 = vpop.permute.xlu0 %7933
    %7935 = vrot.lane.b32.xlu0 %v7358, 16
    %v7936 = vpop.permute.xlu0 %7935
    %7937 = vrot.lane.b32.xlu0 %v7359, 16
    %v7938 = vpop.permute.xlu0 %7937
    %7939 = vrot.lane.b32.xlu0 %v7360, 16
    %v7940 = vpop.permute.xlu0 %7939
    %7941 = vrot.lane.b32.xlu0 %v7361, 16
    %v7942 = vpop.permute.xlu0 %7941
    %7943 = vrot.lane.b32.xlu0 %v7362, 16
    %v7944 = vpop.permute.xlu0 %7943
    %7945 = vrot.lane.b32.xlu0 %v7363, 16
    %v7946 = vpop.permute.xlu0 %7945
    %7947 = vrot.lane.b32.xlu0 %v7364, 16
    %v7948 = vpop.permute.xlu0 %7947
    %7949 = vrot.lane.b32.xlu0 %v7365, 16
    %v7950 = vpop.permute.xlu0 %7949
    %7951 = vrot.lane.b32.xlu0 %v7366, 16
    %v7952 = vpop.permute.xlu0 %7951
    %7953 = vrot.lane.b32.xlu0 %v7367, 16
    %v7954 = vpop.permute.xlu0 %7953
    %7955 = vrot.lane.b32.xlu0 %v7368, 16
    %v7956 = vpop.permute.xlu0 %7955
    %7957 = vrot.lane.b32.xlu0 %v7369, 16
    %v7958 = vpop.permute.xlu0 %7957
    %7959 = vrot.lane.b32.xlu0 %v7370, 16
    %v7960 = vpop.permute.xlu0 %7959
    %7961 = vrot.lane.b32.xlu0 %v7371, 16
    %v7962 = vpop.permute.xlu0 %7961
    %7963 = vrot.lane.b32.xlu0 %v7372, 16
    %v7964 = vpop.permute.xlu0 %7963
    %7965 = vrot.lane.b32.xlu0 %v7373, 16
    %v7966 = vpop.permute.xlu0 %7965
    %7967 = vrot.lane.b32.xlu0 %v7374, 16
    %v7968 = vpop.permute.xlu0 %7967
    %7969 = vrot.lane.b32.xlu0 %v7375, 16
    %v7970 = vpop.permute.xlu0 %7969
    %7971 = vrot.lane.b32.xlu0 %v7376, 16
    %v7972 = vpop.permute.xlu0 %7971
    %7973 = vrot.lane.b32.xlu0 %v7377, 16
    %v7974 = vpop.permute.xlu0 %7973
    %7975 = vrot.lane.b32.xlu0 %v7378, 16
    %v7976 = vpop.permute.xlu0 %7975
    %7977 = vrot.lane.b32.xlu0 %v7379, 16
    %v7978 = vpop.permute.xlu0 %7977
    %7979 = vrot.lane.b32.xlu0 %v7380, 16
    %v7980 = vpop.permute.xlu0 %7979
    %7981 = vrot.lane.b32.xlu0 %v7381, 16
    %v7982 = vpop.permute.xlu0 %7981
    %7983 = vrot.lane.b32.xlu0 %v7382, 16
    %v7984 = vpop.permute.xlu0 %7983
    %7985 = vrot.lane.b32.xlu0 %v7383, 16
    %v7986 = vpop.permute.xlu0 %7985
    %7987 = vrot.lane.b32.xlu0 %v7384, 16
    %v7988 = vpop.permute.xlu0 %7987
    %7989 = vrot.lane.b32.xlu0 %v7385, 16
    %v7990 = vpop.permute.xlu0 %7989
    %7991 = vrot.lane.b32.xlu0 %v7386, 16
    %v7992 = vpop.permute.xlu0 %7991
    %7993 = vrot.lane.b32.xlu0 %v7387, 16
    %v7994 = vpop.permute.xlu0 %7993
    %7995 = vrot.lane.b32.xlu0 %v7388, 16
    %v7996 = vpop.permute.xlu0 %7995
    %7997 = vrot.lane.b32.xlu0 %v7389, 16
    %v7998 = vpop.permute.xlu0 %7997
    %7999 = vrot.lane.b32.xlu0 %v7390, 16
    %v8000 = vpop.permute.xlu0 %7999
    %8001 = vrot.lane.b32.xlu0 %v7391, 16
    %v8002 = vpop.permute.xlu0 %8001
    %8003 = vrot.lane.b32.xlu0 %v7392, 16
    %v8004 = vpop.permute.xlu0 %8003
    %8005 = vrot.lane.b32.xlu0 %v7393, 16
    %v8006 = vpop.permute.xlu0 %8005
    %8007 = vrot.lane.b32.xlu0 %v7394, 16
    %v8008 = vpop.permute.xlu0 %8007
    %8009 = vrot.lane.b32.xlu0 %v7395, 16
    %v8010 = vpop.permute.xlu0 %8009
    %8011 = vrot.lane.b32.xlu0 %v7396, 16
    %v8012 = vpop.permute.xlu0 %8011
    %8013 = vrot.lane.b32.xlu0 %v7397, 16
    %v8014 = vpop.permute.xlu0 %8013
    %8015 = vrot.lane.b32.xlu0 %v7398, 16
    %v8016 = vpop.permute.xlu0 %8015
    %8017 = vrot.lane.b32.xlu0 %v7399, 16
    %v8018 = vpop.permute.xlu0 %8017
    %8019 = vrot.lane.b32.xlu0 %v7400, 16
    %v8020 = vpop.permute.xlu0 %8019
    %8021 = vrot.lane.b32.xlu0 %v7401, 16
    %v8022 = vpop.permute.xlu0 %8021
    %8023 = vrot.lane.b32.xlu0 %v7402, 16
    %v8024 = vpop.permute.xlu0 %8023
    %8025 = vrot.lane.b32.xlu0 %v7403, 16
    %v8026 = vpop.permute.xlu0 %8025
    %8027 = vrot.lane.b32.xlu0 %v7404, 16
    %v8028 = vpop.permute.xlu0 %8027
    %8029 = vrot.lane.b32.xlu0 %v7405, 16
    %v8030 = vpop.permute.xlu0 %8029
    %8031 = vrot.lane.b32.xlu0 %v7406, 16
    %v8032 = vpop.permute.xlu0 %8031
    %8033 = vrot.lane.b32.xlu0 %v7407, 16
    %v8034 = vpop.permute.xlu0 %8033
    %8035 = vrot.lane.b32.xlu0 %v7408, 16
    %v8036 = vpop.permute.xlu0 %8035
    %8037 = vrot.lane.b32.xlu0 %v7409, 16
    %v8038 = vpop.permute.xlu0 %8037
    %8039 = vrot.lane.b32.xlu0 %v7410, 16
    %v8040 = vpop.permute.xlu0 %8039
    %8041 = vrot.lane.b32.xlu0 %v7411, 16
    %v8042 = vpop.permute.xlu0 %8041
    %8043 = vrot.lane.b32.xlu0 %v7412, 16
    %v8044 = vpop.permute.xlu0 %8043
    %8045 = vrot.lane.b32.xlu0 %v7413, 16
    %v8046 = vpop.permute.xlu0 %8045
    %8047 = vrot.lane.b32.xlu0 %v7414, 16
    %v8048 = vpop.permute.xlu0 %8047
    %8049 = vrot.lane.b32.xlu0 %v7415, 16
    %v8050 = vpop.permute.xlu0 %8049
    %8051 = vrot.lane.b32.xlu0 %v7416, 16
    %v8052 = vpop.permute.xlu0 %8051
    %8053 = vrot.lane.b32.xlu0 %v7417, 16
    %v8054 = vpop.permute.xlu0 %8053
    %8055 = vrot.lane.b32.xlu0 %v7418, 16
    %v8056 = vpop.permute.xlu0 %8055
    %8057 = vrot.lane.b32.xlu0 %v7419, 16
    %v8058 = vpop.permute.xlu0 %8057
    %8059 = vrot.lane.b32.xlu0 %v7420, 16
    %v8060 = vpop.permute.xlu0 %8059
    %8189 = vrot.lane.b32.xlu0 %v7421, 32
    %v8190 = vpop.permute.xlu0 %8189
    %8191 = vrot.lane.b32.xlu0 %v7422, 32
    %v8192 = vpop.permute.xlu0 %8191
    %8193 = vrot.lane.b32.xlu0 %v7423, 32
    %v8194 = vpop.permute.xlu0 %8193
    %8195 = vrot.lane.b32.xlu0 %v7424, 32
    %v8196 = vpop.permute.xlu0 %8195
    %8197 = vrot.lane.b32.xlu0 %v7425, 32
    %v8198 = vpop.permute.xlu0 %8197
    %8199 = vrot.lane.b32.xlu0 %v7426, 32
    %v8200 = vpop.permute.xlu0 %8199
    %8201 = vrot.lane.b32.xlu0 %v7427, 32
    %v8202 = vpop.permute.xlu0 %8201
    %8203 = vrot.lane.b32.xlu0 %v7428, 32
    %v8204 = vpop.permute.xlu0 %8203
    %8205 = vrot.lane.b32.xlu0 %v7429, 32
    %v8206 = vpop.permute.xlu0 %8205
    %8207 = vrot.lane.b32.xlu0 %v7430, 32
    %v8208 = vpop.permute.xlu0 %8207
    %8209 = vrot.lane.b32.xlu0 %v7431, 32
    %v8210 = vpop.permute.xlu0 %8209
    %8211 = vrot.lane.b32.xlu0 %v7432, 32
    %v8212 = vpop.permute.xlu0 %8211
    %8213 = vrot.lane.b32.xlu0 %v7433, 32
    %v8214 = vpop.permute.xlu0 %8213
    %8215 = vrot.lane.b32.xlu0 %v7434, 32
    %v8216 = vpop.permute.xlu0 %8215
    %8217 = vrot.lane.b32.xlu0 %v7435, 32
    %v8218 = vpop.permute.xlu0 %8217
    %8219 = vrot.lane.b32.xlu0 %v7436, 32
    %v8220 = vpop.permute.xlu0 %8219
    %8221 = vrot.lane.b32.xlu0 %v7437, 32
    %v8222 = vpop.permute.xlu0 %8221
    %8223 = vrot.lane.b32.xlu0 %v7438, 32
    %v8224 = vpop.permute.xlu0 %8223
    %8225 = vrot.lane.b32.xlu0 %v7439, 32
    %v8226 = vpop.permute.xlu0 %8225
    %8227 = vrot.lane.b32.xlu0 %v7440, 32
    %v8228 = vpop.permute.xlu0 %8227
    %8229 = vrot.lane.b32.xlu0 %v7441, 32
    %v8230 = vpop.permute.xlu0 %8229
    %8231 = vrot.lane.b32.xlu0 %v7442, 32
    %v8232 = vpop.permute.xlu0 %8231
    %8233 = vrot.lane.b32.xlu0 %v7443, 32
    %v8234 = vpop.permute.xlu0 %8233
    %8235 = vrot.lane.b32.xlu0 %v7444, 32
    %v8236 = vpop.permute.xlu0 %8235
    %8237 = vrot.lane.b32.xlu0 %v7445, 32
    %v8238 = vpop.permute.xlu0 %8237
    %8239 = vrot.lane.b32.xlu0 %v7446, 32
    %v8240 = vpop.permute.xlu0 %8239
    %8241 = vrot.lane.b32.xlu0 %v7447, 32
    %v8242 = vpop.permute.xlu0 %8241
    %8243 = vrot.lane.b32.xlu0 %v7448, 32
    %v8244 = vpop.permute.xlu0 %8243
    %8245 = vrot.lane.b32.xlu0 %v7449, 32
    %v8246 = vpop.permute.xlu0 %8245
    %8247 = vrot.lane.b32.xlu0 %v7450, 32
    %v8248 = vpop.permute.xlu0 %8247
    %8249 = vrot.lane.b32.xlu0 %v7451, 32
    %v8250 = vpop.permute.xlu0 %8249
    %8251 = vrot.lane.b32.xlu0 %v7452, 32
    %v8252 = vpop.permute.xlu0 %8251
    %8253 = vrot.lane.b32.xlu0 %v7453, 32
    %v8254 = vpop.permute.xlu0 %8253
    %8255 = vrot.lane.b32.xlu0 %v7454, 32
    %v8256 = vpop.permute.xlu0 %8255
    %8257 = vrot.lane.b32.xlu0 %v7455, 32
    %v8258 = vpop.permute.xlu0 %8257
    %8259 = vrot.lane.b32.xlu0 %v7456, 32
    %v8260 = vpop.permute.xlu0 %8259
    %8261 = vrot.lane.b32.xlu0 %v7457, 32
    %v8262 = vpop.permute.xlu0 %8261
    %8263 = vrot.lane.b32.xlu0 %v7458, 32
    %v8264 = vpop.permute.xlu0 %8263
    %8265 = vrot.lane.b32.xlu0 %v7459, 32
    %v8266 = vpop.permute.xlu0 %8265
    %8267 = vrot.lane.b32.xlu0 %v7460, 32
    %v8268 = vpop.permute.xlu0 %8267
    %8269 = vrot.lane.b32.xlu0 %v7461, 32
    %v8270 = vpop.permute.xlu0 %8269
    %8271 = vrot.lane.b32.xlu0 %v7462, 32
    %v8272 = vpop.permute.xlu0 %8271
    %8273 = vrot.lane.b32.xlu0 %v7463, 32
    %v8274 = vpop.permute.xlu0 %8273
    %8275 = vrot.lane.b32.xlu0 %v7464, 32
    %v8276 = vpop.permute.xlu0 %8275
    %8277 = vrot.lane.b32.xlu0 %v7465, 32
    %v8278 = vpop.permute.xlu0 %8277
    %8279 = vrot.lane.b32.xlu0 %v7466, 32
    %v8280 = vpop.permute.xlu0 %8279
    %8281 = vrot.lane.b32.xlu0 %v7467, 32
    %v8282 = vpop.permute.xlu0 %8281
    %8283 = vrot.lane.b32.xlu0 %v7468, 32
    %v8284 = vpop.permute.xlu0 %8283
    %8285 = vrot.lane.b32.xlu0 %v7469, 32
    %v8286 = vpop.permute.xlu0 %8285
    %8287 = vrot.lane.b32.xlu0 %v7470, 32
    %v8288 = vpop.permute.xlu0 %8287
    %8289 = vrot.lane.b32.xlu0 %v7471, 32
    %v8290 = vpop.permute.xlu0 %8289
    %8291 = vrot.lane.b32.xlu0 %v7472, 32
    %v8292 = vpop.permute.xlu0 %8291
    %8293 = vrot.lane.b32.xlu0 %v7473, 32
    %v8294 = vpop.permute.xlu0 %8293
    %8295 = vrot.lane.b32.xlu0 %v7474, 32
    %v8296 = vpop.permute.xlu0 %8295
    %8297 = vrot.lane.b32.xlu0 %v7475, 32
    %v8298 = vpop.permute.xlu0 %8297
    %8299 = vrot.lane.b32.xlu0 %v7476, 32
    %v8300 = vpop.permute.xlu0 %8299
    %8301 = vrot.lane.b32.xlu0 %v7477, 32
    %v8302 = vpop.permute.xlu0 %8301
    %8303 = vrot.lane.b32.xlu0 %v7478, 32
    %v8304 = vpop.permute.xlu0 %8303
    %8305 = vrot.lane.b32.xlu0 %v7479, 32
    %v8306 = vpop.permute.xlu0 %8305
    %8307 = vrot.lane.b32.xlu0 %v7480, 32
    %v8308 = vpop.permute.xlu0 %8307
    %8309 = vrot.lane.b32.xlu0 %v7481, 32
    %v8310 = vpop.permute.xlu0 %8309
    %8311 = vrot.lane.b32.xlu0 %v7482, 32
    %v8312 = vpop.permute.xlu0 %8311
    %8313 = vrot.lane.b32.xlu0 %v7483, 32
    %v8314 = vpop.permute.xlu0 %8313
    %8315 = vrot.lane.b32.xlu0 %v7484, 32
    %v8316 = vpop.permute.xlu0 %8315
    %8445 = vrot.lane.b32.xlu0 %v7485, 48
    %v8446 = vpop.permute.xlu0 %8445
    %8447 = vrot.lane.b32.xlu0 %v7486, 48
    %v8448 = vpop.permute.xlu0 %8447
    %8449 = vrot.lane.b32.xlu0 %v7487, 48
    %v8450 = vpop.permute.xlu0 %8449
    %8451 = vrot.lane.b32.xlu0 %v7488, 48
    %v8452 = vpop.permute.xlu0 %8451
    %8453 = vrot.lane.b32.xlu0 %v7489, 48
    %v8454 = vpop.permute.xlu0 %8453
    %8455 = vrot.lane.b32.xlu0 %v7490, 48
    %v8456 = vpop.permute.xlu0 %8455
    %8457 = vrot.lane.b32.xlu0 %v7491, 48
    %v8458 = vpop.permute.xlu0 %8457
    %8459 = vrot.lane.b32.xlu0 %v7492, 48
    %v8460 = vpop.permute.xlu0 %8459
    %8461 = vrot.lane.b32.xlu0 %v7493, 48
    %v8462 = vpop.permute.xlu0 %8461
    %8463 = vrot.lane.b32.xlu0 %v7494, 48
    %v8464 = vpop.permute.xlu0 %8463
    %8465 = vrot.lane.b32.xlu0 %v7495, 48
    %v8466 = vpop.permute.xlu0 %8465
    %8467 = vrot.lane.b32.xlu0 %v7496, 48
    %v8468 = vpop.permute.xlu0 %8467
    %8469 = vrot.lane.b32.xlu0 %v7497, 48
    %v8470 = vpop.permute.xlu0 %8469
    %8471 = vrot.lane.b32.xlu0 %v7498, 48
    %v8472 = vpop.permute.xlu0 %8471
    %8473 = vrot.lane.b32.xlu0 %v7499, 48
    %v8474 = vpop.permute.xlu0 %8473
    %8475 = vrot.lane.b32.xlu0 %v7500, 48
    %v8476 = vpop.permute.xlu0 %8475
    %8477 = vrot.lane.b32.xlu0 %v7501, 48
    %v8478 = vpop.permute.xlu0 %8477
    %8479 = vrot.lane.b32.xlu0 %v7502, 48
    %v8480 = vpop.permute.xlu0 %8479
    %8481 = vrot.lane.b32.xlu0 %v7503, 48
    %v8482 = vpop.permute.xlu0 %8481
    %8483 = vrot.lane.b32.xlu0 %v7504, 48
    %v8484 = vpop.permute.xlu0 %8483
    %8485 = vrot.lane.b32.xlu0 %v7505, 48
    %v8486 = vpop.permute.xlu0 %8485
    %8487 = vrot.lane.b32.xlu0 %v7506, 48
    %v8488 = vpop.permute.xlu0 %8487
    %8489 = vrot.lane.b32.xlu0 %v7507, 48
    %v8490 = vpop.permute.xlu0 %8489
    %8491 = vrot.lane.b32.xlu0 %v7508, 48
    %v8492 = vpop.permute.xlu0 %8491
    %8493 = vrot.lane.b32.xlu0 %v7509, 48
    %v8494 = vpop.permute.xlu0 %8493
    %8495 = vrot.lane.b32.xlu0 %v7510, 48
    %v8496 = vpop.permute.xlu0 %8495
    %8497 = vrot.lane.b32.xlu0 %v7511, 48
    %v8498 = vpop.permute.xlu0 %8497
    %8499 = vrot.lane.b32.xlu0 %v7512, 48
    %v8500 = vpop.permute.xlu0 %8499
    %8501 = vrot.lane.b32.xlu0 %v7513, 48
    %v8502 = vpop.permute.xlu0 %8501
    %8503 = vrot.lane.b32.xlu0 %v7514, 48
    %v8504 = vpop.permute.xlu0 %8503
    %8505 = vrot.lane.b32.xlu0 %v7515, 48
    %v8506 = vpop.permute.xlu0 %8505
    %8507 = vrot.lane.b32.xlu0 %v7516, 48
    %v8508 = vpop.permute.xlu0 %8507
    %8509 = vrot.lane.b32.xlu0 %v7517, 48
    %v8510 = vpop.permute.xlu0 %8509
    %8511 = vrot.lane.b32.xlu0 %v7518, 48
    %v8512 = vpop.permute.xlu0 %8511
    %8513 = vrot.lane.b32.xlu0 %v7519, 48
    %v8514 = vpop.permute.xlu0 %8513
    %8515 = vrot.lane.b32.xlu0 %v7520, 48
    %v8516 = vpop.permute.xlu0 %8515
    %8517 = vrot.lane.b32.xlu0 %v7521, 48
    %v8518 = vpop.permute.xlu0 %8517
    %8519 = vrot.lane.b32.xlu0 %v7522, 48
    %v8520 = vpop.permute.xlu0 %8519
    %8521 = vrot.lane.b32.xlu0 %v7523, 48
    %v8522 = vpop.permute.xlu0 %8521
    %8523 = vrot.lane.b32.xlu0 %v7524, 48
    %v8524 = vpop.permute.xlu0 %8523
    %8525 = vrot.lane.b32.xlu0 %v7525, 48
    %v8526 = vpop.permute.xlu0 %8525
    %8527 = vrot.lane.b32.xlu0 %v7526, 48
    %v8528 = vpop.permute.xlu0 %8527
    %8529 = vrot.lane.b32.xlu0 %v7527, 48
    %v8530 = vpop.permute.xlu0 %8529
    %8531 = vrot.lane.b32.xlu0 %v7528, 48
    %v8532 = vpop.permute.xlu0 %8531
    %8533 = vrot.lane.b32.xlu0 %v7529, 48
    %v8534 = vpop.permute.xlu0 %8533
    %8535 = vrot.lane.b32.xlu0 %v7530, 48
    %v8536 = vpop.permute.xlu0 %8535
    %8537 = vrot.lane.b32.xlu0 %v7531, 48
    %v8538 = vpop.permute.xlu0 %8537
    %8539 = vrot.lane.b32.xlu0 %v7532, 48
    %v8540 = vpop.permute.xlu0 %8539
    %8541 = vrot.lane.b32.xlu0 %v7533, 48
    %v8542 = vpop.permute.xlu0 %8541
    %8543 = vrot.lane.b32.xlu0 %v7534, 48
    %v8544 = vpop.permute.xlu0 %8543
    %8545 = vrot.lane.b32.xlu0 %v7535, 48
    %v8546 = vpop.permute.xlu0 %8545
    %8547 = vrot.lane.b32.xlu0 %v7536, 48
    %v8548 = vpop.permute.xlu0 %8547
    %8549 = vrot.lane.b32.xlu0 %v7537, 48
    %v8550 = vpop.permute.xlu0 %8549
    %8551 = vrot.lane.b32.xlu0 %v7538, 48
    %v8552 = vpop.permute.xlu0 %8551
    %8553 = vrot.lane.b32.xlu0 %v7539, 48
    %v8554 = vpop.permute.xlu0 %8553
    %8555 = vrot.lane.b32.xlu0 %v7540, 48
    %v8556 = vpop.permute.xlu0 %8555
    %8557 = vrot.lane.b32.xlu0 %v7541, 48
    %v8558 = vpop.permute.xlu0 %8557
    %8559 = vrot.lane.b32.xlu0 %v7542, 48
    %v8560 = vpop.permute.xlu0 %8559
    %8561 = vrot.lane.b32.xlu0 %v7543, 48
    %v8562 = vpop.permute.xlu0 %8561
    %8563 = vrot.lane.b32.xlu0 %v7544, 48
    %v8564 = vpop.permute.xlu0 %8563
    %8565 = vrot.lane.b32.xlu0 %v7545, 48
    %v8566 = vpop.permute.xlu0 %8565
    %8567 = vrot.lane.b32.xlu0 %v7546, 48
    %v8568 = vpop.permute.xlu0 %8567
    %8569 = vrot.lane.b32.xlu0 %v7547, 48
    %v8570 = vpop.permute.xlu0 %8569
    %8571 = vrot.lane.b32.xlu0 %v7548, 48
    %v8572 = vpop.permute.xlu0 %8571
    %8701 = vrot.lane.b32.xlu0 %v7549, 64
    %v8702 = vpop.permute.xlu0 %8701
    %8703 = vrot.lane.b32.xlu0 %v7550, 64
    %v8704 = vpop.permute.xlu0 %8703
    %8705 = vrot.lane.b32.xlu0 %v7551, 64
    %v8706 = vpop.permute.xlu0 %8705
    %8707 = vrot.lane.b32.xlu0 %v7552, 64
    %v8708 = vpop.permute.xlu0 %8707
    %8709 = vrot.lane.b32.xlu0 %v7553, 64
    %v8710 = vpop.permute.xlu0 %8709
    %8711 = vrot.lane.b32.xlu0 %v7554, 64
    %v8712 = vpop.permute.xlu0 %8711
    %8713 = vrot.lane.b32.xlu0 %v7555, 64
    %v8714 = vpop.permute.xlu0 %8713
    %8715 = vrot.lane.b32.xlu0 %v7556, 64
    %v8716 = vpop.permute.xlu0 %8715
    %8717 = vrot.lane.b32.xlu0 %v7557, 64
    %v8718 = vpop.permute.xlu0 %8717
    %8719 = vrot.lane.b32.xlu0 %v7558, 64
    %v8720 = vpop.permute.xlu0 %8719
    %8721 = vrot.lane.b32.xlu0 %v7559, 64
    %v8722 = vpop.permute.xlu0 %8721
    %8723 = vrot.lane.b32.xlu0 %v7560, 64
    %v8724 = vpop.permute.xlu0 %8723
    %8725 = vrot.lane.b32.xlu0 %v7561, 64
    %v8726 = vpop.permute.xlu0 %8725
    %8727 = vrot.lane.b32.xlu0 %v7562, 64
    %v8728 = vpop.permute.xlu0 %8727
    %8729 = vrot.lane.b32.xlu0 %v7563, 64
    %v8730 = vpop.permute.xlu0 %8729
    %8731 = vrot.lane.b32.xlu0 %v7564, 64
    %v8732 = vpop.permute.xlu0 %8731
    %8733 = vrot.lane.b32.xlu0 %v7565, 64
    %v8734 = vpop.permute.xlu0 %8733
    %8735 = vrot.lane.b32.xlu0 %v7566, 64
    %v8736 = vpop.permute.xlu0 %8735
    %8737 = vrot.lane.b32.xlu0 %v7567, 64
    %v8738 = vpop.permute.xlu0 %8737
    %8739 = vrot.lane.b32.xlu0 %v7568, 64
    %v8740 = vpop.permute.xlu0 %8739
    %8741 = vrot.lane.b32.xlu0 %v7569, 64
    %v8742 = vpop.permute.xlu0 %8741
    %8743 = vrot.lane.b32.xlu0 %v7570, 64
    %v8744 = vpop.permute.xlu0 %8743
    %8745 = vrot.lane.b32.xlu0 %v7571, 64
    %v8746 = vpop.permute.xlu0 %8745
    %8747 = vrot.lane.b32.xlu0 %v7572, 64
    %v8748 = vpop.permute.xlu0 %8747
    %8749 = vrot.lane.b32.xlu0 %v7573, 64
    %v8750 = vpop.permute.xlu0 %8749
    %8751 = vrot.lane.b32.xlu0 %v7574, 64
    %v8752 = vpop.permute.xlu0 %8751
    %8753 = vrot.lane.b32.xlu0 %v7575, 64
    %v8754 = vpop.permute.xlu0 %8753
    %8755 = vrot.lane.b32.xlu0 %v7576, 64
    %v8756 = vpop.permute.xlu0 %8755
    %8757 = vrot.lane.b32.xlu0 %v7577, 64
    %v8758 = vpop.permute.xlu0 %8757
    %8759 = vrot.lane.b32.xlu0 %v7578, 64
    %v8760 = vpop.permute.xlu0 %8759
    %8761 = vrot.lane.b32.xlu0 %v7579, 64
    %v8762 = vpop.permute.xlu0 %8761
    %8763 = vrot.lane.b32.xlu0 %v7580, 64
    %v8764 = vpop.permute.xlu0 %8763
    %8765 = vrot.lane.b32.xlu0 %v7581, 64
    %v8766 = vpop.permute.xlu0 %8765
    %8767 = vrot.lane.b32.xlu0 %v7582, 64
    %v8768 = vpop.permute.xlu0 %8767
    %8769 = vrot.lane.b32.xlu0 %v7583, 64
    %v8770 = vpop.permute.xlu0 %8769
    %8771 = vrot.lane.b32.xlu0 %v7584, 64
    %v8772 = vpop.permute.xlu0 %8771
    %8773 = vrot.lane.b32.xlu0 %v7585, 64
    %v8774 = vpop.permute.xlu0 %8773
    %8775 = vrot.lane.b32.xlu0 %v7586, 64
    %v8776 = vpop.permute.xlu0 %8775
    %8777 = vrot.lane.b32.xlu0 %v7587, 64
    %v8778 = vpop.permute.xlu0 %8777
    %8779 = vrot.lane.b32.xlu0 %v7588, 64
    %v8780 = vpop.permute.xlu0 %8779
    %8781 = vrot.lane.b32.xlu0 %v7589, 64
    %v8782 = vpop.permute.xlu0 %8781
    %8783 = vrot.lane.b32.xlu0 %v7590, 64
    %v8784 = vpop.permute.xlu0 %8783
    %8785 = vrot.lane.b32.xlu0 %v7591, 64
    %v8786 = vpop.permute.xlu0 %8785
    %8787 = vrot.lane.b32.xlu0 %v7592, 64
    %v8788 = vpop.permute.xlu0 %8787
    %8789 = vrot.lane.b32.xlu0 %v7593, 64
    %v8790 = vpop.permute.xlu0 %8789
    %8791 = vrot.lane.b32.xlu0 %v7594, 64
    %v8792 = vpop.permute.xlu0 %8791
    %8793 = vrot.lane.b32.xlu0 %v7595, 64
    %v8794 = vpop.permute.xlu0 %8793
    %8795 = vrot.lane.b32.xlu0 %v7596, 64
    %v8796 = vpop.permute.xlu0 %8795
    %8797 = vrot.lane.b32.xlu0 %v7597, 64
    %v8798 = vpop.permute.xlu0 %8797
    %8799 = vrot.lane.b32.xlu0 %v7598, 64
    %v8800 = vpop.permute.xlu0 %8799
    %8801 = vrot.lane.b32.xlu0 %v7599, 64
    %v8802 = vpop.permute.xlu0 %8801
    %8803 = vrot.lane.b32.xlu0 %v7600, 64
    %v8804 = vpop.permute.xlu0 %8803
    %8805 = vrot.lane.b32.xlu0 %v7601, 64
    %v8806 = vpop.permute.xlu0 %8805
    %8807 = vrot.lane.b32.xlu0 %v7602, 64
    %v8808 = vpop.permute.xlu0 %8807
    %8809 = vrot.lane.b32.xlu0 %v7603, 64
    %v8810 = vpop.permute.xlu0 %8809
    %8811 = vrot.lane.b32.xlu0 %v7604, 64
    %v8812 = vpop.permute.xlu0 %8811
    %8813 = vrot.lane.b32.xlu0 %v7605, 64
    %v8814 = vpop.permute.xlu0 %8813
    %8815 = vrot.lane.b32.xlu0 %v7606, 64
    %v8816 = vpop.permute.xlu0 %8815
    %8817 = vrot.lane.b32.xlu0 %v7607, 64
    %v8818 = vpop.permute.xlu0 %8817
    %8819 = vrot.lane.b32.xlu0 %v7608, 64
    %v8820 = vpop.permute.xlu0 %8819
    %8821 = vrot.lane.b32.xlu0 %v7609, 64
    %v8822 = vpop.permute.xlu0 %8821
    %8823 = vrot.lane.b32.xlu0 %v7610, 64
    %v8824 = vpop.permute.xlu0 %8823
    %8825 = vrot.lane.b32.xlu0 %v7611, 64
    %v8826 = vpop.permute.xlu0 %8825
    %8827 = vrot.lane.b32.xlu0 %v7612, 64
    %v8828 = vpop.permute.xlu0 %8827
    %8957 = vrot.lane.b32.xlu0 %v7613, 80
    %v8958 = vpop.permute.xlu0 %8957
    %8959 = vrot.lane.b32.xlu0 %v7614, 80
    %v8960 = vpop.permute.xlu0 %8959
    %8961 = vrot.lane.b32.xlu0 %v7615, 80
    %v8962 = vpop.permute.xlu0 %8961
    %8963 = vrot.lane.b32.xlu0 %v7616, 80
    %v8964 = vpop.permute.xlu0 %8963
    %8965 = vrot.lane.b32.xlu0 %v7617, 80
    %v8966 = vpop.permute.xlu0 %8965
    %8967 = vrot.lane.b32.xlu0 %v7618, 80
    %v8968 = vpop.permute.xlu0 %8967
    %8969 = vrot.lane.b32.xlu0 %v7619, 80
    %v8970 = vpop.permute.xlu0 %8969
    %8971 = vrot.lane.b32.xlu0 %v7620, 80
    %v8972 = vpop.permute.xlu0 %8971
    %8973 = vrot.lane.b32.xlu0 %v7621, 80
    %v8974 = vpop.permute.xlu0 %8973
    %8975 = vrot.lane.b32.xlu0 %v7622, 80
    %v8976 = vpop.permute.xlu0 %8975
    %8977 = vrot.lane.b32.xlu0 %v7623, 80
    %v8978 = vpop.permute.xlu0 %8977
    %8979 = vrot.lane.b32.xlu0 %v7624, 80
    %v8980 = vpop.permute.xlu0 %8979
    %8981 = vrot.lane.b32.xlu0 %v7625, 80
    %v8982 = vpop.permute.xlu0 %8981
    %8983 = vrot.lane.b32.xlu0 %v7626, 80
    %v8984 = vpop.permute.xlu0 %8983
    %8985 = vrot.lane.b32.xlu0 %v7627, 80
    %v8986 = vpop.permute.xlu0 %8985
    %8987 = vrot.lane.b32.xlu0 %v7628, 80
    %v8988 = vpop.permute.xlu0 %8987
    %8989 = vrot.lane.b32.xlu0 %v7629, 80
    %v8990 = vpop.permute.xlu0 %8989
    %8991 = vrot.lane.b32.xlu0 %v7630, 80
    %v8992 = vpop.permute.xlu0 %8991
    %8993 = vrot.lane.b32.xlu0 %v7631, 80
    %v8994 = vpop.permute.xlu0 %8993
    %8995 = vrot.lane.b32.xlu0 %v7632, 80
    %v8996 = vpop.permute.xlu0 %8995
    %8997 = vrot.lane.b32.xlu0 %v7633, 80
    %v8998 = vpop.permute.xlu0 %8997
    %8999 = vrot.lane.b32.xlu0 %v7634, 80
    %v9000 = vpop.permute.xlu0 %8999
    %9001 = vrot.lane.b32.xlu0 %v7635, 80
    %v9002 = vpop.permute.xlu0 %9001
    %9003 = vrot.lane.b32.xlu0 %v7636, 80
    %v9004 = vpop.permute.xlu0 %9003
    %9005 = vrot.lane.b32.xlu0 %v7637, 80
    %v9006 = vpop.permute.xlu0 %9005
    %9007 = vrot.lane.b32.xlu0 %v7638, 80
    %v9008 = vpop.permute.xlu0 %9007
    %9009 = vrot.lane.b32.xlu0 %v7639, 80
    %v9010 = vpop.permute.xlu0 %9009
    %9011 = vrot.lane.b32.xlu0 %v7640, 80
    %v9012 = vpop.permute.xlu0 %9011
    %9013 = vrot.lane.b32.xlu0 %v7641, 80
    %v9014 = vpop.permute.xlu0 %9013
    %9015 = vrot.lane.b32.xlu0 %v7642, 80
    %v9016 = vpop.permute.xlu0 %9015
    %9017 = vrot.lane.b32.xlu0 %v7643, 80
    %v9018 = vpop.permute.xlu0 %9017
    %9019 = vrot.lane.b32.xlu0 %v7644, 80
    %v9020 = vpop.permute.xlu0 %9019
    %9021 = vrot.lane.b32.xlu0 %v7645, 80
    %v9022 = vpop.permute.xlu0 %9021
    %9023 = vrot.lane.b32.xlu0 %v7646, 80
    %v9024 = vpop.permute.xlu0 %9023
    %9025 = vrot.lane.b32.xlu0 %v7647, 80
    %v9026 = vpop.permute.xlu0 %9025
    %9027 = vrot.lane.b32.xlu0 %v7648, 80
    %v9028 = vpop.permute.xlu0 %9027
    %9029 = vrot.lane.b32.xlu0 %v7649, 80
    %v9030 = vpop.permute.xlu0 %9029
    %9031 = vrot.lane.b32.xlu0 %v7650, 80
    %v9032 = vpop.permute.xlu0 %9031
    %9033 = vrot.lane.b32.xlu0 %v7651, 80
    %v9034 = vpop.permute.xlu0 %9033
    %9035 = vrot.lane.b32.xlu0 %v7652, 80
    %v9036 = vpop.permute.xlu0 %9035
    %9037 = vrot.lane.b32.xlu0 %v7653, 80
    %v9038 = vpop.permute.xlu0 %9037
    %9039 = vrot.lane.b32.xlu0 %v7654, 80
    %v9040 = vpop.permute.xlu0 %9039
    %9041 = vrot.lane.b32.xlu0 %v7655, 80
    %v9042 = vpop.permute.xlu0 %9041
    %9043 = vrot.lane.b32.xlu0 %v7656, 80
    %v9044 = vpop.permute.xlu0 %9043
    %9045 = vrot.lane.b32.xlu0 %v7657, 80
    %v9046 = vpop.permute.xlu0 %9045
    %9047 = vrot.lane.b32.xlu0 %v7658, 80
    %v9048 = vpop.permute.xlu0 %9047
    %9049 = vrot.lane.b32.xlu0 %v7659, 80
    %v9050 = vpop.permute.xlu0 %9049
    %9051 = vrot.lane.b32.xlu0 %v7660, 80
    %v9052 = vpop.permute.xlu0 %9051
    %9053 = vrot.lane.b32.xlu0 %v7661, 80
    %v9054 = vpop.permute.xlu0 %9053
    %9055 = vrot.lane.b32.xlu0 %v7662, 80
    %v9056 = vpop.permute.xlu0 %9055
    %9057 = vrot.lane.b32.xlu0 %v7663, 80
    %v9058 = vpop.permute.xlu0 %9057
    %9059 = vrot.lane.b32.xlu0 %v7664, 80
    %v9060 = vpop.permute.xlu0 %9059
    %9061 = vrot.lane.b32.xlu0 %v7665, 80
    %v9062 = vpop.permute.xlu0 %9061
    %9063 = vrot.lane.b32.xlu0 %v7666, 80
    %v9064 = vpop.permute.xlu0 %9063
    %9065 = vrot.lane.b32.xlu0 %v7667, 80
    %v9066 = vpop.permute.xlu0 %9065
    %9067 = vrot.lane.b32.xlu0 %v7668, 80
    %v9068 = vpop.permute.xlu0 %9067
    %9069 = vrot.lane.b32.xlu0 %v7669, 80
    %v9070 = vpop.permute.xlu0 %9069
    %9071 = vrot.lane.b32.xlu0 %v7670, 80
    %v9072 = vpop.permute.xlu0 %9071
    %9073 = vrot.lane.b32.xlu0 %v7671, 80
    %v9074 = vpop.permute.xlu0 %9073
    %9075 = vrot.lane.b32.xlu0 %v7672, 80
    %v9076 = vpop.permute.xlu0 %9075
    %9077 = vrot.lane.b32.xlu0 %v7673, 80
    %v9078 = vpop.permute.xlu0 %9077
    %9079 = vrot.lane.b32.xlu0 %v7674, 80
    %v9080 = vpop.permute.xlu0 %9079
    %9081 = vrot.lane.b32.xlu0 %v7675, 80
    %v9082 = vpop.permute.xlu0 %9081
    %9083 = vrot.lane.b32.xlu0 %v7676, 80
    %v9084 = vpop.permute.xlu0 %9083
    %9213 = vrot.lane.b32.xlu0 %v7677, 96
    %v9214 = vpop.permute.xlu0 %9213
    %9215 = vrot.lane.b32.xlu0 %v7678, 96
    %v9216 = vpop.permute.xlu0 %9215
    %9217 = vrot.lane.b32.xlu0 %v7679, 96
    %v9218 = vpop.permute.xlu0 %9217
    %9219 = vrot.lane.b32.xlu0 %v7680, 96
    %v9220 = vpop.permute.xlu0 %9219
    %9221 = vrot.lane.b32.xlu0 %v7681, 96
    %v9222 = vpop.permute.xlu0 %9221
    %9223 = vrot.lane.b32.xlu0 %v7682, 96
    %v9224 = vpop.permute.xlu0 %9223
    %9225 = vrot.lane.b32.xlu0 %v7683, 96
    %v9226 = vpop.permute.xlu0 %9225
    %9227 = vrot.lane.b32.xlu0 %v7684, 96
    %v9228 = vpop.permute.xlu0 %9227
    %9229 = vrot.lane.b32.xlu0 %v7685, 96
    %v9230 = vpop.permute.xlu0 %9229
    %9231 = vrot.lane.b32.xlu0 %v7686, 96
    %v9232 = vpop.permute.xlu0 %9231
    %9233 = vrot.lane.b32.xlu0 %v7687, 96
    %v9234 = vpop.permute.xlu0 %9233
    %9235 = vrot.lane.b32.xlu0 %v7688, 96
    %v9236 = vpop.permute.xlu0 %9235
    %9237 = vrot.lane.b32.xlu0 %v7689, 96
    %v9238 = vpop.permute.xlu0 %9237
    %9239 = vrot.lane.b32.xlu0 %v7690, 96
    %v9240 = vpop.permute.xlu0 %9239
    %9241 = vrot.lane.b32.xlu0 %v7691, 96
    %v9242 = vpop.permute.xlu0 %9241
    %9243 = vrot.lane.b32.xlu0 %v7692, 96
    %v9244 = vpop.permute.xlu0 %9243
    %9245 = vrot.lane.b32.xlu0 %v7693, 96
    %v9246 = vpop.permute.xlu0 %9245
    %9247 = vrot.lane.b32.xlu0 %v7694, 96
    %v9248 = vpop.permute.xlu0 %9247
    %9249 = vrot.lane.b32.xlu0 %v7695, 96
    %v9250 = vpop.permute.xlu0 %9249
    %9251 = vrot.lane.b32.xlu0 %v7696, 96
    %v9252 = vpop.permute.xlu0 %9251
    %9253 = vrot.lane.b32.xlu0 %v7697, 96
    %v9254 = vpop.permute.xlu0 %9253
    %9255 = vrot.lane.b32.xlu0 %v7698, 96
    %v9256 = vpop.permute.xlu0 %9255
    %9257 = vrot.lane.b32.xlu0 %v7699, 96
    %v9258 = vpop.permute.xlu0 %9257
    %9259 = vrot.lane.b32.xlu0 %v7700, 96
    %v9260 = vpop.permute.xlu0 %9259
    %9261 = vrot.lane.b32.xlu0 %v7701, 96
    %v9262 = vpop.permute.xlu0 %9261
    %9263 = vrot.lane.b32.xlu0 %v7702, 96
    %v9264 = vpop.permute.xlu0 %9263
    %9265 = vrot.lane.b32.xlu0 %v7703, 96
    %v9266 = vpop.permute.xlu0 %9265
    %9267 = vrot.lane.b32.xlu0 %v7704, 96
    %v9268 = vpop.permute.xlu0 %9267
    %9269 = vrot.lane.b32.xlu0 %v7705, 96
    %v9270 = vpop.permute.xlu0 %9269
    %9271 = vrot.lane.b32.xlu0 %v7706, 96
    %v9272 = vpop.permute.xlu0 %9271
    %9273 = vrot.lane.b32.xlu0 %v7707, 96
    %v9274 = vpop.permute.xlu0 %9273
    %9275 = vrot.lane.b32.xlu0 %v7708, 96
    %v9276 = vpop.permute.xlu0 %9275
    %9277 = vrot.lane.b32.xlu0 %v7709, 96
    %v9278 = vpop.permute.xlu0 %9277
    %9279 = vrot.lane.b32.xlu0 %v7710, 96
    %v9280 = vpop.permute.xlu0 %9279
    %9281 = vrot.lane.b32.xlu0 %v7711, 96
    %v9282 = vpop.permute.xlu0 %9281
    %9283 = vrot.lane.b32.xlu0 %v7712, 96
    %v9284 = vpop.permute.xlu0 %9283
    %9285 = vrot.lane.b32.xlu0 %v7713, 96
    %v9286 = vpop.permute.xlu0 %9285
    %9287 = vrot.lane.b32.xlu0 %v7714, 96
    %v9288 = vpop.permute.xlu0 %9287
    %9289 = vrot.lane.b32.xlu0 %v7715, 96
    %v9290 = vpop.permute.xlu0 %9289
    %9291 = vrot.lane.b32.xlu0 %v7716, 96
    %v9292 = vpop.permute.xlu0 %9291
    %9293 = vrot.lane.b32.xlu0 %v7717, 96
    %v9294 = vpop.permute.xlu0 %9293
    %9295 = vrot.lane.b32.xlu0 %v7718, 96
    %v9296 = vpop.permute.xlu0 %9295
    %9297 = vrot.lane.b32.xlu0 %v7719, 96
    %v9298 = vpop.permute.xlu0 %9297
    %9299 = vrot.lane.b32.xlu0 %v7720, 96
    %v9300 = vpop.permute.xlu0 %9299
    %9301 = vrot.lane.b32.xlu0 %v7721, 96
    %v9302 = vpop.permute.xlu0 %9301
    %9303 = vrot.lane.b32.xlu0 %v7722, 96
    %v9304 = vpop.permute.xlu0 %9303
    %9305 = vrot.lane.b32.xlu0 %v7723, 96
    %v9306 = vpop.permute.xlu0 %9305
    %9307 = vrot.lane.b32.xlu0 %v7724, 96
    %v9308 = vpop.permute.xlu0 %9307
    %9309 = vrot.lane.b32.xlu0 %v7725, 96
    %v9310 = vpop.permute.xlu0 %9309
    %9311 = vrot.lane.b32.xlu0 %v7726, 96
    %v9312 = vpop.permute.xlu0 %9311
    %9313 = vrot.lane.b32.xlu0 %v7727, 96
    %v9314 = vpop.permute.xlu0 %9313
    %9315 = vrot.lane.b32.xlu0 %v7728, 96
    %v9316 = vpop.permute.xlu0 %9315
    %9317 = vrot.lane.b32.xlu0 %v7729, 96
    %v9318 = vpop.permute.xlu0 %9317
    %9319 = vrot.lane.b32.xlu0 %v7730, 96
    %v9320 = vpop.permute.xlu0 %9319
    %9321 = vrot.lane.b32.xlu0 %v7731, 96
    %v9322 = vpop.permute.xlu0 %9321
    %9323 = vrot.lane.b32.xlu0 %v7732, 96
    %v9324 = vpop.permute.xlu0 %9323
    %9325 = vrot.lane.b32.xlu0 %v7733, 96
    %v9326 = vpop.permute.xlu0 %9325
    %9327 = vrot.lane.b32.xlu0 %v7734, 96
    %v9328 = vpop.permute.xlu0 %9327
    %9329 = vrot.lane.b32.xlu0 %v7735, 96
    %v9330 = vpop.permute.xlu0 %9329
    %9331 = vrot.lane.b32.xlu0 %v7736, 96
    %v9332 = vpop.permute.xlu0 %9331
    %9333 = vrot.lane.b32.xlu0 %v7737, 96
    %v9334 = vpop.permute.xlu0 %9333
    %9335 = vrot.lane.b32.xlu0 %v7738, 96
    %v9336 = vpop.permute.xlu0 %9335
    %9337 = vrot.lane.b32.xlu0 %v7739, 96
    %v9338 = vpop.permute.xlu0 %9337
    %9339 = vrot.lane.b32.xlu0 %v7740, 96
    %v9340 = vpop.permute.xlu0 %9339
    %9469 = vrot.lane.b32.xlu0 %v7741, 112
    %v9470 = vpop.permute.xlu0 %9469
    %9471 = vrot.lane.b32.xlu0 %v7742, 112
    %v9472 = vpop.permute.xlu0 %9471
    %9473 = vrot.lane.b32.xlu0 %v7743, 112
    %v9474 = vpop.permute.xlu0 %9473
    %9475 = vrot.lane.b32.xlu0 %v7744, 112
    %v9476 = vpop.permute.xlu0 %9475
    %9477 = vrot.lane.b32.xlu0 %v7745, 112
    %v9478 = vpop.permute.xlu0 %9477
    %9479 = vrot.lane.b32.xlu0 %v7746, 112
    %v9480 = vpop.permute.xlu0 %9479
    %9481 = vrot.lane.b32.xlu0 %v7747, 112
    %v9482 = vpop.permute.xlu0 %9481
    %9483 = vrot.lane.b32.xlu0 %v7748, 112
    %v9484 = vpop.permute.xlu0 %9483
    %9485 = vrot.lane.b32.xlu0 %v7749, 112
    %v9486 = vpop.permute.xlu0 %9485
    %9487 = vrot.lane.b32.xlu0 %v7750, 112
    %v9488 = vpop.permute.xlu0 %9487
    %9489 = vrot.lane.b32.xlu0 %v7751, 112
    %v9490 = vpop.permute.xlu0 %9489
    %9491 = vrot.lane.b32.xlu0 %v7752, 112
    %v9492 = vpop.permute.xlu0 %9491
    %9493 = vrot.lane.b32.xlu0 %v7753, 112
    %v9494 = vpop.permute.xlu0 %9493
    %9495 = vrot.lane.b32.xlu0 %v7754, 112
    %v9496 = vpop.permute.xlu0 %9495
    %9497 = vrot.lane.b32.xlu0 %v7755, 112
    %v9498 = vpop.permute.xlu0 %9497
    %9499 = vrot.lane.b32.xlu0 %v7756, 112
    %v9500 = vpop.permute.xlu0 %9499
    %9501 = vrot.lane.b32.xlu0 %v7757, 112
    %v9502 = vpop.permute.xlu0 %9501
    %9503 = vrot.lane.b32.xlu0 %v7758, 112
    %v9504 = vpop.permute.xlu0 %9503
    %9505 = vrot.lane.b32.xlu0 %v7759, 112
    %v9506 = vpop.permute.xlu0 %9505
    %9507 = vrot.lane.b32.xlu0 %v7760, 112
    %v9508 = vpop.permute.xlu0 %9507
    %9509 = vrot.lane.b32.xlu0 %v7761, 112
    %v9510 = vpop.permute.xlu0 %9509
    %9511 = vrot.lane.b32.xlu0 %v7762, 112
    %v9512 = vpop.permute.xlu0 %9511
    %9513 = vrot.lane.b32.xlu0 %v7763, 112
    %v9514 = vpop.permute.xlu0 %9513
    %9515 = vrot.lane.b32.xlu0 %v7764, 112
    %v9516 = vpop.permute.xlu0 %9515
    %9517 = vrot.lane.b32.xlu0 %v7765, 112
    %v9518 = vpop.permute.xlu0 %9517
    %9519 = vrot.lane.b32.xlu0 %v7766, 112
    %v9520 = vpop.permute.xlu0 %9519
    %9521 = vrot.lane.b32.xlu0 %v7767, 112
    %v9522 = vpop.permute.xlu0 %9521
    %9523 = vrot.lane.b32.xlu0 %v7768, 112
    %v9524 = vpop.permute.xlu0 %9523
    %9525 = vrot.lane.b32.xlu0 %v7769, 112
    %v9526 = vpop.permute.xlu0 %9525
    %9527 = vrot.lane.b32.xlu0 %v7770, 112
    %v9528 = vpop.permute.xlu0 %9527
    %9529 = vrot.lane.b32.xlu0 %v7771, 112
    %v9530 = vpop.permute.xlu0 %9529
    %9531 = vrot.lane.b32.xlu0 %v7772, 112
    %v9532 = vpop.permute.xlu0 %9531
    %9533 = vrot.lane.b32.xlu0 %v7773, 112
    %v9534 = vpop.permute.xlu0 %9533
    %9535 = vrot.lane.b32.xlu0 %v7774, 112
    %v9536 = vpop.permute.xlu0 %9535
    %9537 = vrot.lane.b32.xlu0 %v7775, 112
    %v9538 = vpop.permute.xlu0 %9537
    %9539 = vrot.lane.b32.xlu0 %v7776, 112
    %v9540 = vpop.permute.xlu0 %9539
    %9541 = vrot.lane.b32.xlu0 %v7777, 112
    %v9542 = vpop.permute.xlu0 %9541
    %9543 = vrot.lane.b32.xlu0 %v7778, 112
    %v9544 = vpop.permute.xlu0 %9543
    %9545 = vrot.lane.b32.xlu0 %v7779, 112
    %v9546 = vpop.permute.xlu0 %9545
    %9547 = vrot.lane.b32.xlu0 %v7780, 112
    %v9548 = vpop.permute.xlu0 %9547
    %9549 = vrot.lane.b32.xlu0 %v7781, 112
    %v9550 = vpop.permute.xlu0 %9549
    %9551 = vrot.lane.b32.xlu0 %v7782, 112
    %v9552 = vpop.permute.xlu0 %9551
    %9553 = vrot.lane.b32.xlu0 %v7783, 112
    %v9554 = vpop.permute.xlu0 %9553
    %9555 = vrot.lane.b32.xlu0 %v7784, 112
    %v9556 = vpop.permute.xlu0 %9555
    %9557 = vrot.lane.b32.xlu0 %v7785, 112
    %v9558 = vpop.permute.xlu0 %9557
    %9559 = vrot.lane.b32.xlu0 %v7786, 112
    %v9560 = vpop.permute.xlu0 %9559
    %9561 = vrot.lane.b32.xlu0 %v7787, 112
    %v9562 = vpop.permute.xlu0 %9561
    %9563 = vrot.lane.b32.xlu0 %v7788, 112
    %v9564 = vpop.permute.xlu0 %9563
    %9565 = vrot.lane.b32.xlu0 %v7789, 112
    %v9566 = vpop.permute.xlu0 %9565
    %9567 = vrot.lane.b32.xlu0 %v7790, 112
    %v9568 = vpop.permute.xlu0 %9567
    %9569 = vrot.lane.b32.xlu0 %v7791, 112
    %v9570 = vpop.permute.xlu0 %9569
    %9571 = vrot.lane.b32.xlu0 %v7792, 112
    %v9572 = vpop.permute.xlu0 %9571
    %9573 = vrot.lane.b32.xlu0 %v7793, 112
    %v9574 = vpop.permute.xlu0 %9573
    %9575 = vrot.lane.b32.xlu0 %v7794, 112
    %v9576 = vpop.permute.xlu0 %9575
    %9577 = vrot.lane.b32.xlu0 %v7795, 112
    %v9578 = vpop.permute.xlu0 %9577
    %9579 = vrot.lane.b32.xlu0 %v7796, 112
    %v9580 = vpop.permute.xlu0 %9579
    %9581 = vrot.lane.b32.xlu0 %v7797, 112
    %v9582 = vpop.permute.xlu0 %9581
    %9583 = vrot.lane.b32.xlu0 %v7798, 112
    %v9584 = vpop.permute.xlu0 %9583
    %9585 = vrot.lane.b32.xlu0 %v7799, 112
    %v9586 = vpop.permute.xlu0 %9585
    %9587 = vrot.lane.b32.xlu0 %v7800, 112
    %v9588 = vpop.permute.xlu0 %9587
    %9589 = vrot.lane.b32.xlu0 %v7801, 112
    %v9590 = vpop.permute.xlu0 %9589
    %9591 = vrot.lane.b32.xlu0 %v7802, 112
    %v9592 = vpop.permute.xlu0 %9591
    %9593 = vrot.lane.b32.xlu0 %v7803, 112
    %v9594 = vpop.permute.xlu0 %9593
    %9595 = vrot.lane.b32.xlu0 %v7804, 112
    %v9596 = vpop.permute.xlu0 %9595
    %v9661 = vsel %vm2662, %v7293, %v7934
    %v9662 = vsel %vm2662, %v7294, %v7936
    %v9663 = vsel %vm2662, %v7295, %v7938
    %v9664 = vsel %vm2662, %v7296, %v7940
    %v9665 = vsel %vm2662, %v7297, %v7942
    %v9666 = vsel %vm2662, %v7298, %v7944
    %v9667 = vsel %vm2662, %v7299, %v7946
    %v9668 = vsel %vm2662, %v7300, %v7948
    %v9669 = vsel %vm2662, %v7301, %v7950
    %v9670 = vsel %vm2662, %v7302, %v7952
    %v9671 = vsel %vm2662, %v7303, %v7954
    %v9672 = vsel %vm2662, %v7304, %v7956
    %v9673 = vsel %vm2662, %v7305, %v7958
    %v9674 = vsel %vm2662, %v7306, %v7960
    %v9675 = vsel %vm2662, %v7307, %v7962
    %v9676 = vsel %vm2662, %v7308, %v7964
    %v9677 = vsel %vm2662, %v7309, %v7966
    %v9678 = vsel %vm2662, %v7310, %v7968
    %v9679 = vsel %vm2662, %v7311, %v7970
    %v9680 = vsel %vm2662, %v7312, %v7972
    %v9681 = vsel %vm2662, %v7313, %v7974
    %v9682 = vsel %vm2662, %v7314, %v7976
    %v9683 = vsel %vm2662, %v7315, %v7978
    %v9684 = vsel %vm2662, %v7316, %v7980
    %v9685 = vsel %vm2662, %v7317, %v7982
    %v9686 = vsel %vm2662, %v7318, %v7984
    %v9687 = vsel %vm2662, %v7319, %v7986
    %v9688 = vsel %vm2662, %v7320, %v7988
    %v9689 = vsel %vm2662, %v7321, %v7990
    %v9690 = vsel %vm2662, %v7322, %v7992
    %v9691 = vsel %vm2662, %v7323, %v7994
    %v9692 = vsel %vm2662, %v7324, %v7996
    %v9693 = vsel %vm2662, %v7325, %v7998
    %v9694 = vsel %vm2662, %v7326, %v8000
    %v9695 = vsel %vm2662, %v7327, %v8002
    %v9696 = vsel %vm2662, %v7328, %v8004
    %v9697 = vsel %vm2662, %v7329, %v8006
    %v9698 = vsel %vm2662, %v7330, %v8008
    %v9699 = vsel %vm2662, %v7331, %v8010
    %v9700 = vsel %vm2662, %v7332, %v8012
    %v9701 = vsel %vm2662, %v7333, %v8014
    %v9702 = vsel %vm2662, %v7334, %v8016
    %v9703 = vsel %vm2662, %v7335, %v8018
    %v9704 = vsel %vm2662, %v7336, %v8020
    %v9705 = vsel %vm2662, %v7337, %v8022
    %v9706 = vsel %vm2662, %v7338, %v8024
    %v9707 = vsel %vm2662, %v7339, %v8026
    %v9708 = vsel %vm2662, %v7340, %v8028
    %v9709 = vsel %vm2662, %v7341, %v8030
    %v9710 = vsel %vm2662, %v7342, %v8032
    %v9711 = vsel %vm2662, %v7343, %v8034
    %v9712 = vsel %vm2662, %v7344, %v8036
    %v9713 = vsel %vm2662, %v7345, %v8038
    %v9714 = vsel %vm2662, %v7346, %v8040
    %v9715 = vsel %vm2662, %v7347, %v8042
    %v9716 = vsel %vm2662, %v7348, %v8044
    %v9717 = vsel %vm2662, %v7349, %v8046
    %v9718 = vsel %vm2662, %v7350, %v8048
    %v9719 = vsel %vm2662, %v7351, %v8050
    %v9720 = vsel %vm2662, %v7352, %v8052
    %v9721 = vsel %vm2662, %v7353, %v8054
    %v9722 = vsel %vm2662, %v7354, %v8056
    %v9723 = vsel %vm2662, %v7355, %v8058
    %v9724 = vsel %vm2662, %v7356, %v8060
    %v9725 = vsel %vm1659, %v9661, %v8190
    %v9726 = vsel %vm1659, %v9662, %v8192
    %v9727 = vsel %vm1659, %v9663, %v8194
    %v9728 = vsel %vm1659, %v9664, %v8196
    %v9729 = vsel %vm1659, %v9665, %v8198
    %v9730 = vsel %vm1659, %v9666, %v8200
    %v9731 = vsel %vm1659, %v9667, %v8202
    %v9732 = vsel %vm1659, %v9668, %v8204
    %v9733 = vsel %vm1659, %v9669, %v8206
    %v9734 = vsel %vm1659, %v9670, %v8208
    %v9735 = vsel %vm1659, %v9671, %v8210
    %v9736 = vsel %vm1659, %v9672, %v8212
    %v9737 = vsel %vm1659, %v9673, %v8214
    %v9738 = vsel %vm1659, %v9674, %v8216
    %v9739 = vsel %vm1659, %v9675, %v8218
    %v9740 = vsel %vm1659, %v9676, %v8220
    %v9741 = vsel %vm1659, %v9677, %v8222
    %v9742 = vsel %vm1659, %v9678, %v8224
    %v9743 = vsel %vm1659, %v9679, %v8226
    %v9744 = vsel %vm1659, %v9680, %v8228
    %v9745 = vsel %vm1659, %v9681, %v8230
    %v9746 = vsel %vm1659, %v9682, %v8232
    %v9747 = vsel %vm1659, %v9683, %v8234
    %v9748 = vsel %vm1659, %v9684, %v8236
    %v9749 = vsel %vm1659, %v9685, %v8238
    %v9750 = vsel %vm1659, %v9686, %v8240
    %v9751 = vsel %vm1659, %v9687, %v8242
    %v9752 = vsel %vm1659, %v9688, %v8244
    %v9753 = vsel %vm1659, %v9689, %v8246
    %v9754 = vsel %vm1659, %v9690, %v8248
    %v9755 = vsel %vm1659, %v9691, %v8250
    %v9756 = vsel %vm1659, %v9692, %v8252
    %v9757 = vsel %vm1659, %v9693, %v8254
    %v9758 = vsel %vm1659, %v9694, %v8256
    %v9759 = vsel %vm1659, %v9695, %v8258
    %v9760 = vsel %vm1659, %v9696, %v8260
    %v9761 = vsel %vm1659, %v9697, %v8262
    %v9762 = vsel %vm1659, %v9698, %v8264
    %v9763 = vsel %vm1659, %v9699, %v8266
    %v9764 = vsel %vm1659, %v9700, %v8268
    %v9765 = vsel %vm1659, %v9701, %v8270
    %v9766 = vsel %vm1659, %v9702, %v8272
    %v9767 = vsel %vm1659, %v9703, %v8274
    %v9768 = vsel %vm1659, %v9704, %v8276
    %v9769 = vsel %vm1659, %v9705, %v8278
    %v9770 = vsel %vm1659, %v9706, %v8280
    %v9771 = vsel %vm1659, %v9707, %v8282
    %v9772 = vsel %vm1659, %v9708, %v8284
    %v9773 = vsel %vm1659, %v9709, %v8286
    %v9774 = vsel %vm1659, %v9710, %v8288
    %v9775 = vsel %vm1659, %v9711, %v8290
    %v9776 = vsel %vm1659, %v9712, %v8292
    %v9777 = vsel %vm1659, %v9713, %v8294
    %v9778 = vsel %vm1659, %v9714, %v8296
    %v9779 = vsel %vm1659, %v9715, %v8298
    %v9780 = vsel %vm1659, %v9716, %v8300
    %v9781 = vsel %vm1659, %v9717, %v8302
    %v9782 = vsel %vm1659, %v9718, %v8304
    %v9783 = vsel %vm1659, %v9719, %v8306
    %v9784 = vsel %vm1659, %v9720, %v8308
    %v9785 = vsel %vm1659, %v9721, %v8310
    %v9786 = vsel %vm1659, %v9722, %v8312
    %v9787 = vsel %vm1659, %v9723, %v8314
    %v9788 = vsel %vm1659, %v9724, %v8316
    %v9789 = vsel %vm5762, %v9725, %v8446
    %v9790 = vsel %vm5762, %v9726, %v8448
    %v9791 = vsel %vm5762, %v9727, %v8450
    %v9792 = vsel %vm5762, %v9728, %v8452
    %v9793 = vsel %vm5762, %v9729, %v8454
    %v9794 = vsel %vm5762, %v9730, %v8456
    %v9795 = vsel %vm5762, %v9731, %v8458
    %v9796 = vsel %vm5762, %v9732, %v8460
    %v9797 = vsel %vm5762, %v9733, %v8462
    %v9798 = vsel %vm5762, %v9734, %v8464
    %v9799 = vsel %vm5762, %v9735, %v8466
    %v9800 = vsel %vm5762, %v9736, %v8468
    %v9801 = vsel %vm5762, %v9737, %v8470
    %v9802 = vsel %vm5762, %v9738, %v8472
    %v9803 = vsel %vm5762, %v9739, %v8474
    %v9804 = vsel %vm5762, %v9740, %v8476
    %v9805 = vsel %vm5762, %v9741, %v8478
    %v9806 = vsel %vm5762, %v9742, %v8480
    %v9807 = vsel %vm5762, %v9743, %v8482
    %v9808 = vsel %vm5762, %v9744, %v8484
    %v9809 = vsel %vm5762, %v9745, %v8486
    %v9810 = vsel %vm5762, %v9746, %v8488
    %v9811 = vsel %vm5762, %v9747, %v8490
    %v9812 = vsel %vm5762, %v9748, %v8492
    %v9813 = vsel %vm5762, %v9749, %v8494
    %v9814 = vsel %vm5762, %v9750, %v8496
    %v9815 = vsel %vm5762, %v9751, %v8498
    %v9816 = vsel %vm5762, %v9752, %v8500
    %v9817 = vsel %vm5762, %v9753, %v8502
    %v9818 = vsel %vm5762, %v9754, %v8504
    %v9819 = vsel %vm5762, %v9755, %v8506
    %v9820 = vsel %vm5762, %v9756, %v8508
    %v9821 = vsel %vm5762, %v9757, %v8510
    %v9822 = vsel %vm5762, %v9758, %v8512
    %v9823 = vsel %vm5762, %v9759, %v8514
    %v9824 = vsel %vm5762, %v9760, %v8516
    %v9825 = vsel %vm5762, %v9761, %v8518
    %v9826 = vsel %vm5762, %v9762, %v8520
    %v9827 = vsel %vm5762, %v9763, %v8522
    %v9828 = vsel %vm5762, %v9764, %v8524
    %v9829 = vsel %vm5762, %v9765, %v8526
    %v9830 = vsel %vm5762, %v9766, %v8528
    %v9831 = vsel %vm5762, %v9767, %v8530
    %v9832 = vsel %vm5762, %v9768, %v8532
    %v9833 = vsel %vm5762, %v9769, %v8534
    %v9834 = vsel %vm5762, %v9770, %v8536
    %v9835 = vsel %vm5762, %v9771, %v8538
    %v9836 = vsel %vm5762, %v9772, %v8540
    %v9837 = vsel %vm5762, %v9773, %v8542
    %v9838 = vsel %vm5762, %v9774, %v8544
    %v9839 = vsel %vm5762, %v9775, %v8546
    %v9840 = vsel %vm5762, %v9776, %v8548
    %v9841 = vsel %vm5762, %v9777, %v8550
    %v9842 = vsel %vm5762, %v9778, %v8552
    %v9843 = vsel %vm5762, %v9779, %v8554
    %v9844 = vsel %vm5762, %v9780, %v8556
    %v9845 = vsel %vm5762, %v9781, %v8558
    %v9846 = vsel %vm5762, %v9782, %v8560
    %v9847 = vsel %vm5762, %v9783, %v8562
    %v9848 = vsel %vm5762, %v9784, %v8564
    %v9849 = vsel %vm5762, %v9785, %v8566
    %v9850 = vsel %vm5762, %v9786, %v8568
    %v9851 = vsel %vm5762, %v9787, %v8570
    %v9852 = vsel %vm5762, %v9788, %v8572
    %v9853 = vsel %vm5892, %v9789, %v8702
    %v9854 = vsel %vm5892, %v9790, %v8704
    %v9855 = vsel %vm5892, %v9791, %v8706
    %v9856 = vsel %vm5892, %v9792, %v8708
    %v9857 = vsel %vm5892, %v9793, %v8710
    %v9858 = vsel %vm5892, %v9794, %v8712
    %v9859 = vsel %vm5892, %v9795, %v8714
    %v9860 = vsel %vm5892, %v9796, %v8716
    %v9861 = vsel %vm5892, %v9797, %v8718
    %v9862 = vsel %vm5892, %v9798, %v8720
    %v9863 = vsel %vm5892, %v9799, %v8722
    %v9864 = vsel %vm5892, %v9800, %v8724
    %v9865 = vsel %vm5892, %v9801, %v8726
    %v9866 = vsel %vm5892, %v9802, %v8728
    %v9867 = vsel %vm5892, %v9803, %v8730
    %v9868 = vsel %vm5892, %v9804, %v8732
    %v9869 = vsel %vm5892, %v9805, %v8734
    %v9870 = vsel %vm5892, %v9806, %v8736
    %v9871 = vsel %vm5892, %v9807, %v8738
    %v9872 = vsel %vm5892, %v9808, %v8740
    %v9873 = vsel %vm5892, %v9809, %v8742
    %v9874 = vsel %vm5892, %v9810, %v8744
    %v9875 = vsel %vm5892, %v9811, %v8746
    %v9876 = vsel %vm5892, %v9812, %v8748
    %v9877 = vsel %vm5892, %v9813, %v8750
    %v9878 = vsel %vm5892, %v9814, %v8752
    %v9879 = vsel %vm5892, %v9815, %v8754
    %v9880 = vsel %vm5892, %v9816, %v8756
    %v9881 = vsel %vm5892, %v9817, %v8758
    %v9882 = vsel %vm5892, %v9818, %v8760
    %v9883 = vsel %vm5892, %v9819, %v8762
    %v9884 = vsel %vm5892, %v9820, %v8764
    %v9885 = vsel %vm5892, %v9821, %v8766
    %v9886 = vsel %vm5892, %v9822, %v8768
    %v9887 = vsel %vm5892, %v9823, %v8770
    %v9888 = vsel %vm5892, %v9824, %v8772
    %v9889 = vsel %vm5892, %v9825, %v8774
    %v9890 = vsel %vm5892, %v9826, %v8776
    %v9891 = vsel %vm5892, %v9827, %v8778
    %v9892 = vsel %vm5892, %v9828, %v8780
    %v9893 = vsel %vm5892, %v9829, %v8782
    %v9894 = vsel %vm5892, %v9830, %v8784
    %v9895 = vsel %vm5892, %v9831, %v8786
    %v9896 = vsel %vm5892, %v9832, %v8788
    %v9897 = vsel %vm5892, %v9833, %v8790
    %v9898 = vsel %vm5892, %v9834, %v8792
    %v9899 = vsel %vm5892, %v9835, %v8794
    %v9900 = vsel %vm5892, %v9836, %v8796
    %v9901 = vsel %vm5892, %v9837, %v8798
    %v9902 = vsel %vm5892, %v9838, %v8800
    %v9903 = vsel %vm5892, %v9839, %v8802
    %v9904 = vsel %vm5892, %v9840, %v8804
    %v9905 = vsel %vm5892, %v9841, %v8806
    %v9906 = vsel %vm5892, %v9842, %v8808
    %v9907 = vsel %vm5892, %v9843, %v8810
    %v9908 = vsel %vm5892, %v9844, %v8812
    %v9909 = vsel %vm5892, %v9845, %v8814
    %v9910 = vsel %vm5892, %v9846, %v8816
    %v9911 = vsel %vm5892, %v9847, %v8818
    %v9912 = vsel %vm5892, %v9848, %v8820
    %v9913 = vsel %vm5892, %v9849, %v8822
    %v9914 = vsel %vm5892, %v9850, %v8824
    %v9915 = vsel %vm5892, %v9851, %v8826
    %v9916 = vsel %vm5892, %v9852, %v8828
    %vm9917 = vcmask 654336
    %v9918 = vsel %vm9917, %v9853, %v8958
    %v9919 = vsel %vm9917, %v9854, %v8960
    %v9920 = vsel %vm9917, %v9855, %v8962
    %v9921 = vsel %vm9917, %v9856, %v8964
    %v9922 = vsel %vm9917, %v9857, %v8966
    %v9923 = vsel %vm9917, %v9858, %v8968
    %v9924 = vsel %vm9917, %v9859, %v8970
    %v9925 = vsel %vm9917, %v9860, %v8972
    %v9926 = vsel %vm9917, %v9861, %v8974
    %v9927 = vsel %vm9917, %v9862, %v8976
    %v9928 = vsel %vm9917, %v9863, %v8978
    %v9929 = vsel %vm9917, %v9864, %v8980
    %v9930 = vsel %vm9917, %v9865, %v8982
    %v9931 = vsel %vm9917, %v9866, %v8984
    %v9932 = vsel %vm9917, %v9867, %v8986
    %v9933 = vsel %vm9917, %v9868, %v8988
    %v9934 = vsel %vm9917, %v9869, %v8990
    %v9935 = vsel %vm9917, %v9870, %v8992
    %v9936 = vsel %vm9917, %v9871, %v8994
    %v9937 = vsel %vm9917, %v9872, %v8996
    %v9938 = vsel %vm9917, %v9873, %v8998
    %v9939 = vsel %vm9917, %v9874, %v9000
    %v9940 = vsel %vm9917, %v9875, %v9002
    %v9941 = vsel %vm9917, %v9876, %v9004
    %v9942 = vsel %vm9917, %v9877, %v9006
    %v9943 = vsel %vm9917, %v9878, %v9008
    %v9944 = vsel %vm9917, %v9879, %v9010
    %v9945 = vsel %vm9917, %v9880, %v9012
    %v9946 = vsel %vm9917, %v9881, %v9014
    %v9947 = vsel %vm9917, %v9882, %v9016
    %v9948 = vsel %vm9917, %v9883, %v9018
    %v9949 = vsel %vm9917, %v9884, %v9020
    %v9950 = vsel %vm9917, %v9885, %v9022
    %v9951 = vsel %vm9917, %v9886, %v9024
    %v9952 = vsel %vm9917, %v9887, %v9026
    %v9953 = vsel %vm9917, %v9888, %v9028
    %v9954 = vsel %vm9917, %v9889, %v9030
    %v9955 = vsel %vm9917, %v9890, %v9032
    %v9956 = vsel %vm9917, %v9891, %v9034
    %v9957 = vsel %vm9917, %v9892, %v9036
    %v9958 = vsel %vm9917, %v9893, %v9038
    %v9959 = vsel %vm9917, %v9894, %v9040
    %v9960 = vsel %vm9917, %v9895, %v9042
    %v9961 = vsel %vm9917, %v9896, %v9044
    %v9962 = vsel %vm9917, %v9897, %v9046
    %v9963 = vsel %vm9917, %v9898, %v9048
    %v9964 = vsel %vm9917, %v9899, %v9050
    %v9965 = vsel %vm9917, %v9900, %v9052
    %v9966 = vsel %vm9917, %v9901, %v9054
    %v9967 = vsel %vm9917, %v9902, %v9056
    %v9968 = vsel %vm9917, %v9903, %v9058
    %v9969 = vsel %vm9917, %v9904, %v9060
    %v9970 = vsel %vm9917, %v9905, %v9062
    %v9971 = vsel %vm9917, %v9906, %v9064
    %v9972 = vsel %vm9917, %v9907, %v9066
    %v9973 = vsel %vm9917, %v9908, %v9068
    %v9974 = vsel %vm9917, %v9909, %v9070
    %v9975 = vsel %vm9917, %v9910, %v9072
    %v9976 = vsel %vm9917, %v9911, %v9074
    %v9977 = vsel %vm9917, %v9912, %v9076
    %v9978 = vsel %vm9917, %v9913, %v9078
    %v9979 = vsel %vm9917, %v9914, %v9080
    %v9980 = vsel %vm9917, %v9915, %v9082
    %v9981 = vsel %vm9917, %v9916, %v9084
    %vm9982 = vcmask 785408
    %v9983 = vsel %vm9982, %v9918, %v9214
    %v9984 = vsel %vm9982, %v9919, %v9216
    %v9985 = vsel %vm9982, %v9920, %v9218
    %v9986 = vsel %vm9982, %v9921, %v9220
    %v9987 = vsel %vm9982, %v9922, %v9222
    %v9988 = vsel %vm9982, %v9923, %v9224
    %v9989 = vsel %vm9982, %v9924, %v9226
    %v9990 = vsel %vm9982, %v9925, %v9228
    %v9991 = vsel %vm9982, %v9926, %v9230
    %v9992 = vsel %vm9982, %v9927, %v9232
    %v9993 = vsel %vm9982, %v9928, %v9234
    %v9994 = vsel %vm9982, %v9929, %v9236
    %v9995 = vsel %vm9982, %v9930, %v9238
    %v9996 = vsel %vm9982, %v9931, %v9240
    %v9997 = vsel %vm9982, %v9932, %v9242
    %v9998 = vsel %vm9982, %v9933, %v9244
    %v9999 = vsel %vm9982, %v9934, %v9246
    %v10000 = vsel %vm9982, %v9935, %v9248
    %v10001 = vsel %vm9982, %v9936, %v9250
    %v10002 = vsel %vm9982, %v9937, %v9252
    %v10003 = vsel %vm9982, %v9938, %v9254
    %v10004 = vsel %vm9982, %v9939, %v9256
    %v10005 = vsel %vm9982, %v9940, %v9258
    %v10006 = vsel %vm9982, %v9941, %v9260
    %v10007 = vsel %vm9982, %v9942, %v9262
    %v10008 = vsel %vm9982, %v9943, %v9264
    %v10009 = vsel %vm9982, %v9944, %v9266
    %v10010 = vsel %vm9982, %v9945, %v9268
    %v10011 = vsel %vm9982, %v9946, %v9270
    %v10012 = vsel %vm9982, %v9947, %v9272
    %v10013 = vsel %vm9982, %v9948, %v9274
    %v10014 = vsel %vm9982, %v9949, %v9276
    %v10015 = vsel %vm9982, %v9950, %v9278
    %v10016 = vsel %vm9982, %v9951, %v9280
    %v10017 = vsel %vm9982, %v9952, %v9282
    %v10018 = vsel %vm9982, %v9953, %v9284
    %v10019 = vsel %vm9982, %v9954, %v9286
    %v10020 = vsel %vm9982, %v9955, %v9288
    %v10021 = vsel %vm9982, %v9956, %v9290
    %v10022 = vsel %vm9982, %v9957, %v9292
    %v10023 = vsel %vm9982, %v9958, %v9294
    %v10024 = vsel %vm9982, %v9959, %v9296
    %v10025 = vsel %vm9982, %v9960, %v9298
    %v10026 = vsel %vm9982, %v9961, %v9300
    %v10027 = vsel %vm9982, %v9962, %v9302
    %v10028 = vsel %vm9982, %v9963, %v9304
    %v10029 = vsel %vm9982, %v9964, %v9306
    %v10030 = vsel %vm9982, %v9965, %v9308
    %v10031 = vsel %vm9982, %v9966, %v9310
    %v10032 = vsel %vm9982, %v9967, %v9312
    %v10033 = vsel %vm9982, %v9968, %v9314
    %v10034 = vsel %vm9982, %v9969, %v9316
    %v10035 = vsel %vm9982, %v9970, %v9318
    %v10036 = vsel %vm9982, %v9971, %v9320
    %v10037 = vsel %vm9982, %v9972, %v9322
    %v10038 = vsel %vm9982, %v9973, %v9324
    %v10039 = vsel %vm9982, %v9974, %v9326
    %v10040 = vsel %vm9982, %v9975, %v9328
    %v10041 = vsel %vm9982, %v9976, %v9330
    %v10042 = vsel %vm9982, %v9977, %v9332
    %v10043 = vsel %vm9982, %v9978, %v9334
    %v10044 = vsel %vm9982, %v9979, %v9336
    %v10045 = vsel %vm9982, %v9980, %v9338
    %v10046 = vsel %vm9982, %v9981, %v9340
    %vm10047 = vcmask 916480
    %v10048 = vsel %vm10047, %v9983, %v9470
    %v10049 = vsel %vm10047, %v9984, %v9472
    %v10050 = vsel %vm10047, %v9985, %v9474
    %v10051 = vsel %vm10047, %v9986, %v9476
    %v10052 = vsel %vm10047, %v9987, %v9478
    %v10053 = vsel %vm10047, %v9988, %v9480
    %v10054 = vsel %vm10047, %v9989, %v9482
    %v10055 = vsel %vm10047, %v9990, %v9484
    %v10056 = vsel %vm10047, %v9991, %v9486
    %v10057 = vsel %vm10047, %v9992, %v9488
    %v10058 = vsel %vm10047, %v9993, %v9490
    %v10059 = vsel %vm10047, %v9994, %v9492
    %v10060 = vsel %vm10047, %v9995, %v9494
    %v10061 = vsel %vm10047, %v9996, %v9496
    %v10062 = vsel %vm10047, %v9997, %v9498
    %v10063 = vsel %vm10047, %v9998, %v9500
    %v10064 = vsel %vm10047, %v9999, %v9502
    %v10065 = vsel %vm10047, %v10000, %v9504
    %v10066 = vsel %vm10047, %v10001, %v9506
    %v10067 = vsel %vm10047, %v10002, %v9508
    %v10068 = vsel %vm10047, %v10003, %v9510
    %v10069 = vsel %vm10047, %v10004, %v9512
    %v10070 = vsel %vm10047, %v10005, %v9514
    %v10071 = vsel %vm10047, %v10006, %v9516
    %v10072 = vsel %vm10047, %v10007, %v9518
    %v10073 = vsel %vm10047, %v10008, %v9520
    %v10074 = vsel %vm10047, %v10009, %v9522
    %v10075 = vsel %vm10047, %v10010, %v9524
    %v10076 = vsel %vm10047, %v10011, %v9526
    %v10077 = vsel %vm10047, %v10012, %v9528
    %v10078 = vsel %vm10047, %v10013, %v9530
    %v10079 = vsel %vm10047, %v10014, %v9532
    %v10080 = vsel %vm10047, %v10015, %v9534
    %v10081 = vsel %vm10047, %v10016, %v9536
    %v10082 = vsel %vm10047, %v10017, %v9538
    %v10083 = vsel %vm10047, %v10018, %v9540
    %v10084 = vsel %vm10047, %v10019, %v9542
    %v10085 = vsel %vm10047, %v10020, %v9544
    %v10086 = vsel %vm10047, %v10021, %v9546
    %v10087 = vsel %vm10047, %v10022, %v9548
    %v10088 = vsel %vm10047, %v10023, %v9550
    %v10089 = vsel %vm10047, %v10024, %v9552
    %v10090 = vsel %vm10047, %v10025, %v9554
    %v10091 = vsel %vm10047, %v10026, %v9556
    %v10092 = vsel %vm10047, %v10027, %v9558
    %v10093 = vsel %vm10047, %v10028, %v9560
    %v10094 = vsel %vm10047, %v10029, %v9562
    %v10095 = vsel %vm10047, %v10030, %v9564
    %v10096 = vsel %vm10047, %v10031, %v9566
    %v10097 = vsel %vm10047, %v10032, %v9568
    %v10098 = vsel %vm10047, %v10033, %v9570
    %v10099 = vsel %vm10047, %v10034, %v9572
    %v10100 = vsel %vm10047, %v10035, %v9574
    %v10101 = vsel %vm10047, %v10036, %v9576
    %v10102 = vsel %vm10047, %v10037, %v9578
    %v10103 = vsel %vm10047, %v10038, %v9580
    %v10104 = vsel %vm10047, %v10039, %v9582
    %v10105 = vsel %vm10047, %v10040, %v9584
    %v10106 = vsel %vm10047, %v10041, %v9586
    %v10107 = vsel %vm10047, %v10042, %v9588
    %v10108 = vsel %vm10047, %v10043, %v9590
    %v10109 = vsel %vm10047, %v10044, %v9592
    %v10110 = vsel %vm10047, %v10045, %v9594
    %v10111 = vsel %vm10047, %v10046, %v9596
    %v10112 = vpack.c.bf16 %v7805, %v10048
    %v10113 = vpack.c.bf16 %v7806, %v10049
    %v10114 = vpack.c.bf16 %v7807, %v10050
    %v10115 = vpack.c.bf16 %v7808, %v10051
    %v10116 = vpack.c.bf16 %v7809, %v10052
    %v10117 = vpack.c.bf16 %v7810, %v10053
    %v10118 = vpack.c.bf16 %v7811, %v10054
    %v10119 = vpack.c.bf16 %v7812, %v10055
    %v10120 = vpack.c.bf16 %v7813, %v10056
    %v10121 = vpack.c.bf16 %v7814, %v10057
    %v10122 = vpack.c.bf16 %v7815, %v10058
    %v10123 = vpack.c.bf16 %v7816, %v10059
    %v10124 = vpack.c.bf16 %v7817, %v10060
    %v10125 = vpack.c.bf16 %v7818, %v10061
    %v10126 = vpack.c.bf16 %v7819, %v10062
    %v10127 = vpack.c.bf16 %v7820, %v10063
    %v10128 = vpack.c.bf16 %v7821, %v10064
    %v10129 = vpack.c.bf16 %v7822, %v10065
    %v10130 = vpack.c.bf16 %v7823, %v10066
    %v10131 = vpack.c.bf16 %v7824, %v10067
    %v10132 = vpack.c.bf16 %v7825, %v10068
    %v10133 = vpack.c.bf16 %v7826, %v10069
    %v10134 = vpack.c.bf16 %v7827, %v10070
    %v10135 = vpack.c.bf16 %v7828, %v10071
    %v10136 = vpack.c.bf16 %v7829, %v10072
    %v10137 = vpack.c.bf16 %v7830, %v10073
    %v10138 = vpack.c.bf16 %v7831, %v10074
    %v10139 = vpack.c.bf16 %v7832, %v10075
    %v10140 = vpack.c.bf16 %v7833, %v10076
    %v10141 = vpack.c.bf16 %v7834, %v10077
    %v10142 = vpack.c.bf16 %v7835, %v10078
    %v10143 = vpack.c.bf16 %v7836, %v10079
    %v10144 = vpack.c.bf16 %v7837, %v10080
    %v10145 = vpack.c.bf16 %v7838, %v10081
    %v10146 = vpack.c.bf16 %v7839, %v10082
    %v10147 = vpack.c.bf16 %v7840, %v10083
    %v10148 = vpack.c.bf16 %v7841, %v10084
    %v10149 = vpack.c.bf16 %v7842, %v10085
    %v10150 = vpack.c.bf16 %v7843, %v10086
    %v10151 = vpack.c.bf16 %v7844, %v10087
    %v10152 = vpack.c.bf16 %v7845, %v10088
    %v10153 = vpack.c.bf16 %v7846, %v10089
    %v10154 = vpack.c.bf16 %v7847, %v10090
    %v10155 = vpack.c.bf16 %v7848, %v10091
    %v10156 = vpack.c.bf16 %v7849, %v10092
    %v10157 = vpack.c.bf16 %v7850, %v10093
    %v10158 = vpack.c.bf16 %v7851, %v10094
    %v10159 = vpack.c.bf16 %v7852, %v10095
    %v10160 = vpack.c.bf16 %v7853, %v10096
    %v10161 = vpack.c.bf16 %v7854, %v10097
    %v10162 = vpack.c.bf16 %v7855, %v10098
    %v10163 = vpack.c.bf16 %v7856, %v10099
    %v10164 = vpack.c.bf16 %v7857, %v10100
    %v10165 = vpack.c.bf16 %v7858, %v10101
    %v10166 = vpack.c.bf16 %v7859, %v10102
    %v10167 = vpack.c.bf16 %v7860, %v10103
    %v10168 = vpack.c.bf16 %v7861, %v10104
    %v10169 = vpack.c.bf16 %v7862, %v10105
    %v10170 = vpack.c.bf16 %v7863, %v10106
    %v10171 = vpack.c.bf16 %v7864, %v10107
    %v10172 = vpack.c.bf16 %v7865, %v10108
    %v10173 = vpack.c.bf16 %v7866, %v10109
    %v10174 = vpack.c.bf16 %v7867, %v10110
    %v10175 = vpack.c.bf16 %v7868, %v10111
    %v10176 = vld [vmem:[%s9] sm:$0xf]
    %v10177 = vld [vmem:[%s9 + $0x4] sm:$0xf]
    %v10178 = vld [vmem:[%s9 + $0x8] sm:$0xf]
    %v10179 = vld [vmem:[%s9 + $0xc] sm:$0xf]
    %v10180 = vld [vmem:[%s9 + $0x10] sm:$0xf]
    %v10181 = vld [vmem:[%s9 + $0x14] sm:$0xf]
    %v10182 = vld [vmem:[%s9 + $0x18] sm:$0xf]
    %v10183 = vld [vmem:[%s9 + $0x1c] sm:$0xf]
    %v10184 = vld [vmem:[%s9 + $0x20] sm:$0xf]
    %v10185 = vld [vmem:[%s9 + $0x24] sm:$0xf]
    %v10186 = vld [vmem:[%s9 + $0x28] sm:$0xf]
    %v10187 = vld [vmem:[%s9 + $0x2c] sm:$0xf]
    %v10188 = vld [vmem:[%s9 + $0x30] sm:$0xf]
    %v10189 = vld [vmem:[%s9 + $0x34] sm:$0xf]
    %v10190 = vld [vmem:[%s9 + $0x38] sm:$0xf]
    %v10191 = vld [vmem:[%s9 + $0x3c] sm:$0xf]
    %v10192 = vld [vmem:[%s9 + $0x40] sm:$0xf]
    %v10193 = vld [vmem:[%s9 + $0x44] sm:$0xf]
    %v10194 = vld [vmem:[%s10] sm:$0x1]
    %v10196 = vperm.slane %v10194, 0
    %v10262 = vunpack.c.l.b16 %v10112
    %v10263 = vunpack.c.h.b16 %v10112
    %v10264 = vunpack.c.l.b16 %v10113
    %v10265 = vunpack.c.h.b16 %v10113
    %v10266 = vunpack.c.l.b16 %v10114
    %v10267 = vunpack.c.h.b16 %v10114
    %v10268 = vunpack.c.l.b16 %v10115
    %v10269 = vunpack.c.h.b16 %v10115
    %v10270 = vunpack.c.l.b16 %v10116
    %v10271 = vunpack.c.h.b16 %v10116
    %v10272 = vunpack.c.l.b16 %v10117
    %v10273 = vunpack.c.h.b16 %v10117
    %v10274 = vunpack.c.l.b16 %v10118
    %v10275 = vunpack.c.h.b16 %v10118
    %v10276 = vunpack.c.l.b16 %v10119
    %v10277 = vunpack.c.h.b16 %v10119
    %v10278 = vunpack.c.l.b16 %v10120
    %v10279 = vunpack.c.h.b16 %v10120
    %v10280 = vunpack.c.l.b16 %v10121
    %v10281 = vunpack.c.h.b16 %v10121
    %v10282 = vunpack.c.l.b16 %v10122
    %v10283 = vunpack.c.h.b16 %v10122
    %v10284 = vunpack.c.l.b16 %v10123
    %v10285 = vunpack.c.h.b16 %v10123
    %v10286 = vunpack.c.l.b16 %v10124
    %v10287 = vunpack.c.h.b16 %v10124
    %v10288 = vunpack.c.l.b16 %v10125
    %v10289 = vunpack.c.h.b16 %v10125
    %v10290 = vunpack.c.l.b16 %v10126
    %v10291 = vunpack.c.h.b16 %v10126
    %v10292 = vunpack.c.l.b16 %v10127
    %v10293 = vunpack.c.h.b16 %v10127
    %v10294 = vunpack.c.l.b16 %v10128
    %v10295 = vunpack.c.h.b16 %v10128
    %v10296 = vunpack.c.l.b16 %v10129
    %v10297 = vunpack.c.h.b16 %v10129
    %v10298 = vunpack.c.l.b16 %v10130
    %v10299 = vunpack.c.h.b16 %v10130
    %v10300 = vunpack.c.l.b16 %v10131
    %v10301 = vunpack.c.h.b16 %v10131
    %v10302 = vunpack.c.l.b16 %v10132
    %v10303 = vunpack.c.h.b16 %v10132
    %v10304 = vunpack.c.l.b16 %v10133
    %v10305 = vunpack.c.h.b16 %v10133
    %v10306 = vunpack.c.l.b16 %v10134
    %v10307 = vunpack.c.h.b16 %v10134
    %v10308 = vunpack.c.l.b16 %v10135
    %v10309 = vunpack.c.h.b16 %v10135
    %v10310 = vunpack.c.l.b16 %v10136
    %v10311 = vunpack.c.h.b16 %v10136
    %v10312 = vunpack.c.l.b16 %v10137
    %v10313 = vunpack.c.h.b16 %v10137
    %v10314 = vunpack.c.l.b16 %v10138
    %v10315 = vunpack.c.h.b16 %v10138
    %v10316 = vunpack.c.l.b16 %v10139
    %v10317 = vunpack.c.h.b16 %v10139
    %v10318 = vunpack.c.l.b16 %v10140
    %v10319 = vunpack.c.h.b16 %v10140
    %v10320 = vunpack.c.l.b16 %v10141
    %v10321 = vunpack.c.h.b16 %v10141
    %v10322 = vunpack.c.l.b16 %v10142
    %v10323 = vunpack.c.h.b16 %v10142
    %v10324 = vunpack.c.l.b16 %v10143
    %v10325 = vunpack.c.h.b16 %v10143
    %v10326 = vunpack.c.l.b16 %v10144
    %v10327 = vunpack.c.h.b16 %v10144
    %v10328 = vunpack.c.l.b16 %v10145
    %v10329 = vunpack.c.h.b16 %v10145
    %v10330 = vunpack.c.l.b16 %v10146
    %v10331 = vunpack.c.h.b16 %v10146
    %v10332 = vunpack.c.l.b16 %v10147
    %v10333 = vunpack.c.h.b16 %v10147
    %v10334 = vunpack.c.l.b16 %v10148
    %v10335 = vunpack.c.h.b16 %v10148
    %v10336 = vunpack.c.l.b16 %v10149
    %v10337 = vunpack.c.h.b16 %v10149
    %v10338 = vunpack.c.l.b16 %v10150
    %v10339 = vunpack.c.h.b16 %v10150
    %v10340 = vunpack.c.l.b16 %v10151
    %v10341 = vunpack.c.h.b16 %v10151
    %v10342 = vunpack.c.l.b16 %v10152
    %v10343 = vunpack.c.h.b16 %v10152
    %v10344 = vunpack.c.l.b16 %v10153
    %v10345 = vunpack.c.h.b16 %v10153
    %v10346 = vunpack.c.l.b16 %v10154
    %v10347 = vunpack.c.h.b16 %v10154
    %v10348 = vunpack.c.l.b16 %v10155
    %v10349 = vunpack.c.h.b16 %v10155
    %v10350 = vunpack.c.l.b16 %v10156
    %v10351 = vunpack.c.h.b16 %v10156
    %v10352 = vunpack.c.l.b16 %v10157
    %v10353 = vunpack.c.h.b16 %v10157
    %v10354 = vunpack.c.l.b16 %v10158
    %v10355 = vunpack.c.h.b16 %v10158
    %v10356 = vunpack.c.l.b16 %v10159
    %v10357 = vunpack.c.h.b16 %v10159
    %v10358 = vunpack.c.l.b16 %v10160
    %v10359 = vunpack.c.h.b16 %v10160
    %v10360 = vunpack.c.l.b16 %v10161
    %v10361 = vunpack.c.h.b16 %v10161
    %v10362 = vunpack.c.l.b16 %v10162
    %v10363 = vunpack.c.h.b16 %v10162
    %v10364 = vunpack.c.l.b16 %v10163
    %v10365 = vunpack.c.h.b16 %v10163
    %v10366 = vunpack.c.l.b16 %v10164
    %v10367 = vunpack.c.h.b16 %v10164
    %v10368 = vunpack.c.l.b16 %v10165
    %v10369 = vunpack.c.h.b16 %v10165
    %v10370 = vunpack.c.l.b16 %v10166
    %v10371 = vunpack.c.h.b16 %v10166
    %v10372 = vunpack.c.l.b16 %v10167
    %v10373 = vunpack.c.h.b16 %v10167
    %v10374 = vunpack.c.l.b16 %v10168
    %v10375 = vunpack.c.h.b16 %v10168
    %v10376 = vunpack.c.l.b16 %v10169
    %v10377 = vunpack.c.h.b16 %v10169
    %v10378 = vunpack.c.l.b16 %v10170
    %v10379 = vunpack.c.h.b16 %v10170
    %v10380 = vunpack.c.l.b16 %v10171
    %v10381 = vunpack.c.h.b16 %v10171
    %v10382 = vunpack.c.l.b16 %v10172
    %v10383 = vunpack.c.h.b16 %v10172
    %v10384 = vunpack.c.l.b16 %v10173
    %v10385 = vunpack.c.h.b16 %v10173
    %v10386 = vunpack.c.l.b16 %v10174
    %v10387 = vunpack.c.h.b16 %v10174
    %v10388 = vunpack.c.l.b16 %v10175
    %v10389 = vunpack.c.h.b16 %v10175
    %v10390 = vpack.c.b16 %v10264, %v10262
    %v10391 = vpack.c.b16 %v10265, %v10263
    %v10392 = vpack.c.b16 %v10268, %v10266
    %v10393 = vpack.c.b16 %v10269, %v10267
    %v10394 = vpack.c.b16 %v10272, %v10270
    %v10395 = vpack.c.b16 %v10273, %v10271
    %v10396 = vpack.c.b16 %v10276, %v10274
    %v10397 = vpack.c.b16 %v10277, %v10275
    %v10398 = vpack.c.b16 %v10280, %v10278
    %v10399 = vpack.c.b16 %v10281, %v10279
    %v10400 = vpack.c.b16 %v10284, %v10282
    %v10401 = vpack.c.b16 %v10285, %v10283
    %v10402 = vpack.c.b16 %v10288, %v10286
    %v10403 = vpack.c.b16 %v10289, %v10287
    %v10404 = vpack.c.b16 %v10292, %v10290
    %v10405 = vpack.c.b16 %v10293, %v10291
    %v10406 = vpack.c.b16 %v10296, %v10294
    %v10407 = vpack.c.b16 %v10297, %v10295
    %v10408 = vpack.c.b16 %v10300, %v10298
    %v10409 = vpack.c.b16 %v10301, %v10299
    %v10410 = vpack.c.b16 %v10304, %v10302
    %v10411 = vpack.c.b16 %v10305, %v10303
    %v10412 = vpack.c.b16 %v10308, %v10306
    %v10413 = vpack.c.b16 %v10309, %v10307
    %v10414 = vpack.c.b16 %v10312, %v10310
    %v10415 = vpack.c.b16 %v10313, %v10311
    %v10416 = vpack.c.b16 %v10316, %v10314
    %v10417 = vpack.c.b16 %v10317, %v10315
    %v10418 = vpack.c.b16 %v10320, %v10318
    %v10419 = vpack.c.b16 %v10321, %v10319
    %v10420 = vpack.c.b16 %v10324, %v10322
    %v10421 = vpack.c.b16 %v10325, %v10323
    %v10422 = vpack.c.b16 %v10328, %v10326
    %v10423 = vpack.c.b16 %v10329, %v10327
    %v10424 = vpack.c.b16 %v10332, %v10330
    %v10425 = vpack.c.b16 %v10333, %v10331
    %v10426 = vpack.c.b16 %v10336, %v10334
    %v10427 = vpack.c.b16 %v10337, %v10335
    %v10428 = vpack.c.b16 %v10340, %v10338
    %v10429 = vpack.c.b16 %v10341, %v10339
    %v10430 = vpack.c.b16 %v10344, %v10342
    %v10431 = vpack.c.b16 %v10345, %v10343
    %v10432 = vpack.c.b16 %v10348, %v10346
    %v10433 = vpack.c.b16 %v10349, %v10347
    %v10434 = vpack.c.b16 %v10352, %v10350
    %v10435 = vpack.c.b16 %v10353, %v10351
    %v10436 = vpack.c.b16 %v10356, %v10354
    %v10437 = vpack.c.b16 %v10357, %v10355
    %v10438 = vpack.c.b16 %v10360, %v10358
    %v10439 = vpack.c.b16 %v10361, %v10359
    %v10440 = vpack.c.b16 %v10364, %v10362
    %v10441 = vpack.c.b16 %v10365, %v10363
    %v10442 = vpack.c.b16 %v10368, %v10366
    %v10443 = vpack.c.b16 %v10369, %v10367
    %v10444 = vpack.c.b16 %v10372, %v10370
    %v10445 = vpack.c.b16 %v10373, %v10371
    %v10446 = vpack.c.b16 %v10376, %v10374
    %v10447 = vpack.c.b16 %v10377, %v10375
    %v10448 = vpack.c.b16 %v10380, %v10378
    %v10449 = vpack.c.b16 %v10381, %v10379
    %v10450 = vpack.c.b16 %v10384, %v10382
    %v10451 = vpack.c.b16 %v10385, %v10383
    %v10452 = vpack.c.b16 %v10388, %v10386
    %v10453 = vpack.c.b16 %v10389, %v10387
    %v10504 = vunpack.c.l.b16 %v10176
    %v10505 = vunpack.c.l.b16 %v10177
    %v10506 = vunpack.c.l.b16 %v10178
    %v10507 = vunpack.c.l.b16 %v10179
    %v10508 = vunpack.c.l.b16 %v10180
    %v10509 = vunpack.c.l.b16 %v10181
    %v10510 = vunpack.c.l.b16 %v10182
    %v10511 = vunpack.c.l.b16 %v10183
    %v10512 = vunpack.c.l.b16 %v10184
    %v10513 = vunpack.c.l.b16 %v10185
    %v10514 = vunpack.c.l.b16 %v10186
    %v10515 = vunpack.c.l.b16 %v10187
    %v10516 = vunpack.c.l.b16 %v10188
    %v10517 = vunpack.c.l.b16 %v10189
    %v10518 = vunpack.c.l.b16 %v10190
    %v10519 = vunpack.c.l.b16 %v10191
    %v10520 = vunpack.c.l.b16 %v10192
    %v10521 = vunpack.c.l.b16 %v10193
    %v10522 = vpack.c.b16 %v10505, %v10504
    %v10523 = vpack.c.b16 %v10507, %v10506
    %v10524 = vpack.c.b16 %v10509, %v10508
    %v10525 = vpack.c.b16 %v10511, %v10510
    %v10526 = vpack.c.b16 %v10513, %v10512
    %v10527 = vpack.c.b16 %v10515, %v10514
    %v10528 = vpack.c.b16 %v10517, %v10516
    %v10529 = vpack.c.b16 %v10519, %v10518
    %v10530 = vpack.c.b16 %v10521, %v10520
    %v10541 = vsel %vm2662, %v10391, 0
    %v10544 = vsel %vm2662, %v10393, 0
    %v10547 = vsel %vm2662, %v10395, 0
    %v10550 = vsel %vm2662, %v10397, 0
    %v10553 = vsel %vm2662, %v10399, 0
    %v10556 = vsel %vm2662, %v10401, 0
    %v10559 = vsel %vm2662, %v10403, 0
    %v10562 = vsel %vm2662, %v10405, 0
    %v10565 = vsel %vm2662, %v10407, 0
    %v10568 = vsel %vm2662, %v10409, 0
    %v10571 = vsel %vm2662, %v10411, 0
    %v10574 = vsel %vm2662, %v10413, 0
    %v10577 = vsel %vm2662, %v10415, 0
    %v10580 = vsel %vm2662, %v10417, 0
    %v10583 = vsel %vm2662, %v10419, 0
    %v10586 = vsel %vm2662, %v10421, 0
    %v10589 = vsel %vm2662, %v10423, 0
    %v10592 = vsel %vm2662, %v10425, 0
    %v10595 = vsel %vm2662, %v10427, 0
    %v10598 = vsel %vm2662, %v10429, 0
    %v10601 = vsel %vm2662, %v10431, 0
    %v10604 = vsel %vm2662, %v10433, 0
    %v10607 = vsel %vm2662, %v10435, 0
    %v10610 = vsel %vm2662, %v10437, 0
    %v10613 = vsel %vm2662, %v10439, 0
    %v10616 = vsel %vm2662, %v10441, 0
    %v10619 = vsel %vm2662, %v10443, 0
    %v10622 = vsel %vm2662, %v10445, 0
    %v10625 = vsel %vm2662, %v10447, 0
    %v10628 = vsel %vm2662, %v10449, 0
    %v10631 = vsel %vm2662, %v10451, 0
    %v10634 = vsel %vm2662, %v10453, 0
    %10636 = vmatpush.bf16.msra.mxu0 %v10529
    %10637 = vmatpush.bf16.msra.mxu0 %v10528
    %10638 = vmatpush.bf16.msra.mxu0 %v10527
    %10639 = vmatpush.bf16.msra.mxu0 %v10526
    %10640 = vmatpush.bf16.msra.mxu0 %v10525
    %10641 = vmatpush.bf16.msra.mxu0 %v10524
    %10642 = vmatpush.bf16.msra.mxu0 %v10523
    %10643 = vmatpush.bf16.msra.mxu0 %v10522
    %10644 = vmatmul.bf16.gmra.mxu0 %v10390
    %v10645 = vpop.f32.mrf.mxu0
    %v10646 = vadd.f32 %v10196, %v10645
    %v10647 = vpop.f32.mrf.mxu0
    %v10648 = vadd.f32 %v10196, %v10647
    %10649 = vmatmul.bf16.gmra.mxu0 %v10392
    %v10650 = vpop.f32.mrf.mxu0
    %v10651 = vadd.f32 %v10196, %v10650
    %v10652 = vpop.f32.mrf.mxu0
    %v10653 = vadd.f32 %v10196, %v10652
    %10654 = vmatmul.bf16.gmra.mxu0 %v10394
    %v10655 = vpop.f32.mrf.mxu0
    %v10656 = vadd.f32 %v10196, %v10655
    %v10657 = vpop.f32.mrf.mxu0
    %v10658 = vadd.f32 %v10196, %v10657
    %10659 = vmatmul.bf16.gmra.mxu0 %v10396
    %v10660 = vpop.f32.mrf.mxu0
    %v10661 = vadd.f32 %v10196, %v10660
    %v10662 = vpop.f32.mrf.mxu0
    %v10663 = vadd.f32 %v10196, %v10662
    %10664 = vmatmul.bf16.gmra.mxu0 %v10398
    %v10665 = vpop.f32.mrf.mxu0
    %v10666 = vadd.f32 %v10196, %v10665
    %v10667 = vpop.f32.mrf.mxu0
    %v10668 = vadd.f32 %v10196, %v10667
    %10669 = vmatmul.bf16.gmra.mxu0 %v10400
    %v10670 = vpop.f32.mrf.mxu0
    %v10671 = vadd.f32 %v10196, %v10670
    %v10672 = vpop.f32.mrf.mxu0
    %v10673 = vadd.f32 %v10196, %v10672
    %10674 = vmatmul.bf16.gmra.mxu0 %v10402
    %v10675 = vpop.f32.mrf.mxu0
    %v10676 = vadd.f32 %v10196, %v10675
    %v10677 = vpop.f32.mrf.mxu0
    %v10678 = vadd.f32 %v10196, %v10677
    %10679 = vmatmul.bf16.gmra.mxu0 %v10404
    %v10680 = vpop.f32.mrf.mxu0
    %v10681 = vadd.f32 %v10196, %v10680
    %v10682 = vpop.f32.mrf.mxu0
    %v10683 = vadd.f32 %v10196, %v10682
    %10684 = vmatmul.bf16.gmra.mxu0 %v10406
    %v10685 = vpop.f32.mrf.mxu0
    %v10686 = vadd.f32 %v10196, %v10685
    %v10687 = vpop.f32.mrf.mxu0
    %v10688 = vadd.f32 %v10196, %v10687
    %10689 = vmatmul.bf16.gmra.mxu0 %v10408
    %v10690 = vpop.f32.mrf.mxu0
    %v10691 = vadd.f32 %v10196, %v10690
    %v10692 = vpop.f32.mrf.mxu0
    %v10693 = vadd.f32 %v10196, %v10692
    %10694 = vmatmul.bf16.gmra.mxu0 %v10410
    %v10695 = vpop.f32.mrf.mxu0
    %v10696 = vadd.f32 %v10196, %v10695
    %v10697 = vpop.f32.mrf.mxu0
    %v10698 = vadd.f32 %v10196, %v10697
    %10699 = vmatmul.bf16.gmra.mxu0 %v10412
    %v10700 = vpop.f32.mrf.mxu0
    %v10701 = vadd.f32 %v10196, %v10700
    %v10702 = vpop.f32.mrf.mxu0
    %v10703 = vadd.f32 %v10196, %v10702
    %10704 = vmatmul.bf16.gmra.mxu0 %v10414
    %v10705 = vpop.f32.mrf.mxu0
    %v10706 = vadd.f32 %v10196, %v10705
    %v10707 = vpop.f32.mrf.mxu0
    %v10708 = vadd.f32 %v10196, %v10707
    %10709 = vmatmul.bf16.gmra.mxu0 %v10416
    %v10710 = vpop.f32.mrf.mxu0
    %v10711 = vadd.f32 %v10196, %v10710
    %v10712 = vpop.f32.mrf.mxu0
    %v10713 = vadd.f32 %v10196, %v10712
    %10714 = vmatmul.bf16.gmra.mxu0 %v10418
    %v10715 = vpop.f32.mrf.mxu0
    %v10716 = vadd.f32 %v10196, %v10715
    %v10717 = vpop.f32.mrf.mxu0
    %v10718 = vadd.f32 %v10196, %v10717
    %10719 = vmatmul.bf16.gmra.mxu0 %v10420
    %v10720 = vpop.f32.mrf.mxu0
    %v10721 = vadd.f32 %v10196, %v10720
    %v10722 = vpop.f32.mrf.mxu0
    %v10723 = vadd.f32 %v10196, %v10722
    %10724 = vmatmul.bf16.gmra.mxu0 %v10422
    %v10725 = vpop.f32.mrf.mxu0
    %v10726 = vadd.f32 %v10196, %v10725
    %v10727 = vpop.f32.mrf.mxu0
    %v10728 = vadd.f32 %v10196, %v10727
    %10729 = vmatmul.bf16.gmra.mxu0 %v10424
    %v10730 = vpop.f32.mrf.mxu0
    %v10731 = vadd.f32 %v10196, %v10730
    %v10732 = vpop.f32.mrf.mxu0
    %v10733 = vadd.f32 %v10196, %v10732
    %10734 = vmatmul.bf16.gmra.mxu0 %v10426
    %v10735 = vpop.f32.mrf.mxu0
    %v10736 = vadd.f32 %v10196, %v10735
    %v10737 = vpop.f32.mrf.mxu0
    %v10738 = vadd.f32 %v10196, %v10737
    %10739 = vmatmul.bf16.gmra.mxu0 %v10428
    %v10740 = vpop.f32.mrf.mxu0
    %v10741 = vadd.f32 %v10196, %v10740
    %v10742 = vpop.f32.mrf.mxu0
    %v10743 = vadd.f32 %v10196, %v10742
    %10744 = vmatmul.bf16.gmra.mxu0 %v10430
    %v10745 = vpop.f32.mrf.mxu0
    %v10746 = vadd.f32 %v10196, %v10745
    %v10747 = vpop.f32.mrf.mxu0
    %v10748 = vadd.f32 %v10196, %v10747
    %10749 = vmatmul.bf16.gmra.mxu0 %v10432
    %v10750 = vpop.f32.mrf.mxu0
    %v10751 = vadd.f32 %v10196, %v10750
    %v10752 = vpop.f32.mrf.mxu0
    %v10753 = vadd.f32 %v10196, %v10752
    %10754 = vmatmul.bf16.gmra.mxu0 %v10434
    %v10755 = vpop.f32.mrf.mxu0
    %v10756 = vadd.f32 %v10196, %v10755
    %v10757 = vpop.f32.mrf.mxu0
    %v10758 = vadd.f32 %v10196, %v10757
    %10759 = vmatmul.bf16.gmra.mxu0 %v10436
    %v10760 = vpop.f32.mrf.mxu0
    %v10761 = vadd.f32 %v10196, %v10760
    %v10762 = vpop.f32.mrf.mxu0
    %v10763 = vadd.f32 %v10196, %v10762
    %10764 = vmatmul.bf16.gmra.mxu0 %v10438
    %v10765 = vpop.f32.mrf.mxu0
    %v10766 = vadd.f32 %v10196, %v10765
    %v10767 = vpop.f32.mrf.mxu0
    %v10768 = vadd.f32 %v10196, %v10767
    %10769 = vmatmul.bf16.gmra.mxu0 %v10440
    %v10770 = vpop.f32.mrf.mxu0
    %v10771 = vadd.f32 %v10196, %v10770
    %v10772 = vpop.f32.mrf.mxu0
    %v10773 = vadd.f32 %v10196, %v10772
    %10774 = vmatmul.bf16.gmra.mxu0 %v10442
    %v10775 = vpop.f32.mrf.mxu0
    %v10776 = vadd.f32 %v10196, %v10775
    %v10777 = vpop.f32.mrf.mxu0
    %v10778 = vadd.f32 %v10196, %v10777
    %10779 = vmatmul.bf16.gmra.mxu0 %v10444
    %v10780 = vpop.f32.mrf.mxu0
    %v10781 = vadd.f32 %v10196, %v10780
    %v10782 = vpop.f32.mrf.mxu0
    %v10783 = vadd.f32 %v10196, %v10782
    %10784 = vmatmul.bf16.gmra.mxu0 %v10446
    %v10785 = vpop.f32.mrf.mxu0
    %v10786 = vadd.f32 %v10196, %v10785
    %v10787 = vpop.f32.mrf.mxu0
    %v10788 = vadd.f32 %v10196, %v10787
    %10789 = vmatmul.bf16.gmra.mxu0 %v10448
    %v10790 = vpop.f32.mrf.mxu0
    %v10791 = vadd.f32 %v10196, %v10790
    %v10792 = vpop.f32.mrf.mxu0
    %v10793 = vadd.f32 %v10196, %v10792
    %10794 = vmatmul.bf16.gmra.mxu0 %v10450
    %v10795 = vpop.f32.mrf.mxu0
    %v10796 = vadd.f32 %v10196, %v10795
    %v10797 = vpop.f32.mrf.mxu0
    %v10798 = vadd.f32 %v10196, %v10797
    %10799 = vmatmul.bf16.gmra.mxu0 %v10452
    %v10800 = vpop.f32.mrf.mxu0
    %v10801 = vadd.f32 %v10196, %v10800
    %v10802 = vpop.f32.mrf.mxu0
    %v10803 = vadd.f32 %v10196, %v10802
    %10804 = vdwg.mxu0
    %10805 = vmatpush.bf16.msra.mxu0 0
    %10806 = vmatpush.bf16.msra.mxu0 0
    %10807 = vmatpush.bf16.msra.mxu0 0
    %10808 = vmatpush.bf16.msra.mxu0 0
    %10809 = vmatpush.bf16.msra.mxu0 0
    %10810 = vmatpush.bf16.msra.mxu0 0
    %10811 = vmatpush.bf16.msra.mxu0 0
    %10812 = vmatpush.bf16.msra.mxu0 %v10530
    %10813 = vmatmul.bf16.gmra.mxu0 %v10541
    %v10814 = vpop.f32.mrf.mxu0
    %v10815 = vadd.f32 %v10646, %v10814
    %v10816 = vpop.f32.mrf.mxu0
    %v10817 = vadd.f32 %v10648, %v10816
    %10818 = vmatmul.bf16.gmra.mxu0 %v10544
    %v10819 = vpop.f32.mrf.mxu0
    %v10820 = vadd.f32 %v10651, %v10819
    %v10821 = vpop.f32.mrf.mxu0
    %v10822 = vadd.f32 %v10653, %v10821
    %10823 = vmatmul.bf16.gmra.mxu0 %v10547
    %v10824 = vpop.f32.mrf.mxu0
    %v10825 = vadd.f32 %v10656, %v10824
    %v10826 = vpop.f32.mrf.mxu0
    %v10827 = vadd.f32 %v10658, %v10826
    %10828 = vmatmul.bf16.gmra.mxu0 %v10550
    %v10829 = vpop.f32.mrf.mxu0
    %v10830 = vadd.f32 %v10661, %v10829
    %v10831 = vpop.f32.mrf.mxu0
    %v10832 = vadd.f32 %v10663, %v10831
    %10833 = vmatmul.bf16.gmra.mxu0 %v10553
    %v10834 = vpop.f32.mrf.mxu0
    %v10835 = vadd.f32 %v10666, %v10834
    %v10836 = vpop.f32.mrf.mxu0
    %v10837 = vadd.f32 %v10668, %v10836
    %10838 = vmatmul.bf16.gmra.mxu0 %v10556
    %v10839 = vpop.f32.mrf.mxu0
    %v10840 = vadd.f32 %v10671, %v10839
    %v10841 = vpop.f32.mrf.mxu0
    %v10842 = vadd.f32 %v10673, %v10841
    %10843 = vmatmul.bf16.gmra.mxu0 %v10559
    %v10844 = vpop.f32.mrf.mxu0
    %v10845 = vadd.f32 %v10676, %v10844
    %v10846 = vpop.f32.mrf.mxu0
    %v10847 = vadd.f32 %v10678, %v10846
    %10848 = vmatmul.bf16.gmra.mxu0 %v10562
    %v10849 = vpop.f32.mrf.mxu0
    %v10850 = vadd.f32 %v10681, %v10849
    %v10851 = vpop.f32.mrf.mxu0
    %v10852 = vadd.f32 %v10683, %v10851
    %10853 = vmatmul.bf16.gmra.mxu0 %v10565
    %v10854 = vpop.f32.mrf.mxu0
    %v10855 = vadd.f32 %v10686, %v10854
    %v10856 = vpop.f32.mrf.mxu0
    %v10857 = vadd.f32 %v10688, %v10856
    %10858 = vmatmul.bf16.gmra.mxu0 %v10568
    %v10859 = vpop.f32.mrf.mxu0
    %v10860 = vadd.f32 %v10691, %v10859
    %v10861 = vpop.f32.mrf.mxu0
    %v10862 = vadd.f32 %v10693, %v10861
    %10863 = vmatmul.bf16.gmra.mxu0 %v10571
    %v10864 = vpop.f32.mrf.mxu0
    %v10865 = vadd.f32 %v10696, %v10864
    %v10866 = vpop.f32.mrf.mxu0
    %v10867 = vadd.f32 %v10698, %v10866
    %10868 = vmatmul.bf16.gmra.mxu0 %v10574
    %v10869 = vpop.f32.mrf.mxu0
    %v10870 = vadd.f32 %v10701, %v10869
    %v10871 = vpop.f32.mrf.mxu0
    %v10872 = vadd.f32 %v10703, %v10871
    %10873 = vmatmul.bf16.gmra.mxu0 %v10577
    %v10874 = vpop.f32.mrf.mxu0
    %v10875 = vadd.f32 %v10706, %v10874
    %v10876 = vpop.f32.mrf.mxu0
    %v10877 = vadd.f32 %v10708, %v10876
    %10878 = vmatmul.bf16.gmra.mxu0 %v10580
    %v10879 = vpop.f32.mrf.mxu0
    %v10880 = vadd.f32 %v10711, %v10879
    %v10881 = vpop.f32.mrf.mxu0
    %v10882 = vadd.f32 %v10713, %v10881
    %10883 = vmatmul.bf16.gmra.mxu0 %v10583
    %v10884 = vpop.f32.mrf.mxu0
    %v10885 = vadd.f32 %v10716, %v10884
    %v10886 = vpop.f32.mrf.mxu0
    %v10887 = vadd.f32 %v10718, %v10886
    %10888 = vmatmul.bf16.gmra.mxu0 %v10586
    %v10889 = vpop.f32.mrf.mxu0
    %v10890 = vadd.f32 %v10721, %v10889
    %v10891 = vpop.f32.mrf.mxu0
    %v10892 = vadd.f32 %v10723, %v10891
    %10893 = vmatmul.bf16.gmra.mxu0 %v10589
    %v10894 = vpop.f32.mrf.mxu0
    %v10895 = vadd.f32 %v10726, %v10894
    %v10896 = vpop.f32.mrf.mxu0
    %v10897 = vadd.f32 %v10728, %v10896
    %10898 = vmatmul.bf16.gmra.mxu0 %v10592
    %v10899 = vpop.f32.mrf.mxu0
    %v10900 = vadd.f32 %v10731, %v10899
    %v10901 = vpop.f32.mrf.mxu0
    %v10902 = vadd.f32 %v10733, %v10901
    %10903 = vmatmul.bf16.gmra.mxu0 %v10595
    %v10904 = vpop.f32.mrf.mxu0
    %v10905 = vadd.f32 %v10736, %v10904
    %v10906 = vpop.f32.mrf.mxu0
    %v10907 = vadd.f32 %v10738, %v10906
    %10908 = vmatmul.bf16.gmra.mxu0 %v10598
    %v10909 = vpop.f32.mrf.mxu0
    %v10910 = vadd.f32 %v10741, %v10909
    %v10911 = vpop.f32.mrf.mxu0
    %v10912 = vadd.f32 %v10743, %v10911
    %10913 = vmatmul.bf16.gmra.mxu0 %v10601
    %v10914 = vpop.f32.mrf.mxu0
    %v10915 = vadd.f32 %v10746, %v10914
    %v10916 = vpop.f32.mrf.mxu0
    %v10917 = vadd.f32 %v10748, %v10916
    %10918 = vmatmul.bf16.gmra.mxu0 %v10604
    %v10919 = vpop.f32.mrf.mxu0
    %v10920 = vadd.f32 %v10751, %v10919
    %v10921 = vpop.f32.mrf.mxu0
    %v10922 = vadd.f32 %v10753, %v10921
    %10923 = vmatmul.bf16.gmra.mxu0 %v10607
    %v10924 = vpop.f32.mrf.mxu0
    %v10925 = vadd.f32 %v10756, %v10924
    %v10926 = vpop.f32.mrf.mxu0
    %v10927 = vadd.f32 %v10758, %v10926
    %10928 = vmatmul.bf16.gmra.mxu0 %v10610
    %v10929 = vpop.f32.mrf.mxu0
    %v10930 = vadd.f32 %v10761, %v10929
    %v10931 = vpop.f32.mrf.mxu0
    %v10932 = vadd.f32 %v10763, %v10931
    %10933 = vmatmul.bf16.gmra.mxu0 %v10613
    %v10934 = vpop.f32.mrf.mxu0
    %v10935 = vadd.f32 %v10766, %v10934
    %v10936 = vpop.f32.mrf.mxu0
    %v10937 = vadd.f32 %v10768, %v10936
    %10938 = vmatmul.bf16.gmra.mxu0 %v10616
    %v10939 = vpop.f32.mrf.mxu0
    %v10940 = vadd.f32 %v10771, %v10939
    %v10941 = vpop.f32.mrf.mxu0
    %v10942 = vadd.f32 %v10773, %v10941
    %10943 = vmatmul.bf16.gmra.mxu0 %v10619
    %v10944 = vpop.f32.mrf.mxu0
    %v10945 = vadd.f32 %v10776, %v10944
    %v10946 = vpop.f32.mrf.mxu0
    %v10947 = vadd.f32 %v10778, %v10946
    %10948 = vmatmul.bf16.gmra.mxu0 %v10622
    %v10949 = vpop.f32.mrf.mxu0
    %v10950 = vadd.f32 %v10781, %v10949
    %v10951 = vpop.f32.mrf.mxu0
    %v10952 = vadd.f32 %v10783, %v10951
    %10953 = vmatmul.bf16.gmra.mxu0 %v10625
    %v10954 = vpop.f32.mrf.mxu0
    %v10955 = vadd.f32 %v10786, %v10954
    %v10956 = vpop.f32.mrf.mxu0
    %v10957 = vadd.f32 %v10788, %v10956
    %10958 = vmatmul.bf16.gmra.mxu0 %v10628
    %v10959 = vpop.f32.mrf.mxu0
    %v10960 = vadd.f32 %v10791, %v10959
    %v10961 = vpop.f32.mrf.mxu0
    %v10962 = vadd.f32 %v10793, %v10961
    %10963 = vmatmul.bf16.gmra.mxu0 %v10631
    %v10964 = vpop.f32.mrf.mxu0
    %v10965 = vadd.f32 %v10796, %v10964
    %v10966 = vpop.f32.mrf.mxu0
    %v10967 = vadd.f32 %v10798, %v10966
    %10968 = vmatmul.bf16.gmra.mxu0 %v10634
    %v10969 = vpop.f32.mrf.mxu0
    %v10970 = vadd.f32 %v10801, %v10969
    %v10971 = vpop.f32.mrf.mxu0
    %v10972 = vadd.f32 %v10803, %v10971
    %10973 = vdwg.mxu0
    %v10974 = vsel %vm1659, %v10815, 0.0
    %v10975 = vsel %vm1659, %v10817, 0.0
    %v10976 = vadd.f32 %v10974, %v10975
    %v10977 = vsel %vm1659, %v10820, 0.0
    %v10978 = vadd.f32 %v10976, %v10977
    %v10979 = vsel %vm1659, %v10822, 0.0
    %v10980 = vadd.f32 %v10978, %v10979
    %v10981 = vsel %vm1659, %v10825, 0.0
    %v10982 = vadd.f32 %v10980, %v10981
    %v10983 = vsel %vm1659, %v10827, 0.0
    %v10984 = vadd.f32 %v10982, %v10983
    %v10985 = vsel %vm1659, %v10830, 0.0
    %v10986 = vadd.f32 %v10984, %v10985
    %v10987 = vsel %vm1659, %v10832, 0.0
    %v10988 = vadd.f32 %v10986, %v10987
    %v10989 = vsel %vm1659, %v10835, 0.0
    %v10990 = vadd.f32 %v10988, %v10989
    %v10991 = vsel %vm1659, %v10837, 0.0
    %v10992 = vadd.f32 %v10990, %v10991
    %v10993 = vsel %vm1659, %v10840, 0.0
    %v10994 = vadd.f32 %v10992, %v10993
    %v10995 = vsel %vm1659, %v10842, 0.0
    %v10996 = vadd.f32 %v10994, %v10995
    %v10997 = vsel %vm1659, %v10845, 0.0
    %v10998 = vadd.f32 %v10996, %v10997
    %v10999 = vsel %vm1659, %v10847, 0.0
    %v11000 = vadd.f32 %v10998, %v10999
    %v11001 = vsel %vm1659, %v10850, 0.0
    %v11002 = vadd.f32 %v11000, %v11001
    %v11003 = vsel %vm1659, %v10852, 0.0
    %v11004 = vadd.f32 %v11002, %v11003
    %v11005 = vsel %vm1659, %v10855, 0.0
    %v11006 = vadd.f32 %v11004, %v11005
    %v11007 = vsel %vm1659, %v10857, 0.0
    %v11008 = vadd.f32 %v11006, %v11007
    %v11009 = vsel %vm1659, %v10860, 0.0
    %v11010 = vadd.f32 %v11008, %v11009
    %v11011 = vsel %vm1659, %v10862, 0.0
    %v11012 = vadd.f32 %v11010, %v11011
    %v11013 = vsel %vm1659, %v10865, 0.0
    %v11014 = vadd.f32 %v11012, %v11013
    %v11015 = vsel %vm1659, %v10867, 0.0
    %v11016 = vadd.f32 %v11014, %v11015
    %v11017 = vsel %vm1659, %v10870, 0.0
    %v11018 = vadd.f32 %v11016, %v11017
    %v11019 = vsel %vm1659, %v10872, 0.0
    %v11020 = vadd.f32 %v11018, %v11019
    %v11021 = vsel %vm1659, %v10875, 0.0
    %v11022 = vadd.f32 %v11020, %v11021
    %v11023 = vsel %vm1659, %v10877, 0.0
    %v11024 = vadd.f32 %v11022, %v11023
    %v11025 = vsel %vm1659, %v10880, 0.0
    %v11026 = vadd.f32 %v11024, %v11025
    %v11027 = vsel %vm1659, %v10882, 0.0
    %v11028 = vadd.f32 %v11026, %v11027
    %v11029 = vsel %vm1659, %v10885, 0.0
    %v11030 = vadd.f32 %v11028, %v11029
    %v11031 = vsel %vm1659, %v10887, 0.0
    %v11032 = vadd.f32 %v11030, %v11031
    %v11033 = vsel %vm1659, %v10890, 0.0
    %v11034 = vadd.f32 %v11032, %v11033
    %v11035 = vsel %vm1659, %v10892, 0.0
    %v11036 = vadd.f32 %v11034, %v11035
    %v11037 = vsel %vm1659, %v10895, 0.0
    %v11038 = vadd.f32 %v11036, %v11037
    %v11039 = vsel %vm1659, %v10897, 0.0
    %v11040 = vadd.f32 %v11038, %v11039
    %v11041 = vsel %vm1659, %v10900, 0.0
    %v11042 = vadd.f32 %v11040, %v11041
    %v11043 = vsel %vm1659, %v10902, 0.0
    %v11044 = vadd.f32 %v11042, %v11043
    %v11045 = vsel %vm1659, %v10905, 0.0
    %v11046 = vadd.f32 %v11044, %v11045
    %v11047 = vsel %vm1659, %v10907, 0.0
    %v11048 = vadd.f32 %v11046, %v11047
    %v11049 = vsel %vm1659, %v10910, 0.0
    %v11050 = vadd.f32 %v11048, %v11049
    %v11051 = vsel %vm1659, %v10912, 0.0
    %v11052 = vadd.f32 %v11050, %v11051
    %v11053 = vsel %vm1659, %v10915, 0.0
    %v11054 = vadd.f32 %v11052, %v11053
    %v11055 = vsel %vm1659, %v10917, 0.0
    %v11056 = vadd.f32 %v11054, %v11055
    %v11057 = vsel %vm1659, %v10920, 0.0
    %v11058 = vadd.f32 %v11056, %v11057
    %v11059 = vsel %vm1659, %v10922, 0.0
    %v11060 = vadd.f32 %v11058, %v11059
    %v11061 = vsel %vm1659, %v10925, 0.0
    %v11062 = vadd.f32 %v11060, %v11061
    %v11063 = vsel %vm1659, %v10927, 0.0
    %v11064 = vadd.f32 %v11062, %v11063
    %v11065 = vsel %vm1659, %v10930, 0.0
    %v11066 = vadd.f32 %v11064, %v11065
    %v11067 = vsel %vm1659, %v10932, 0.0
    %v11068 = vadd.f32 %v11066, %v11067
    %v11069 = vsel %vm1659, %v10935, 0.0
    %v11070 = vadd.f32 %v11068, %v11069
    %v11071 = vsel %vm1659, %v10937, 0.0
    %v11072 = vadd.f32 %v11070, %v11071
    %v11073 = vsel %vm1659, %v10940, 0.0
    %v11074 = vadd.f32 %v11072, %v11073
    %v11075 = vsel %vm1659, %v10942, 0.0
    %v11076 = vadd.f32 %v11074, %v11075
    %v11077 = vsel %vm1659, %v10945, 0.0
    %v11078 = vadd.f32 %v11076, %v11077
    %v11079 = vsel %vm1659, %v10947, 0.0
    %v11080 = vadd.f32 %v11078, %v11079
    %v11081 = vsel %vm1659, %v10950, 0.0
    %v11082 = vadd.f32 %v11080, %v11081
    %v11083 = vsel %vm1659, %v10952, 0.0
    %v11084 = vadd.f32 %v11082, %v11083
    %v11085 = vsel %vm1659, %v10955, 0.0
    %v11086 = vadd.f32 %v11084, %v11085
    %v11087 = vsel %vm1659, %v10957, 0.0
    %v11088 = vadd.f32 %v11086, %v11087
    %v11089 = vsel %vm1659, %v10960, 0.0
    %v11090 = vadd.f32 %v11088, %v11089
    %v11091 = vsel %vm1659, %v10962, 0.0
    %v11092 = vadd.f32 %v11090, %v11091
    %v11093 = vsel %vm1659, %v10965, 0.0
    %v11094 = vadd.f32 %v11092, %v11093
    %v11095 = vsel %vm1659, %v10967, 0.0
    %v11096 = vadd.f32 %v11094, %v11095
    %v11097 = vsel %vm1659, %v10970, 0.0
    %v11098 = vadd.f32 %v11096, %v11097
    %v11099 = vsel %vm1659, %v10972, 0.0
    %v11100 = vadd.f32 %v11098, %v11099
    %v11101 = vrot.slane %v11100, 4
    %v11102 = vadd.f32 %v11100, %v11101
    %v11103 = vrot.slane %v11102, 2
    %v11104 = vadd.f32 %v11102, %v11103
    %v11105 = vrot.slane %v11104, 1
    %v11106 = vadd.f32 %v11104, %v11105
    %v11107 = vmul.f32 %v11106, %v1799
    %v11108 = vmul.f32 %v10815, %v10815
    %v11109 = vmul.f32 %v10817, %v10817
    %v11110 = vmul.f32 %v10820, %v10820
    %v11111 = vmul.f32 %v10822, %v10822
    %v11112 = vmul.f32 %v10825, %v10825
    %v11113 = vmul.f32 %v10827, %v10827
    %v11114 = vmul.f32 %v10830, %v10830
    %v11115 = vmul.f32 %v10832, %v10832
    %v11116 = vmul.f32 %v10835, %v10835
    %v11117 = vmul.f32 %v10837, %v10837
    %v11118 = vmul.f32 %v10840, %v10840
    %v11119 = vmul.f32 %v10842, %v10842
    %v11120 = vmul.f32 %v10845, %v10845
    %v11121 = vmul.f32 %v10847, %v10847
    %v11122 = vmul.f32 %v10850, %v10850
    %v11123 = vmul.f32 %v10852, %v10852
    %v11124 = vmul.f32 %v10855, %v10855
    %v11125 = vmul.f32 %v10857, %v10857
    %v11126 = vmul.f32 %v10860, %v10860
    %v11127 = vmul.f32 %v10862, %v10862
    %v11128 = vmul.f32 %v10865, %v10865
    %v11129 = vmul.f32 %v10867, %v10867
    %v11130 = vmul.f32 %v10870, %v10870
    %v11131 = vmul.f32 %v10872, %v10872
    %v11132 = vmul.f32 %v10875, %v10875
    %v11133 = vmul.f32 %v10877, %v10877
    %v11134 = vmul.f32 %v10880, %v10880
    %v11135 = vmul.f32 %v10882, %v10882
    %v11136 = vmul.f32 %v10885, %v10885
    %v11137 = vmul.f32 %v10887, %v10887
    %v11138 = vmul.f32 %v10890, %v10890
    %v11139 = vmul.f32 %v10892, %v10892
    %v11140 = vmul.f32 %v10895, %v10895
    %v11141 = vmul.f32 %v10897, %v10897
    %v11142 = vmul.f32 %v10900, %v10900
    %v11143 = vmul.f32 %v10902, %v10902
    %v11144 = vmul.f32 %v10905, %v10905
    %v11145 = vmul.f32 %v10907, %v10907
    %v11146 = vmul.f32 %v10910, %v10910
    %v11147 = vmul.f32 %v10912, %v10912
    %v11148 = vmul.f32 %v10915, %v10915
    %v11149 = vmul.f32 %v10917, %v10917
    %v11150 = vmul.f32 %v10920, %v10920
    %v11151 = vmul.f32 %v10922, %v10922
    %v11152 = vmul.f32 %v10925, %v10925
    %v11153 = vmul.f32 %v10927, %v10927
    %v11154 = vmul.f32 %v10930, %v10930
    %v11155 = vmul.f32 %v10932, %v10932
    %v11156 = vmul.f32 %v10935, %v10935
    %v11157 = vmul.f32 %v10937, %v10937
    %v11158 = vmul.f32 %v10940, %v10940
    %v11159 = vmul.f32 %v10942, %v10942
    %v11160 = vmul.f32 %v10945, %v10945
    %v11161 = vmul.f32 %v10947, %v10947
    %v11162 = vmul.f32 %v10950, %v10950
    %v11163 = vmul.f32 %v10952, %v10952
    %v11164 = vmul.f32 %v10955, %v10955
    %v11165 = vmul.f32 %v10957, %v10957
    %v11166 = vmul.f32 %v10960, %v10960
    %v11167 = vmul.f32 %v10962, %v10962
    %v11168 = vmul.f32 %v10965, %v10965
    %v11169 = vmul.f32 %v10967, %v10967
    %v11170 = vmul.f32 %v10970, %v10970
    %v11171 = vmul.f32 %v10972, %v10972
    %v11172 = vsel %vm1659, %v11108, 0.0
    %v11173 = vsel %vm1659, %v11109, 0.0
    %v11174 = vadd.f32 %v11172, %v11173
    %v11175 = vsel %vm1659, %v11110, 0.0
    %v11176 = vadd.f32 %v11174, %v11175
    %v11177 = vsel %vm1659, %v11111, 0.0
    %v11178 = vadd.f32 %v11176, %v11177
    %v11179 = vsel %vm1659, %v11112, 0.0
    %v11180 = vadd.f32 %v11178, %v11179
    %v11181 = vsel %vm1659, %v11113, 0.0
    %v11182 = vadd.f32 %v11180, %v11181
    %v11183 = vsel %vm1659, %v11114, 0.0
    %v11184 = vadd.f32 %v11182, %v11183
    %v11185 = vsel %vm1659, %v11115, 0.0
    %v11186 = vadd.f32 %v11184, %v11185
    %v11187 = vsel %vm1659, %v11116, 0.0
    %v11188 = vadd.f32 %v11186, %v11187
    %v11189 = vsel %vm1659, %v11117, 0.0
    %v11190 = vadd.f32 %v11188, %v11189
    %v11191 = vsel %vm1659, %v11118, 0.0
    %v11192 = vadd.f32 %v11190, %v11191
    %v11193 = vsel %vm1659, %v11119, 0.0
    %v11194 = vadd.f32 %v11192, %v11193
    %v11195 = vsel %vm1659, %v11120, 0.0
    %v11196 = vadd.f32 %v11194, %v11195
    %v11197 = vsel %vm1659, %v11121, 0.0
    %v11198 = vadd.f32 %v11196, %v11197
    %v11199 = vsel %vm1659, %v11122, 0.0
    %v11200 = vadd.f32 %v11198, %v11199
    %v11201 = vsel %vm1659, %v11123, 0.0
    %v11202 = vadd.f32 %v11200, %v11201
    %v11203 = vsel %vm1659, %v11124, 0.0
    %v11204 = vadd.f32 %v11202, %v11203
    %v11205 = vsel %vm1659, %v11125, 0.0
    %v11206 = vadd.f32 %v11204, %v11205
    %v11207 = vsel %vm1659, %v11126, 0.0
    %v11208 = vadd.f32 %v11206, %v11207
    %v11209 = vsel %vm1659, %v11127, 0.0
    %v11210 = vadd.f32 %v11208, %v11209
    %v11211 = vsel %vm1659, %v11128, 0.0
    %v11212 = vadd.f32 %v11210, %v11211
    %v11213 = vsel %vm1659, %v11129, 0.0
    %v11214 = vadd.f32 %v11212, %v11213
    %v11215 = vsel %vm1659, %v11130, 0.0
    %v11216 = vadd.f32 %v11214, %v11215
    %v11217 = vsel %vm1659, %v11131, 0.0
    %v11218 = vadd.f32 %v11216, %v11217
    %v11219 = vsel %vm1659, %v11132, 0.0
    %v11220 = vadd.f32 %v11218, %v11219
    %v11221 = vsel %vm1659, %v11133, 0.0
    %v11222 = vadd.f32 %v11220, %v11221
    %v11223 = vsel %vm1659, %v11134, 0.0
    %v11224 = vadd.f32 %v11222, %v11223
    %v11225 = vsel %vm1659, %v11135, 0.0
    %v11226 = vadd.f32 %v11224, %v11225
    %v11227 = vsel %vm1659, %v11136, 0.0
    %v11228 = vadd.f32 %v11226, %v11227
    %v11229 = vsel %vm1659, %v11137, 0.0
    %v11230 = vadd.f32 %v11228, %v11229
    %v11231 = vsel %vm1659, %v11138, 0.0
    %v11232 = vadd.f32 %v11230, %v11231
    %v11233 = vsel %vm1659, %v11139, 0.0
    %v11234 = vadd.f32 %v11232, %v11233
    %v11235 = vsel %vm1659, %v11140, 0.0
    %v11236 = vadd.f32 %v11234, %v11235
    %v11237 = vsel %vm1659, %v11141, 0.0
    %v11238 = vadd.f32 %v11236, %v11237
    %v11239 = vsel %vm1659, %v11142, 0.0
    %v11240 = vadd.f32 %v11238, %v11239
    %v11241 = vsel %vm1659, %v11143, 0.0
    %v11242 = vadd.f32 %v11240, %v11241
    %v11243 = vsel %vm1659, %v11144, 0.0
    %v11244 = vadd.f32 %v11242, %v11243
    %v11245 = vsel %vm1659, %v11145, 0.0
    %v11246 = vadd.f32 %v11244, %v11245
    %v11247 = vsel %vm1659, %v11146, 0.0
    %v11248 = vadd.f32 %v11246, %v11247
    %v11249 = vsel %vm1659, %v11147, 0.0
    %v11250 = vadd.f32 %v11248, %v11249
    %v11251 = vsel %vm1659, %v11148, 0.0
    %v11252 = vadd.f32 %v11250, %v11251
    %v11253 = vsel %vm1659, %v11149, 0.0
    %v11254 = vadd.f32 %v11252, %v11253
    %v11255 = vsel %vm1659, %v11150, 0.0
    %v11256 = vadd.f32 %v11254, %v11255
    %v11257 = vsel %vm1659, %v11151, 0.0
    %v11258 = vadd.f32 %v11256, %v11257
    %v11259 = vsel %vm1659, %v11152, 0.0
    %v11260 = vadd.f32 %v11258, %v11259
    %v11261 = vsel %vm1659, %v11153, 0.0
    %v11262 = vadd.f32 %v11260, %v11261
    %v11263 = vsel %vm1659, %v11154, 0.0
    %v11264 = vadd.f32 %v11262, %v11263
    %v11265 = vsel %vm1659, %v11155, 0.0
    %v11266 = vadd.f32 %v11264, %v11265
    %v11267 = vsel %vm1659, %v11156, 0.0
    %v11268 = vadd.f32 %v11266, %v11267
    %v11269 = vsel %vm1659, %v11157, 0.0
    %v11270 = vadd.f32 %v11268, %v11269
    %v11271 = vsel %vm1659, %v11158, 0.0
    %v11272 = vadd.f32 %v11270, %v11271
    %v11273 = vsel %vm1659, %v11159, 0.0
    %v11274 = vadd.f32 %v11272, %v11273
    %v11275 = vsel %vm1659, %v11160, 0.0
    %v11276 = vadd.f32 %v11274, %v11275
    %v11277 = vsel %vm1659, %v11161, 0.0
    %v11278 = vadd.f32 %v11276, %v11277
    %v11279 = vsel %vm1659, %v11162, 0.0
    %v11280 = vadd.f32 %v11278, %v11279
    %v11281 = vsel %vm1659, %v11163, 0.0
    %v11282 = vadd.f32 %v11280, %v11281
    %v11283 = vsel %vm1659, %v11164, 0.0
    %v11284 = vadd.f32 %v11282, %v11283
    %v11285 = vsel %vm1659, %v11165, 0.0
    %v11286 = vadd.f32 %v11284, %v11285
    %v11287 = vsel %vm1659, %v11166, 0.0
    %v11288 = vadd.f32 %v11286, %v11287
    %v11289 = vsel %vm1659, %v11167, 0.0
    %v11290 = vadd.f32 %v11288, %v11289
    %v11291 = vsel %vm1659, %v11168, 0.0
    %v11292 = vadd.f32 %v11290, %v11291
    %v11293 = vsel %vm1659, %v11169, 0.0
    %v11294 = vadd.f32 %v11292, %v11293
    %v11295 = vsel %vm1659, %v11170, 0.0
    %v11296 = vadd.f32 %v11294, %v11295
    %v11297 = vsel %vm1659, %v11171, 0.0
    %v11298 = vadd.f32 %v11296, %v11297
    %v11299 = vrot.slane %v11298, 4
    %v11300 = vadd.f32 %v11298, %v11299
    %v11301 = vrot.slane %v11300, 2
    %v11302 = vadd.f32 %v11300, %v11301
    %v11303 = vrot.slane %v11302, 1
    %v11304 = vadd.f32 %v11302, %v11303
    %v11305 = vmul.f32 %v11304, %v1799
    %v11306 = vmul.f32 %v11107, %v11107
    %v11307 = vsub.f32 %v11305, %v11306
    %v11308 = vmax.f32 %v11307, 0.0
    %v11309 = vsub.f32 %v10815, %v11107
    %v11310 = vsub.f32 %v10817, %v11107
    %v11311 = vsub.f32 %v10820, %v11107
    %v11312 = vsub.f32 %v10822, %v11107
    %v11313 = vsub.f32 %v10825, %v11107
    %v11314 = vsub.f32 %v10827, %v11107
    %v11315 = vsub.f32 %v10830, %v11107
    %v11316 = vsub.f32 %v10832, %v11107
    %v11317 = vsub.f32 %v10835, %v11107
    %v11318 = vsub.f32 %v10837, %v11107
    %v11319 = vsub.f32 %v10840, %v11107
    %v11320 = vsub.f32 %v10842, %v11107
    %v11321 = vsub.f32 %v10845, %v11107
    %v11322 = vsub.f32 %v10847, %v11107
    %v11323 = vsub.f32 %v10850, %v11107
    %v11324 = vsub.f32 %v10852, %v11107
    %v11325 = vsub.f32 %v10855, %v11107
    %v11326 = vsub.f32 %v10857, %v11107
    %v11327 = vsub.f32 %v10860, %v11107
    %v11328 = vsub.f32 %v10862, %v11107
    %v11329 = vsub.f32 %v10865, %v11107
    %v11330 = vsub.f32 %v10867, %v11107
    %v11331 = vsub.f32 %v10870, %v11107
    %v11332 = vsub.f32 %v10872, %v11107
    %v11333 = vsub.f32 %v10875, %v11107
    %v11334 = vsub.f32 %v10877, %v11107
    %v11335 = vsub.f32 %v10880, %v11107
    %v11336 = vsub.f32 %v10882, %v11107
    %v11337 = vsub.f32 %v10885, %v11107
    %v11338 = vsub.f32 %v10887, %v11107
    %v11339 = vsub.f32 %v10890, %v11107
    %v11340 = vsub.f32 %v10892, %v11107
    %v11341 = vsub.f32 %v10895, %v11107
    %v11342 = vsub.f32 %v10897, %v11107
    %v11343 = vsub.f32 %v10900, %v11107
    %v11344 = vsub.f32 %v10902, %v11107
    %v11345 = vsub.f32 %v10905, %v11107
    %v11346 = vsub.f32 %v10907, %v11107
    %v11347 = vsub.f32 %v10910, %v11107
    %v11348 = vsub.f32 %v10912, %v11107
    %v11349 = vsub.f32 %v10915, %v11107
    %v11350 = vsub.f32 %v10917, %v11107
    %v11351 = vsub.f32 %v10920, %v11107
    %v11352 = vsub.f32 %v10922, %v11107
    %v11353 = vsub.f32 %v10925, %v11107
    %v11354 = vsub.f32 %v10927, %v11107
    %v11355 = vsub.f32 %v10930, %v11107
    %v11356 = vsub.f32 %v10932, %v11107
    %v11357 = vsub.f32 %v10935, %v11107
    %v11358 = vsub.f32 %v10937, %v11107
    %v11359 = vsub.f32 %v10940, %v11107
    %v11360 = vsub.f32 %v10942, %v11107
    %v11361 = vsub.f32 %v10945, %v11107
    %v11362 = vsub.f32 %v10947, %v11107
    %v11363 = vsub.f32 %v10950, %v11107
    %v11364 = vsub.f32 %v10952, %v11107
    %v11365 = vsub.f32 %v10955, %v11107
    %v11366 = vsub.f32 %v10957, %v11107
    %v11367 = vsub.f32 %v10960, %v11107
    %v11368 = vsub.f32 %v10962, %v11107
    %v11369 = vsub.f32 %v10965, %v11107
    %v11370 = vsub.f32 %v10967, %v11107
    %v11371 = vsub.f32 %v10970, %v11107
    %v11372 = vsub.f32 %v10972, %v11107
    %v11373 = vadd.f32 %v11308, 1e-05
    %v11374 = vrsqrt.pop %v11373
    %v11375 = vmul.f32 %v11374, %v11373
    %v11376 = vmul.f32 %v11375, %v11374
    %v11377 = vmul.f32 0.5, %v11376
    %v11378 = vsub.f32 1.5, %v11377
    %v11379 = vmul.f32 %v11374, %v11378
    %vm11380 = vweird.f32 %v11373
    %vm11381 = vweird.f32 %v11374
    %vm11382 = vmor %vm11380, %vm11381
    %v11383 = vsel %vm11382, %v11374, %v11379
    %v11384 = vmul.f32 %v11309, %v11383
    %v11385 = vmul.f32 %v11310, %v11383
    %v11386 = vmul.f32 %v11311, %v11383
    %v11387 = vmul.f32 %v11312, %v11383
    %v11388 = vmul.f32 %v11313, %v11383
    %v11389 = vmul.f32 %v11314, %v11383
    %v11390 = vmul.f32 %v11315, %v11383
    %v11391 = vmul.f32 %v11316, %v11383
    %v11392 = vmul.f32 %v11317, %v11383
    %v11393 = vmul.f32 %v11318, %v11383
    %v11394 = vmul.f32 %v11319, %v11383
    %v11395 = vmul.f32 %v11320, %v11383
    %v11396 = vmul.f32 %v11321, %v11383
    %v11397 = vmul.f32 %v11322, %v11383
    %v11398 = vmul.f32 %v11323, %v11383
    %v11399 = vmul.f32 %v11324, %v11383
    %v11400 = vmul.f32 %v11325, %v11383
    %v11401 = vmul.f32 %v11326, %v11383
    %v11402 = vmul.f32 %v11327, %v11383
    %v11403 = vmul.f32 %v11328, %v11383
    %v11404 = vmul.f32 %v11329, %v11383
    %v11405 = vmul.f32 %v11330, %v11383
    %v11406 = vmul.f32 %v11331, %v11383
    %v11407 = vmul.f32 %v11332, %v11383
    %v11408 = vmul.f32 %v11333, %v11383
    %v11409 = vmul.f32 %v11334, %v11383
    %v11410 = vmul.f32 %v11335, %v11383
    %v11411 = vmul.f32 %v11336, %v11383
    %v11412 = vmul.f32 %v11337, %v11383
    %v11413 = vmul.f32 %v11338, %v11383
    %v11414 = vmul.f32 %v11339, %v11383
    %v11415 = vmul.f32 %v11340, %v11383
    %v11416 = vmul.f32 %v11341, %v11383
    %v11417 = vmul.f32 %v11342, %v11383
    %v11418 = vmul.f32 %v11343, %v11383
    %v11419 = vmul.f32 %v11344, %v11383
    %v11420 = vmul.f32 %v11345, %v11383
    %v11421 = vmul.f32 %v11346, %v11383
    %v11422 = vmul.f32 %v11347, %v11383
    %v11423 = vmul.f32 %v11348, %v11383
    %v11424 = vmul.f32 %v11349, %v11383
    %v11425 = vmul.f32 %v11350, %v11383
    %v11426 = vmul.f32 %v11351, %v11383
    %v11427 = vmul.f32 %v11352, %v11383
    %v11428 = vmul.f32 %v11353, %v11383
    %v11429 = vmul.f32 %v11354, %v11383
    %v11430 = vmul.f32 %v11355, %v11383
    %v11431 = vmul.f32 %v11356, %v11383
    %v11432 = vmul.f32 %v11357, %v11383
    %v11433 = vmul.f32 %v11358, %v11383
    %v11434 = vmul.f32 %v11359, %v11383
    %v11435 = vmul.f32 %v11360, %v11383
    %v11436 = vmul.f32 %v11361, %v11383
    %v11437 = vmul.f32 %v11362, %v11383
    %v11438 = vmul.f32 %v11363, %v11383
    %v11439 = vmul.f32 %v11364, %v11383
    %v11440 = vmul.f32 %v11365, %v11383
    %v11441 = vmul.f32 %v11366, %v11383
    %v11442 = vmul.f32 %v11367, %v11383
    %v11443 = vmul.f32 %v11368, %v11383
    %v11444 = vmul.f32 %v11369, %v11383
    %v11445 = vmul.f32 %v11370, %v11383
    %v11446 = vmul.f32 %v11371, %v11383
    %v11447 = vmul.f32 %v11372, %v11383
    %v11448 = vld [vmem:[%s11] sm:$0x1]
    %v11450 = vperm.slane %v11448, 0
    %v11452 = vmul.f32 %v11384, %v11450
    %v11453 = vmul.f32 %v11385, %v11450
    %v11454 = vmul.f32 %v11386, %v11450
    %v11455 = vmul.f32 %v11387, %v11450
    %v11456 = vmul.f32 %v11388, %v11450
    %v11457 = vmul.f32 %v11389, %v11450
    %v11458 = vmul.f32 %v11390, %v11450
    %v11459 = vmul.f32 %v11391, %v11450
    %v11460 = vmul.f32 %v11392, %v11450
    %v11461 = vmul.f32 %v11393, %v11450
    %v11462 = vmul.f32 %v11394, %v11450
    %v11463 = vmul.f32 %v11395, %v11450
    %v11464 = vmul.f32 %v11396, %v11450
    %v11465 = vmul.f32 %v11397, %v11450
    %v11466 = vmul.f32 %v11398, %v11450
    %v11467 = vmul.f32 %v11399, %v11450
    %v11468 = vmul.f32 %v11400, %v11450
    %v11469 = vmul.f32 %v11401, %v11450
    %v11470 = vmul.f32 %v11402, %v11450
    %v11471 = vmul.f32 %v11403, %v11450
    %v11472 = vmul.f32 %v11404, %v11450
    %v11473 = vmul.f32 %v11405, %v11450
    %v11474 = vmul.f32 %v11406, %v11450
    %v11475 = vmul.f32 %v11407, %v11450
    %v11476 = vmul.f32 %v11408, %v11450
    %v11477 = vmul.f32 %v11409, %v11450
    %v11478 = vmul.f32 %v11410, %v11450
    %v11479 = vmul.f32 %v11411, %v11450
    %v11480 = vmul.f32 %v11412, %v11450
    %v11481 = vmul.f32 %v11413, %v11450
    %v11482 = vmul.f32 %v11414, %v11450
    %v11483 = vmul.f32 %v11415, %v11450
    %v11484 = vmul.f32 %v11416, %v11450
    %v11485 = vmul.f32 %v11417, %v11450
    %v11486 = vmul.f32 %v11418, %v11450
    %v11487 = vmul.f32 %v11419, %v11450
    %v11488 = vmul.f32 %v11420, %v11450
    %v11489 = vmul.f32 %v11421, %v11450
    %v11490 = vmul.f32 %v11422, %v11450
    %v11491 = vmul.f32 %v11423, %v11450
    %v11492 = vmul.f32 %v11424, %v11450
    %v11493 = vmul.f32 %v11425, %v11450
    %v11494 = vmul.f32 %v11426, %v11450
    %v11495 = vmul.f32 %v11427, %v11450
    %v11496 = vmul.f32 %v11428, %v11450
    %v11497 = vmul.f32 %v11429, %v11450
    %v11498 = vmul.f32 %v11430, %v11450
    %v11499 = vmul.f32 %v11431, %v11450
    %v11500 = vmul.f32 %v11432, %v11450
    %v11501 = vmul.f32 %v11433, %v11450
    %v11502 = vmul.f32 %v11434, %v11450
    %v11503 = vmul.f32 %v11435, %v11450
    %v11504 = vmul.f32 %v11436, %v11450
    %v11505 = vmul.f32 %v11437, %v11450
    %v11506 = vmul.f32 %v11438, %v11450
    %v11507 = vmul.f32 %v11439, %v11450
    %v11508 = vmul.f32 %v11440, %v11450
    %v11509 = vmul.f32 %v11441, %v11450
    %v11510 = vmul.f32 %v11442, %v11450
    %v11511 = vmul.f32 %v11443, %v11450
    %v11512 = vmul.f32 %v11444, %v11450
    %v11513 = vmul.f32 %v11445, %v11450
    %v11514 = vmul.f32 %v11446, %v11450
    %v11515 = vmul.f32 %v11447, %v11450
    %v11516 = vld [vmem:[%s12] sm:$0x1]
    %v11518 = vperm.slane %v11516, 0
    %v11520 = vadd.f32 %v11452, %v11518
    %v11521 = vadd.f32 %v11453, %v11518
    %v11522 = vadd.f32 %v11454, %v11518
    %v11523 = vadd.f32 %v11455, %v11518
    %v11524 = vadd.f32 %v11456, %v11518
    %v11525 = vadd.f32 %v11457, %v11518
    %v11526 = vadd.f32 %v11458, %v11518
    %v11527 = vadd.f32 %v11459, %v11518
    %v11528 = vadd.f32 %v11460, %v11518
    %v11529 = vadd.f32 %v11461, %v11518
    %v11530 = vadd.f32 %v11462, %v11518
    %v11531 = vadd.f32 %v11463, %v11518
    %v11532 = vadd.f32 %v11464, %v11518
    %v11533 = vadd.f32 %v11465, %v11518
    %v11534 = vadd.f32 %v11466, %v11518
    %v11535 = vadd.f32 %v11467, %v11518
    %v11536 = vadd.f32 %v11468, %v11518
    %v11537 = vadd.f32 %v11469, %v11518
    %v11538 = vadd.f32 %v11470, %v11518
    %v11539 = vadd.f32 %v11471, %v11518
    %v11540 = vadd.f32 %v11472, %v11518
    %v11541 = vadd.f32 %v11473, %v11518
    %v11542 = vadd.f32 %v11474, %v11518
    %v11543 = vadd.f32 %v11475, %v11518
    %v11544 = vadd.f32 %v11476, %v11518
    %v11545 = vadd.f32 %v11477, %v11518
    %v11546 = vadd.f32 %v11478, %v11518
    %v11547 = vadd.f32 %v11479, %v11518
    %v11548 = vadd.f32 %v11480, %v11518
    %v11549 = vadd.f32 %v11481, %v11518
    %v11550 = vadd.f32 %v11482, %v11518
    %v11551 = vadd.f32 %v11483, %v11518
    %v11552 = vadd.f32 %v11484, %v11518
    %v11553 = vadd.f32 %v11485, %v11518
    %v11554 = vadd.f32 %v11486, %v11518
    %v11555 = vadd.f32 %v11487, %v11518
    %v11556 = vadd.f32 %v11488, %v11518
    %v11557 = vadd.f32 %v11489, %v11518
    %v11558 = vadd.f32 %v11490, %v11518
    %v11559 = vadd.f32 %v11491, %v11518
    %v11560 = vadd.f32 %v11492, %v11518
    %v11561 = vadd.f32 %v11493, %v11518
    %v11562 = vadd.f32 %v11494, %v11518
    %v11563 = vadd.f32 %v11495, %v11518
    %v11564 = vadd.f32 %v11496, %v11518
    %v11565 = vadd.f32 %v11497, %v11518
    %v11566 = vadd.f32 %v11498, %v11518
    %v11567 = vadd.f32 %v11499, %v11518
    %v11568 = vadd.f32 %v11500, %v11518
    %v11569 = vadd.f32 %v11501, %v11518
    %v11570 = vadd.f32 %v11502, %v11518
    %v11571 = vadd.f32 %v11503, %v11518
    %v11572 = vadd.f32 %v11504, %v11518
    %v11573 = vadd.f32 %v11505, %v11518
    %v11574 = vadd.f32 %v11506, %v11518
    %v11575 = vadd.f32 %v11507, %v11518
    %v11576 = vadd.f32 %v11508, %v11518
    %v11577 = vadd.f32 %v11509, %v11518
    %v11578 = vadd.f32 %v11510, %v11518
    %v11579 = vadd.f32 %v11511, %v11518
    %v11580 = vadd.f32 %v11512, %v11518
    %v11581 = vadd.f32 %v11513, %v11518
    %v11582 = vadd.f32 %v11514, %v11518
    %v11583 = vadd.f32 %v11515, %v11518
    %v11584 = vmax.f32 %v11520, 0.0
    %v11585 = vmax.f32 %v11521, 0.0
    %v11586 = vmax.f32 %v11522, 0.0
    %v11587 = vmax.f32 %v11523, 0.0
    %v11588 = vmax.f32 %v11524, 0.0
    %v11589 = vmax.f32 %v11525, 0.0
    %v11590 = vmax.f32 %v11526, 0.0
    %v11591 = vmax.f32 %v11527, 0.0
    %v11592 = vmax.f32 %v11528, 0.0
    %v11593 = vmax.f32 %v11529, 0.0
    %v11594 = vmax.f32 %v11530, 0.0
    %v11595 = vmax.f32 %v11531, 0.0
    %v11596 = vmax.f32 %v11532, 0.0
    %v11597 = vmax.f32 %v11533, 0.0
    %v11598 = vmax.f32 %v11534, 0.0
    %v11599 = vmax.f32 %v11535, 0.0
    %v11600 = vmax.f32 %v11536, 0.0
    %v11601 = vmax.f32 %v11537, 0.0
    %v11602 = vmax.f32 %v11538, 0.0
    %v11603 = vmax.f32 %v11539, 0.0
    %v11604 = vmax.f32 %v11540, 0.0
    %v11605 = vmax.f32 %v11541, 0.0
    %v11606 = vmax.f32 %v11542, 0.0
    %v11607 = vmax.f32 %v11543, 0.0
    %v11608 = vmax.f32 %v11544, 0.0
    %v11609 = vmax.f32 %v11545, 0.0
    %v11610 = vmax.f32 %v11546, 0.0
    %v11611 = vmax.f32 %v11547, 0.0
    %v11612 = vmax.f32 %v11548, 0.0
    %v11613 = vmax.f32 %v11549, 0.0
    %v11614 = vmax.f32 %v11550, 0.0
    %v11615 = vmax.f32 %v11551, 0.0
    %v11616 = vmax.f32 %v11552, 0.0
    %v11617 = vmax.f32 %v11553, 0.0
    %v11618 = vmax.f32 %v11554, 0.0
    %v11619 = vmax.f32 %v11555, 0.0
    %v11620 = vmax.f32 %v11556, 0.0
    %v11621 = vmax.f32 %v11557, 0.0
    %v11622 = vmax.f32 %v11558, 0.0
    %v11623 = vmax.f32 %v11559, 0.0
    %v11624 = vmax.f32 %v11560, 0.0
    %v11625 = vmax.f32 %v11561, 0.0
    %v11626 = vmax.f32 %v11562, 0.0
    %v11627 = vmax.f32 %v11563, 0.0
    %v11628 = vmax.f32 %v11564, 0.0
    %v11629 = vmax.f32 %v11565, 0.0
    %v11630 = vmax.f32 %v11566, 0.0
    %v11631 = vmax.f32 %v11567, 0.0
    %v11632 = vmax.f32 %v11568, 0.0
    %v11633 = vmax.f32 %v11569, 0.0
    %v11634 = vmax.f32 %v11570, 0.0
    %v11635 = vmax.f32 %v11571, 0.0
    %v11636 = vmax.f32 %v11572, 0.0
    %v11637 = vmax.f32 %v11573, 0.0
    %v11638 = vmax.f32 %v11574, 0.0
    %v11639 = vmax.f32 %v11575, 0.0
    %v11640 = vmax.f32 %v11576, 0.0
    %v11641 = vmax.f32 %v11577, 0.0
    %v11642 = vmax.f32 %v11578, 0.0
    %v11643 = vmax.f32 %v11579, 0.0
    %v11644 = vmax.f32 %v11580, 0.0
    %v11645 = vmax.f32 %v11581, 0.0
    %v11646 = vmax.f32 %v11582, 0.0
    %v11647 = vmax.f32 %v11583, 0.0
    %11648 = vst.msk [vmem:[#allocation4] sm:$0xff] %vm1659, %v11584
    %11649 = vst.msk [vmem:[#allocation4 + $0x8] sm:$0xff] %vm1659, %v11585
    %11650 = vst.msk [vmem:[#allocation4 + $0x10] sm:$0xff] %vm1659, %v11586
    %11651 = vst.msk [vmem:[#allocation4 + $0x18] sm:$0xff] %vm1659, %v11587
    %11652 = vst.msk [vmem:[#allocation4 + $0x20] sm:$0xff] %vm1659, %v11588
    %11653 = vst.msk [vmem:[#allocation4 + $0x28] sm:$0xff] %vm1659, %v11589
    %11654 = vst.msk [vmem:[#allocation4 + $0x30] sm:$0xff] %vm1659, %v11590
    %11655 = vst.msk [vmem:[#allocation4 + $0x38] sm:$0xff] %vm1659, %v11591
    %11656 = vst.msk [vmem:[#allocation4 + $0x40] sm:$0xff] %vm1659, %v11592
    %11657 = vst.msk [vmem:[#allocation4 + $0x48] sm:$0xff] %vm1659, %v11593
    %11658 = vst.msk [vmem:[#allocation4 + $0x50] sm:$0xff] %vm1659, %v11594
    %11659 = vst.msk [vmem:[#allocation4 + $0x58] sm:$0xff] %vm1659, %v11595
    %11660 = vst.msk [vmem:[#allocation4 + $0x60] sm:$0xff] %vm1659, %v11596
    %11661 = vst.msk [vmem:[#allocation4 + $0x68] sm:$0xff] %vm1659, %v11597
    %11662 = vst.msk [vmem:[#allocation4 + $0x70] sm:$0xff] %vm1659, %v11598
    %11663 = vst.msk [vmem:[#allocation4 + $0x78] sm:$0xff] %vm1659, %v11599
    %11664 = vst.msk [vmem:[#allocation4 + $0x80] sm:$0xff] %vm1659, %v11600
    %11665 = vst.msk [vmem:[#allocation4 + $0x88] sm:$0xff] %vm1659, %v11601
    %11666 = vst.msk [vmem:[#allocation4 + $0x90] sm:$0xff] %vm1659, %v11602
    %11667 = vst.msk [vmem:[#allocation4 + $0x98] sm:$0xff] %vm1659, %v11603
    %11668 = vst.msk [vmem:[#allocation4 + $0xa0] sm:$0xff] %vm1659, %v11604
    %11669 = vst.msk [vmem:[#allocation4 + $0xa8] sm:$0xff] %vm1659, %v11605
    %11670 = vst.msk [vmem:[#allocation4 + $0xb0] sm:$0xff] %vm1659, %v11606
    %11671 = vst.msk [vmem:[#allocation4 + $0xb8] sm:$0xff] %vm1659, %v11607
    %11672 = vst.msk [vmem:[#allocation4 + $0xc0] sm:$0xff] %vm1659, %v11608
    %11673 = vst.msk [vmem:[#allocation4 + $0xc8] sm:$0xff] %vm1659, %v11609
    %11674 = vst.msk [vmem:[#allocation4 + $0xd0] sm:$0xff] %vm1659, %v11610
    %11675 = vst.msk [vmem:[#allocation4 + $0xd8] sm:$0xff] %vm1659, %v11611
    %11676 = vst.msk [vmem:[#allocation4 + $0xe0] sm:$0xff] %vm1659, %v11612
    %11677 = vst.msk [vmem:[#allocation4 + $0xe8] sm:$0xff] %vm1659, %v11613
    %11678 = vst.msk [vmem:[#allocation4 + $0xf0] sm:$0xff] %vm1659, %v11614
    %11679 = vst.msk [vmem:[#allocation4 + $0xf8] sm:$0xff] %vm1659, %v11615
    %11680 = vst.msk [vmem:[#allocation4 + $0x100] sm:$0xff] %vm1659, %v11616
    %11681 = vst.msk [vmem:[#allocation4 + $0x108] sm:$0xff] %vm1659, %v11617
    %11682 = vst.msk [vmem:[#allocation4 + $0x110] sm:$0xff] %vm1659, %v11618
    %11683 = vst.msk [vmem:[#allocation4 + $0x118] sm:$0xff] %vm1659, %v11619
    %11684 = vst.msk [vmem:[#allocation4 + $0x120] sm:$0xff] %vm1659, %v11620
    %11685 = vst.msk [vmem:[#allocation4 + $0x128] sm:$0xff] %vm1659, %v11621
    %11686 = vst.msk [vmem:[#allocation4 + $0x130] sm:$0xff] %vm1659, %v11622
    %11687 = vst.msk [vmem:[#allocation4 + $0x138] sm:$0xff] %vm1659, %v11623
    %11688 = vst.msk [vmem:[#allocation4 + $0x140] sm:$0xff] %vm1659, %v11624
    %11689 = vst.msk [vmem:[#allocation4 + $0x148] sm:$0xff] %vm1659, %v11625
    %11690 = vst.msk [vmem:[#allocation4 + $0x150] sm:$0xff] %vm1659, %v11626
    %11691 = vst.msk [vmem:[#allocation4 + $0x158] sm:$0xff] %vm1659, %v11627
    %11692 = vst.msk [vmem:[#allocation4 + $0x160] sm:$0xff] %vm1659, %v11628
    %11693 = vst.msk [vmem:[#allocation4 + $0x168] sm:$0xff] %vm1659, %v11629
    %11694 = vst.msk [vmem:[#allocation4 + $0x170] sm:$0xff] %vm1659, %v11630
    %11695 = vst.msk [vmem:[#allocation4 + $0x178] sm:$0xff] %vm1659, %v11631
    %11696 = vst.msk [vmem:[#allocation4 + $0x180] sm:$0xff] %vm1659, %v11632
    %11697 = vst.msk [vmem:[#allocation4 + $0x188] sm:$0xff] %vm1659, %v11633
    %11698 = vst.msk [vmem:[#allocation4 + $0x190] sm:$0xff] %vm1659, %v11634
    %11699 = vst.msk [vmem:[#allocation4 + $0x198] sm:$0xff] %vm1659, %v11635
    %11700 = vst.msk [vmem:[#allocation4 + $0x1a0] sm:$0xff] %vm1659, %v11636
    %11701 = vst.msk [vmem:[#allocation4 + $0x1a8] sm:$0xff] %vm1659, %v11637
    %11702 = vst.msk [vmem:[#allocation4 + $0x1b0] sm:$0xff] %vm1659, %v11638
    %11703 = vst.msk [vmem:[#allocation4 + $0x1b8] sm:$0xff] %vm1659, %v11639
    %11704 = vst.msk [vmem:[#allocation4 + $0x1c0] sm:$0xff] %vm1659, %v11640
    %11705 = vst.msk [vmem:[#allocation4 + $0x1c8] sm:$0xff] %vm1659, %v11641
    %11706 = vst.msk [vmem:[#allocation4 + $0x1d0] sm:$0xff] %vm1659, %v11642
    %11707 = vst.msk [vmem:[#allocation4 + $0x1d8] sm:$0xff] %vm1659, %v11643
    %11708 = vst.msk [vmem:[#allocation4 + $0x1e0] sm:$0xff] %vm1659, %v11644
    %11709 = vst.msk [vmem:[#allocation4 + $0x1e8] sm:$0xff] %vm1659, %v11645
    %11710 = vst.msk [vmem:[#allocation4 + $0x1f0] sm:$0xff] %vm1659, %v11646
    %11711 = vst.msk [vmem:[#allocation4 + $0x1f8] sm:$0xff] %vm1659, %v11647
    // Predicated region
    $region54: #{inception_f7_forward.1} parent=1 // pred_check
      _
    $region55: #{inception_f7_forward.1} parent=1 // pred_check_branch
      %11713 = sbr.rel (0) target = $region57
    $region56: #{inception_f7_forward.1} parent=1 // pred_region
      %11715 = vsyncadd [#allocation5], 0
      %s11716 = sshll.u32 [#allocation4], 4
      %s11717 = int_to_ptr.vmem [resolvable:$true] %s11716
      %s11718 = sshll.u32 %s13, 4
      %s11719 = int_to_ptr.hbm [resolvable:$true] %s11718
      %11724 = dma.vmem_to_hbm [thread:$0]  %s11717, 8192, %s11719, [#allocation5], 128, 128, 8
    $region57: #{inception_f7_forward.1} parent=1 // pred_fallthru
      _
    // Predicated region
    $region58: #{inception_f7_forward.1} parent=1 // pred_check
      _
    $region59: #{inception_f7_forward.1} parent=1 // pred_check_branch
      %11726 = sbr.rel (0) target = $region61
    $region60: #{inception_f7_forward.1} parent=1 // pred_region
      %11728 = dma.done [#allocation5], 8192
    $region61: #{inception_f7_forward.1} parent=1 // pred_fallthru
      _
    %11729 = vsyncpa [#allocation5], 1

</llo_original>
